<compile_context>
chip_gen: v5e
topology: v5e:2x2
jax: 0.10.0
libtpu: 0.0.40
codegen_flags: <defaults>
</compile_context>

<pallas_src>
import numpy as np

import jax
import jax.numpy as jnp
from jax.experimental import pallas as pl
from jax.experimental.pallas import tpu as pltpu

# Module-consistent sizes: Decoder(caps_dimension=32, num_caps=1, img_size=16)
IMG_SIZE = 16
CAPS_DIM = 32
NUM_CAPS = 1
BATCH = 2
BN_EPS = 1e-5


# ----------------------------------------------------------------------------
# Fused kernel: the entire Decoder.forward in one program.
# ----------------------------------------------------------------------------
def _decoder_kernel(x_ref, wfcT_ref, vecs_ref, pb_ref, csel_ref, pr1_ref,
                    w1_ref, w2_ref, w3_ref, sel1_ref, sel2_ref, sel3_ref,
                    rsum4_ref, q4_ref, p4_ref,
                    out_ref,
                    buf1, buf2, buf3, buf4, acc3_ref, acc4_ref):
    f32 = jnp.float32
    B = BATCH

    # Hoisted converts of the reused bf16 0/1 constants (exact in bf16).
    cself = csel_ref[...].astype(f32)        # (256, 16): [u//16 == c]
    pmask = pb_ref[0:16, :].astype(f32)      # (16, 256): [u%16  == p]
    bcast = pb_ref[16:32, :].astype(f32)     # (16, 256): [u//16 == c]
    q4m = q4_ref[...].astype(f32)            # (286, 16)
    p4m = p4_ref[...].astype(f32)            # (16, 286)

    # ---- fc (Linear + ReLU), lane-dense (B, 256) layout ---------------------
    h = jnp.dot(x_ref[...], wfcT_ref[...], preferred_element_type=f32)
    h = jnp.maximum(h + vecs_ref[0:1, :], 0.0)                     # (B, 256)

    # ---- BatchNorm2d(16), training-mode batch statistics --------------------
    inv_n = 1.0 / (B * 16)
    colsum = jnp.sum(h, axis=0, keepdims=True)                     # (1, 256)
    colsq = jnp.sum(h * h, axis=0, keepdims=True)                  # (1, 256)
    m16 = jnp.dot(colsum, cself, preferred_element_type=f32) * inv_n   # (1,16)
    q16 = jnp.dot(colsq, cself, preferred_element_type=f32) * inv_n
    var16 = jnp.maximum(q16 - m16 * m16, 0.0)                      # clamp >= 0
    scale16 = vecs_ref[1:2, 0:16] * jax.lax.rsqrt(var16 + BN_EPS)  # gamma/std
    shift16 = vecs_ref[2:3, 0:16] - m16 * scale16                  # beta-..
    scale = jnp.dot(scale16, bcast, preferred_element_type=f32)    # (1, 256)
    shift = jnp.dot(shift16, bcast, preferred_element_type=f32)
    hn = h * scale + shift                                         # (B, 256)

    # ---- scatter fc/BN output into ct1's padded input buffer (36, B*16) -----
    # y_b[p, c] = hn[b, c*16 + p]  (torch reshape(-1,16,4,4)), built per batch
    # with a position mask + one tiny dot; then one dot plants it in buf1.
    ys = []
    for b in range(B):
        z = hn[b:b + 1, :] * pmask                                 # (16, 256)
        ys.append(jnp.dot(z, cself, preferred_element_type=f32))   # (16, 16)
    ycat = jnp.concatenate(ys, axis=1)                             # (16, B*16)
    buf1[...] = jnp.dot(pr1_ref[...].astype(f32), ycat,
                        preferred_element_type=f32)                # (36, B*16)

    # ---- 3x3 VALID conv over a flat padded buffer: 9 unrolled MXU taps ------
    def conv_taps(buf_ref, w_ref, wp, m_run):
        acc = None
        for k in range(9):
            s = (k // 3) * wp + (k % 3)
            d = jnp.dot(buf_ref[s:s + m_run, :], w_ref[k],
                        preferred_element_type=f32)
            acc = d if acc is None else acc + d
        return acc

    # ct1 (16->64, s1 p1), then scatter into ct2's dilated+padded buffer
    acc1 = conv_taps(buf1, w1_ref, 6, 22) + vecs_ref[3:4, 0:B * 64]
    buf2[...] = jnp.dot(sel1_ref[...].astype(f32), acc1,
                        preferred_element_type=f32)                # (81, B*64)
    # ct2 (64->32, s2 p1), F.pad(1,0,1,0), scatter into ct3's buffer
    acc2 = conv_taps(buf2, w2_ref, 9, 61) + vecs_ref[4:5, 0:B * 32]
    buf3[...] = jnp.dot(sel2_ref[...].astype(f32), acc2,
                        preferred_element_type=f32)                # (289, B*32)
    # ct3 (32->16, s2 p1): taps accumulate into a VMEM scratch (vreg pressure)
    for k in range(9):
        s = (k // 3) * 17 + (k % 3)
        d = jnp.dot(buf3[s:s + 253, :], w3_ref[k], preferred_element_type=f32)
        if k == 0:
            acc3_ref[...] = d
        else:
            acc3_ref[...] = acc3_ref[...] + d
    acc3 = acc3_ref[...] + vecs_ref[5:6, 0:B * 16]                 # (253, B*16)
    # F.pad(1,0,1,0) + conv padding scatter into ct4's buffer
    buf4[...] = jnp.dot(sel3_ref[...].astype(f32), acc3,
                        preferred_element_type=f32)                # (324, B*16)

    # ---- ct4 (16->1, s1 p1): per-channel taps on the VPU, one reduce dot ----
    for k in range(9):
        s = (k // 3) * 18 + (k % 3)
        t = buf4[s:s + 286, :] * vecs_ref[7 + k:8 + k, 0:B * 16]
        if k == 0:
            acc4_ref[...] = t
        else:
            acc4_ref[...] = acc4_ref[...] + t
    red = jnp.dot(acc4_ref[...], rsum4_ref[...].astype(f32),
                  preferred_element_type=f32)                      # (286, B)

    # ---- final lane-dense (16, B*16) image assembly + bias + ReLU -----------
    imgs = []
    for b in range(B):
        imgs.append(jnp.dot(p4m, red[:, b:b + 1] * q4m,
                            preferred_element_type=f32))           # (16, 16)
    out_ref[...] = jnp.maximum(jnp.concatenate(imgs, axis=1)
                               + vecs_ref[6:7, 0:1], 0.0)          # (16, B*16)


# ----------------------------------------------------------------------------
# Host-side (hoisted) preparation of all constant kernel operands.
# ----------------------------------------------------------------------------
def prepare_kernel_inputs(params):
    B = BATCH
    bf16 = jnp.bfloat16

    fc_w = np.asarray(params["fc_w"], np.float32)                 # (256, 32)
    wfcT = np.ascontiguousarray(fc_w.T)                           # (32, 256)

    # Packed f32 row vectors: fc bias, gamma, beta, conv biases, ct4 tap rows.
    vecs = np.zeros((16, 256), np.float32)
    vecs[0, :] = np.asarray(params["fc_b"], np.float32)
    vecs[1, 0:16] = np.asarray(params["bn_gamma"], np.float32)
    vecs[2, 0:16] = np.asarray(params["bn_beta"], np.float32)
    vecs[3, 0:B * 64] = np.tile(np.asarray(params["ct1_b"], np.float32), B)
    vecs[4, 0:B * 32] = np.tile(np.asarray(params["ct2_b"], np.float32), B)
    vecs[5, 0:B * 16] = np.tile(np.asarray(params["ct3_b"], np.float32), B)
    vecs[6, 0] = np.asarray(params["ct4_b"], np.float32)[0]
    wf4 = np.asarray(params["ct4_w"], np.float32)[:, :, ::-1, ::-1]  # flipped
    for k in range(9):
        ki, kj = k // 3, k % 3
        vecs[7 + k, 0:B * 16] = np.tile(wf4[:, 0, ki, kj], B)

    # Position mask (rows 0..15) and channel broadcast (rows 16..31).
    pb = np.zeros((32, 256), np.float32)
    csel = np.zeros((256, 16), np.float32)
    for u in range(256):
        pb[u % 16, u] = 1.0
        pb[16 + u // 16, u] = 1.0
        csel[u, u // 16] = 1.0

    # fc spatial position -> ct1 padded buffer row ((i+1)*6 + (j+1)).
    pr1 = np.zeros((36, 16), np.float32)
    for i in range(4):
        for j in range(4):
            pr1[(i + 1) * 6 + (j + 1), i * 4 + j] = 1.0

    # ConvTranspose2d weights: flip spatially, per-tap, block-diag over batch.
    def blockdiag_taps(w_pt):
        w = np.asarray(w_pt, np.float32)
        cin, cout = w.shape[0], w.shape[1]
        wf = w[:, :, ::-1, ::-1]
        out = np.zeros((9, B * cin, B * cout), np.float32)
        for ki in range(3):
            for kj in range(3):
                blk = wf[:, :, ki, kj]
                for b in range(B):
                    out[ki * 3 + kj,
                        b * cin:(b + 1) * cin,
                        b * cout:(b + 1) * cout] = blk
        return out

    w1 = blockdiag_taps(params["ct1_w"])     # (9,  32, 128)
    w2 = blockdiag_taps(params["ct2_w"])     # (9, 128,  64)
    w3 = blockdiag_taps(params["ct3_w"])     # (9,  64,  32)

    # Selection matrices: conv-l output -> conv-(l+1) dilated+padded buffer.
    # target r = (stride*(oh+extra) + 1) * wp_dst + stride*(ow+extra) + 1
    # (extra=1 encodes the torch F.pad(1,0,1,0); conv-pad is always k-1-p = 1)
    def sel_matrix(ho, wo, wp_src, hp_dst, wp_dst, stride, extra):
        S = np.zeros((hp_dst * wp_dst, (ho - 1) * wp_src + wo), np.float32)
        for oh in range(ho):
            for ow in range(wo):
                r = (stride * (oh + extra) + 1) * wp_dst + stride * (ow + extra) + 1
                S[r, oh * wp_src + ow] = 1.0
        return S

    sel1 = sel_matrix(4, 4, 6, 9, 9, 2, 0)        # ct1 out -> ct2 buffer
    sel2 = sel_matrix(7, 7, 9, 17, 17, 2, 1)      # ct2 out -> ct3 buffer
    sel3 = sel_matrix(15, 15, 17, 18, 18, 1, 1)   # ct3 out -> ct4 buffer

    # ct4: per-batch 16-channel reduce matrix (32 -> B lanes).
    rsum4 = np.zeros((B * 16, B), np.float32)
    for b in range(B):
        rsum4[b * 16:(b + 1) * 16, b] = 1.0

    # Final reorientation: flat ct4 output column -> (16, 16) image rows.
    q4 = np.zeros((286, 16), np.float32)
    p4 = np.zeros((16, 286), np.float32)
    for m in range(286):
        oh, ow = m // 18, m % 18
        if ow < 16:
            q4[m, ow] = 1.0
        p4[oh, m] = 1.0

    return dict(
        wfcT=jnp.asarray(wfcT), vecs=jnp.asarray(vecs),
        pb=jnp.asarray(pb, bf16), csel=jnp.asarray(csel, bf16),
        pr1=jnp.asarray(pr1, bf16),
        w1=jnp.asarray(w1), w2=jnp.asarray(w2), w3=jnp.asarray(w3),
        sel1=jnp.asarray(sel1, bf16), sel2=jnp.asarray(sel2, bf16),
        sel3=jnp.asarray(sel3, bf16),
        rsum4=jnp.asarray(rsum4, bf16),
        q4=jnp.asarray(q4, bf16), p4=jnp.asarray(p4, bf16))


# ----------------------------------------------------------------------------
# Forward pass (single pallas_call, everything in VMEM)
# ----------------------------------------------------------------------------
def decoder_forward(x, kp):
    x32 = x.astype(jnp.float32)                                    # (B, 32)
    out2d = pl.pallas_call(
        _decoder_kernel,
        out_shape=jax.ShapeDtypeStruct((IMG_SIZE, BATCH * IMG_SIZE), jnp.float32),
        scratch_shapes=[
            pltpu.VMEM((36, BATCH * 16), jnp.float32),    # ct1 padded input
            pltpu.VMEM((81, BATCH * 64), jnp.float32),    # ct2 dilated+padded
            pltpu.VMEM((289, BATCH * 32), jnp.float32),   # ct3 dilated+padded
            pltpu.VMEM((324, BATCH * 16), jnp.float32),   # ct4 padded input
            pltpu.VMEM((253, BATCH * 16), jnp.float32),   # ct3 tap accumulator
            pltpu.VMEM((286, BATCH * 16), jnp.float32),   # ct4 tap accumulator
        ],
    )(x32, kp["wfcT"], kp["vecs"], kp["pb"], kp["csel"], kp["pr1"],
      kp["w1"], kp["w2"], kp["w3"], kp["sel1"], kp["sel2"], kp["sel3"],
      kp["rsum4"], kp["q4"], kp["p4"])
    # out2d[oh, b*16 + ow] -> (B, 1, 16, 16)
    out = out2d.reshape(IMG_SIZE, BATCH, IMG_SIZE).transpose(1, 0, 2)
    return out.reshape(BATCH, 1, IMG_SIZE, IMG_SIZE)


# ----------------------------------------------------------------------------
# Pure-JAX reference (straightforward math, no Pallas) for the correctness check
# ----------------------------------------------------------------------------
def _conv_transpose_ref(x, w, b, stride, padding):
    # x: (B, Cin, H, W) NCHW; w: (Cin, Cout, 3, 3) (PyTorch layout)
    B, C, H, W = x.shape
    Hd, Wd = (H - 1) * stride + 1, (W - 1) * stride + 1
    xd = jnp.zeros((B, C, Hd, Wd), x.dtype).at[:, :, ::stride, ::stride].set(x)
    pad = 2 - padding
    xp = jnp.pad(xd, ((0, 0), (0, 0), (pad, pad), (pad, pad)))
    wf = jnp.flip(w, (2, 3))
    Ho, Wo = Hd + 2 * pad - 2, Wd + 2 * pad - 2
    out = None
    for ki in range(3):
        for kj in range(3):
            t = jnp.einsum("bchw,co->bohw", xp[:, :, ki:ki + Ho, kj:kj + Wo],
                           wf[:, :, ki, kj], precision=jax.lax.Precision.HIGHEST)
            out = t if out is None else out + t
    return out + b.reshape(1, -1, 1, 1)


def decoder_reference(x, params):
    B = x.shape[0]
    n = IMG_SIZE // 4
    x = x.astype(jnp.float32)
    h = jnp.maximum(x @ params["fc_w"].T + params["fc_b"], 0.0)
    h = h.reshape(B, 16, n, n)
    mean = h.mean(axis=(0, 2, 3), keepdims=True)
    var = jnp.mean((h - mean) ** 2, axis=(0, 2, 3), keepdims=True)
    h = (params["bn_gamma"].reshape(1, 16, 1, 1) * (h - mean)
         / jnp.sqrt(var + BN_EPS) + params["bn_beta"].reshape(1, 16, 1, 1))
    h = _conv_transpose_ref(h, params["ct1_w"], params["ct1_b"], 1, 1)
    h = _conv_transpose_ref(h, params["ct2_w"], params["ct2_b"], 2, 1)
    h = jnp.pad(h, ((0, 0), (0, 0), (1, 0), (1, 0)))
    h = _conv_transpose_ref(h, params["ct3_w"], params["ct3_b"], 2, 1)
    h = jnp.pad(h, ((0, 0), (0, 0), (1, 0), (1, 0)))
    h = _conv_transpose_ref(h, params["ct4_w"], params["ct4_b"], 1, 1)
    h = jnp.maximum(h, 0.0)
    return h.reshape(B, 1, IMG_SIZE, IMG_SIZE)


def init_params(key):
    neurons = IMG_SIZE // 4
    d_in = CAPS_DIM * NUM_CAPS
    d_out = neurons * neurons * 16
    ks = jax.random.split(key, 12)

    def w(k, shape, scale):
        return jax.random.normal(k, shape, jnp.float32) * scale

    return dict(
        fc_w=w(ks[0], (d_out, d_in), 0.1),       # PyTorch Linear weight (out, in)
        fc_b=w(ks[1], (d_out,), 0.05),
        bn_gamma=1.0 + w(ks[2], (16,), 0.05),
        bn_beta=w(ks[3], (16,), 0.05),
        ct1_w=w(ks[4], (16, 64, 3, 3), 0.1),     # ConvTranspose2d weight (Cin, Cout, kH, kW)
        ct1_b=w(ks[5], (64,), 0.05),
        ct2_w=w(ks[6], (64, 32, 3, 3), 0.1),
        ct2_b=w(ks[7], (32,), 0.05),
        ct3_w=w(ks[8], (32, 16, 3, 3), 0.1),
        ct3_b=w(ks[9], (16,), 0.05),
        ct4_w=w(ks[10], (16, 1, 3, 3), 0.1),
        ct4_b=w(ks[11], (1,), 0.05),
    )


if __name__ == "__main__":
    key = jax.random.PRNGKey(0)
    kx, kp_key = jax.random.split(key)
    params = init_params(kp_key)
    x = jax.random.normal(kx, (BATCH, CAPS_DIM * NUM_CAPS), jnp.float32)

    # TODO(synk): eval-mode BatchNorm (running stats) is not modelled; the
    # kernel reproduces the module's default train()-mode batch statistics.
    kparams = prepare_kernel_inputs(params)          # hoisted weight preprocessing
    fwd = jax.jit(decoder_forward)
    out = jax.block_until_ready(fwd(x, kparams))

    ref = decoder_reference(x, params)
    assert out.shape == (BATCH, 1, IMG_SIZE, IMG_SIZE), out.shape
    assert bool(jnp.all(jnp.isfinite(out)))
    assert bool(jnp.allclose(out, ref, atol=3e-3, rtol=3e-3))

    print("KERNEL_OK")
</pallas_src>

<mosaic_0001>
module attributes {stable_mosaic.version = 11 : i64} {
  func.func @_decoder_kernel(%arg0: memref<2x32xf32, #tpu.memory_space<vmem>>, %arg1: memref<32x256xf32, #tpu.memory_space<vmem>>, %arg2: memref<16x256xf32, #tpu.memory_space<vmem>>, %arg3: memref<32x256xbf16, #tpu.memory_space<vmem>>, %arg4: memref<256x16xbf16, #tpu.memory_space<vmem>>, %arg5: memref<36x16xbf16, #tpu.memory_space<vmem>>, %arg6: memref<9x32x128xf32, #tpu.memory_space<vmem>>, %arg7: memref<9x128x64xf32, #tpu.memory_space<vmem>>, %arg8: memref<9x64x32xf32, #tpu.memory_space<vmem>>, %arg9: memref<81x22xbf16, #tpu.memory_space<vmem>>, %arg10: memref<289x61xbf16, #tpu.memory_space<vmem>>, %arg11: memref<324x253xbf16, #tpu.memory_space<vmem>>, %arg12: memref<32x2xbf16, #tpu.memory_space<vmem>>, %arg13: memref<286x16xbf16, #tpu.memory_space<vmem>>, %arg14: memref<16x286xbf16, #tpu.memory_space<vmem>>, %arg15: memref<16x32xf32, #tpu.memory_space<vmem>>, %arg16: memref<36x32xf32, #tpu.memory_space<vmem>>, %arg17: memref<81x128xf32, #tpu.memory_space<vmem>>, %arg18: memref<289x64xf32, #tpu.memory_space<vmem>>, %arg19: memref<324x32xf32, #tpu.memory_space<vmem>>, %arg20: memref<253x32xf32, #tpu.memory_space<vmem>>, %arg21: memref<286x32xf32, #tpu.memory_space<vmem>>) attributes {dimension_semantics = [], scalar_prefetch = 0 : i64, scratch_operands = 6 : i64, tpu.core_type = #tpu.core_type<tc>} {
    %c0 = arith.constant 0 : index
    %c0_0 = arith.constant 0 : index
    %0 = vector.load %arg4[%c0, %c0_0] : memref<256x16xbf16, #tpu.memory_space<vmem>>, vector<256x16xbf16>
    %1 = arith.extf %0 : vector<256x16xbf16> to vector<256x16xf32>
    %c0_1 = arith.constant 0 : index
    %c0_2 = arith.constant 0 : index
    %2 = vector.load %arg3[%c0_1, %c0_2] : memref<32x256xbf16, #tpu.memory_space<vmem>>, vector<16x256xbf16>
    %3 = arith.extf %2 : vector<16x256xbf16> to vector<16x256xf32>
    %c16 = arith.constant 16 : index
    %c0_3 = arith.constant 0 : index
    %4 = vector.load %arg3[%c16, %c0_3] : memref<32x256xbf16, #tpu.memory_space<vmem>>, vector<16x256xbf16>
    %5 = arith.extf %4 : vector<16x256xbf16> to vector<16x256xf32>
    %c0_4 = arith.constant 0 : index
    %c0_5 = arith.constant 0 : index
    %6 = vector.load %arg13[%c0_4, %c0_5] : memref<286x16xbf16, #tpu.memory_space<vmem>>, vector<286x16xbf16>
    %7 = arith.extf %6 : vector<286x16xbf16> to vector<286x16xf32>
    %c0_6 = arith.constant 0 : index
    %c0_7 = arith.constant 0 : index
    %8 = vector.load %arg14[%c0_6, %c0_7] : memref<16x286xbf16, #tpu.memory_space<vmem>>, vector<16x286xbf16>
    %9 = arith.extf %8 : vector<16x286xbf16> to vector<16x286xf32>
    %c0_8 = arith.constant 0 : index
    %c0_9 = arith.constant 0 : index
    %10 = vector.load %arg0[%c0_8, %c0_9] : memref<2x32xf32, #tpu.memory_space<vmem>>, vector<2x32xf32>
    %c0_10 = arith.constant 0 : index
    %c0_11 = arith.constant 0 : index
    %11 = vector.load %arg1[%c0_10, %c0_11] : memref<32x256xf32, #tpu.memory_space<vmem>>, vector<32x256xf32>
    %cst = arith.constant dense<0.000000e+00> : vector<2x256xf32>
    %12 = tpu.matmul %10, %11, %cst {dimension_numbers = #tpu.dot_dimension_numbers<[1], [0], [0], [1], [0, 0, 1, 1], [], []>} : vector<2x32xf32>, vector<32x256xf32>, vector<2x256xf32> -> vector<2x256xf32>
    %c0_12 = arith.constant 0 : index
    %c0_13 = arith.constant 0 : index
    %13 = vector.load %arg2[%c0_12, %c0_13] : memref<16x256xf32, #tpu.memory_space<vmem>>, vector<1x256xf32>
    %14 = vector.broadcast %13 : vector<1x256xf32> to vector<2x256xf32>
    %15 = arith.addf %12, %14 : vector<2x256xf32>
    %cst_14 = arith.constant 0.000000e+00 : f32
    %16 = vector.broadcast %cst_14 : f32 to vector<2x256xf32>
    %17 = arith.maximumf %15, %16 : vector<2x256xf32>
    %cst_15 = arith.constant dense<0.000000e+00> : vector<256xf32>
    %18 = vector.multi_reduction <add>, %17, %cst_15 [0] : vector<2x256xf32> to vector<256xf32>
    %19 = vector.shape_cast %18 : vector<256xf32> to vector<1x256xf32>
    %20 = arith.mulf %17, %17 : vector<2x256xf32>
    %cst_16 = arith.constant dense<0.000000e+00> : vector<256xf32>
    %21 = vector.multi_reduction <add>, %20, %cst_16 [0] : vector<2x256xf32> to vector<256xf32>
    %22 = vector.shape_cast %21 : vector<256xf32> to vector<1x256xf32>
    %cst_17 = arith.constant dense<0.000000e+00> : vector<1x16xf32>
    %23 = tpu.matmul %19, %1, %cst_17 {dimension_numbers = #tpu.dot_dimension_numbers<[1], [0], [0], [1], [0, 0, 1, 1], [], []>} : vector<1x256xf32>, vector<256x16xf32>, vector<1x16xf32> -> vector<1x16xf32>
    %cst_18 = arith.constant 3.125000e-02 : f32
    %24 = vector.broadcast %cst_18 : f32 to vector<1x16xf32>
    %25 = arith.mulf %23, %24 : vector<1x16xf32>
    %cst_19 = arith.constant dense<0.000000e+00> : vector<1x16xf32>
    %26 = tpu.matmul %22, %1, %cst_19 {dimension_numbers = #tpu.dot_dimension_numbers<[1], [0], [0], [1], [0, 0, 1, 1], [], []>} : vector<1x256xf32>, vector<256x16xf32>, vector<1x16xf32> -> vector<1x16xf32>
    %cst_20 = arith.constant 3.125000e-02 : f32
    %27 = vector.broadcast %cst_20 : f32 to vector<1x16xf32>
    %28 = arith.mulf %26, %27 : vector<1x16xf32>
    %29 = arith.mulf %25, %25 : vector<1x16xf32>
    %30 = arith.subf %28, %29 : vector<1x16xf32>
    %cst_21 = arith.constant 0.000000e+00 : f32
    %31 = vector.broadcast %cst_21 : f32 to vector<1x16xf32>
    %32 = arith.maximumf %30, %31 : vector<1x16xf32>
    %c1 = arith.constant 1 : index
    %c0_22 = arith.constant 0 : index
    %33 = vector.load %arg2[%c1, %c0_22] : memref<16x256xf32, #tpu.memory_space<vmem>>, vector<1x16xf32>
    %cst_23 = arith.constant 9.99999974E-6 : f32
    %34 = vector.broadcast %cst_23 : f32 to vector<1x16xf32>
    %35 = arith.addf %32, %34 : vector<1x16xf32>
    %36 = math.rsqrt %35 : vector<1x16xf32>
    %37 = arith.mulf %33, %36 : vector<1x16xf32>
    %c2 = arith.constant 2 : index
    %c0_24 = arith.constant 0 : index
    %38 = vector.load %arg2[%c2, %c0_24] : memref<16x256xf32, #tpu.memory_space<vmem>>, vector<1x16xf32>
    %39 = arith.mulf %25, %37 : vector<1x16xf32>
    %40 = arith.subf %38, %39 : vector<1x16xf32>
    %cst_25 = arith.constant dense<0.000000e+00> : vector<1x256xf32>
    %41 = tpu.matmul %37, %5, %cst_25 {dimension_numbers = #tpu.dot_dimension_numbers<[1], [0], [0], [1], [0, 0, 1, 1], [], []>} : vector<1x16xf32>, vector<16x256xf32>, vector<1x256xf32> -> vector<1x256xf32>
    %cst_26 = arith.constant dense<0.000000e+00> : vector<1x256xf32>
    %42 = tpu.matmul %40, %5, %cst_26 {dimension_numbers = #tpu.dot_dimension_numbers<[1], [0], [0], [1], [0, 0, 1, 1], [], []>} : vector<1x16xf32>, vector<16x256xf32>, vector<1x256xf32> -> vector<1x256xf32>
    %43 = vector.broadcast %41 : vector<1x256xf32> to vector<2x256xf32>
    %44 = arith.mulf %17, %43 : vector<2x256xf32>
    %45 = vector.broadcast %42 : vector<1x256xf32> to vector<2x256xf32>
    %46 = arith.addf %44, %45 : vector<2x256xf32>
    %47 = vector.extract_strided_slice %46 {offsets = [0, 0], sizes = [1, 256], strides = [1, 1]} : vector<2x256xf32> to vector<1x256xf32>
    %48 = vector.broadcast %47 : vector<1x256xf32> to vector<16x256xf32>
    %49 = arith.mulf %48, %3 : vector<16x256xf32>
    %cst_27 = arith.constant dense<0.000000e+00> : vector<16x16xf32>
    %50 = tpu.matmul %49, %1, %cst_27 {dimension_numbers = #tpu.dot_dimension_numbers<[1], [0], [0], [1], [0, 0, 1, 1], [], []>} : vector<16x256xf32>, vector<256x16xf32>, vector<16x16xf32> -> vector<16x16xf32>
    %51 = vector.extract_strided_slice %46 {offsets = [1, 0], sizes = [1, 256], strides = [1, 1]} : vector<2x256xf32> to vector<1x256xf32>
    %52 = vector.broadcast %51 : vector<1x256xf32> to vector<16x256xf32>
    %53 = arith.mulf %52, %3 : vector<16x256xf32>
    %cst_28 = arith.constant dense<0.000000e+00> : vector<16x16xf32>
    %54 = tpu.matmul %53, %1, %cst_28 {dimension_numbers = #tpu.dot_dimension_numbers<[1], [0], [0], [1], [0, 0, 1, 1], [], []>} : vector<16x256xf32>, vector<256x16xf32>, vector<16x16xf32> -> vector<16x16xf32>
    %55 = tpu.concatenate %50, %54 in 1 : vector<16x16xf32>, vector<16x16xf32> -> vector<16x32xf32>
    %c0_29 = arith.constant 0 : index
    %c0_30 = arith.constant 0 : index
    %56 = vector.load %arg5[%c0_29, %c0_30] : memref<36x16xbf16, #tpu.memory_space<vmem>>, vector<36x16xbf16>
    %57 = arith.extf %56 : vector<36x16xbf16> to vector<36x16xf32>
    %cst_31 = arith.constant dense<0.000000e+00> : vector<36x32xf32>
    %58 = tpu.matmul %57, %55, %cst_31 {dimension_numbers = #tpu.dot_dimension_numbers<[1], [0], [0], [1], [0, 0, 1, 1], [], []>} : vector<36x16xf32>, vector<16x32xf32>, vector<36x32xf32> -> vector<36x32xf32>
    %c0_32 = arith.constant 0 : index
    %c0_33 = arith.constant 0 : index
    %59 = vector.load %arg16[%c0_32, %c0_33] : memref<36x32xf32, #tpu.memory_space<vmem>>, vector<36x32xf32>
    tpu.vector_store %arg16[%c0_32, %c0_33], %58 {strides = array<i32>} : memref<36x32xf32, #tpu.memory_space<vmem>>, vector<36x32xf32>,
    %c0_34 = arith.constant 0 : index
    %c0_35 = arith.constant 0 : index
    %60 = vector.load %arg16[%c0_34, %c0_35] : memref<36x32xf32, #tpu.memory_space<vmem>>, vector<22x32xf32>
    %c0_36 = arith.constant 0 : index
    %c0_37 = arith.constant 0 : index
    %c0_38 = arith.constant 0 : index
    %61 = vector.load %arg6[%c0_36, %c0_37, %c0_38] : memref<9x32x128xf32, #tpu.memory_space<vmem>>, vector<1x32x128xf32>
    %62 = vector.shape_cast %61 : vector<1x32x128xf32> to vector<32x128xf32>
    %cst_39 = arith.constant dense<0.000000e+00> : vector<22x128xf32>
    %63 = tpu.matmul %60, %62, %cst_39 {dimension_numbers = #tpu.dot_dimension_numbers<[1], [0], [0], [1], [0, 0, 1, 1], [], []>} : vector<22x32xf32>, vector<32x128xf32>, vector<22x128xf32> -> vector<22x128xf32>
    %c1_40 = arith.constant 1 : index
    %c0_41 = arith.constant 0 : index
    %64 = vector.load %arg16[%c1_40, %c0_41] : memref<36x32xf32, #tpu.memory_space<vmem>>, vector<22x32xf32>
    %c1_42 = arith.constant 1 : index
    %c0_43 = arith.constant 0 : index
    %c0_44 = arith.constant 0 : index
    %65 = vector.load %arg6[%c1_42, %c0_43, %c0_44] : memref<9x32x128xf32, #tpu.memory_space<vmem>>, vector<1x32x128xf32>
    %66 = vector.shape_cast %65 : vector<1x32x128xf32> to vector<32x128xf32>
    %cst_45 = arith.constant dense<0.000000e+00> : vector<22x128xf32>
    %67 = tpu.matmul %64, %66, %cst_45 {dimension_numbers = #tpu.dot_dimension_numbers<[1], [0], [0], [1], [0, 0, 1, 1], [], []>} : vector<22x32xf32>, vector<32x128xf32>, vector<22x128xf32> -> vector<22x128xf32>
    %68 = arith.addf %63, %67 : vector<22x128xf32>
    %c2_46 = arith.constant 2 : index
    %c0_47 = arith.constant 0 : index
    %69 = vector.load %arg16[%c2_46, %c0_47] : memref<36x32xf32, #tpu.memory_space<vmem>>, vector<22x32xf32>
    %c2_48 = arith.constant 2 : index
    %c0_49 = arith.constant 0 : index
    %c0_50 = arith.constant 0 : index
    %70 = vector.load %arg6[%c2_48, %c0_49, %c0_50] : memref<9x32x128xf32, #tpu.memory_space<vmem>>, vector<1x32x128xf32>
    %71 = vector.shape_cast %70 : vector<1x32x128xf32> to vector<32x128xf32>
    %cst_51 = arith.constant dense<0.000000e+00> : vector<22x128xf32>
    %72 = tpu.matmul %69, %71, %cst_51 {dimension_numbers = #tpu.dot_dimension_numbers<[1], [0], [0], [1], [0, 0, 1, 1], [], []>} : vector<22x32xf32>, vector<32x128xf32>, vector<22x128xf32> -> vector<22x128xf32>
    %73 = arith.addf %68, %72 : vector<22x128xf32>
    %c6 = arith.constant 6 : index
    %c0_52 = arith.constant 0 : index
    %74 = vector.load %arg16[%c6, %c0_52] : memref<36x32xf32, #tpu.memory_space<vmem>>, vector<22x32xf32>
    %c3 = arith.constant 3 : index
    %c0_53 = arith.constant 0 : index
    %c0_54 = arith.constant 0 : index
    %75 = vector.load %arg6[%c3, %c0_53, %c0_54] : memref<9x32x128xf32, #tpu.memory_space<vmem>>, vector<1x32x128xf32>
    %76 = vector.shape_cast %75 : vector<1x32x128xf32> to vector<32x128xf32>
    %cst_55 = arith.constant dense<0.000000e+00> : vector<22x128xf32>
    %77 = tpu.matmul %74, %76, %cst_55 {dimension_numbers = #tpu.dot_dimension_numbers<[1], [0], [0], [1], [0, 0, 1, 1], [], []>} : vector<22x32xf32>, vector<32x128xf32>, vector<22x128xf32> -> vector<22x128xf32>
    %78 = arith.addf %73, %77 : vector<22x128xf32>
    %c7 = arith.constant 7 : index
    %c0_56 = arith.constant 0 : index
    %79 = vector.load %arg16[%c7, %c0_56] : memref<36x32xf32, #tpu.memory_space<vmem>>, vector<22x32xf32>
    %c4 = arith.constant 4 : index
    %c0_57 = arith.constant 0 : index
    %c0_58 = arith.constant 0 : index
    %80 = vector.load %arg6[%c4, %c0_57, %c0_58] : memref<9x32x128xf32, #tpu.memory_space<vmem>>, vector<1x32x128xf32>
    %81 = vector.shape_cast %80 : vector<1x32x128xf32> to vector<32x128xf32>
    %cst_59 = arith.constant dense<0.000000e+00> : vector<22x128xf32>
    %82 = tpu.matmul %79, %81, %cst_59 {dimension_numbers = #tpu.dot_dimension_numbers<[1], [0], [0], [1], [0, 0, 1, 1], [], []>} : vector<22x32xf32>, vector<32x128xf32>, vector<22x128xf32> -> vector<22x128xf32>
    %83 = arith.addf %78, %82 : vector<22x128xf32>
    %c8 = arith.constant 8 : index
    %c0_60 = arith.constant 0 : index
    %84 = vector.load %arg16[%c8, %c0_60] : memref<36x32xf32, #tpu.memory_space<vmem>>, vector<22x32xf32>
    %c5 = arith.constant 5 : index
    %c0_61 = arith.constant 0 : index
    %c0_62 = arith.constant 0 : index
    %85 = vector.load %arg6[%c5, %c0_61, %c0_62] : memref<9x32x128xf32, #tpu.memory_space<vmem>>, vector<1x32x128xf32>
    %86 = vector.shape_cast %85 : vector<1x32x128xf32> to vector<32x128xf32>
    %cst_63 = arith.constant dense<0.000000e+00> : vector<22x128xf32>
    %87 = tpu.matmul %84, %86, %cst_63 {dimension_numbers = #tpu.dot_dimension_numbers<[1], [0], [0], [1], [0, 0, 1, 1], [], []>} : vector<22x32xf32>, vector<32x128xf32>, vector<22x128xf32> -> vector<22x128xf32>
    %88 = arith.addf %83, %87 : vector<22x128xf32>
    %c12 = arith.constant 12 : index
    %c0_64 = arith.constant 0 : index
    %89 = vector.load %arg16[%c12, %c0_64] : memref<36x32xf32, #tpu.memory_space<vmem>>, vector<22x32xf32>
    %c6_65 = arith.constant 6 : index
    %c0_66 = arith.constant 0 : index
    %c0_67 = arith.constant 0 : index
    %90 = vector.load %arg6[%c6_65, %c0_66, %c0_67] : memref<9x32x128xf32, #tpu.memory_space<vmem>>, vector<1x32x128xf32>
    %91 = vector.shape_cast %90 : vector<1x32x128xf32> to vector<32x128xf32>
    %cst_68 = arith.constant dense<0.000000e+00> : vector<22x128xf32>
    %92 = tpu.matmul %89, %91, %cst_68 {dimension_numbers = #tpu.dot_dimension_numbers<[1], [0], [0], [1], [0, 0, 1, 1], [], []>} : vector<22x32xf32>, vector<32x128xf32>, vector<22x128xf32> -> vector<22x128xf32>
    %93 = arith.addf %88, %92 : vector<22x128xf32>
    %c13 = arith.constant 13 : index
    %c0_69 = arith.constant 0 : index
    %94 = vector.load %arg16[%c13, %c0_69] : memref<36x32xf32, #tpu.memory_space<vmem>>, vector<22x32xf32>
    %c7_70 = arith.constant 7 : index
    %c0_71 = arith.constant 0 : index
    %c0_72 = arith.constant 0 : index
    %95 = vector.load %arg6[%c7_70, %c0_71, %c0_72] : memref<9x32x128xf32, #tpu.memory_space<vmem>>, vector<1x32x128xf32>
    %96 = vector.shape_cast %95 : vector<1x32x128xf32> to vector<32x128xf32>
    %cst_73 = arith.constant dense<0.000000e+00> : vector<22x128xf32>
    %97 = tpu.matmul %94, %96, %cst_73 {dimension_numbers = #tpu.dot_dimension_numbers<[1], [0], [0], [1], [0, 0, 1, 1], [], []>} : vector<22x32xf32>, vector<32x128xf32>, vector<22x128xf32> -> vector<22x128xf32>
    %98 = arith.addf %93, %97 : vector<22x128xf32>
    %c14 = arith.constant 14 : index
    %c0_74 = arith.constant 0 : index
    %99 = vector.load %arg16[%c14, %c0_74] : memref<36x32xf32, #tpu.memory_space<vmem>>, vector<22x32xf32>
    %c8_75 = arith.constant 8 : index
    %c0_76 = arith.constant 0 : index
    %c0_77 = arith.constant 0 : index
    %100 = vector.load %arg6[%c8_75, %c0_76, %c0_77] : memref<9x32x128xf32, #tpu.memory_space<vmem>>, vector<1x32x128xf32>
    %101 = vector.shape_cast %100 : vector<1x32x128xf32> to vector<32x128xf32>
    %cst_78 = arith.constant dense<0.000000e+00> : vector<22x128xf32>
    %102 = tpu.matmul %99, %101, %cst_78 {dimension_numbers = #tpu.dot_dimension_numbers<[1], [0], [0], [1], [0, 0, 1, 1], [], []>} : vector<22x32xf32>, vector<32x128xf32>, vector<22x128xf32> -> vector<22x128xf32>
    %103 = arith.addf %98, %102 : vector<22x128xf32>
    %c3_79 = arith.constant 3 : index
    %c0_80 = arith.constant 0 : index
    %104 = vector.load %arg2[%c3_79, %c0_80] : memref<16x256xf32, #tpu.memory_space<vmem>>, vector<1x128xf32>
    %105 = vector.broadcast %104 : vector<1x128xf32> to vector<22x128xf32>
    %106 = arith.addf %103, %105 : vector<22x128xf32>
    %c0_81 = arith.constant 0 : index
    %c0_82 = arith.constant 0 : index
    %107 = vector.load %arg9[%c0_81, %c0_82] : memref<81x22xbf16, #tpu.memory_space<vmem>>, vector<81x22xbf16>
    %108 = arith.extf %107 : vector<81x22xbf16> to vector<81x22xf32>
    %cst_83 = arith.constant dense<0.000000e+00> : vector<81x128xf32>
    %109 = tpu.matmul %108, %106, %cst_83 {dimension_numbers = #tpu.dot_dimension_numbers<[1], [0], [0], [1], [0, 0, 1, 1], [], []>} : vector<81x22xf32>, vector<22x128xf32>, vector<81x128xf32> -> vector<81x128xf32>
    %c0_84 = arith.constant 0 : index
    %c0_85 = arith.constant 0 : index
    %110 = vector.load %arg17[%c0_84, %c0_85] : memref<81x128xf32, #tpu.memory_space<vmem>>, vector<81x128xf32>
    tpu.vector_store %arg17[%c0_84, %c0_85], %109 {strides = array<i32>} : memref<81x128xf32, #tpu.memory_space<vmem>>, vector<81x128xf32>,
    %c0_86 = arith.constant 0 : index
    %c0_87 = arith.constant 0 : index
    %111 = vector.load %arg17[%c0_86, %c0_87] : memref<81x128xf32, #tpu.memory_space<vmem>>, vector<61x128xf32>
    %c0_88 = arith.constant 0 : index
    %c0_89 = arith.constant 0 : index
    %c0_90 = arith.constant 0 : index
    %112 = vector.load %arg7[%c0_88, %c0_89, %c0_90] : memref<9x128x64xf32, #tpu.memory_space<vmem>>, vector<1x128x64xf32>
    %113 = vector.shape_cast %112 : vector<1x128x64xf32> to vector<128x64xf32>
    %cst_91 = arith.constant dense<0.000000e+00> : vector<61x64xf32>
    %114 = tpu.matmul %111, %113, %cst_91 {dimension_numbers = #tpu.dot_dimension_numbers<[1], [0], [0], [1], [0, 0, 1, 1], [], []>} : vector<61x128xf32>, vector<128x64xf32>, vector<61x64xf32> -> vector<61x64xf32>
    %c1_92 = arith.constant 1 : index
    %c0_93 = arith.constant 0 : index
    %115 = vector.load %arg17[%c1_92, %c0_93] : memref<81x128xf32, #tpu.memory_space<vmem>>, vector<61x128xf32>
    %c1_94 = arith.constant 1 : index
    %c0_95 = arith.constant 0 : index
    %c0_96 = arith.constant 0 : index
    %116 = vector.load %arg7[%c1_94, %c0_95, %c0_96] : memref<9x128x64xf32, #tpu.memory_space<vmem>>, vector<1x128x64xf32>
    %117 = vector.shape_cast %116 : vector<1x128x64xf32> to vector<128x64xf32>
    %cst_97 = arith.constant dense<0.000000e+00> : vector<61x64xf32>
    %118 = tpu.matmul %115, %117, %cst_97 {dimension_numbers = #tpu.dot_dimension_numbers<[1], [0], [0], [1], [0, 0, 1, 1], [], []>} : vector<61x128xf32>, vector<128x64xf32>, vector<61x64xf32> -> vector<61x64xf32>
    %119 = arith.addf %114, %118 : vector<61x64xf32>
    %c2_98 = arith.constant 2 : index
    %c0_99 = arith.constant 0 : index
    %120 = vector.load %arg17[%c2_98, %c0_99] : memref<81x128xf32, #tpu.memory_space<vmem>>, vector<61x128xf32>
    %c2_100 = arith.constant 2 : index
    %c0_101 = arith.constant 0 : index
    %c0_102 = arith.constant 0 : index
    %121 = vector.load %arg7[%c2_100, %c0_101, %c0_102] : memref<9x128x64xf32, #tpu.memory_space<vmem>>, vector<1x128x64xf32>
    %122 = vector.shape_cast %121 : vector<1x128x64xf32> to vector<128x64xf32>
    %cst_103 = arith.constant dense<0.000000e+00> : vector<61x64xf32>
    %123 = tpu.matmul %120, %122, %cst_103 {dimension_numbers = #tpu.dot_dimension_numbers<[1], [0], [0], [1], [0, 0, 1, 1], [], []>} : vector<61x128xf32>, vector<128x64xf32>, vector<61x64xf32> -> vector<61x64xf32>
    %124 = arith.addf %119, %123 : vector<61x64xf32>
    %c9 = arith.constant 9 : index
    %c0_104 = arith.constant 0 : index
    %125 = vector.load %arg17[%c9, %c0_104] : memref<81x128xf32, #tpu.memory_space<vmem>>, vector<61x128xf32>
    %c3_105 = arith.constant 3 : index
    %c0_106 = arith.constant 0 : index
    %c0_107 = arith.constant 0 : index
    %126 = vector.load %arg7[%c3_105, %c0_106, %c0_107] : memref<9x128x64xf32, #tpu.memory_space<vmem>>, vector<1x128x64xf32>
    %127 = vector.shape_cast %126 : vector<1x128x64xf32> to vector<128x64xf32>
    %cst_108 = arith.constant dense<0.000000e+00> : vector<61x64xf32>
    %128 = tpu.matmul %125, %127, %cst_108 {dimension_numbers = #tpu.dot_dimension_numbers<[1], [0], [0], [1], [0, 0, 1, 1], [], []>} : vector<61x128xf32>, vector<128x64xf32>, vector<61x64xf32> -> vector<61x64xf32>
    %129 = arith.addf %124, %128 : vector<61x64xf32>
    %c10 = arith.constant 10 : index
    %c0_109 = arith.constant 0 : index
    %130 = vector.load %arg17[%c10, %c0_109] : memref<81x128xf32, #tpu.memory_space<vmem>>, vector<61x128xf32>
    %c4_110 = arith.constant 4 : index
    %c0_111 = arith.constant 0 : index
    %c0_112 = arith.constant 0 : index
    %131 = vector.load %arg7[%c4_110, %c0_111, %c0_112] : memref<9x128x64xf32, #tpu.memory_space<vmem>>, vector<1x128x64xf32>
    %132 = vector.shape_cast %131 : vector<1x128x64xf32> to vector<128x64xf32>
    %cst_113 = arith.constant dense<0.000000e+00> : vector<61x64xf32>
    %133 = tpu.matmul %130, %132, %cst_113 {dimension_numbers = #tpu.dot_dimension_numbers<[1], [0], [0], [1], [0, 0, 1, 1], [], []>} : vector<61x128xf32>, vector<128x64xf32>, vector<61x64xf32> -> vector<61x64xf32>
    %134 = arith.addf %129, %133 : vector<61x64xf32>
    %c11 = arith.constant 11 : index
    %c0_114 = arith.constant 0 : index
    %135 = vector.load %arg17[%c11, %c0_114] : memref<81x128xf32, #tpu.memory_space<vmem>>, vector<61x128xf32>
    %c5_115 = arith.constant 5 : index
    %c0_116 = arith.constant 0 : index
    %c0_117 = arith.constant 0 : index
    %136 = vector.load %arg7[%c5_115, %c0_116, %c0_117] : memref<9x128x64xf32, #tpu.memory_space<vmem>>, vector<1x128x64xf32>
    %137 = vector.shape_cast %136 : vector<1x128x64xf32> to vector<128x64xf32>
    %cst_118 = arith.constant dense<0.000000e+00> : vector<61x64xf32>
    %138 = tpu.matmul %135, %137, %cst_118 {dimension_numbers = #tpu.dot_dimension_numbers<[1], [0], [0], [1], [0, 0, 1, 1], [], []>} : vector<61x128xf32>, vector<128x64xf32>, vector<61x64xf32> -> vector<61x64xf32>
    %139 = arith.addf %134, %138 : vector<61x64xf32>
    %c18 = arith.constant 18 : index
    %c0_119 = arith.constant 0 : index
    %140 = vector.load %arg17[%c18, %c0_119] : memref<81x128xf32, #tpu.memory_space<vmem>>, vector<61x128xf32>
    %c6_120 = arith.constant 6 : index
    %c0_121 = arith.constant 0 : index
    %c0_122 = arith.constant 0 : index
    %141 = vector.load %arg7[%c6_120, %c0_121, %c0_122] : memref<9x128x64xf32, #tpu.memory_space<vmem>>, vector<1x128x64xf32>
    %142 = vector.shape_cast %141 : vector<1x128x64xf32> to vector<128x64xf32>
    %cst_123 = arith.constant dense<0.000000e+00> : vector<61x64xf32>
    %143 = tpu.matmul %140, %142, %cst_123 {dimension_numbers = #tpu.dot_dimension_numbers<[1], [0], [0], [1], [0, 0, 1, 1], [], []>} : vector<61x128xf32>, vector<128x64xf32>, vector<61x64xf32> -> vector<61x64xf32>
    %144 = arith.addf %139, %143 : vector<61x64xf32>
    %c19 = arith.constant 19 : index
    %c0_124 = arith.constant 0 : index
    %145 = vector.load %arg17[%c19, %c0_124] : memref<81x128xf32, #tpu.memory_space<vmem>>, vector<61x128xf32>
    %c7_125 = arith.constant 7 : index
    %c0_126 = arith.constant 0 : index
    %c0_127 = arith.constant 0 : index
    %146 = vector.load %arg7[%c7_125, %c0_126, %c0_127] : memref<9x128x64xf32, #tpu.memory_space<vmem>>, vector<1x128x64xf32>
    %147 = vector.shape_cast %146 : vector<1x128x64xf32> to vector<128x64xf32>
    %cst_128 = arith.constant dense<0.000000e+00> : vector<61x64xf32>
    %148 = tpu.matmul %145, %147, %cst_128 {dimension_numbers = #tpu.dot_dimension_numbers<[1], [0], [0], [1], [0, 0, 1, 1], [], []>} : vector<61x128xf32>, vector<128x64xf32>, vector<61x64xf32> -> vector<61x64xf32>
    %149 = arith.addf %144, %148 : vector<61x64xf32>
    %c20 = arith.constant 20 : index
    %c0_129 = arith.constant 0 : index
    %150 = vector.load %arg17[%c20, %c0_129] : memref<81x128xf32, #tpu.memory_space<vmem>>, vector<61x128xf32>
    %c8_130 = arith.constant 8 : index
    %c0_131 = arith.constant 0 : index
    %c0_132 = arith.constant 0 : index
    %151 = vector.load %arg7[%c8_130, %c0_131, %c0_132] : memref<9x128x64xf32, #tpu.memory_space<vmem>>, vector<1x128x64xf32>
    %152 = vector.shape_cast %151 : vector<1x128x64xf32> to vector<128x64xf32>
    %cst_133 = arith.constant dense<0.000000e+00> : vector<61x64xf32>
    %153 = tpu.matmul %150, %152, %cst_133 {dimension_numbers = #tpu.dot_dimension_numbers<[1], [0], [0], [1], [0, 0, 1, 1], [], []>} : vector<61x128xf32>, vector<128x64xf32>, vector<61x64xf32> -> vector<61x64xf32>
    %154 = arith.addf %149, %153 : vector<61x64xf32>
    %c4_134 = arith.constant 4 : index
    %c0_135 = arith.constant 0 : index
    %155 = vector.load %arg2[%c4_134, %c0_135] : memref<16x256xf32, #tpu.memory_space<vmem>>, vector<1x64xf32>
    %156 = vector.broadcast %155 : vector<1x64xf32> to vector<61x64xf32>
    %157 = arith.addf %154, %156 : vector<61x64xf32>
    %c0_136 = arith.constant 0 : index
    %c0_137 = arith.constant 0 : index
    %158 = vector.load %arg10[%c0_136, %c0_137] : memref<289x61xbf16, #tpu.memory_space<vmem>>, vector<289x61xbf16>
    %159 = arith.extf %158 : vector<289x61xbf16> to vector<289x61xf32>
    %cst_138 = arith.constant dense<0.000000e+00> : vector<289x64xf32>
    %160 = tpu.matmul %159, %157, %cst_138 {dimension_numbers = #tpu.dot_dimension_numbers<[1], [0], [0], [1], [0, 0, 1, 1], [], []>} : vector<289x61xf32>, vector<61x64xf32>, vector<289x64xf32> -> vector<289x64xf32>
    %c0_139 = arith.constant 0 : index
    %c0_140 = arith.constant 0 : index
    %161 = vector.load %arg18[%c0_139, %c0_140] : memref<289x64xf32, #tpu.memory_space<vmem>>, vector<289x64xf32>
    tpu.vector_store %arg18[%c0_139, %c0_140], %160 {strides = array<i32>} : memref<289x64xf32, #tpu.memory_space<vmem>>, vector<289x64xf32>,
    %c0_141 = arith.constant 0 : index
    %c0_142 = arith.constant 0 : index
    %162 = vector.load %arg18[%c0_141, %c0_142] : memref<289x64xf32, #tpu.memory_space<vmem>>, vector<253x64xf32>
    %c0_143 = arith.constant 0 : index
    %c0_144 = arith.constant 0 : index
    %c0_145 = arith.constant 0 : index
    %163 = vector.load %arg8[%c0_143, %c0_144, %c0_145] : memref<9x64x32xf32, #tpu.memory_space<vmem>>, vector<1x64x32xf32>
    %164 = vector.shape_cast %163 : vector<1x64x32xf32> to vector<64x32xf32>
    %cst_146 = arith.constant dense<0.000000e+00> : vector<253x32xf32>
    %165 = tpu.matmul %162, %164, %cst_146 {dimension_numbers = #tpu.dot_dimension_numbers<[1], [0], [0], [1], [0, 0, 1, 1], [], []>} : vector<253x64xf32>, vector<64x32xf32>, vector<253x32xf32> -> vector<253x32xf32>
    %c0_147 = arith.constant 0 : index
    %c0_148 = arith.constant 0 : index
    %166 = vector.load %arg20[%c0_147, %c0_148] : memref<253x32xf32, #tpu.memory_space<vmem>>, vector<253x32xf32>
    tpu.vector_store %arg20[%c0_147, %c0_148], %165 {strides = array<i32>} : memref<253x32xf32, #tpu.memory_space<vmem>>, vector<253x32xf32>,
    %c1_149 = arith.constant 1 : index
    %c0_150 = arith.constant 0 : index
    %167 = vector.load %arg18[%c1_149, %c0_150] : memref<289x64xf32, #tpu.memory_space<vmem>>, vector<253x64xf32>
    %c1_151 = arith.constant 1 : index
    %c0_152 = arith.constant 0 : index
    %c0_153 = arith.constant 0 : index
    %168 = vector.load %arg8[%c1_151, %c0_152, %c0_153] : memref<9x64x32xf32, #tpu.memory_space<vmem>>, vector<1x64x32xf32>
    %169 = vector.shape_cast %168 : vector<1x64x32xf32> to vector<64x32xf32>
    %cst_154 = arith.constant dense<0.000000e+00> : vector<253x32xf32>
    %170 = tpu.matmul %167, %169, %cst_154 {dimension_numbers = #tpu.dot_dimension_numbers<[1], [0], [0], [1], [0, 0, 1, 1], [], []>} : vector<253x64xf32>, vector<64x32xf32>, vector<253x32xf32> -> vector<253x32xf32>
    %c0_155 = arith.constant 0 : index
    %c0_156 = arith.constant 0 : index
    %171 = vector.load %arg20[%c0_155, %c0_156] : memref<253x32xf32, #tpu.memory_space<vmem>>, vector<253x32xf32>
    %172 = arith.addf %171, %170 : vector<253x32xf32>
    %c0_157 = arith.constant 0 : index
    %c0_158 = arith.constant 0 : index
    %173 = vector.load %arg20[%c0_157, %c0_158] : memref<253x32xf32, #tpu.memory_space<vmem>>, vector<253x32xf32>
    tpu.vector_store %arg20[%c0_157, %c0_158], %172 {strides = array<i32>} : memref<253x32xf32, #tpu.memory_space<vmem>>, vector<253x32xf32>,
    %c2_159 = arith.constant 2 : index
    %c0_160 = arith.constant 0 : index
    %174 = vector.load %arg18[%c2_159, %c0_160] : memref<289x64xf32, #tpu.memory_space<vmem>>, vector<253x64xf32>
    %c2_161 = arith.constant 2 : index
    %c0_162 = arith.constant 0 : index
    %c0_163 = arith.constant 0 : index
    %175 = vector.load %arg8[%c2_161, %c0_162, %c0_163] : memref<9x64x32xf32, #tpu.memory_space<vmem>>, vector<1x64x32xf32>
    %176 = vector.shape_cast %175 : vector<1x64x32xf32> to vector<64x32xf32>
    %cst_164 = arith.constant dense<0.000000e+00> : vector<253x32xf32>
    %177 = tpu.matmul %174, %176, %cst_164 {dimension_numbers = #tpu.dot_dimension_numbers<[1], [0], [0], [1], [0, 0, 1, 1], [], []>} : vector<253x64xf32>, vector<64x32xf32>, vector<253x32xf32> -> vector<253x32xf32>
    %c0_165 = arith.constant 0 : index
    %c0_166 = arith.constant 0 : index
    %178 = vector.load %arg20[%c0_165, %c0_166] : memref<253x32xf32, #tpu.memory_space<vmem>>, vector<253x32xf32>
    %179 = arith.addf %178, %177 : vector<253x32xf32>
    %c0_167 = arith.constant 0 : index
    %c0_168 = arith.constant 0 : index
    %180 = vector.load %arg20[%c0_167, %c0_168] : memref<253x32xf32, #tpu.memory_space<vmem>>, vector<253x32xf32>
    tpu.vector_store %arg20[%c0_167, %c0_168], %179 {strides = array<i32>} : memref<253x32xf32, #tpu.memory_space<vmem>>, vector<253x32xf32>,
    %c17 = arith.constant 17 : index
    %c0_169 = arith.constant 0 : index
    %181 = vector.load %arg18[%c17, %c0_169] : memref<289x64xf32, #tpu.memory_space<vmem>>, vector<253x64xf32>
    %c3_170 = arith.constant 3 : index
    %c0_171 = arith.constant 0 : index
    %c0_172 = arith.constant 0 : index
    %182 = vector.load %arg8[%c3_170, %c0_171, %c0_172] : memref<9x64x32xf32, #tpu.memory_space<vmem>>, vector<1x64x32xf32>
    %183 = vector.shape_cast %182 : vector<1x64x32xf32> to vector<64x32xf32>
    %cst_173 = arith.constant dense<0.000000e+00> : vector<253x32xf32>
    %184 = tpu.matmul %181, %183, %cst_173 {dimension_numbers = #tpu.dot_dimension_numbers<[1], [0], [0], [1], [0, 0, 1, 1], [], []>} : vector<253x64xf32>, vector<64x32xf32>, vector<253x32xf32> -> vector<253x32xf32>
    %c0_174 = arith.constant 0 : index
    %c0_175 = arith.constant 0 : index
    %185 = vector.load %arg20[%c0_174, %c0_175] : memref<253x32xf32, #tpu.memory_space<vmem>>, vector<253x32xf32>
    %186 = arith.addf %185, %184 : vector<253x32xf32>
    %c0_176 = arith.constant 0 : index
    %c0_177 = arith.constant 0 : index
    %187 = vector.load %arg20[%c0_176, %c0_177] : memref<253x32xf32, #tpu.memory_space<vmem>>, vector<253x32xf32>
    tpu.vector_store %arg20[%c0_176, %c0_177], %186 {strides = array<i32>} : memref<253x32xf32, #tpu.memory_space<vmem>>, vector<253x32xf32>,
    %c18_178 = arith.constant 18 : index
    %c0_179 = arith.constant 0 : index
    %188 = vector.load %arg18[%c18_178, %c0_179] : memref<289x64xf32, #tpu.memory_space<vmem>>, vector<253x64xf32>
    %c4_180 = arith.constant 4 : index
    %c0_181 = arith.constant 0 : index
    %c0_182 = arith.constant 0 : index
    %189 = vector.load %arg8[%c4_180, %c0_181, %c0_182] : memref<9x64x32xf32, #tpu.memory_space<vmem>>, vector<1x64x32xf32>
    %190 = vector.shape_cast %189 : vector<1x64x32xf32> to vector<64x32xf32>
    %cst_183 = arith.constant dense<0.000000e+00> : vector<253x32xf32>
    %191 = tpu.matmul %188, %190, %cst_183 {dimension_numbers = #tpu.dot_dimension_numbers<[1], [0], [0], [1], [0, 0, 1, 1], [], []>} : vector<253x64xf32>, vector<64x32xf32>, vector<253x32xf32> -> vector<253x32xf32>
    %c0_184 = arith.constant 0 : index
    %c0_185 = arith.constant 0 : index
    %192 = vector.load %arg20[%c0_184, %c0_185] : memref<253x32xf32, #tpu.memory_space<vmem>>, vector<253x32xf32>
    %193 = arith.addf %192, %191 : vector<253x32xf32>
    %c0_186 = arith.constant 0 : index
    %c0_187 = arith.constant 0 : index
    %194 = vector.load %arg20[%c0_186, %c0_187] : memref<253x32xf32, #tpu.memory_space<vmem>>, vector<253x32xf32>
    tpu.vector_store %arg20[%c0_186, %c0_187], %193 {strides = array<i32>} : memref<253x32xf32, #tpu.memory_space<vmem>>, vector<253x32xf32>,
    %c19_188 = arith.constant 19 : index
    %c0_189 = arith.constant 0 : index
    %195 = vector.load %arg18[%c19_188, %c0_189] : memref<289x64xf32, #tpu.memory_space<vmem>>, vector<253x64xf32>
    %c5_190 = arith.constant 5 : index
    %c0_191 = arith.constant 0 : index
    %c0_192 = arith.constant 0 : index
    %196 = vector.load %arg8[%c5_190, %c0_191, %c0_192] : memref<9x64x32xf32, #tpu.memory_space<vmem>>, vector<1x64x32xf32>
    %197 = vector.shape_cast %196 : vector<1x64x32xf32> to vector<64x32xf32>
    %cst_193 = arith.constant dense<0.000000e+00> : vector<253x32xf32>
    %198 = tpu.matmul %195, %197, %cst_193 {dimension_numbers = #tpu.dot_dimension_numbers<[1], [0], [0], [1], [0, 0, 1, 1], [], []>} : vector<253x64xf32>, vector<64x32xf32>, vector<253x32xf32> -> vector<253x32xf32>
    %c0_194 = arith.constant 0 : index
    %c0_195 = arith.constant 0 : index
    %199 = vector.load %arg20[%c0_194, %c0_195] : memref<253x32xf32, #tpu.memory_space<vmem>>, vector<253x32xf32>
    %200 = arith.addf %199, %198 : vector<253x32xf32>
    %c0_196 = arith.constant 0 : index
    %c0_197 = arith.constant 0 : index
    %201 = vector.load %arg20[%c0_196, %c0_197] : memref<253x32xf32, #tpu.memory_space<vmem>>, vector<253x32xf32>
    tpu.vector_store %arg20[%c0_196, %c0_197], %200 {strides = array<i32>} : memref<253x32xf32, #tpu.memory_space<vmem>>, vector<253x32xf32>,
    %c34 = arith.constant 34 : index
    %c0_198 = arith.constant 0 : index
    %202 = vector.load %arg18[%c34, %c0_198] : memref<289x64xf32, #tpu.memory_space<vmem>>, vector<253x64xf32>
    %c6_199 = arith.constant 6 : index
    %c0_200 = arith.constant 0 : index
    %c0_201 = arith.constant 0 : index
    %203 = vector.load %arg8[%c6_199, %c0_200, %c0_201] : memref<9x64x32xf32, #tpu.memory_space<vmem>>, vector<1x64x32xf32>
    %204 = vector.shape_cast %203 : vector<1x64x32xf32> to vector<64x32xf32>
    %cst_202 = arith.constant dense<0.000000e+00> : vector<253x32xf32>
    %205 = tpu.matmul %202, %204, %cst_202 {dimension_numbers = #tpu.dot_dimension_numbers<[1], [0], [0], [1], [0, 0, 1, 1], [], []>} : vector<253x64xf32>, vector<64x32xf32>, vector<253x32xf32> -> vector<253x32xf32>
    %c0_203 = arith.constant 0 : index
    %c0_204 = arith.constant 0 : index
    %206 = vector.load %arg20[%c0_203, %c0_204] : memref<253x32xf32, #tpu.memory_space<vmem>>, vector<253x32xf32>
    %207 = arith.addf %206, %205 : vector<253x32xf32>
    %c0_205 = arith.constant 0 : index
    %c0_206 = arith.constant 0 : index
    %208 = vector.load %arg20[%c0_205, %c0_206] : memref<253x32xf32, #tpu.memory_space<vmem>>, vector<253x32xf32>
    tpu.vector_store %arg20[%c0_205, %c0_206], %207 {strides = array<i32>} : memref<253x32xf32, #tpu.memory_space<vmem>>, vector<253x32xf32>,
    %c35 = arith.constant 35 : index
    %c0_207 = arith.constant 0 : index
    %209 = vector.load %arg18[%c35, %c0_207] : memref<289x64xf32, #tpu.memory_space<vmem>>, vector<253x64xf32>
    %c7_208 = arith.constant 7 : index
    %c0_209 = arith.constant 0 : index
    %c0_210 = arith.constant 0 : index
    %210 = vector.load %arg8[%c7_208, %c0_209, %c0_210] : memref<9x64x32xf32, #tpu.memory_space<vmem>>, vector<1x64x32xf32>
    %211 = vector.shape_cast %210 : vector<1x64x32xf32> to vector<64x32xf32>
    %cst_211 = arith.constant dense<0.000000e+00> : vector<253x32xf32>
    %212 = tpu.matmul %209, %211, %cst_211 {dimension_numbers = #tpu.dot_dimension_numbers<[1], [0], [0], [1], [0, 0, 1, 1], [], []>} : vector<253x64xf32>, vector<64x32xf32>, vector<253x32xf32> -> vector<253x32xf32>
    %c0_212 = arith.constant 0 : index
    %c0_213 = arith.constant 0 : index
    %213 = vector.load %arg20[%c0_212, %c0_213] : memref<253x32xf32, #tpu.memory_space<vmem>>, vector<253x32xf32>
    %214 = arith.addf %213, %212 : vector<253x32xf32>
    %c0_214 = arith.constant 0 : index
    %c0_215 = arith.constant 0 : index
    %215 = vector.load %arg20[%c0_214, %c0_215] : memref<253x32xf32, #tpu.memory_space<vmem>>, vector<253x32xf32>
    tpu.vector_store %arg20[%c0_214, %c0_215], %214 {strides = array<i32>} : memref<253x32xf32, #tpu.memory_space<vmem>>, vector<253x32xf32>,
    %c36 = arith.constant 36 : index
    %c0_216 = arith.constant 0 : index
    %216 = vector.load %arg18[%c36, %c0_216] : memref<289x64xf32, #tpu.memory_space<vmem>>, vector<253x64xf32>
    %c8_217 = arith.constant 8 : index
    %c0_218 = arith.constant 0 : index
    %c0_219 = arith.constant 0 : index
    %217 = vector.load %arg8[%c8_217, %c0_218, %c0_219] : memref<9x64x32xf32, #tpu.memory_space<vmem>>, vector<1x64x32xf32>
    %218 = vector.shape_cast %217 : vector<1x64x32xf32> to vector<64x32xf32>
    %cst_220 = arith.constant dense<0.000000e+00> : vector<253x32xf32>
    %219 = tpu.matmul %216, %218, %cst_220 {dimension_numbers = #tpu.dot_dimension_numbers<[1], [0], [0], [1], [0, 0, 1, 1], [], []>} : vector<253x64xf32>, vector<64x32xf32>, vector<253x32xf32> -> vector<253x32xf32>
    %c0_221 = arith.constant 0 : index
    %c0_222 = arith.constant 0 : index
    %220 = vector.load %arg20[%c0_221, %c0_222] : memref<253x32xf32, #tpu.memory_space<vmem>>, vector<253x32xf32>
    %221 = arith.addf %220, %219 : vector<253x32xf32>
    %c0_223 = arith.constant 0 : index
    %c0_224 = arith.constant 0 : index
    %222 = vector.load %arg20[%c0_223, %c0_224] : memref<253x32xf32, #tpu.memory_space<vmem>>, vector<253x32xf32>
    tpu.vector_store %arg20[%c0_223, %c0_224], %221 {strides = array<i32>} : memref<253x32xf32, #tpu.memory_space<vmem>>, vector<253x32xf32>,
    %c0_225 = arith.constant 0 : index
    %c0_226 = arith.constant 0 : index
    %223 = vector.load %arg20[%c0_225, %c0_226] : memref<253x32xf32, #tpu.memory_space<vmem>>, vector<253x32xf32>
    %c5_227 = arith.constant 5 : index
    %c0_228 = arith.constant 0 : index
    %224 = vector.load %arg2[%c5_227, %c0_228] : memref<16x256xf32, #tpu.memory_space<vmem>>, vector<1x32xf32>
    %225 = vector.broadcast %224 : vector<1x32xf32> to vector<253x32xf32>
    %226 = arith.addf %223, %225 : vector<253x32xf32>
    %c0_229 = arith.constant 0 : index
    %c0_230 = arith.constant 0 : index
    %227 = vector.load %arg11[%c0_229, %c0_230] : memref<324x253xbf16, #tpu.memory_space<vmem>>, vector<324x253xbf16>
    %228 = arith.extf %227 : vector<324x253xbf16> to vector<324x253xf32>
    %cst_231 = arith.constant dense<0.000000e+00> : vector<324x32xf32>
    %229 = tpu.matmul %228, %226, %cst_231 {dimension_numbers = #tpu.dot_dimension_numbers<[1], [0], [0], [1], [0, 0, 1, 1], [], []>} : vector<324x253xf32>, vector<253x32xf32>, vector<324x32xf32> -> vector<324x32xf32>
    %c0_232 = arith.constant 0 : index
    %c0_233 = arith.constant 0 : index
    %230 = vector.load %arg19[%c0_232, %c0_233] : memref<324x32xf32, #tpu.memory_space<vmem>>, vector<324x32xf32>
    tpu.vector_store %arg19[%c0_232, %c0_233], %229 {strides = array<i32>} : memref<324x32xf32, #tpu.memory_space<vmem>>, vector<324x32xf32>,
    %c0_234 = arith.constant 0 : index
    %c0_235 = arith.constant 0 : index
    %231 = vector.load %arg19[%c0_234, %c0_235] : memref<324x32xf32, #tpu.memory_space<vmem>>, vector<286x32xf32>
    %c7_236 = arith.constant 7 : index
    %c0_237 = arith.constant 0 : index
    %232 = vector.load %arg2[%c7_236, %c0_237] : memref<16x256xf32, #tpu.memory_space<vmem>>, vector<1x32xf32>
    %233 = vector.broadcast %232 : vector<1x32xf32> to vector<286x32xf32>
    %234 = arith.mulf %231, %233 : vector<286x32xf32>
    %c0_238 = arith.constant 0 : index
    %c0_239 = arith.constant 0 : index
    %235 = vector.load %arg21[%c0_238, %c0_239] : memref<286x32xf32, #tpu.memory_space<vmem>>, vector<286x32xf32>
    tpu.vector_store %arg21[%c0_238, %c0_239], %234 {strides = array<i32>} : memref<286x32xf32, #tpu.memory_space<vmem>>, vector<286x32xf32>,
    %c1_240 = arith.constant 1 : index
    %c0_241 = arith.constant 0 : index
    %236 = vector.load %arg19[%c1_240, %c0_241] : memref<324x32xf32, #tpu.memory_space<vmem>>, vector<286x32xf32>
    %c8_242 = arith.constant 8 : index
    %c0_243 = arith.constant 0 : index
    %237 = vector.load %arg2[%c8_242, %c0_243] : memref<16x256xf32, #tpu.memory_space<vmem>>, vector<1x32xf32>
    %238 = vector.broadcast %237 : vector<1x32xf32> to vector<286x32xf32>
    %239 = arith.mulf %236, %238 : vector<286x32xf32>
    %c0_244 = arith.constant 0 : index
    %c0_245 = arith.constant 0 : index
    %240 = vector.load %arg21[%c0_244, %c0_245] : memref<286x32xf32, #tpu.memory_space<vmem>>, vector<286x32xf32>
    %241 = arith.addf %240, %239 : vector<286x32xf32>
    %c0_246 = arith.constant 0 : index
    %c0_247 = arith.constant 0 : index
    %242 = vector.load %arg21[%c0_246, %c0_247] : memref<286x32xf32, #tpu.memory_space<vmem>>, vector<286x32xf32>
    tpu.vector_store %arg21[%c0_246, %c0_247], %241 {strides = array<i32>} : memref<286x32xf32, #tpu.memory_space<vmem>>, vector<286x32xf32>,
    %c2_248 = arith.constant 2 : index
    %c0_249 = arith.constant 0 : index
    %243 = vector.load %arg19[%c2_248, %c0_249] : memref<324x32xf32, #tpu.memory_space<vmem>>, vector<286x32xf32>
    %c9_250 = arith.constant 9 : index
    %c0_251 = arith.constant 0 : index
    %244 = vector.load %arg2[%c9_250, %c0_251] : memref<16x256xf32, #tpu.memory_space<vmem>>, vector<1x32xf32>
    %245 = vector.broadcast %244 : vector<1x32xf32> to vector<286x32xf32>
    %246 = arith.mulf %243, %245 : vector<286x32xf32>
    %c0_252 = arith.constant 0 : index
    %c0_253 = arith.constant 0 : index
    %247 = vector.load %arg21[%c0_252, %c0_253] : memref<286x32xf32, #tpu.memory_space<vmem>>, vector<286x32xf32>
    %248 = arith.addf %247, %246 : vector<286x32xf32>
    %c0_254 = arith.constant 0 : index
    %c0_255 = arith.constant 0 : index
    %249 = vector.load %arg21[%c0_254, %c0_255] : memref<286x32xf32, #tpu.memory_space<vmem>>, vector<286x32xf32>
    tpu.vector_store %arg21[%c0_254, %c0_255], %248 {strides = array<i32>} : memref<286x32xf32, #tpu.memory_space<vmem>>, vector<286x32xf32>,
    %c18_256 = arith.constant 18 : index
    %c0_257 = arith.constant 0 : index
    %250 = vector.load %arg19[%c18_256, %c0_257] : memref<324x32xf32, #tpu.memory_space<vmem>>, vector<286x32xf32>
    %c10_258 = arith.constant 10 : index
    %c0_259 = arith.constant 0 : index
    %251 = vector.load %arg2[%c10_258, %c0_259] : memref<16x256xf32, #tpu.memory_space<vmem>>, vector<1x32xf32>
    %252 = vector.broadcast %251 : vector<1x32xf32> to vector<286x32xf32>
    %253 = arith.mulf %250, %252 : vector<286x32xf32>
    %c0_260 = arith.constant 0 : index
    %c0_261 = arith.constant 0 : index
    %254 = vector.load %arg21[%c0_260, %c0_261] : memref<286x32xf32, #tpu.memory_space<vmem>>, vector<286x32xf32>
    %255 = arith.addf %254, %253 : vector<286x32xf32>
    %c0_262 = arith.constant 0 : index
    %c0_263 = arith.constant 0 : index
    %256 = vector.load %arg21[%c0_262, %c0_263] : memref<286x32xf32, #tpu.memory_space<vmem>>, vector<286x32xf32>
    tpu.vector_store %arg21[%c0_262, %c0_263], %255 {strides = array<i32>} : memref<286x32xf32, #tpu.memory_space<vmem>>, vector<286x32xf32>,
    %c19_264 = arith.constant 19 : index
    %c0_265 = arith.constant 0 : index
    %257 = vector.load %arg19[%c19_264, %c0_265] : memref<324x32xf32, #tpu.memory_space<vmem>>, vector<286x32xf32>
    %c11_266 = arith.constant 11 : index
    %c0_267 = arith.constant 0 : index
    %258 = vector.load %arg2[%c11_266, %c0_267] : memref<16x256xf32, #tpu.memory_space<vmem>>, vector<1x32xf32>
    %259 = vector.broadcast %258 : vector<1x32xf32> to vector<286x32xf32>
    %260 = arith.mulf %257, %259 : vector<286x32xf32>
    %c0_268 = arith.constant 0 : index
    %c0_269 = arith.constant 0 : index
    %261 = vector.load %arg21[%c0_268, %c0_269] : memref<286x32xf32, #tpu.memory_space<vmem>>, vector<286x32xf32>
    %262 = arith.addf %261, %260 : vector<286x32xf32>
    %c0_270 = arith.constant 0 : index
    %c0_271 = arith.constant 0 : index
    %263 = vector.load %arg21[%c0_270, %c0_271] : memref<286x32xf32, #tpu.memory_space<vmem>>, vector<286x32xf32>
    tpu.vector_store %arg21[%c0_270, %c0_271], %262 {strides = array<i32>} : memref<286x32xf32, #tpu.memory_space<vmem>>, vector<286x32xf32>,
    %c20_272 = arith.constant 20 : index
    %c0_273 = arith.constant 0 : index
    %264 = vector.load %arg19[%c20_272, %c0_273] : memref<324x32xf32, #tpu.memory_space<vmem>>, vector<286x32xf32>
    %c12_274 = arith.constant 12 : index
    %c0_275 = arith.constant 0 : index
    %265 = vector.load %arg2[%c12_274, %c0_275] : memref<16x256xf32, #tpu.memory_space<vmem>>, vector<1x32xf32>
    %266 = vector.broadcast %265 : vector<1x32xf32> to vector<286x32xf32>
    %267 = arith.mulf %264, %266 : vector<286x32xf32>
    %c0_276 = arith.constant 0 : index
    %c0_277 = arith.constant 0 : index
    %268 = vector.load %arg21[%c0_276, %c0_277] : memref<286x32xf32, #tpu.memory_space<vmem>>, vector<286x32xf32>
    %269 = arith.addf %268, %267 : vector<286x32xf32>
    %c0_278 = arith.constant 0 : index
    %c0_279 = arith.constant 0 : index
    %270 = vector.load %arg21[%c0_278, %c0_279] : memref<286x32xf32, #tpu.memory_space<vmem>>, vector<286x32xf32>
    tpu.vector_store %arg21[%c0_278, %c0_279], %269 {strides = array<i32>} : memref<286x32xf32, #tpu.memory_space<vmem>>, vector<286x32xf32>,
    %c36_280 = arith.constant 36 : index
    %c0_281 = arith.constant 0 : index
    %271 = vector.load %arg19[%c36_280, %c0_281] : memref<324x32xf32, #tpu.memory_space<vmem>>, vector<286x32xf32>
    %c13_282 = arith.constant 13 : index
    %c0_283 = arith.constant 0 : index
    %272 = vector.load %arg2[%c13_282, %c0_283] : memref<16x256xf32, #tpu.memory_space<vmem>>, vector<1x32xf32>
    %273 = vector.broadcast %272 : vector<1x32xf32> to vector<286x32xf32>
    %274 = arith.mulf %271, %273 : vector<286x32xf32>
    %c0_284 = arith.constant 0 : index
    %c0_285 = arith.constant 0 : index
    %275 = vector.load %arg21[%c0_284, %c0_285] : memref<286x32xf32, #tpu.memory_space<vmem>>, vector<286x32xf32>
    %276 = arith.addf %275, %274 : vector<286x32xf32>
    %c0_286 = arith.constant 0 : index
    %c0_287 = arith.constant 0 : index
    %277 = vector.load %arg21[%c0_286, %c0_287] : memref<286x32xf32, #tpu.memory_space<vmem>>, vector<286x32xf32>
    tpu.vector_store %arg21[%c0_286, %c0_287], %276 {strides = array<i32>} : memref<286x32xf32, #tpu.memory_space<vmem>>, vector<286x32xf32>,
    %c37 = arith.constant 37 : index
    %c0_288 = arith.constant 0 : index
    %278 = vector.load %arg19[%c37, %c0_288] : memref<324x32xf32, #tpu.memory_space<vmem>>, vector<286x32xf32>
    %c14_289 = arith.constant 14 : index
    %c0_290 = arith.constant 0 : index
    %279 = vector.load %arg2[%c14_289, %c0_290] : memref<16x256xf32, #tpu.memory_space<vmem>>, vector<1x32xf32>
    %280 = vector.broadcast %279 : vector<1x32xf32> to vector<286x32xf32>
    %281 = arith.mulf %278, %280 : vector<286x32xf32>
    %c0_291 = arith.constant 0 : index
    %c0_292 = arith.constant 0 : index
    %282 = vector.load %arg21[%c0_291, %c0_292] : memref<286x32xf32, #tpu.memory_space<vmem>>, vector<286x32xf32>
    %283 = arith.addf %282, %281 : vector<286x32xf32>
    %c0_293 = arith.constant 0 : index
    %c0_294 = arith.constant 0 : index
    %284 = vector.load %arg21[%c0_293, %c0_294] : memref<286x32xf32, #tpu.memory_space<vmem>>, vector<286x32xf32>
    tpu.vector_store %arg21[%c0_293, %c0_294], %283 {strides = array<i32>} : memref<286x32xf32, #tpu.memory_space<vmem>>, vector<286x32xf32>,
    %c38 = arith.constant 38 : index
    %c0_295 = arith.constant 0 : index
    %285 = vector.load %arg19[%c38, %c0_295] : memref<324x32xf32, #tpu.memory_space<vmem>>, vector<286x32xf32>
    %c15 = arith.constant 15 : index
    %c0_296 = arith.constant 0 : index
    %286 = vector.load %arg2[%c15, %c0_296] : memref<16x256xf32, #tpu.memory_space<vmem>>, vector<1x32xf32>
    %287 = vector.broadcast %286 : vector<1x32xf32> to vector<286x32xf32>
    %288 = arith.mulf %285, %287 : vector<286x32xf32>
    %c0_297 = arith.constant 0 : index
    %c0_298 = arith.constant 0 : index
    %289 = vector.load %arg21[%c0_297, %c0_298] : memref<286x32xf32, #tpu.memory_space<vmem>>, vector<286x32xf32>
    %290 = arith.addf %289, %288 : vector<286x32xf32>
    %c0_299 = arith.constant 0 : index
    %c0_300 = arith.constant 0 : index
    %291 = vector.load %arg21[%c0_299, %c0_300] : memref<286x32xf32, #tpu.memory_space<vmem>>, vector<286x32xf32>
    tpu.vector_store %arg21[%c0_299, %c0_300], %290 {strides = array<i32>} : memref<286x32xf32, #tpu.memory_space<vmem>>, vector<286x32xf32>,
    %c0_301 = arith.constant 0 : index
    %c0_302 = arith.constant 0 : index
    %292 = vector.load %arg21[%c0_301, %c0_302] : memref<286x32xf32, #tpu.memory_space<vmem>>, vector<286x32xf32>
    %c0_303 = arith.constant 0 : index
    %c0_304 = arith.constant 0 : index
    %293 = vector.load %arg12[%c0_303, %c0_304] : memref<32x2xbf16, #tpu.memory_space<vmem>>, vector<32x2xbf16>
    %294 = arith.extf %293 : vector<32x2xbf16> to vector<32x2xf32>
    %cst_305 = arith.constant dense<0.000000e+00> : vector<286x2xf32>
    %295 = tpu.matmul %292, %294, %cst_305 {dimension_numbers = #tpu.dot_dimension_numbers<[1], [0], [0], [1], [0, 0, 1, 1], [], []>} : vector<286x32xf32>, vector<32x2xf32>, vector<286x2xf32> -> vector<286x2xf32>
    %296 = vector.extract_strided_slice %295 {offsets = [0, 0], sizes = [286, 1], strides = [1, 1]} : vector<286x2xf32> to vector<286x1xf32>
    %297 = vector.broadcast %296 : vector<286x1xf32> to vector<286x16xf32>
    %298 = arith.mulf %297, %7 : vector<286x16xf32>
    %cst_306 = arith.constant dense<0.000000e+00> : vector<16x16xf32>
    %299 = tpu.matmul %9, %298, %cst_306 {dimension_numbers = #tpu.dot_dimension_numbers<[1], [0], [0], [1], [0, 0, 1, 1], [], []>} : vector<16x286xf32>, vector<286x16xf32>, vector<16x16xf32> -> vector<16x16xf32>
    %300 = vector.extract_strided_slice %295 {offsets = [0, 1], sizes = [286, 1], strides = [1, 1]} : vector<286x2xf32> to vector<286x1xf32>
    %301 = vector.broadcast %300 : vector<286x1xf32> to vector<286x16xf32>
    %302 = arith.mulf %301, %7 : vector<286x16xf32>
    %cst_307 = arith.constant dense<0.000000e+00> : vector<16x16xf32>
    %303 = tpu.matmul %9, %302, %cst_307 {dimension_numbers = #tpu.dot_dimension_numbers<[1], [0], [0], [1], [0, 0, 1, 1], [], []>} : vector<16x286xf32>, vector<286x16xf32>, vector<16x16xf32> -> vector<16x16xf32>
    %304 = tpu.concatenate %299, %303 in 1 : vector<16x16xf32>, vector<16x16xf32> -> vector<16x32xf32>
    %c6_308 = arith.constant 6 : index
    %c0_309 = arith.constant 0 : index
    %305 = vector.load %arg2[%c6_308, %c0_309] : memref<16x256xf32, #tpu.memory_space<vmem>>, vector<1x1xf32>
    %306 = vector.broadcast %305 : vector<1x1xf32> to vector<16x32xf32>
    %307 = arith.addf %304, %306 : vector<16x32xf32>
    %cst_310 = arith.constant 0.000000e+00 : f32
    %308 = vector.broadcast %cst_310 : f32 to vector<16x32xf32>
    %309 = arith.maximumf %307, %308 : vector<16x32xf32>
    %c0_311 = arith.constant 0 : index
    %c0_312 = arith.constant 0 : index
    %310 = vector.load %arg15[%c0_311, %c0_312] : memref<16x32xf32, #tpu.memory_space<vmem>>, vector<16x32xf32>
    tpu.vector_store %arg15[%c0_311, %c0_312], %309 {strides = array<i32>} : memref<16x32xf32, #tpu.memory_space<vmem>>, vector<16x32xf32>,
    return
  }
}

</mosaic_0001>

<llo_original>
// kernel: decoder_forward.1
$region0: #{decoder_forward.1}
  #allocation0 [shape = 'u32[]', space=smem, size = 0x4, offset = 0x4, fixed_abs, tag = 'smem constant byte address 0x4 - core index']
  #allocation1 [shape = 'u32[72,128]{1,0:T(1,128)}', space=vmem, size = 0x9000, scoped, tag = 'internal scratch']
  #allocation2 [shape = 'f32[36,32]{1,0:T(8,128)}', space=vmem, size = 0x5000, scoped, tag = 'scratch operand']
  #allocation3 [shape = 'f32[81,128]{1,0:T(8,128)}', space=vmem, size = 0xb000, scoped, tag = 'scratch operand']
  #allocation4 [shape = 'f32[289,64]{1,0:T(8,128)}', space=vmem, size = 0x25000, scoped, tag = 'scratch operand']
  #allocation5 [shape = 'f32[324,32]{1,0:T(8,128)}', space=vmem, size = 0x29000, scoped, tag = 'scratch operand']
  #allocation6 [shape = 'f32[253,32]{1,0:T(8,128)}', space=vmem, size = 0x20000, scoped, tag = 'scratch operand']
  #allocation7 [shape = 'f32[286,32]{1,0:T(8,128)}', space=vmem, size = 0x24000, scoped, tag = 'scratch operand']
  %s0 = inlined_call_operand.vmem [shape: f32[2,32], index: 0, kind: input, shape index: {}]
  %s1 = inlined_call_operand.vmem [shape: f32[32,256], index: 1, kind: input, shape index: {}]
  %s2 = inlined_call_operand.vmem [shape: f32[16,256], index: 2, kind: input, shape index: {}]
  %s3 = inlined_call_operand.vmem [shape: bf16[32,256], index: 3, kind: input, shape index: {}]
  %s4 = inlined_call_operand.vmem [shape: bf16[256,16], index: 4, kind: input, shape index: {}]
  %s5 = inlined_call_operand.vmem [shape: bf16[36,16], index: 5, kind: input, shape index: {}]
  %s6 = inlined_call_operand.vmem [shape: f32[9,32,128], index: 6, kind: input, shape index: {}]
  %s7 = inlined_call_operand.vmem [shape: f32[9,128,64], index: 7, kind: input, shape index: {}]
  %s8 = inlined_call_operand.vmem [shape: f32[9,64,32], index: 8, kind: input, shape index: {}]
  %s9 = inlined_call_operand.vmem [shape: bf16[81,22], index: 9, kind: input, shape index: {}]
  %s10 = inlined_call_operand.vmem [shape: bf16[289,61], index: 10, kind: input, shape index: {}]
  %s11 = inlined_call_operand.vmem [shape: bf16[324,253], index: 11, kind: input, shape index: {}]
  %s12 = inlined_call_operand.vmem [shape: bf16[32,2], index: 12, kind: input, shape index: {}]
  %s13 = inlined_call_operand.vmem [shape: bf16[286,16], index: 13, kind: input, shape index: {}]
  %s14 = inlined_call_operand.vmem [shape: bf16[16,286], index: 14, kind: input, shape index: {}]
  %s15 = inlined_call_operand.vmem [shape: f32[16,32], index: 15, kind: output, shape index: {}]
  %s16 = sld [smem:[#allocation0]]
  $region70: #{decoder_forward.1} parent=0
    _
  %s18 = ssub.s32 1, %s16
  %s19 = scalar_select 0, %s18, %s16
  // Predicated region
  $region2: #{decoder_forward.1} parent=0 // pred_check
    _
  $region3: #{decoder_forward.1} parent=0 // pred_check_branch
    %21 = sbr.rel (0) target = $region5
  $region4: #{decoder_forward.1} parent=0 // pred_region
    _
  $region5: #{decoder_forward.1} parent=0 // pred_fallthru
    _
  // Predicated region
  $region6: #{decoder_forward.1} parent=0 // pred_check
    _
  $region7: #{decoder_forward.1} parent=0 // pred_check_branch
    %23 = sbr.rel (0) target = $region9
  $region8: #{decoder_forward.1} parent=0 // pred_region
    _
  $region9: #{decoder_forward.1} parent=0 // pred_fallthru
    _
  // Predicated region
  $region10: #{decoder_forward.1} parent=0 // pred_check
    _
  $region11: #{decoder_forward.1} parent=0 // pred_check_branch
    %25 = sbr.rel (0) target = $region13
  $region12: #{decoder_forward.1} parent=0 // pred_region
    _
  $region13: #{decoder_forward.1} parent=0 // pred_fallthru
    _
  // Predicated region
  $region14: #{decoder_forward.1} parent=0 // pred_check
    _
  $region15: #{decoder_forward.1} parent=0 // pred_check_branch
    %27 = sbr.rel (0) target = $region17
  $region16: #{decoder_forward.1} parent=0 // pred_region
    _
  $region17: #{decoder_forward.1} parent=0 // pred_fallthru
    _
  // Predicated region
  $region18: #{decoder_forward.1} parent=0 // pred_check
    _
  $region19: #{decoder_forward.1} parent=0 // pred_check_branch
    %29 = sbr.rel (0) target = $region21
  $region20: #{decoder_forward.1} parent=0 // pred_region
    _
  $region21: #{decoder_forward.1} parent=0 // pred_fallthru
    _
  // Predicated region
  $region22: #{decoder_forward.1} parent=0 // pred_check
    _
  $region23: #{decoder_forward.1} parent=0 // pred_check_branch
    %31 = sbr.rel (0) target = $region25
  $region24: #{decoder_forward.1} parent=0 // pred_region
    _
  $region25: #{decoder_forward.1} parent=0 // pred_fallthru
    _
  // Predicated region
  $region26: #{decoder_forward.1} parent=0 // pred_check
    _
  $region27: #{decoder_forward.1} parent=0 // pred_check_branch
    %33 = sbr.rel (0) target = $region29
  $region28: #{decoder_forward.1} parent=0 // pred_region
    _
  $region29: #{decoder_forward.1} parent=0 // pred_fallthru
    _
  // Predicated region
  $region30: #{decoder_forward.1} parent=0 // pred_check
    _
  $region31: #{decoder_forward.1} parent=0 // pred_check_branch
    %35 = sbr.rel (0) target = $region33
  $region32: #{decoder_forward.1} parent=0 // pred_region
    _
  $region33: #{decoder_forward.1} parent=0 // pred_fallthru
    _
  // Predicated region
  $region34: #{decoder_forward.1} parent=0 // pred_check
    _
  $region35: #{decoder_forward.1} parent=0 // pred_check_branch
    %37 = sbr.rel (0) target = $region37
  $region36: #{decoder_forward.1} parent=0 // pred_region
    _
  $region37: #{decoder_forward.1} parent=0 // pred_fallthru
    _
  // Predicated region
  $region38: #{decoder_forward.1} parent=0 // pred_check
    _
  $region39: #{decoder_forward.1} parent=0 // pred_check_branch
    %39 = sbr.rel (0) target = $region41
  $region40: #{decoder_forward.1} parent=0 // pred_region
    _
  $region41: #{decoder_forward.1} parent=0 // pred_fallthru
    _
  // Predicated region
  $region42: #{decoder_forward.1} parent=0 // pred_check
    _
  $region43: #{decoder_forward.1} parent=0 // pred_check_branch
    %41 = sbr.rel (0) target = $region45
  $region44: #{decoder_forward.1} parent=0 // pred_region
    _
  $region45: #{decoder_forward.1} parent=0 // pred_fallthru
    _
  // Predicated region
  $region46: #{decoder_forward.1} parent=0 // pred_check
    _
  $region47: #{decoder_forward.1} parent=0 // pred_check_branch
    %43 = sbr.rel (0) target = $region49
  $region48: #{decoder_forward.1} parent=0 // pred_region
    _
  $region49: #{decoder_forward.1} parent=0 // pred_fallthru
    _
  // Predicated region
  $region50: #{decoder_forward.1} parent=0 // pred_check
    _
  $region51: #{decoder_forward.1} parent=0 // pred_check_branch
    %45 = sbr.rel (0) target = $region53
  $region52: #{decoder_forward.1} parent=0 // pred_region
    _
  $region53: #{decoder_forward.1} parent=0 // pred_fallthru
    _
  // Predicated region
  $region54: #{decoder_forward.1} parent=0 // pred_check
    _
  $region55: #{decoder_forward.1} parent=0 // pred_check_branch
    %47 = sbr.rel (0) target = $region57
  $region56: #{decoder_forward.1} parent=0 // pred_region
    _
  $region57: #{decoder_forward.1} parent=0 // pred_fallthru
    _
  // Predicated region
  $region58: #{decoder_forward.1} parent=0 // pred_check
    _
  $region59: #{decoder_forward.1} parent=0 // pred_check_branch
    %49 = sbr.rel (0) target = $region61
  $region60: #{decoder_forward.1} parent=0 // pred_region
    _
  $region61: #{decoder_forward.1} parent=0 // pred_fallthru
    _
  %v50 = vld [vmem:[%s4] sm:$0xf]
  %v51 = vld [vmem:[%s4 + $0x4] sm:$0xf]
  %v52 = vld [vmem:[%s4 + $0x8] sm:$0xf]
  %v53 = vld [vmem:[%s4 + $0xc] sm:$0xf]
  %v54 = vld [vmem:[%s4 + $0x10] sm:$0xf]
  %v55 = vld [vmem:[%s4 + $0x14] sm:$0xf]
  %v56 = vld [vmem:[%s4 + $0x18] sm:$0xf]
  %v57 = vld [vmem:[%s4 + $0x1c] sm:$0xf]
  %v58 = vld [vmem:[%s4 + $0x20] sm:$0xf]
  %v59 = vld [vmem:[%s4 + $0x24] sm:$0xf]
  %v60 = vld [vmem:[%s4 + $0x28] sm:$0xf]
  %v61 = vld [vmem:[%s4 + $0x2c] sm:$0xf]
  %v62 = vld [vmem:[%s4 + $0x30] sm:$0xf]
  %v63 = vld [vmem:[%s4 + $0x34] sm:$0xf]
  %v64 = vld [vmem:[%s4 + $0x38] sm:$0xf]
  %v65 = vld [vmem:[%s4 + $0x3c] sm:$0xf]
  %v66 = vld [vmem:[%s4 + $0x40] sm:$0xf]
  %v67 = vld [vmem:[%s4 + $0x44] sm:$0xf]
  %v68 = vld [vmem:[%s4 + $0x48] sm:$0xf]
  %v69 = vld [vmem:[%s4 + $0x4c] sm:$0xf]
  %v70 = vld [vmem:[%s4 + $0x50] sm:$0xf]
  %v71 = vld [vmem:[%s4 + $0x54] sm:$0xf]
  %v72 = vld [vmem:[%s4 + $0x58] sm:$0xf]
  %v73 = vld [vmem:[%s4 + $0x5c] sm:$0xf]
  %v74 = vld [vmem:[%s4 + $0x60] sm:$0xf]
  %v75 = vld [vmem:[%s4 + $0x64] sm:$0xf]
  %v76 = vld [vmem:[%s4 + $0x68] sm:$0xf]
  %v77 = vld [vmem:[%s4 + $0x6c] sm:$0xf]
  %v78 = vld [vmem:[%s4 + $0x70] sm:$0xf]
  %v79 = vld [vmem:[%s4 + $0x74] sm:$0xf]
  %v80 = vld [vmem:[%s4 + $0x78] sm:$0xf]
  %v81 = vld [vmem:[%s4 + $0x7c] sm:$0xf]
  %v82 = vunpack.c.l.bf16 %v50
  %v83 = vunpack.c.l.bf16 %v51
  %v84 = vunpack.c.l.bf16 %v52
  %v85 = vunpack.c.l.bf16 %v53
  %v86 = vunpack.c.l.bf16 %v54
  %v87 = vunpack.c.l.bf16 %v55
  %v88 = vunpack.c.l.bf16 %v56
  %v89 = vunpack.c.l.bf16 %v57
  %v90 = vunpack.c.l.bf16 %v58
  %v91 = vunpack.c.l.bf16 %v59
  %v92 = vunpack.c.l.bf16 %v60
  %v93 = vunpack.c.l.bf16 %v61
  %v94 = vunpack.c.l.bf16 %v62
  %v95 = vunpack.c.l.bf16 %v63
  %v96 = vunpack.c.l.bf16 %v64
  %v97 = vunpack.c.l.bf16 %v65
  %v98 = vunpack.c.l.bf16 %v66
  %v99 = vunpack.c.l.bf16 %v67
  %v100 = vunpack.c.l.bf16 %v68
  %v101 = vunpack.c.l.bf16 %v69
  %v102 = vunpack.c.l.bf16 %v70
  %v103 = vunpack.c.l.bf16 %v71
  %v104 = vunpack.c.l.bf16 %v72
  %v105 = vunpack.c.l.bf16 %v73
  %v106 = vunpack.c.l.bf16 %v74
  %v107 = vunpack.c.l.bf16 %v75
  %v108 = vunpack.c.l.bf16 %v76
  %v109 = vunpack.c.l.bf16 %v77
  %v110 = vunpack.c.l.bf16 %v78
  %v111 = vunpack.c.l.bf16 %v79
  %v112 = vunpack.c.l.bf16 %v80
  %v113 = vunpack.c.l.bf16 %v81
  %v114 = vld [vmem:[%s3] sm:$0xff]
  %v115 = vld [vmem:[%s3 + $0x8] sm:$0xff]
  %v116 = vunpack.c.l.bf16 %v114
  %v117 = vunpack.c.h.bf16 %v114
  %v118 = vunpack.c.l.bf16 %v115
  %v119 = vunpack.c.h.bf16 %v115
  %v120 = vld [vmem:[%s3 + $0x10] sm:$0xff]
  %v121 = vld [vmem:[%s3 + $0x18] sm:$0xff]
  %v122 = vunpack.c.l.bf16 %v120
  %v123 = vunpack.c.h.bf16 %v120
  %v124 = vunpack.c.l.bf16 %v121
  %v125 = vunpack.c.h.bf16 %v121
  %v126 = vld [vmem:[%s13] sm:$0xf]
  %v127 = vld [vmem:[%s13 + $0x4] sm:$0xf]
  %v128 = vld [vmem:[%s13 + $0x8] sm:$0xf]
  %v129 = vld [vmem:[%s13 + $0xc] sm:$0xf]
  %v130 = vld [vmem:[%s13 + $0x10] sm:$0xf]
  %v131 = vld [vmem:[%s13 + $0x14] sm:$0xf]
  %v132 = vld [vmem:[%s13 + $0x18] sm:$0xf]
  %v133 = vld [vmem:[%s13 + $0x1c] sm:$0xf]
  %v134 = vld [vmem:[%s13 + $0x20] sm:$0xf]
  %v135 = vld [vmem:[%s13 + $0x24] sm:$0xf]
  %v136 = vld [vmem:[%s13 + $0x28] sm:$0xf]
  %v137 = vld [vmem:[%s13 + $0x2c] sm:$0xf]
  %v138 = vld [vmem:[%s13 + $0x30] sm:$0xf]
  %v139 = vld [vmem:[%s13 + $0x34] sm:$0xf]
  %v140 = vld [vmem:[%s13 + $0x38] sm:$0xf]
  %v141 = vld [vmem:[%s13 + $0x3c] sm:$0xf]
  %v142 = vld [vmem:[%s13 + $0x40] sm:$0xf]
  %v143 = vld [vmem:[%s13 + $0x44] sm:$0xf]
  %v144 = vld [vmem:[%s13 + $0x48] sm:$0xf]
  %v145 = vld [vmem:[%s13 + $0x4c] sm:$0xf]
  %v146 = vld [vmem:[%s13 + $0x50] sm:$0xf]
  %v147 = vld [vmem:[%s13 + $0x54] sm:$0xf]
  %v148 = vld [vmem:[%s13 + $0x58] sm:$0xf]
  %v149 = vld [vmem:[%s13 + $0x5c] sm:$0xf]
  %v150 = vld [vmem:[%s13 + $0x60] sm:$0xf]
  %v151 = vld [vmem:[%s13 + $0x64] sm:$0xf]
  %v152 = vld [vmem:[%s13 + $0x68] sm:$0xf]
  %v153 = vld [vmem:[%s13 + $0x6c] sm:$0xf]
  %v154 = vld [vmem:[%s13 + $0x70] sm:$0xf]
  %v155 = vld [vmem:[%s13 + $0x74] sm:$0xf]
  %v156 = vld [vmem:[%s13 + $0x78] sm:$0xf]
  %v157 = vld [vmem:[%s13 + $0x7c] sm:$0xf]
  %v158 = vld [vmem:[%s13 + $0x80] sm:$0xf]
  %v159 = vld [vmem:[%s13 + $0x84] sm:$0xf]
  %v160 = vld [vmem:[%s13 + $0x88] sm:$0xf]
  %v161 = vld [vmem:[%s13 + $0x8c] sm:$0x7]
  %v162 = vunpack.c.l.bf16 %v126
  %v163 = vunpack.c.l.bf16 %v127
  %v164 = vunpack.c.l.bf16 %v128
  %v165 = vunpack.c.l.bf16 %v129
  %v166 = vunpack.c.l.bf16 %v130
  %v167 = vunpack.c.l.bf16 %v131
  %v168 = vunpack.c.l.bf16 %v132
  %v169 = vunpack.c.l.bf16 %v133
  %v170 = vunpack.c.l.bf16 %v134
  %v171 = vunpack.c.l.bf16 %v135
  %v172 = vunpack.c.l.bf16 %v136
  %v173 = vunpack.c.l.bf16 %v137
  %v174 = vunpack.c.l.bf16 %v138
  %v175 = vunpack.c.l.bf16 %v139
  %v176 = vunpack.c.l.bf16 %v140
  %v177 = vunpack.c.l.bf16 %v141
  %v178 = vunpack.c.l.bf16 %v142
  %v179 = vunpack.c.l.bf16 %v143
  %v180 = vunpack.c.l.bf16 %v144
  %v181 = vunpack.c.l.bf16 %v145
  %v182 = vunpack.c.l.bf16 %v146
  %v183 = vunpack.c.l.bf16 %v147
  %v184 = vunpack.c.l.bf16 %v148
  %v185 = vunpack.c.l.bf16 %v149
  %v186 = vunpack.c.l.bf16 %v150
  %v187 = vunpack.c.l.bf16 %v151
  %v188 = vunpack.c.l.bf16 %v152
  %v189 = vunpack.c.l.bf16 %v153
  %v190 = vunpack.c.l.bf16 %v154
  %v191 = vunpack.c.l.bf16 %v155
  %v192 = vunpack.c.l.bf16 %v156
  %v193 = vunpack.c.l.bf16 %v157
  %v194 = vunpack.c.l.bf16 %v158
  %v195 = vunpack.c.l.bf16 %v159
  %v196 = vunpack.c.l.bf16 %v160
  %v197 = vunpack.c.l.bf16 %v161
  %v198 = vld [vmem:[%s14] sm:$0xff]
  %v199 = vld [vmem:[%s14 + $0x8] sm:$0xf]
  %v200 = vld [vmem:[%s14 + $0xc] sm:$0xff]
  %v201 = vld [vmem:[%s14 + $0x14] sm:$0xf]
  %v202 = vunpack.c.l.bf16 %v198
  %v203 = vunpack.c.h.bf16 %v198
  %v204 = vunpack.c.l.bf16 %v199
  %v205 = vunpack.c.l.bf16 %v200
  %v206 = vunpack.c.h.bf16 %v200
  %v207 = vunpack.c.l.bf16 %v201
  %v208 = vld [vmem:[%s0] sm:$0x3]
  %v209 = vld [vmem:[%s1] sm:$0xff]
  %v210 = vld [vmem:[%s1 + $0x8] sm:$0xff]
  %v211 = vld [vmem:[%s1 + $0x10] sm:$0xff]
  %v212 = vld [vmem:[%s1 + $0x18] sm:$0xff]
  %v213 = vld [vmem:[%s1 + $0x20] sm:$0xff]
  %v214 = vld [vmem:[%s1 + $0x28] sm:$0xff]
  %v215 = vld [vmem:[%s1 + $0x30] sm:$0xff]
  %v216 = vld [vmem:[%s1 + $0x38] sm:$0xff]
  %v217 = vld [vmem:[%s2] ss:$8 sm:$0x3]
  %v219 = vperm.slane %v217, 0
  %v220 = vperm.slane %v217, 1
  %vm223 = vcmask 261120
  %v225 = vsel %vm223, %v208, 0
  %227 = vmatpush.msra.mxu0 0.0
  %228 = vmatpush.msra.mxu0 0.0
  %229 = vmatpush.msra.mxu0 0.0
  %230 = vmatpush.msra.mxu0 0.0
  %231 = vmatpush.msra.mxu0 0.0
  %232 = vmatpush.msra.mxu0 0.0
  %233 = vmatpush.msra.mxu0 0.0
  %234 = vmatpush.msra.mxu0 0.0
  %235 = vmatpush.msra.mxu0 0.0
  %236 = vmatpush.msra.mxu0 0.0
  %237 = vmatpush.msra.mxu0 0.0
  %238 = vmatpush.msra.mxu0 0.0
  %239 = vmatpush.msra.mxu0 %v215
  %240 = vmatpush.msra.mxu0 %v213
  %241 = vmatpush.msra.mxu0 %v211
  %242 = vmatpush.msra.mxu0 %v209
  %243 = vmatmul.f32.gmra.mxu0 %v225
  %v244 = vpop.f32.mrf.mxu0
  %v245 = vadd.f32 %v219, %v244
  %246 = vdwg.mxu0
  %247 = vmatpush.msra.mxu0 0.0
  %248 = vmatpush.msra.mxu0 0.0
  %249 = vmatpush.msra.mxu0 0.0
  %250 = vmatpush.msra.mxu0 0.0
  %251 = vmatpush.msra.mxu0 0.0
  %252 = vmatpush.msra.mxu0 0.0
  %253 = vmatpush.msra.mxu0 0.0
  %254 = vmatpush.msra.mxu0 0.0
  %255 = vmatpush.msra.mxu0 0.0
  %256 = vmatpush.msra.mxu0 0.0
  %257 = vmatpush.msra.mxu0 0.0
  %258 = vmatpush.msra.mxu0 0.0
  %259 = vmatpush.msra.mxu0 %v216
  %260 = vmatpush.msra.mxu0 %v214
  %261 = vmatpush.msra.mxu0 %v212
  %262 = vmatpush.msra.mxu0 %v210
  %263 = vmatmul.f32.gmra.mxu0 %v225
  %v264 = vpop.f32.mrf.mxu0
  %v265 = vadd.f32 %v220, %v264
  %266 = vdwg.mxu0
  %v267 = vmax.f32 %v245, 0.0
  %v268 = vmax.f32 %v265, 0.0
  %vm269 = vcmask 1041408
  %v270 = vsel %vm269, %v267, 0.0
  %v271 = vrot.slane %v270, 4
  %v272 = vadd.f32 %v270, %v271
  %v273 = vrot.slane %v272, 2
  %v274 = vadd.f32 %v272, %v273
  %v275 = vrot.slane %v274, 1
  %v276 = vadd.f32 %v274, %v275
  %v277 = vsel %vm269, %v268, 0.0
  %v278 = vrot.slane %v277, 4
  %v279 = vadd.f32 %v277, %v278
  %v280 = vrot.slane %v279, 2
  %v281 = vadd.f32 %v279, %v280
  %v282 = vrot.slane %v281, 1
  %v283 = vadd.f32 %v281, %v282
  %v284 = vmul.f32 %v267, %v267
  %v285 = vmul.f32 %v268, %v268
  %v286 = vsel %vm269, %v284, 0.0
  %v287 = vrot.slane %v286, 4
  %v288 = vadd.f32 %v286, %v287
  %v289 = vrot.slane %v288, 2
  %v290 = vadd.f32 %v288, %v289
  %v291 = vrot.slane %v290, 1
  %v292 = vadd.f32 %v290, %v291
  %v293 = vsel %vm269, %v285, 0.0
  %v294 = vrot.slane %v293, 4
  %v295 = vadd.f32 %v293, %v294
  %v296 = vrot.slane %v295, 2
  %v297 = vadd.f32 %v295, %v296
  %v298 = vrot.slane %v297, 1
  %v299 = vadd.f32 %v297, %v298
  %300 = vmatpush.msra.mxu0 %v97
  %301 = vmatpush.msra.mxu0 %v96
  %302 = vmatpush.msra.mxu0 %v95
  %303 = vmatpush.msra.mxu0 %v94
  %304 = vmatpush.msra.mxu0 %v93
  %305 = vmatpush.msra.mxu0 %v92
  %306 = vmatpush.msra.mxu0 %v91
  %307 = vmatpush.msra.mxu0 %v90
  %308 = vmatpush.msra.mxu0 %v89
  %309 = vmatpush.msra.mxu0 %v88
  %310 = vmatpush.msra.mxu0 %v87
  %311 = vmatpush.msra.mxu0 %v86
  %312 = vmatpush.msra.mxu0 %v85
  %313 = vmatpush.msra.mxu0 %v84
  %314 = vmatpush.msra.mxu0 %v83
  %315 = vmatpush.msra.mxu0 %v82
  %316 = vmatmul.f32.gmra.mxu0 %v276
  %v317 = vpop.f32.mrf.mxu0
  %v318 = vadd.f32 0.0, %v317
  %319 = vdwg.mxu0
  %320 = vmatpush.msra.mxu0 %v113
  %321 = vmatpush.msra.mxu0 %v112
  %322 = vmatpush.msra.mxu0 %v111
  %323 = vmatpush.msra.mxu0 %v110
  %324 = vmatpush.msra.mxu0 %v109
  %325 = vmatpush.msra.mxu0 %v108
  %326 = vmatpush.msra.mxu0 %v107
  %327 = vmatpush.msra.mxu0 %v106
  %328 = vmatpush.msra.mxu0 %v105
  %329 = vmatpush.msra.mxu0 %v104
  %330 = vmatpush.msra.mxu0 %v103
  %331 = vmatpush.msra.mxu0 %v102
  %332 = vmatpush.msra.mxu0 %v101
  %333 = vmatpush.msra.mxu0 %v100
  %334 = vmatpush.msra.mxu0 %v99
  %335 = vmatpush.msra.mxu0 %v98
  %336 = vmatmul.f32.gmra.mxu0 %v283
  %v337 = vpop.f32.mrf.mxu0
  %v338 = vadd.f32 %v318, %v337
  %339 = vdwg.mxu0
  %v340 = vmul.f32 %v338, 0.03125
  %341 = vmatpush.msra.mxu0 %v97
  %342 = vmatpush.msra.mxu0 %v96
  %343 = vmatpush.msra.mxu0 %v95
  %344 = vmatpush.msra.mxu0 %v94
  %345 = vmatpush.msra.mxu0 %v93
  %346 = vmatpush.msra.mxu0 %v92
  %347 = vmatpush.msra.mxu0 %v91
  %348 = vmatpush.msra.mxu0 %v90
  %349 = vmatpush.msra.mxu0 %v89
  %350 = vmatpush.msra.mxu0 %v88
  %351 = vmatpush.msra.mxu0 %v87
  %352 = vmatpush.msra.mxu0 %v86
  %353 = vmatpush.msra.mxu0 %v85
  %354 = vmatpush.msra.mxu0 %v84
  %355 = vmatpush.msra.mxu0 %v83
  %356 = vmatpush.msra.mxu0 %v82
  %357 = vmatmul.f32.gmra.mxu0 %v292
  %v358 = vpop.f32.mrf.mxu0
  %v359 = vadd.f32 0.0, %v358
  %360 = vdwg.mxu0
  %361 = vmatpush.msra.mxu0 %v113
  %362 = vmatpush.msra.mxu0 %v112
  %363 = vmatpush.msra.mxu0 %v111
  %364 = vmatpush.msra.mxu0 %v110
  %365 = vmatpush.msra.mxu0 %v109
  %366 = vmatpush.msra.mxu0 %v108
  %367 = vmatpush.msra.mxu0 %v107
  %368 = vmatpush.msra.mxu0 %v106
  %369 = vmatpush.msra.mxu0 %v105
  %370 = vmatpush.msra.mxu0 %v104
  %371 = vmatpush.msra.mxu0 %v103
  %372 = vmatpush.msra.mxu0 %v102
  %373 = vmatpush.msra.mxu0 %v101
  %374 = vmatpush.msra.mxu0 %v100
  %375 = vmatpush.msra.mxu0 %v99
  %376 = vmatpush.msra.mxu0 %v98
  %377 = vmatmul.f32.gmra.mxu0 %v299
  %v378 = vpop.f32.mrf.mxu0
  %v379 = vadd.f32 %v359, %v378
  %380 = vdwg.mxu0
  %v381 = vmul.f32 %v379, 0.03125
  %v382 = vmul.f32 %v340, %v340
  %v383 = vsub.f32 %v381, %v382
  %v384 = vmax.f32 %v383, 0.0
  %v385 = vld [vmem:[%s2 + $0x1] ss:$0 sm:$0xff]
  %v386 = vadd.f32 %v384, 1e-05
  %v387 = vrsqrt.pop %v386
  %v388 = vmul.f32 %v387, %v386
  %v389 = vmul.f32 %v388, %v387
  %v390 = vmul.f32 0.5, %v389
  %v391 = vsub.f32 1.5, %v390
  %v392 = vmul.f32 %v387, %v391
  %vm393 = vweird.f32 %v386
  %vm394 = vweird.f32 %v387
  %vm395 = vmor %vm393, %vm394
  %v396 = vsel %vm395, %v387, %v392
  %v397 = vmul.f32 %v385, %v396
  %v398 = vld [vmem:[%s2 + $0x2] ss:$0 sm:$0xff]
  %v399 = vmul.f32 %v340, %v397
  %v400 = vsub.f32 %v398, %v399
  %vm401 = vcmask 130048
  %v403 = vsel %vm401, %v397, 0
  %405 = vmatpush.msra.mxu0 0.0
  %406 = vmatpush.msra.mxu0 0.0
  %407 = vmatpush.msra.mxu0 0.0
  %408 = vmatpush.msra.mxu0 0.0
  %409 = vmatpush.msra.mxu0 0.0
  %410 = vmatpush.msra.mxu0 0.0
  %411 = vmatpush.msra.mxu0 0.0
  %412 = vmatpush.msra.mxu0 0.0
  %413 = vmatpush.msra.mxu0 0.0
  %414 = vmatpush.msra.mxu0 0.0
  %415 = vmatpush.msra.mxu0 0.0
  %416 = vmatpush.msra.mxu0 0.0
  %417 = vmatpush.msra.mxu0 0.0
  %418 = vmatpush.msra.mxu0 0.0
  %419 = vmatpush.msra.mxu0 %v124
  %420 = vmatpush.msra.mxu0 %v122
  %421 = vmatmul.f32.gmra.mxu0 %v403
  %v422 = vpop.f32.mrf.mxu0
  %v423 = vadd.f32 0.0, %v422
  %424 = vdwg.mxu0
  %425 = vmatpush.msra.mxu0 0.0
  %426 = vmatpush.msra.mxu0 0.0
  %427 = vmatpush.msra.mxu0 0.0
  %428 = vmatpush.msra.mxu0 0.0
  %429 = vmatpush.msra.mxu0 0.0
  %430 = vmatpush.msra.mxu0 0.0
  %431 = vmatpush.msra.mxu0 0.0
  %432 = vmatpush.msra.mxu0 0.0
  %433 = vmatpush.msra.mxu0 0.0
  %434 = vmatpush.msra.mxu0 0.0
  %435 = vmatpush.msra.mxu0 0.0
  %436 = vmatpush.msra.mxu0 0.0
  %437 = vmatpush.msra.mxu0 0.0
  %438 = vmatpush.msra.mxu0 0.0
  %439 = vmatpush.msra.mxu0 %v125
  %440 = vmatpush.msra.mxu0 %v123
  %441 = vmatmul.f32.gmra.mxu0 %v403
  %v442 = vpop.f32.mrf.mxu0
  %v443 = vadd.f32 0.0, %v442
  %444 = vdwg.mxu0
  %v446 = vsel %vm401, %v400, 0
  %448 = vmatpush.msra.mxu0 0.0
  %449 = vmatpush.msra.mxu0 0.0
  %450 = vmatpush.msra.mxu0 0.0
  %451 = vmatpush.msra.mxu0 0.0
  %452 = vmatpush.msra.mxu0 0.0
  %453 = vmatpush.msra.mxu0 0.0
  %454 = vmatpush.msra.mxu0 0.0
  %455 = vmatpush.msra.mxu0 0.0
  %456 = vmatpush.msra.mxu0 0.0
  %457 = vmatpush.msra.mxu0 0.0
  %458 = vmatpush.msra.mxu0 0.0
  %459 = vmatpush.msra.mxu0 0.0
  %460 = vmatpush.msra.mxu0 0.0
  %461 = vmatpush.msra.mxu0 0.0
  %462 = vmatpush.msra.mxu0 %v124
  %463 = vmatpush.msra.mxu0 %v122
  %464 = vmatmul.f32.gmra.mxu0 %v446
  %v465 = vpop.f32.mrf.mxu0
  %v466 = vadd.f32 0.0, %v465
  %467 = vdwg.mxu0
  %468 = vmatpush.msra.mxu0 0.0
  %469 = vmatpush.msra.mxu0 0.0
  %470 = vmatpush.msra.mxu0 0.0
  %471 = vmatpush.msra.mxu0 0.0
  %472 = vmatpush.msra.mxu0 0.0
  %473 = vmatpush.msra.mxu0 0.0
  %474 = vmatpush.msra.mxu0 0.0
  %475 = vmatpush.msra.mxu0 0.0
  %476 = vmatpush.msra.mxu0 0.0
  %477 = vmatpush.msra.mxu0 0.0
  %478 = vmatpush.msra.mxu0 0.0
  %479 = vmatpush.msra.mxu0 0.0
  %480 = vmatpush.msra.mxu0 0.0
  %481 = vmatpush.msra.mxu0 0.0
  %482 = vmatpush.msra.mxu0 %v125
  %483 = vmatpush.msra.mxu0 %v123
  %484 = vmatmul.f32.gmra.mxu0 %v446
  %v485 = vpop.f32.mrf.mxu0
  %v486 = vadd.f32 0.0, %v485
  %487 = vdwg.mxu0
  %v488 = vperm.slane %v423, 0
  %v489 = vperm.slane %v443, 0
  %v490 = vmul.f32 %v267, %v488
  %v491 = vmul.f32 %v268, %v489
  %v492 = vperm.slane %v466, 0
  %v493 = vperm.slane %v486, 0
  %v494 = vadd.f32 %v490, %v492
  %v495 = vadd.f32 %v491, %v493
  %v496 = vperm.slane %v494, 0
  %v497 = vperm.slane %v495, 0
  %v498 = vmul.f32 %v496, %v116
  %v499 = vmul.f32 %v497, %v117
  %v500 = vmul.f32 %v496, %v118
  %v501 = vmul.f32 %v497, %v119
  %502 = vmatpush.msra.mxu0 %v97
  %503 = vmatpush.msra.mxu0 %v96
  %504 = vmatpush.msra.mxu0 %v95
  %505 = vmatpush.msra.mxu0 %v94
  %506 = vmatpush.msra.mxu0 %v93
  %507 = vmatpush.msra.mxu0 %v92
  %508 = vmatpush.msra.mxu0 %v91
  %509 = vmatpush.msra.mxu0 %v90
  %510 = vmatpush.msra.mxu0 %v89
  %511 = vmatpush.msra.mxu0 %v88
  %512 = vmatpush.msra.mxu0 %v87
  %513 = vmatpush.msra.mxu0 %v86
  %514 = vmatpush.msra.mxu0 %v85
  %515 = vmatpush.msra.mxu0 %v84
  %516 = vmatpush.msra.mxu0 %v83
  %517 = vmatpush.msra.mxu0 %v82
  %518 = vmatmul.f32.gmra.mxu0 %v498
  %v519 = vpop.f32.mrf.mxu0
  %v520 = vadd.f32 0.0, %v519
  %521 = vmatmul.f32.gmra.mxu0 %v500
  %v522 = vpop.f32.mrf.mxu0
  %v523 = vadd.f32 0.0, %v522
  %524 = vdwg.mxu0
  %525 = vmatpush.msra.mxu0 %v113
  %526 = vmatpush.msra.mxu0 %v112
  %527 = vmatpush.msra.mxu0 %v111
  %528 = vmatpush.msra.mxu0 %v110
  %529 = vmatpush.msra.mxu0 %v109
  %530 = vmatpush.msra.mxu0 %v108
  %531 = vmatpush.msra.mxu0 %v107
  %532 = vmatpush.msra.mxu0 %v106
  %533 = vmatpush.msra.mxu0 %v105
  %534 = vmatpush.msra.mxu0 %v104
  %535 = vmatpush.msra.mxu0 %v103
  %536 = vmatpush.msra.mxu0 %v102
  %537 = vmatpush.msra.mxu0 %v101
  %538 = vmatpush.msra.mxu0 %v100
  %539 = vmatpush.msra.mxu0 %v99
  %540 = vmatpush.msra.mxu0 %v98
  %541 = vmatmul.f32.gmra.mxu0 %v499
  %v542 = vpop.f32.mrf.mxu0
  %v543 = vadd.f32 %v520, %v542
  %544 = vmatmul.f32.gmra.mxu0 %v501
  %v545 = vpop.f32.mrf.mxu0
  %v546 = vadd.f32 %v523, %v545
  %547 = vdwg.mxu0
  %v548 = vperm.slane %v494, 1
  %v549 = vperm.slane %v495, 1
  %v550 = vmul.f32 %v548, %v116
  %v551 = vmul.f32 %v549, %v117
  %v552 = vmul.f32 %v548, %v118
  %v553 = vmul.f32 %v549, %v119
  %554 = vmatpush.msra.mxu0 %v97
  %555 = vmatpush.msra.mxu0 %v96
  %556 = vmatpush.msra.mxu0 %v95
  %557 = vmatpush.msra.mxu0 %v94
  %558 = vmatpush.msra.mxu0 %v93
  %559 = vmatpush.msra.mxu0 %v92
  %560 = vmatpush.msra.mxu0 %v91
  %561 = vmatpush.msra.mxu0 %v90
  %562 = vmatpush.msra.mxu0 %v89
  %563 = vmatpush.msra.mxu0 %v88
  %564 = vmatpush.msra.mxu0 %v87
  %565 = vmatpush.msra.mxu0 %v86
  %566 = vmatpush.msra.mxu0 %v85
  %567 = vmatpush.msra.mxu0 %v84
  %568 = vmatpush.msra.mxu0 %v83
  %569 = vmatpush.msra.mxu0 %v82
  %570 = vmatmul.f32.gmra.mxu0 %v550
  %v571 = vpop.f32.mrf.mxu0
  %v572 = vadd.f32 0.0, %v571
  %573 = vmatmul.f32.gmra.mxu0 %v552
  %v574 = vpop.f32.mrf.mxu0
  %v575 = vadd.f32 0.0, %v574
  %576 = vdwg.mxu0
  %577 = vmatpush.msra.mxu0 %v113
  %578 = vmatpush.msra.mxu0 %v112
  %579 = vmatpush.msra.mxu0 %v111
  %580 = vmatpush.msra.mxu0 %v110
  %581 = vmatpush.msra.mxu0 %v109
  %582 = vmatpush.msra.mxu0 %v108
  %583 = vmatpush.msra.mxu0 %v107
  %584 = vmatpush.msra.mxu0 %v106
  %585 = vmatpush.msra.mxu0 %v105
  %586 = vmatpush.msra.mxu0 %v104
  %587 = vmatpush.msra.mxu0 %v103
  %588 = vmatpush.msra.mxu0 %v102
  %589 = vmatpush.msra.mxu0 %v101
  %590 = vmatpush.msra.mxu0 %v100
  %591 = vmatpush.msra.mxu0 %v99
  %592 = vmatpush.msra.mxu0 %v98
  %593 = vmatmul.f32.gmra.mxu0 %v551
  %v594 = vpop.f32.mrf.mxu0
  %v595 = vadd.f32 %v572, %v594
  %596 = vmatmul.f32.gmra.mxu0 %v553
  %v597 = vpop.f32.mrf.mxu0
  %v598 = vadd.f32 %v575, %v597
  %599 = vdwg.mxu0
  %602 = vrot.lane.b32.xlu0 %v595, 16
  %v603 = vpop.permute.xlu0 %602
  %604 = vrot.lane.b32.xlu0 %v598, 16
  %v605 = vpop.permute.xlu0 %604
  %v608 = vsel %vm401, %v543, %v603
  %v609 = vsel %vm401, %v546, %v605
  %v610 = vld [vmem:[%s5] sm:$0xf]
  %v611 = vld [vmem:[%s5 + $0x4] sm:$0xf]
  %v612 = vld [vmem:[%s5 + $0x8] sm:$0xf]
  %v613 = vld [vmem:[%s5 + $0xc] sm:$0xf]
  %v614 = vld [vmem:[%s5 + $0x10] sm:$0x3]
  %v615 = vunpack.c.l.bf16 %v610
  %v616 = vunpack.c.l.bf16 %v611
  %v617 = vunpack.c.l.bf16 %v612
  %v618 = vunpack.c.l.bf16 %v613
  %v619 = vunpack.c.l.bf16 %v614
  %v621 = vsel %vm401, %v615, 0
  %v624 = vsel %vm401, %v616, 0
  %v627 = vsel %vm401, %v617, 0
  %v630 = vsel %vm401, %v618, 0
  %v633 = vsel %vm401, %v619, 0
  %635 = vmatpush.msra.mxu0 0.0
  %636 = vmatpush.msra.mxu0 0.0
  %637 = vmatpush.msra.mxu0 0.0
  %638 = vmatpush.msra.mxu0 0.0
  %639 = vmatpush.msra.mxu0 0.0
  %640 = vmatpush.msra.mxu0 0.0
  %641 = vmatpush.msra.mxu0 0.0
  %642 = vmatpush.msra.mxu0 0.0
  %643 = vmatpush.msra.mxu0 0.0
  %644 = vmatpush.msra.mxu0 0.0
  %645 = vmatpush.msra.mxu0 0.0
  %646 = vmatpush.msra.mxu0 0.0
  %647 = vmatpush.msra.mxu0 0.0
  %648 = vmatpush.msra.mxu0 0.0
  %649 = vmatpush.msra.mxu0 %v609
  %650 = vmatpush.msra.mxu0 %v608
  %651 = vmatmul.f32.gmra.mxu0 %v621
  %v652 = vpop.f32.mrf.mxu0
  %v653 = vadd.f32 0.0, %v652
  %654 = vmatmul.f32.gmra.mxu0 %v624
  %v655 = vpop.f32.mrf.mxu0
  %v656 = vadd.f32 0.0, %v655
  %657 = vmatmul.f32.gmra.mxu0 %v627
  %v658 = vpop.f32.mrf.mxu0
  %v659 = vadd.f32 0.0, %v658
  %660 = vmatmul.f32.gmra.mxu0 %v630
  %v661 = vpop.f32.mrf.mxu0
  %v662 = vadd.f32 0.0, %v661
  %663 = vmatmul.f32.gmra.mxu0 %v633
  %v664 = vpop.f32.mrf.mxu0
  %v665 = vadd.f32 0.0, %v664
  %666 = vdwg.mxu0
  %667 = vst.msk [vmem:[#allocation2] sm:$0xff] %vm223, %v653
  %668 = vst.msk [vmem:[#allocation2 + $0x8] sm:$0xff] %vm223, %v656
  %669 = vst.msk [vmem:[#allocation2 + $0x10] sm:$0xff] %vm223, %v659
  %670 = vst.msk [vmem:[#allocation2 + $0x18] sm:$0xff] %vm223, %v662
  %vm671 = vcmask 257024
  %672 = vst.msk [vmem:[#allocation2 + $0x20] sm:$0xf] %vm671, %v665
  %v673 = vld [vmem:[#allocation2] sm:$0xff]
  %v674 = vld [vmem:[#allocation2 + $0x8] sm:$0xff]
  %v675 = vld [vmem:[#allocation2 + $0x10] sm:$0x3f]
  %v676 = vld [vmem:[%s6] sm:$0xff]
  %v677 = vld [vmem:[%s6 + $0x8] sm:$0xff]
  %v678 = vld [vmem:[%s6 + $0x10] sm:$0xff]
  %v679 = vld [vmem:[%s6 + $0x18] sm:$0xff]
  %v680 = vld [vmem:[#allocation2 + $0x1] sm:$0xff]
  %v681 = vld [vmem:[#allocation2 + $0x9] sm:$0xff]
  %v682 = vld [vmem:[#allocation2 + $0x11] sm:$0x3f]
  %s683 = scalar_lea.vmem %s6, 32
  %v684 = vld [vmem:[%s683] sm:$0xff]
  %v685 = vld [vmem:[%s683 + $0x8] sm:$0xff]
  %v686 = vld [vmem:[%s683 + $0x10] sm:$0xff]
  %v687 = vld [vmem:[%s683 + $0x18] sm:$0xff]
  %v689 = vsel %vm223, %v680, 0
  %v692 = vsel %vm223, %v681, 0
  %v695 = vsel %vm223, %v682, 0
  %697 = vmatpush.msra.mxu0 0.0
  %698 = vmatpush.msra.mxu0 0.0
  %699 = vmatpush.msra.mxu0 0.0
  %700 = vmatpush.msra.mxu0 0.0
  %701 = vmatpush.msra.mxu0 0.0
  %702 = vmatpush.msra.mxu0 0.0
  %703 = vmatpush.msra.mxu0 0.0
  %704 = vmatpush.msra.mxu0 0.0
  %705 = vmatpush.msra.mxu0 0.0
  %706 = vmatpush.msra.mxu0 0.0
  %707 = vmatpush.msra.mxu0 0.0
  %708 = vmatpush.msra.mxu0 0.0
  %709 = vmatpush.msra.mxu0 %v687
  %710 = vmatpush.msra.mxu0 %v686
  %711 = vmatpush.msra.mxu0 %v685
  %712 = vmatpush.msra.mxu0 %v684
  %713 = vmatmul.f32.gmra.mxu0 %v689
  %v714 = vpop.f32.mrf.mxu0
  %v715 = vadd.f32 0.0, %v714
  %716 = vmatmul.f32.gmra.mxu0 %v692
  %v717 = vpop.f32.mrf.mxu0
  %v718 = vadd.f32 0.0, %v717
  %719 = vmatmul.f32.gmra.mxu0 %v695
  %v720 = vpop.f32.mrf.mxu0
  %v721 = vadd.f32 0.0, %v720
  %722 = vdwg.mxu0
  %v724 = vsel %vm223, %v673, 0
  %v727 = vsel %vm223, %v674, 0
  %v730 = vsel %vm223, %v675, 0
  %732 = vmatpush.msra.mxu0 0.0
  %733 = vmatpush.msra.mxu0 0.0
  %734 = vmatpush.msra.mxu0 0.0
  %735 = vmatpush.msra.mxu0 0.0
  %736 = vmatpush.msra.mxu0 0.0
  %737 = vmatpush.msra.mxu0 0.0
  %738 = vmatpush.msra.mxu0 0.0
  %739 = vmatpush.msra.mxu0 0.0
  %740 = vmatpush.msra.mxu0 0.0
  %741 = vmatpush.msra.mxu0 0.0
  %742 = vmatpush.msra.mxu0 0.0
  %743 = vmatpush.msra.mxu0 0.0
  %744 = vmatpush.msra.mxu0 %v679
  %745 = vmatpush.msra.mxu0 %v678
  %746 = vmatpush.msra.mxu0 %v677
  %747 = vmatpush.msra.mxu0 %v676
  %748 = vmatmul.f32.gmra.mxu0 %v724
  %v749 = vpop.f32.mrf.mxu0
  %v750 = vadd.f32 %v715, %v749
  %751 = vmatmul.f32.gmra.mxu0 %v727
  %v752 = vpop.f32.mrf.mxu0
  %v753 = vadd.f32 %v718, %v752
  %754 = vmatmul.f32.gmra.mxu0 %v730
  %v755 = vpop.f32.mrf.mxu0
  %v756 = vadd.f32 %v721, %v755
  %757 = vdwg.mxu0
  %v758 = vld [vmem:[#allocation2 + $0x2] sm:$0xff]
  %v759 = vld [vmem:[#allocation2 + $0xa] sm:$0xff]
  %v760 = vld [vmem:[#allocation2 + $0x12] sm:$0x3f]
  %s761 = scalar_lea.vmem %s6, 64
  %v762 = vld [vmem:[%s761] sm:$0xff]
  %v763 = vld [vmem:[%s761 + $0x8] sm:$0xff]
  %v764 = vld [vmem:[%s761 + $0x10] sm:$0xff]
  %v765 = vld [vmem:[%s761 + $0x18] sm:$0xff]
  %v767 = vsel %vm223, %v758, 0
  %v770 = vsel %vm223, %v759, 0
  %v773 = vsel %vm223, %v760, 0
  %775 = vmatpush.msra.mxu0 0.0
  %776 = vmatpush.msra.mxu0 0.0
  %777 = vmatpush.msra.mxu0 0.0
  %778 = vmatpush.msra.mxu0 0.0
  %779 = vmatpush.msra.mxu0 0.0
  %780 = vmatpush.msra.mxu0 0.0
  %781 = vmatpush.msra.mxu0 0.0
  %782 = vmatpush.msra.mxu0 0.0
  %783 = vmatpush.msra.mxu0 0.0
  %784 = vmatpush.msra.mxu0 0.0
  %785 = vmatpush.msra.mxu0 0.0
  %786 = vmatpush.msra.mxu0 0.0
  %787 = vmatpush.msra.mxu0 %v765
  %788 = vmatpush.msra.mxu0 %v764
  %789 = vmatpush.msra.mxu0 %v763
  %790 = vmatpush.msra.mxu0 %v762
  %791 = vmatmul.f32.gmra.mxu0 %v767
  %v792 = vpop.f32.mrf.mxu0
  %v793 = vadd.f32 0.0, %v792
  %794 = vmatmul.f32.gmra.mxu0 %v770
  %v795 = vpop.f32.mrf.mxu0
  %v796 = vadd.f32 0.0, %v795
  %797 = vmatmul.f32.gmra.mxu0 %v773
  %v798 = vpop.f32.mrf.mxu0
  %v799 = vadd.f32 0.0, %v798
  %800 = vdwg.mxu0
  %v801 = vadd.f32 %v750, %v793
  %v802 = vadd.f32 %v753, %v796
  %v803 = vadd.f32 %v756, %v799
  %v804 = vld [vmem:[#allocation2 + $0x6] sm:$0xff]
  %v805 = vld [vmem:[#allocation2 + $0xe] sm:$0xff]
  %v806 = vld [vmem:[#allocation2 + $0x16] sm:$0x3f]
  %s807 = scalar_lea.vmem %s6, 96
  %v808 = vld [vmem:[%s807] sm:$0xff]
  %v809 = vld [vmem:[%s807 + $0x8] sm:$0xff]
  %v810 = vld [vmem:[%s807 + $0x10] sm:$0xff]
  %v811 = vld [vmem:[%s807 + $0x18] sm:$0xff]
  %v813 = vsel %vm223, %v804, 0
  %v816 = vsel %vm223, %v805, 0
  %v819 = vsel %vm223, %v806, 0
  %821 = vmatpush.msra.mxu0 0.0
  %822 = vmatpush.msra.mxu0 0.0
  %823 = vmatpush.msra.mxu0 0.0
  %824 = vmatpush.msra.mxu0 0.0
  %825 = vmatpush.msra.mxu0 0.0
  %826 = vmatpush.msra.mxu0 0.0
  %827 = vmatpush.msra.mxu0 0.0
  %828 = vmatpush.msra.mxu0 0.0
  %829 = vmatpush.msra.mxu0 0.0
  %830 = vmatpush.msra.mxu0 0.0
  %831 = vmatpush.msra.mxu0 0.0
  %832 = vmatpush.msra.mxu0 0.0
  %833 = vmatpush.msra.mxu0 %v811
  %834 = vmatpush.msra.mxu0 %v810
  %835 = vmatpush.msra.mxu0 %v809
  %836 = vmatpush.msra.mxu0 %v808
  %837 = vmatmul.f32.gmra.mxu0 %v813
  %v838 = vpop.f32.mrf.mxu0
  %v839 = vadd.f32 0.0, %v838
  %840 = vmatmul.f32.gmra.mxu0 %v816
  %v841 = vpop.f32.mrf.mxu0
  %v842 = vadd.f32 0.0, %v841
  %843 = vmatmul.f32.gmra.mxu0 %v819
  %v844 = vpop.f32.mrf.mxu0
  %v845 = vadd.f32 0.0, %v844
  %846 = vdwg.mxu0
  %v847 = vadd.f32 %v801, %v839
  %v848 = vadd.f32 %v802, %v842
  %v849 = vadd.f32 %v803, %v845
  %v850 = vld [vmem:[#allocation2 + $0x7] sm:$0xff]
  %v851 = vld [vmem:[#allocation2 + $0xf] sm:$0xff]
  %v852 = vld [vmem:[#allocation2 + $0x17] sm:$0x3f]
  %s853 = scalar_lea.vmem %s6, 128
  %v854 = vld [vmem:[%s853] sm:$0xff]
  %v855 = vld [vmem:[%s853 + $0x8] sm:$0xff]
  %v856 = vld [vmem:[%s853 + $0x10] sm:$0xff]
  %v857 = vld [vmem:[%s853 + $0x18] sm:$0xff]
  %v859 = vsel %vm223, %v850, 0
  %v862 = vsel %vm223, %v851, 0
  %v865 = vsel %vm223, %v852, 0
  %867 = vmatpush.msra.mxu0 0.0
  %868 = vmatpush.msra.mxu0 0.0
  %869 = vmatpush.msra.mxu0 0.0
  %870 = vmatpush.msra.mxu0 0.0
  %871 = vmatpush.msra.mxu0 0.0
  %872 = vmatpush.msra.mxu0 0.0
  %873 = vmatpush.msra.mxu0 0.0
  %874 = vmatpush.msra.mxu0 0.0
  %875 = vmatpush.msra.mxu0 0.0
  %876 = vmatpush.msra.mxu0 0.0
  %877 = vmatpush.msra.mxu0 0.0
  %878 = vmatpush.msra.mxu0 0.0
  %879 = vmatpush.msra.mxu0 %v857
  %880 = vmatpush.msra.mxu0 %v856
  %881 = vmatpush.msra.mxu0 %v855
  %882 = vmatpush.msra.mxu0 %v854
  %883 = vmatmul.f32.gmra.mxu0 %v859
  %v884 = vpop.f32.mrf.mxu0
  %v885 = vadd.f32 0.0, %v884
  %886 = vmatmul.f32.gmra.mxu0 %v862
  %v887 = vpop.f32.mrf.mxu0
  %v888 = vadd.f32 0.0, %v887
  %889 = vmatmul.f32.gmra.mxu0 %v865
  %v890 = vpop.f32.mrf.mxu0
  %v891 = vadd.f32 0.0, %v890
  %892 = vdwg.mxu0
  %v893 = vadd.f32 %v847, %v885
  %v894 = vadd.f32 %v848, %v888
  %v895 = vadd.f32 %v849, %v891
  %v896 = vld [vmem:[#allocation2 + $0x8] sm:$0xff]
  %v897 = vld [vmem:[#allocation2 + $0x10] sm:$0xff]
  %v898 = vld [vmem:[#allocation2 + $0x18] sm:$0x3f]
  %s899 = scalar_lea.vmem %s6, 160
  %v900 = vld [vmem:[%s899] sm:$0xff]
  %v901 = vld [vmem:[%s899 + $0x8] sm:$0xff]
  %v902 = vld [vmem:[%s899 + $0x10] sm:$0xff]
  %v903 = vld [vmem:[%s899 + $0x18] sm:$0xff]
  %v905 = vsel %vm223, %v896, 0
  %v908 = vsel %vm223, %v897, 0
  %v911 = vsel %vm223, %v898, 0
  %913 = vmatpush.msra.mxu0 0.0
  %914 = vmatpush.msra.mxu0 0.0
  %915 = vmatpush.msra.mxu0 0.0
  %916 = vmatpush.msra.mxu0 0.0
  %917 = vmatpush.msra.mxu0 0.0
  %918 = vmatpush.msra.mxu0 0.0
  %919 = vmatpush.msra.mxu0 0.0
  %920 = vmatpush.msra.mxu0 0.0
  %921 = vmatpush.msra.mxu0 0.0
  %922 = vmatpush.msra.mxu0 0.0
  %923 = vmatpush.msra.mxu0 0.0
  %924 = vmatpush.msra.mxu0 0.0
  %925 = vmatpush.msra.mxu0 %v903
  %926 = vmatpush.msra.mxu0 %v902
  %927 = vmatpush.msra.mxu0 %v901
  %928 = vmatpush.msra.mxu0 %v900
  %929 = vmatmul.f32.gmra.mxu0 %v905
  %v930 = vpop.f32.mrf.mxu0
  %v931 = vadd.f32 0.0, %v930
  %932 = vmatmul.f32.gmra.mxu0 %v908
  %v933 = vpop.f32.mrf.mxu0
  %v934 = vadd.f32 0.0, %v933
  %935 = vmatmul.f32.gmra.mxu0 %v911
  %v936 = vpop.f32.mrf.mxu0
  %v937 = vadd.f32 0.0, %v936
  %938 = vdwg.mxu0
  %v939 = vadd.f32 %v893, %v931
  %v940 = vadd.f32 %v894, %v934
  %v941 = vadd.f32 %v895, %v937
  %v942 = vld [vmem:[#allocation2 + $0xc] sm:$0xff]
  %v943 = vld [vmem:[#allocation2 + $0x14] sm:$0xff]
  %v944 = vld [vmem:[#allocation2 + $0x1c] sm:$0x3f]
  %s945 = scalar_lea.vmem %s6, 192
  %v946 = vld [vmem:[%s945] sm:$0xff]
  %v947 = vld [vmem:[%s945 + $0x8] sm:$0xff]
  %v948 = vld [vmem:[%s945 + $0x10] sm:$0xff]
  %v949 = vld [vmem:[%s945 + $0x18] sm:$0xff]
  %v951 = vsel %vm223, %v942, 0
  %v954 = vsel %vm223, %v943, 0
  %v957 = vsel %vm223, %v944, 0
  %959 = vmatpush.msra.mxu0 0.0
  %960 = vmatpush.msra.mxu0 0.0
  %961 = vmatpush.msra.mxu0 0.0
  %962 = vmatpush.msra.mxu0 0.0
  %963 = vmatpush.msra.mxu0 0.0
  %964 = vmatpush.msra.mxu0 0.0
  %965 = vmatpush.msra.mxu0 0.0
  %966 = vmatpush.msra.mxu0 0.0
  %967 = vmatpush.msra.mxu0 0.0
  %968 = vmatpush.msra.mxu0 0.0
  %969 = vmatpush.msra.mxu0 0.0
  %970 = vmatpush.msra.mxu0 0.0
  %971 = vmatpush.msra.mxu0 %v949
  %972 = vmatpush.msra.mxu0 %v948
  %973 = vmatpush.msra.mxu0 %v947
  %974 = vmatpush.msra.mxu0 %v946
  %975 = vmatmul.f32.gmra.mxu0 %v951
  %v976 = vpop.f32.mrf.mxu0
  %v977 = vadd.f32 0.0, %v976
  %978 = vmatmul.f32.gmra.mxu0 %v954
  %v979 = vpop.f32.mrf.mxu0
  %v980 = vadd.f32 0.0, %v979
  %981 = vmatmul.f32.gmra.mxu0 %v957
  %v982 = vpop.f32.mrf.mxu0
  %v983 = vadd.f32 0.0, %v982
  %984 = vdwg.mxu0
  %v985 = vadd.f32 %v939, %v977
  %v986 = vadd.f32 %v940, %v980
  %v987 = vadd.f32 %v941, %v983
  %v988 = vld [vmem:[#allocation2 + $0xd] sm:$0xff]
  %v989 = vld [vmem:[#allocation2 + $0x15] sm:$0xff]
  %v990 = vld [vmem:[#allocation2 + $0x1d] sm:$0x3f]
  %s991 = scalar_lea.vmem %s6, 224
  %v992 = vld [vmem:[%s991] sm:$0xff]
  %v993 = vld [vmem:[%s991 + $0x8] sm:$0xff]
  %v994 = vld [vmem:[%s991 + $0x10] sm:$0xff]
  %v995 = vld [vmem:[%s991 + $0x18] sm:$0xff]
  %v997 = vsel %vm223, %v988, 0
  %v1000 = vsel %vm223, %v989, 0
  %v1003 = vsel %vm223, %v990, 0
  %1005 = vmatpush.msra.mxu0 0.0
  %1006 = vmatpush.msra.mxu0 0.0
  %1007 = vmatpush.msra.mxu0 0.0
  %1008 = vmatpush.msra.mxu0 0.0
  %1009 = vmatpush.msra.mxu0 0.0
  %1010 = vmatpush.msra.mxu0 0.0
  %1011 = vmatpush.msra.mxu0 0.0
  %1012 = vmatpush.msra.mxu0 0.0
  %1013 = vmatpush.msra.mxu0 0.0
  %1014 = vmatpush.msra.mxu0 0.0
  %1015 = vmatpush.msra.mxu0 0.0
  %1016 = vmatpush.msra.mxu0 0.0
  %1017 = vmatpush.msra.mxu0 %v995
  %1018 = vmatpush.msra.mxu0 %v994
  %1019 = vmatpush.msra.mxu0 %v993
  %1020 = vmatpush.msra.mxu0 %v992
  %1021 = vmatmul.f32.gmra.mxu0 %v997
  %v1022 = vpop.f32.mrf.mxu0
  %v1023 = vadd.f32 0.0, %v1022
  %1024 = vmatmul.f32.gmra.mxu0 %v1000
  %v1025 = vpop.f32.mrf.mxu0
  %v1026 = vadd.f32 0.0, %v1025
  %1027 = vmatmul.f32.gmra.mxu0 %v1003
  %v1028 = vpop.f32.mrf.mxu0
  %v1029 = vadd.f32 0.0, %v1028
  %1030 = vdwg.mxu0
  %v1031 = vadd.f32 %v985, %v1023
  %v1032 = vadd.f32 %v986, %v1026
  %v1033 = vadd.f32 %v987, %v1029
  %v1034 = vld [vmem:[#allocation2 + $0xe] sm:$0xff]
  %v1035 = vld [vmem:[#allocation2 + $0x16] sm:$0xff]
  %v1036 = vld [vmem:[#allocation2 + $0x1e] sm:$0x3f]
  %s1037 = scalar_lea.vmem %s6, 256
  %v1038 = vld [vmem:[%s1037] sm:$0xff]
  %v1039 = vld [vmem:[%s1037 + $0x8] sm:$0xff]
  %v1040 = vld [vmem:[%s1037 + $0x10] sm:$0xff]
  %v1041 = vld [vmem:[%s1037 + $0x18] sm:$0xff]
  %v1043 = vsel %vm223, %v1034, 0
  %v1046 = vsel %vm223, %v1035, 0
  %v1049 = vsel %vm223, %v1036, 0
  %1051 = vmatpush.msra.mxu0 0.0
  %1052 = vmatpush.msra.mxu0 0.0
  %1053 = vmatpush.msra.mxu0 0.0
  %1054 = vmatpush.msra.mxu0 0.0
  %1055 = vmatpush.msra.mxu0 0.0
  %1056 = vmatpush.msra.mxu0 0.0
  %1057 = vmatpush.msra.mxu0 0.0
  %1058 = vmatpush.msra.mxu0 0.0
  %1059 = vmatpush.msra.mxu0 0.0
  %1060 = vmatpush.msra.mxu0 0.0
  %1061 = vmatpush.msra.mxu0 0.0
  %1062 = vmatpush.msra.mxu0 0.0
  %1063 = vmatpush.msra.mxu0 %v1041
  %1064 = vmatpush.msra.mxu0 %v1040
  %1065 = vmatpush.msra.mxu0 %v1039
  %1066 = vmatpush.msra.mxu0 %v1038
  %1067 = vmatmul.f32.gmra.mxu0 %v1043
  %v1068 = vpop.f32.mrf.mxu0
  %v1069 = vadd.f32 0.0, %v1068
  %1070 = vmatmul.f32.gmra.mxu0 %v1046
  %v1071 = vpop.f32.mrf.mxu0
  %v1072 = vadd.f32 0.0, %v1071
  %1073 = vmatmul.f32.gmra.mxu0 %v1049
  %v1074 = vpop.f32.mrf.mxu0
  %v1075 = vadd.f32 0.0, %v1074
  %1076 = vdwg.mxu0
  %v1077 = vadd.f32 %v1031, %v1069
  %v1078 = vadd.f32 %v1032, %v1072
  %v1079 = vadd.f32 %v1033, %v1075
  %v1080 = vld [vmem:[%s2 + $0x3] ss:$0 sm:$0xff]
  %v1081 = vadd.f32 %v1077, %v1080
  %v1082 = vadd.f32 %v1078, %v1080
  %v1083 = vadd.f32 %v1079, %v1080
  %v1084 = vld [vmem:[%s9] sm:$0xf]
  %v1085 = vld [vmem:[%s9 + $0x4] sm:$0xf]
  %v1086 = vld [vmem:[%s9 + $0x8] sm:$0xf]
  %v1087 = vld [vmem:[%s9 + $0xc] sm:$0xf]
  %v1088 = vld [vmem:[%s9 + $0x10] sm:$0xf]
  %v1089 = vld [vmem:[%s9 + $0x14] sm:$0xf]
  %v1090 = vld [vmem:[%s9 + $0x18] sm:$0xf]
  %v1091 = vld [vmem:[%s9 + $0x1c] sm:$0xf]
  %v1092 = vld [vmem:[%s9 + $0x20] sm:$0xf]
  %v1093 = vld [vmem:[%s9 + $0x24] sm:$0xf]
  %v1094 = vld [vmem:[%s9 + $0x28] sm:$0x1]
  %v1095 = vunpack.c.l.bf16 %v1084
  %v1096 = vunpack.c.l.bf16 %v1085
  %v1097 = vunpack.c.l.bf16 %v1086
  %v1098 = vunpack.c.l.bf16 %v1087
  %v1099 = vunpack.c.l.bf16 %v1088
  %v1100 = vunpack.c.l.bf16 %v1089
  %v1101 = vunpack.c.l.bf16 %v1090
  %v1102 = vunpack.c.l.bf16 %v1091
  %v1103 = vunpack.c.l.bf16 %v1092
  %v1104 = vunpack.c.l.bf16 %v1093
  %v1105 = vunpack.c.l.bf16 %v1094
  %vm1106 = vcmask 179200
  %v1108 = vsel %vm1106, %v1095, 0
  %v1111 = vsel %vm1106, %v1096, 0
  %v1114 = vsel %vm1106, %v1097, 0
  %v1117 = vsel %vm1106, %v1098, 0
  %v1120 = vsel %vm1106, %v1099, 0
  %v1123 = vsel %vm1106, %v1100, 0
  %v1126 = vsel %vm1106, %v1101, 0
  %v1129 = vsel %vm1106, %v1102, 0
  %v1132 = vsel %vm1106, %v1103, 0
  %v1135 = vsel %vm1106, %v1104, 0
  %v1138 = vsel %vm1106, %v1105, 0
  %vm1140 = vcmask 1045504
  %v1142 = vsel %vm1140, %v1083, 0
  %1144 = vmatpush.msra.mxu0 0.0
  %1145 = vmatpush.msra.mxu0 0.0
  %1146 = vmatpush.msra.mxu0 0.0
  %1147 = vmatpush.msra.mxu0 0.0
  %1148 = vmatpush.msra.mxu0 0.0
  %1149 = vmatpush.msra.mxu0 0.0
  %1150 = vmatpush.msra.mxu0 0.0
  %1151 = vmatpush.msra.mxu0 0.0
  %1152 = vmatpush.msra.mxu0 0.0
  %1153 = vmatpush.msra.mxu0 0.0
  %1154 = vmatpush.msra.mxu0 0.0
  %1155 = vmatpush.msra.mxu0 0.0
  %1156 = vmatpush.msra.mxu0 0.0
  %1157 = vmatpush.msra.mxu0 %v1142
  %1158 = vmatpush.msra.mxu0 %v1082
  %1159 = vmatpush.msra.mxu0 %v1081
  %1160 = vmatmul.f32.gmra.mxu0 %v1108
  %v1161 = vpop.f32.mrf.mxu0
  %v1162 = vadd.f32 0.0, %v1161
  %1163 = vmatmul.f32.gmra.mxu0 %v1111
  %v1164 = vpop.f32.mrf.mxu0
  %v1165 = vadd.f32 0.0, %v1164
  %1166 = vmatmul.f32.gmra.mxu0 %v1114
  %v1167 = vpop.f32.mrf.mxu0
  %v1168 = vadd.f32 0.0, %v1167
  %1169 = vmatmul.f32.gmra.mxu0 %v1117
  %v1170 = vpop.f32.mrf.mxu0
  %v1171 = vadd.f32 0.0, %v1170
  %1172 = vmatmul.f32.gmra.mxu0 %v1120
  %v1173 = vpop.f32.mrf.mxu0
  %v1174 = vadd.f32 0.0, %v1173
  %1175 = vmatmul.f32.gmra.mxu0 %v1123
  %v1176 = vpop.f32.mrf.mxu0
  %v1177 = vadd.f32 0.0, %v1176
  %1178 = vmatmul.f32.gmra.mxu0 %v1126
  %v1179 = vpop.f32.mrf.mxu0
  %v1180 = vadd.f32 0.0, %v1179
  %1181 = vmatmul.f32.gmra.mxu0 %v1129
  %v1182 = vpop.f32.mrf.mxu0
  %v1183 = vadd.f32 0.0, %v1182
  %1184 = vmatmul.f32.gmra.mxu0 %v1132
  %v1185 = vpop.f32.mrf.mxu0
  %v1186 = vadd.f32 0.0, %v1185
  %1187 = vmatmul.f32.gmra.mxu0 %v1135
  %v1188 = vpop.f32.mrf.mxu0
  %v1189 = vadd.f32 0.0, %v1188
  %1190 = vmatmul.f32.gmra.mxu0 %v1138
  %v1191 = vpop.f32.mrf.mxu0
  %v1192 = vadd.f32 0.0, %v1191
  %1193 = vdwg.mxu0
  %1194 = vst [vmem:[#allocation3] sm:$0xff] %v1162
  %1195 = vst [vmem:[#allocation3 + $0x8] sm:$0xff] %v1165
  %1196 = vst [vmem:[#allocation3 + $0x10] sm:$0xff] %v1168
  %1197 = vst [vmem:[#allocation3 + $0x18] sm:$0xff] %v1171
  %1198 = vst [vmem:[#allocation3 + $0x20] sm:$0xff] %v1174
  %1199 = vst [vmem:[#allocation3 + $0x28] sm:$0xff] %v1177
  %1200 = vst [vmem:[#allocation3 + $0x30] sm:$0xff] %v1180
  %1201 = vst [vmem:[#allocation3 + $0x38] sm:$0xff] %v1183
  %1202 = vst [vmem:[#allocation3 + $0x40] sm:$0xff] %v1186
  %1203 = vst [vmem:[#allocation3 + $0x48] sm:$0xff] %v1189
  %1204 = vst [vmem:[#allocation3 + $0x50] sm:$0x1] %v1192
  %v1205 = vld [vmem:[#allocation3] sm:$0xff]
  %v1206 = vld [vmem:[#allocation3 + $0x8] sm:$0xff]
  %v1207 = vld [vmem:[#allocation3 + $0x10] sm:$0xff]
  %v1208 = vld [vmem:[#allocation3 + $0x18] sm:$0xff]
  %v1209 = vld [vmem:[#allocation3 + $0x20] sm:$0xff]
  %v1210 = vld [vmem:[#allocation3 + $0x28] sm:$0xff]
  %v1211 = vld [vmem:[#allocation3 + $0x30] sm:$0xff]
  %v1212 = vld [vmem:[#allocation3 + $0x38] sm:$0x1f]
  %v1213 = vld [vmem:[%s7] sm:$0xff]
  %v1214 = vld [vmem:[%s7 + $0x8] sm:$0xff]
  %v1215 = vld [vmem:[%s7 + $0x10] sm:$0xff]
  %v1216 = vld [vmem:[%s7 + $0x18] sm:$0xff]
  %v1217 = vld [vmem:[%s7 + $0x20] sm:$0xff]
  %v1218 = vld [vmem:[%s7 + $0x28] sm:$0xff]
  %v1219 = vld [vmem:[%s7 + $0x30] sm:$0xff]
  %v1220 = vld [vmem:[%s7 + $0x38] sm:$0xff]
  %v1221 = vld [vmem:[%s7 + $0x40] sm:$0xff]
  %v1222 = vld [vmem:[%s7 + $0x48] sm:$0xff]
  %v1223 = vld [vmem:[%s7 + $0x50] sm:$0xff]
  %v1224 = vld [vmem:[%s7 + $0x58] sm:$0xff]
  %v1225 = vld [vmem:[%s7 + $0x60] sm:$0xff]
  %v1226 = vld [vmem:[%s7 + $0x68] sm:$0xff]
  %v1227 = vld [vmem:[%s7 + $0x70] sm:$0xff]
  %v1228 = vld [vmem:[%s7 + $0x78] sm:$0xff]
  %v1229 = vld [vmem:[#allocation3 + $0x1] sm:$0xff]
  %v1230 = vld [vmem:[#allocation3 + $0x9] sm:$0xff]
  %v1231 = vld [vmem:[#allocation3 + $0x11] sm:$0xff]
  %v1232 = vld [vmem:[#allocation3 + $0x19] sm:$0xff]
  %v1233 = vld [vmem:[#allocation3 + $0x21] sm:$0xff]
  %v1234 = vld [vmem:[#allocation3 + $0x29] sm:$0xff]
  %v1235 = vld [vmem:[#allocation3 + $0x31] sm:$0xff]
  %v1236 = vld [vmem:[#allocation3 + $0x39] sm:$0x1f]
  %s1237 = scalar_lea.vmem %s7, 128
  %v1238 = vld [vmem:[%s1237] sm:$0xff]
  %v1239 = vld [vmem:[%s1237 + $0x8] sm:$0xff]
  %v1240 = vld [vmem:[%s1237 + $0x10] sm:$0xff]
  %v1241 = vld [vmem:[%s1237 + $0x18] sm:$0xff]
  %v1242 = vld [vmem:[%s1237 + $0x20] sm:$0xff]
  %v1243 = vld [vmem:[%s1237 + $0x28] sm:$0xff]
  %v1244 = vld [vmem:[%s1237 + $0x30] sm:$0xff]
  %v1245 = vld [vmem:[%s1237 + $0x38] sm:$0xff]
  %v1246 = vld [vmem:[%s1237 + $0x40] sm:$0xff]
  %v1247 = vld [vmem:[%s1237 + $0x48] sm:$0xff]
  %v1248 = vld [vmem:[%s1237 + $0x50] sm:$0xff]
  %v1249 = vld [vmem:[%s1237 + $0x58] sm:$0xff]
  %v1250 = vld [vmem:[%s1237 + $0x60] sm:$0xff]
  %v1251 = vld [vmem:[%s1237 + $0x68] sm:$0xff]
  %v1252 = vld [vmem:[%s1237 + $0x70] sm:$0xff]
  %v1253 = vld [vmem:[%s1237 + $0x78] sm:$0xff]
  %1254 = vmatpush.msra.mxu0 %v1253
  %1255 = vmatpush.msra.mxu0 %v1252
  %1256 = vmatpush.msra.mxu0 %v1251
  %1257 = vmatpush.msra.mxu0 %v1250
  %1258 = vmatpush.msra.mxu0 %v1249
  %1259 = vmatpush.msra.mxu0 %v1248
  %1260 = vmatpush.msra.mxu0 %v1247
  %1261 = vmatpush.msra.mxu0 %v1246
  %1262 = vmatpush.msra.mxu0 %v1245
  %1263 = vmatpush.msra.mxu0 %v1244
  %1264 = vmatpush.msra.mxu0 %v1243
  %1265 = vmatpush.msra.mxu0 %v1242
  %1266 = vmatpush.msra.mxu0 %v1241
  %1267 = vmatpush.msra.mxu0 %v1240
  %1268 = vmatpush.msra.mxu0 %v1239
  %1269 = vmatpush.msra.mxu0 %v1238
  %1270 = vmatmul.f32.gmra.mxu0 %v1229
  %v1271 = vpop.f32.mrf.mxu0
  %v1272 = vadd.f32 0.0, %v1271
  %1273 = vmatmul.f32.gmra.mxu0 %v1230
  %v1274 = vpop.f32.mrf.mxu0
  %v1275 = vadd.f32 0.0, %v1274
  %1276 = vmatmul.f32.gmra.mxu0 %v1231
  %v1277 = vpop.f32.mrf.mxu0
  %v1278 = vadd.f32 0.0, %v1277
  %1279 = vmatmul.f32.gmra.mxu0 %v1232
  %v1280 = vpop.f32.mrf.mxu0
  %v1281 = vadd.f32 0.0, %v1280
  %1282 = vmatmul.f32.gmra.mxu0 %v1233
  %v1283 = vpop.f32.mrf.mxu0
  %v1284 = vadd.f32 0.0, %v1283
  %1285 = vmatmul.f32.gmra.mxu0 %v1234
  %v1286 = vpop.f32.mrf.mxu0
  %v1287 = vadd.f32 0.0, %v1286
  %1288 = vmatmul.f32.gmra.mxu0 %v1235
  %v1289 = vpop.f32.mrf.mxu0
  %v1290 = vadd.f32 0.0, %v1289
  %1291 = vmatmul.f32.gmra.mxu0 %v1236
  %v1292 = vpop.f32.mrf.mxu0
  %v1293 = vadd.f32 0.0, %v1292
  %1294 = vdwg.mxu0
  %1295 = vmatpush.msra.mxu0 %v1228
  %1296 = vmatpush.msra.mxu0 %v1227
  %1297 = vmatpush.msra.mxu0 %v1226
  %1298 = vmatpush.msra.mxu0 %v1225
  %1299 = vmatpush.msra.mxu0 %v1224
  %1300 = vmatpush.msra.mxu0 %v1223
  %1301 = vmatpush.msra.mxu0 %v1222
  %1302 = vmatpush.msra.mxu0 %v1221
  %1303 = vmatpush.msra.mxu0 %v1220
  %1304 = vmatpush.msra.mxu0 %v1219
  %1305 = vmatpush.msra.mxu0 %v1218
  %1306 = vmatpush.msra.mxu0 %v1217
  %1307 = vmatpush.msra.mxu0 %v1216
  %1308 = vmatpush.msra.mxu0 %v1215
  %1309 = vmatpush.msra.mxu0 %v1214
  %1310 = vmatpush.msra.mxu0 %v1213
  %1311 = vmatmul.f32.gmra.mxu0 %v1205
  %v1312 = vpop.f32.mrf.mxu0
  %v1313 = vadd.f32 %v1272, %v1312
  %1314 = vmatmul.f32.gmra.mxu0 %v1206
  %v1315 = vpop.f32.mrf.mxu0
  %v1316 = vadd.f32 %v1275, %v1315
  %1317 = vmatmul.f32.gmra.mxu0 %v1207
  %v1318 = vpop.f32.mrf.mxu0
  %v1319 = vadd.f32 %v1278, %v1318
  %1320 = vmatmul.f32.gmra.mxu0 %v1208
  %v1321 = vpop.f32.mrf.mxu0
  %v1322 = vadd.f32 %v1281, %v1321
  %1323 = vmatmul.f32.gmra.mxu0 %v1209
  %v1324 = vpop.f32.mrf.mxu0
  %v1325 = vadd.f32 %v1284, %v1324
  %1326 = vmatmul.f32.gmra.mxu0 %v1210
  %v1327 = vpop.f32.mrf.mxu0
  %v1328 = vadd.f32 %v1287, %v1327
  %1329 = vmatmul.f32.gmra.mxu0 %v1211
  %v1330 = vpop.f32.mrf.mxu0
  %v1331 = vadd.f32 %v1290, %v1330
  %1332 = vmatmul.f32.gmra.mxu0 %v1212
  %v1333 = vpop.f32.mrf.mxu0
  %v1334 = vadd.f32 %v1293, %v1333
  %1335 = vdwg.mxu0
  %v1336 = vld [vmem:[#allocation3 + $0x2] sm:$0xff]
  %v1337 = vld [vmem:[#allocation3 + $0xa] sm:$0xff]
  %v1338 = vld [vmem:[#allocation3 + $0x12] sm:$0xff]
  %v1339 = vld [vmem:[#allocation3 + $0x1a] sm:$0xff]
  %v1340 = vld [vmem:[#allocation3 + $0x22] sm:$0xff]
  %v1341 = vld [vmem:[#allocation3 + $0x2a] sm:$0xff]
  %v1342 = vld [vmem:[#allocation3 + $0x32] sm:$0xff]
  %v1343 = vld [vmem:[#allocation3 + $0x3a] sm:$0x1f]
  %s1344 = scalar_lea.vmem %s7, 256
  %v1345 = vld [vmem:[%s1344] sm:$0xff]
  %v1346 = vld [vmem:[%s1344 + $0x8] sm:$0xff]
  %v1347 = vld [vmem:[%s1344 + $0x10] sm:$0xff]
  %v1348 = vld [vmem:[%s1344 + $0x18] sm:$0xff]
  %v1349 = vld [vmem:[%s1344 + $0x20] sm:$0xff]
  %v1350 = vld [vmem:[%s1344 + $0x28] sm:$0xff]
  %v1351 = vld [vmem:[%s1344 + $0x30] sm:$0xff]
  %v1352 = vld [vmem:[%s1344 + $0x38] sm:$0xff]
  %v1353 = vld [vmem:[%s1344 + $0x40] sm:$0xff]
  %v1354 = vld [vmem:[%s1344 + $0x48] sm:$0xff]
  %v1355 = vld [vmem:[%s1344 + $0x50] sm:$0xff]
  %v1356 = vld [vmem:[%s1344 + $0x58] sm:$0xff]
  %v1357 = vld [vmem:[%s1344 + $0x60] sm:$0xff]
  %v1358 = vld [vmem:[%s1344 + $0x68] sm:$0xff]
  %v1359 = vld [vmem:[%s1344 + $0x70] sm:$0xff]
  %v1360 = vld [vmem:[%s1344 + $0x78] sm:$0xff]
  %1361 = vmatpush.msra.mxu0 %v1360
  %1362 = vmatpush.msra.mxu0 %v1359
  %1363 = vmatpush.msra.mxu0 %v1358
  %1364 = vmatpush.msra.mxu0 %v1357
  %1365 = vmatpush.msra.mxu0 %v1356
  %1366 = vmatpush.msra.mxu0 %v1355
  %1367 = vmatpush.msra.mxu0 %v1354
  %1368 = vmatpush.msra.mxu0 %v1353
  %1369 = vmatpush.msra.mxu0 %v1352
  %1370 = vmatpush.msra.mxu0 %v1351
  %1371 = vmatpush.msra.mxu0 %v1350
  %1372 = vmatpush.msra.mxu0 %v1349
  %1373 = vmatpush.msra.mxu0 %v1348
  %1374 = vmatpush.msra.mxu0 %v1347
  %1375 = vmatpush.msra.mxu0 %v1346
  %1376 = vmatpush.msra.mxu0 %v1345
  %1377 = vmatmul.f32.gmra.mxu0 %v1336
  %v1378 = vpop.f32.mrf.mxu0
  %v1379 = vadd.f32 0.0, %v1378
  %1380 = vmatmul.f32.gmra.mxu0 %v1337
  %v1381 = vpop.f32.mrf.mxu0
  %v1382 = vadd.f32 0.0, %v1381
  %1383 = vmatmul.f32.gmra.mxu0 %v1338
  %v1384 = vpop.f32.mrf.mxu0
  %v1385 = vadd.f32 0.0, %v1384
  %1386 = vmatmul.f32.gmra.mxu0 %v1339
  %v1387 = vpop.f32.mrf.mxu0
  %v1388 = vadd.f32 0.0, %v1387
  %1389 = vmatmul.f32.gmra.mxu0 %v1340
  %v1390 = vpop.f32.mrf.mxu0
  %v1391 = vadd.f32 0.0, %v1390
  %1392 = vmatmul.f32.gmra.mxu0 %v1341
  %v1393 = vpop.f32.mrf.mxu0
  %v1394 = vadd.f32 0.0, %v1393
  %1395 = vmatmul.f32.gmra.mxu0 %v1342
  %v1396 = vpop.f32.mrf.mxu0
  %v1397 = vadd.f32 0.0, %v1396
  %1398 = vmatmul.f32.gmra.mxu0 %v1343
  %v1399 = vpop.f32.mrf.mxu0
  %v1400 = vadd.f32 0.0, %v1399
  %1401 = vdwg.mxu0
  %v1402 = vadd.f32 %v1313, %v1379
  %v1403 = vadd.f32 %v1316, %v1382
  %v1404 = vadd.f32 %v1319, %v1385
  %v1405 = vadd.f32 %v1322, %v1388
  %v1406 = vadd.f32 %v1325, %v1391
  %v1407 = vadd.f32 %v1328, %v1394
  %v1408 = vadd.f32 %v1331, %v1397
  %v1409 = vadd.f32 %v1334, %v1400
  %v1410 = vld [vmem:[#allocation3 + $0x9] sm:$0xff]
  %v1411 = vld [vmem:[#allocation3 + $0x11] sm:$0xff]
  %v1412 = vld [vmem:[#allocation3 + $0x19] sm:$0xff]
  %v1413 = vld [vmem:[#allocation3 + $0x21] sm:$0xff]
  %v1414 = vld [vmem:[#allocation3 + $0x29] sm:$0xff]
  %v1415 = vld [vmem:[#allocation3 + $0x31] sm:$0xff]
  %v1416 = vld [vmem:[#allocation3 + $0x39] sm:$0xff]
  %v1417 = vld [vmem:[#allocation3 + $0x41] sm:$0x1f]
  %s1418 = scalar_lea.vmem %s7, 384
  %v1419 = vld [vmem:[%s1418] sm:$0xff]
  %v1420 = vld [vmem:[%s1418 + $0x8] sm:$0xff]
  %v1421 = vld [vmem:[%s1418 + $0x10] sm:$0xff]
  %v1422 = vld [vmem:[%s1418 + $0x18] sm:$0xff]
  %v1423 = vld [vmem:[%s1418 + $0x20] sm:$0xff]
  %v1424 = vld [vmem:[%s1418 + $0x28] sm:$0xff]
  %v1425 = vld [vmem:[%s1418 + $0x30] sm:$0xff]
  %v1426 = vld [vmem:[%s1418 + $0x38] sm:$0xff]
  %v1427 = vld [vmem:[%s1418 + $0x40] sm:$0xff]
  %v1428 = vld [vmem:[%s1418 + $0x48] sm:$0xff]
  %v1429 = vld [vmem:[%s1418 + $0x50] sm:$0xff]
  %v1430 = vld [vmem:[%s1418 + $0x58] sm:$0xff]
  %v1431 = vld [vmem:[%s1418 + $0x60] sm:$0xff]
  %v1432 = vld [vmem:[%s1418 + $0x68] sm:$0xff]
  %v1433 = vld [vmem:[%s1418 + $0x70] sm:$0xff]
  %v1434 = vld [vmem:[%s1418 + $0x78] sm:$0xff]
  %1435 = vmatpush.msra.mxu0 %v1434
  %1436 = vmatpush.msra.mxu0 %v1433
  %1437 = vmatpush.msra.mxu0 %v1432
  %1438 = vmatpush.msra.mxu0 %v1431
  %1439 = vmatpush.msra.mxu0 %v1430
  %1440 = vmatpush.msra.mxu0 %v1429
  %1441 = vmatpush.msra.mxu0 %v1428
  %1442 = vmatpush.msra.mxu0 %v1427
  %1443 = vmatpush.msra.mxu0 %v1426
  %1444 = vmatpush.msra.mxu0 %v1425
  %1445 = vmatpush.msra.mxu0 %v1424
  %1446 = vmatpush.msra.mxu0 %v1423
  %1447 = vmatpush.msra.mxu0 %v1422
  %1448 = vmatpush.msra.mxu0 %v1421
  %1449 = vmatpush.msra.mxu0 %v1420
  %1450 = vmatpush.msra.mxu0 %v1419
  %1451 = vmatmul.f32.gmra.mxu0 %v1410
  %v1452 = vpop.f32.mrf.mxu0
  %v1453 = vadd.f32 0.0, %v1452
  %1454 = vmatmul.f32.gmra.mxu0 %v1411
  %v1455 = vpop.f32.mrf.mxu0
  %v1456 = vadd.f32 0.0, %v1455
  %1457 = vmatmul.f32.gmra.mxu0 %v1412
  %v1458 = vpop.f32.mrf.mxu0
  %v1459 = vadd.f32 0.0, %v1458
  %1460 = vmatmul.f32.gmra.mxu0 %v1413
  %v1461 = vpop.f32.mrf.mxu0
  %v1462 = vadd.f32 0.0, %v1461
  %1463 = vmatmul.f32.gmra.mxu0 %v1414
  %v1464 = vpop.f32.mrf.mxu0
  %v1465 = vadd.f32 0.0, %v1464
  %1466 = vmatmul.f32.gmra.mxu0 %v1415
  %v1467 = vpop.f32.mrf.mxu0
  %v1468 = vadd.f32 0.0, %v1467
  %1469 = vmatmul.f32.gmra.mxu0 %v1416
  %v1470 = vpop.f32.mrf.mxu0
  %v1471 = vadd.f32 0.0, %v1470
  %1472 = vmatmul.f32.gmra.mxu0 %v1417
  %v1473 = vpop.f32.mrf.mxu0
  %v1474 = vadd.f32 0.0, %v1473
  %1475 = vdwg.mxu0
  %v1476 = vadd.f32 %v1402, %v1453
  %v1477 = vadd.f32 %v1403, %v1456
  %v1478 = vadd.f32 %v1404, %v1459
  %v1479 = vadd.f32 %v1405, %v1462
  %v1480 = vadd.f32 %v1406, %v1465
  %v1481 = vadd.f32 %v1407, %v1468
  %v1482 = vadd.f32 %v1408, %v1471
  %v1483 = vadd.f32 %v1409, %v1474
  %v1484 = vld [vmem:[#allocation3 + $0xa] sm:$0xff]
  %v1485 = vld [vmem:[#allocation3 + $0x12] sm:$0xff]
  %v1486 = vld [vmem:[#allocation3 + $0x1a] sm:$0xff]
  %v1487 = vld [vmem:[#allocation3 + $0x22] sm:$0xff]
  %v1488 = vld [vmem:[#allocation3 + $0x2a] sm:$0xff]
  %v1489 = vld [vmem:[#allocation3 + $0x32] sm:$0xff]
  %v1490 = vld [vmem:[#allocation3 + $0x3a] sm:$0xff]
  %v1491 = vld [vmem:[#allocation3 + $0x42] sm:$0x1f]
  %s1492 = scalar_lea.vmem %s7, 512
  %v1493 = vld [vmem:[%s1492] sm:$0xff]
  %v1494 = vld [vmem:[%s1492 + $0x8] sm:$0xff]
  %v1495 = vld [vmem:[%s1492 + $0x10] sm:$0xff]
  %v1496 = vld [vmem:[%s1492 + $0x18] sm:$0xff]
  %v1497 = vld [vmem:[%s1492 + $0x20] sm:$0xff]
  %v1498 = vld [vmem:[%s1492 + $0x28] sm:$0xff]
  %v1499 = vld [vmem:[%s1492 + $0x30] sm:$0xff]
  %v1500 = vld [vmem:[%s1492 + $0x38] sm:$0xff]
  %v1501 = vld [vmem:[%s1492 + $0x40] sm:$0xff]
  %v1502 = vld [vmem:[%s1492 + $0x48] sm:$0xff]
  %v1503 = vld [vmem:[%s1492 + $0x50] sm:$0xff]
  %v1504 = vld [vmem:[%s1492 + $0x58] sm:$0xff]
  %v1505 = vld [vmem:[%s1492 + $0x60] sm:$0xff]
  %v1506 = vld [vmem:[%s1492 + $0x68] sm:$0xff]
  %v1507 = vld [vmem:[%s1492 + $0x70] sm:$0xff]
  %v1508 = vld [vmem:[%s1492 + $0x78] sm:$0xff]
  %1509 = vmatpush.msra.mxu0 %v1508
  %1510 = vmatpush.msra.mxu0 %v1507
  %1511 = vmatpush.msra.mxu0 %v1506
  %1512 = vmatpush.msra.mxu0 %v1505
  %1513 = vmatpush.msra.mxu0 %v1504
  %1514 = vmatpush.msra.mxu0 %v1503
  %1515 = vmatpush.msra.mxu0 %v1502
  %1516 = vmatpush.msra.mxu0 %v1501
  %1517 = vmatpush.msra.mxu0 %v1500
  %1518 = vmatpush.msra.mxu0 %v1499
  %1519 = vmatpush.msra.mxu0 %v1498
  %1520 = vmatpush.msra.mxu0 %v1497
  %1521 = vmatpush.msra.mxu0 %v1496
  %1522 = vmatpush.msra.mxu0 %v1495
  %1523 = vmatpush.msra.mxu0 %v1494
  %1524 = vmatpush.msra.mxu0 %v1493
  %1525 = vmatmul.f32.gmra.mxu0 %v1484
  %v1526 = vpop.f32.mrf.mxu0
  %v1527 = vadd.f32 0.0, %v1526
  %1528 = vmatmul.f32.gmra.mxu0 %v1485
  %v1529 = vpop.f32.mrf.mxu0
  %v1530 = vadd.f32 0.0, %v1529
  %1531 = vmatmul.f32.gmra.mxu0 %v1486
  %v1532 = vpop.f32.mrf.mxu0
  %v1533 = vadd.f32 0.0, %v1532
  %1534 = vmatmul.f32.gmra.mxu0 %v1487
  %v1535 = vpop.f32.mrf.mxu0
  %v1536 = vadd.f32 0.0, %v1535
  %1537 = vmatmul.f32.gmra.mxu0 %v1488
  %v1538 = vpop.f32.mrf.mxu0
  %v1539 = vadd.f32 0.0, %v1538
  %1540 = vmatmul.f32.gmra.mxu0 %v1489
  %v1541 = vpop.f32.mrf.mxu0
  %v1542 = vadd.f32 0.0, %v1541
  %1543 = vmatmul.f32.gmra.mxu0 %v1490
  %v1544 = vpop.f32.mrf.mxu0
  %v1545 = vadd.f32 0.0, %v1544
  %1546 = vmatmul.f32.gmra.mxu0 %v1491
  %v1547 = vpop.f32.mrf.mxu0
  %v1548 = vadd.f32 0.0, %v1547
  %1549 = vdwg.mxu0
  %v1550 = vadd.f32 %v1476, %v1527
  %v1551 = vadd.f32 %v1477, %v1530
  %v1552 = vadd.f32 %v1478, %v1533
  %v1553 = vadd.f32 %v1479, %v1536
  %v1554 = vadd.f32 %v1480, %v1539
  %v1555 = vadd.f32 %v1481, %v1542
  %v1556 = vadd.f32 %v1482, %v1545
  %v1557 = vadd.f32 %v1483, %v1548
  %v1558 = vld [vmem:[#allocation3 + $0xb] sm:$0xff]
  %v1559 = vld [vmem:[#allocation3 + $0x13] sm:$0xff]
  %v1560 = vld [vmem:[#allocation3 + $0x1b] sm:$0xff]
  %v1561 = vld [vmem:[#allocation3 + $0x23] sm:$0xff]
  %v1562 = vld [vmem:[#allocation3 + $0x2b] sm:$0xff]
  %v1563 = vld [vmem:[#allocation3 + $0x33] sm:$0xff]
  %v1564 = vld [vmem:[#allocation3 + $0x3b] sm:$0xff]
  %v1565 = vld [vmem:[#allocation3 + $0x43] sm:$0x1f]
  %s1566 = scalar_lea.vmem %s7, 640
  %v1567 = vld [vmem:[%s1566] sm:$0xff]
  %v1568 = vld [vmem:[%s1566 + $0x8] sm:$0xff]
  %v1569 = vld [vmem:[%s1566 + $0x10] sm:$0xff]
  %v1570 = vld [vmem:[%s1566 + $0x18] sm:$0xff]
  %v1571 = vld [vmem:[%s1566 + $0x20] sm:$0xff]
  %v1572 = vld [vmem:[%s1566 + $0x28] sm:$0xff]
  %v1573 = vld [vmem:[%s1566 + $0x30] sm:$0xff]
  %v1574 = vld [vmem:[%s1566 + $0x38] sm:$0xff]
  %v1575 = vld [vmem:[%s1566 + $0x40] sm:$0xff]
  %v1576 = vld [vmem:[%s1566 + $0x48] sm:$0xff]
  %v1577 = vld [vmem:[%s1566 + $0x50] sm:$0xff]
  %v1578 = vld [vmem:[%s1566 + $0x58] sm:$0xff]
  %v1579 = vld [vmem:[%s1566 + $0x60] sm:$0xff]
  %v1580 = vld [vmem:[%s1566 + $0x68] sm:$0xff]
  %v1581 = vld [vmem:[%s1566 + $0x70] sm:$0xff]
  %v1582 = vld [vmem:[%s1566 + $0x78] sm:$0xff]
  %1583 = vmatpush.msra.mxu0 %v1582
  %1584 = vmatpush.msra.mxu0 %v1581
  %1585 = vmatpush.msra.mxu0 %v1580
  %1586 = vmatpush.msra.mxu0 %v1579
  %1587 = vmatpush.msra.mxu0 %v1578
  %1588 = vmatpush.msra.mxu0 %v1577
  %1589 = vmatpush.msra.mxu0 %v1576
  %1590 = vmatpush.msra.mxu0 %v1575
  %1591 = vmatpush.msra.mxu0 %v1574
  %1592 = vmatpush.msra.mxu0 %v1573
  %1593 = vmatpush.msra.mxu0 %v1572
  %1594 = vmatpush.msra.mxu0 %v1571
  %1595 = vmatpush.msra.mxu0 %v1570
  %1596 = vmatpush.msra.mxu0 %v1569
  %1597 = vmatpush.msra.mxu0 %v1568
  %1598 = vmatpush.msra.mxu0 %v1567
  %1599 = vmatmul.f32.gmra.mxu0 %v1558
  %v1600 = vpop.f32.mrf.mxu0
  %v1601 = vadd.f32 0.0, %v1600
  %1602 = vmatmul.f32.gmra.mxu0 %v1559
  %v1603 = vpop.f32.mrf.mxu0
  %v1604 = vadd.f32 0.0, %v1603
  %1605 = vmatmul.f32.gmra.mxu0 %v1560
  %v1606 = vpop.f32.mrf.mxu0
  %v1607 = vadd.f32 0.0, %v1606
  %1608 = vmatmul.f32.gmra.mxu0 %v1561
  %v1609 = vpop.f32.mrf.mxu0
  %v1610 = vadd.f32 0.0, %v1609
  %1611 = vmatmul.f32.gmra.mxu0 %v1562
  %v1612 = vpop.f32.mrf.mxu0
  %v1613 = vadd.f32 0.0, %v1612
  %1614 = vmatmul.f32.gmra.mxu0 %v1563
  %v1615 = vpop.f32.mrf.mxu0
  %v1616 = vadd.f32 0.0, %v1615
  %1617 = vmatmul.f32.gmra.mxu0 %v1564
  %v1618 = vpop.f32.mrf.mxu0
  %v1619 = vadd.f32 0.0, %v1618
  %1620 = vmatmul.f32.gmra.mxu0 %v1565
  %v1621 = vpop.f32.mrf.mxu0
  %v1622 = vadd.f32 0.0, %v1621
  %1623 = vdwg.mxu0
  %v1624 = vadd.f32 %v1550, %v1601
  %v1625 = vadd.f32 %v1551, %v1604
  %v1626 = vadd.f32 %v1552, %v1607
  %v1627 = vadd.f32 %v1553, %v1610
  %v1628 = vadd.f32 %v1554, %v1613
  %v1629 = vadd.f32 %v1555, %v1616
  %v1630 = vadd.f32 %v1556, %v1619
  %v1631 = vadd.f32 %v1557, %v1622
  %v1632 = vld [vmem:[#allocation3 + $0x12] sm:$0xff]
  %v1633 = vld [vmem:[#allocation3 + $0x1a] sm:$0xff]
  %v1634 = vld [vmem:[#allocation3 + $0x22] sm:$0xff]
  %v1635 = vld [vmem:[#allocation3 + $0x2a] sm:$0xff]
  %v1636 = vld [vmem:[#allocation3 + $0x32] sm:$0xff]
  %v1637 = vld [vmem:[#allocation3 + $0x3a] sm:$0xff]
  %v1638 = vld [vmem:[#allocation3 + $0x42] sm:$0xff]
  %v1639 = vld [vmem:[#allocation3 + $0x4a] sm:$0x1f]
  %s1640 = scalar_lea.vmem %s7, 768
  %v1641 = vld [vmem:[%s1640] sm:$0xff]
  %v1642 = vld [vmem:[%s1640 + $0x8] sm:$0xff]
  %v1643 = vld [vmem:[%s1640 + $0x10] sm:$0xff]
  %v1644 = vld [vmem:[%s1640 + $0x18] sm:$0xff]
  %v1645 = vld [vmem:[%s1640 + $0x20] sm:$0xff]
  %v1646 = vld [vmem:[%s1640 + $0x28] sm:$0xff]
  %v1647 = vld [vmem:[%s1640 + $0x30] sm:$0xff]
  %v1648 = vld [vmem:[%s1640 + $0x38] sm:$0xff]
  %v1649 = vld [vmem:[%s1640 + $0x40] sm:$0xff]
  %v1650 = vld [vmem:[%s1640 + $0x48] sm:$0xff]
  %v1651 = vld [vmem:[%s1640 + $0x50] sm:$0xff]
  %v1652 = vld [vmem:[%s1640 + $0x58] sm:$0xff]
  %v1653 = vld [vmem:[%s1640 + $0x60] sm:$0xff]
  %v1654 = vld [vmem:[%s1640 + $0x68] sm:$0xff]
  %v1655 = vld [vmem:[%s1640 + $0x70] sm:$0xff]
  %v1656 = vld [vmem:[%s1640 + $0x78] sm:$0xff]
  %1657 = vmatpush.msra.mxu0 %v1656
  %1658 = vmatpush.msra.mxu0 %v1655
  %1659 = vmatpush.msra.mxu0 %v1654
  %1660 = vmatpush.msra.mxu0 %v1653
  %1661 = vmatpush.msra.mxu0 %v1652
  %1662 = vmatpush.msra.mxu0 %v1651
  %1663 = vmatpush.msra.mxu0 %v1650
  %1664 = vmatpush.msra.mxu0 %v1649
  %1665 = vmatpush.msra.mxu0 %v1648
  %1666 = vmatpush.msra.mxu0 %v1647
  %1667 = vmatpush.msra.mxu0 %v1646
  %1668 = vmatpush.msra.mxu0 %v1645
  %1669 = vmatpush.msra.mxu0 %v1644
  %1670 = vmatpush.msra.mxu0 %v1643
  %1671 = vmatpush.msra.mxu0 %v1642
  %1672 = vmatpush.msra.mxu0 %v1641
  %1673 = vmatmul.f32.gmra.mxu0 %v1632
  %v1674 = vpop.f32.mrf.mxu0
  %v1675 = vadd.f32 0.0, %v1674
  %1676 = vmatmul.f32.gmra.mxu0 %v1633
  %v1677 = vpop.f32.mrf.mxu0
  %v1678 = vadd.f32 0.0, %v1677
  %1679 = vmatmul.f32.gmra.mxu0 %v1634
  %v1680 = vpop.f32.mrf.mxu0
  %v1681 = vadd.f32 0.0, %v1680
  %1682 = vmatmul.f32.gmra.mxu0 %v1635
  %v1683 = vpop.f32.mrf.mxu0
  %v1684 = vadd.f32 0.0, %v1683
  %1685 = vmatmul.f32.gmra.mxu0 %v1636
  %v1686 = vpop.f32.mrf.mxu0
  %v1687 = vadd.f32 0.0, %v1686
  %1688 = vmatmul.f32.gmra.mxu0 %v1637
  %v1689 = vpop.f32.mrf.mxu0
  %v1690 = vadd.f32 0.0, %v1689
  %1691 = vmatmul.f32.gmra.mxu0 %v1638
  %v1692 = vpop.f32.mrf.mxu0
  %v1693 = vadd.f32 0.0, %v1692
  %1694 = vmatmul.f32.gmra.mxu0 %v1639
  %v1695 = vpop.f32.mrf.mxu0
  %v1696 = vadd.f32 0.0, %v1695
  %1697 = vdwg.mxu0
  %v1698 = vadd.f32 %v1624, %v1675
  %v1699 = vadd.f32 %v1625, %v1678
  %v1700 = vadd.f32 %v1626, %v1681
  %v1701 = vadd.f32 %v1627, %v1684
  %v1702 = vadd.f32 %v1628, %v1687
  %v1703 = vadd.f32 %v1629, %v1690
  %v1704 = vadd.f32 %v1630, %v1693
  %v1705 = vadd.f32 %v1631, %v1696
  %v1706 = vld [vmem:[#allocation3 + $0x13] sm:$0xff]
  %v1707 = vld [vmem:[#allocation3 + $0x1b] sm:$0xff]
  %v1708 = vld [vmem:[#allocation3 + $0x23] sm:$0xff]
  %v1709 = vld [vmem:[#allocation3 + $0x2b] sm:$0xff]
  %v1710 = vld [vmem:[#allocation3 + $0x33] sm:$0xff]
  %v1711 = vld [vmem:[#allocation3 + $0x3b] sm:$0xff]
  %v1712 = vld [vmem:[#allocation3 + $0x43] sm:$0xff]
  %v1713 = vld [vmem:[#allocation3 + $0x4b] sm:$0x1f]
  %s1714 = scalar_lea.vmem %s7, 896
  %v1715 = vld [vmem:[%s1714] sm:$0xff]
  %v1716 = vld [vmem:[%s1714 + $0x8] sm:$0xff]
  %v1717 = vld [vmem:[%s1714 + $0x10] sm:$0xff]
  %v1718 = vld [vmem:[%s1714 + $0x18] sm:$0xff]
  %v1719 = vld [vmem:[%s1714 + $0x20] sm:$0xff]
  %v1720 = vld [vmem:[%s1714 + $0x28] sm:$0xff]
  %v1721 = vld [vmem:[%s1714 + $0x30] sm:$0xff]
  %v1722 = vld [vmem:[%s1714 + $0x38] sm:$0xff]
  %v1723 = vld [vmem:[%s1714 + $0x40] sm:$0xff]
  %v1724 = vld [vmem:[%s1714 + $0x48] sm:$0xff]
  %v1725 = vld [vmem:[%s1714 + $0x50] sm:$0xff]
  %v1726 = vld [vmem:[%s1714 + $0x58] sm:$0xff]
  %v1727 = vld [vmem:[%s1714 + $0x60] sm:$0xff]
  %v1728 = vld [vmem:[%s1714 + $0x68] sm:$0xff]
  %v1729 = vld [vmem:[%s1714 + $0x70] sm:$0xff]
  %v1730 = vld [vmem:[%s1714 + $0x78] sm:$0xff]
  %1731 = vmatpush.msra.mxu0 %v1730
  %1732 = vmatpush.msra.mxu0 %v1729
  %1733 = vmatpush.msra.mxu0 %v1728
  %1734 = vmatpush.msra.mxu0 %v1727
  %1735 = vmatpush.msra.mxu0 %v1726
  %1736 = vmatpush.msra.mxu0 %v1725
  %1737 = vmatpush.msra.mxu0 %v1724
  %1738 = vmatpush.msra.mxu0 %v1723
  %1739 = vmatpush.msra.mxu0 %v1722
  %1740 = vmatpush.msra.mxu0 %v1721
  %1741 = vmatpush.msra.mxu0 %v1720
  %1742 = vmatpush.msra.mxu0 %v1719
  %1743 = vmatpush.msra.mxu0 %v1718
  %1744 = vmatpush.msra.mxu0 %v1717
  %1745 = vmatpush.msra.mxu0 %v1716
  %1746 = vmatpush.msra.mxu0 %v1715
  %1747 = vmatmul.f32.gmra.mxu0 %v1706
  %v1748 = vpop.f32.mrf.mxu0
  %v1749 = vadd.f32 0.0, %v1748
  %1750 = vmatmul.f32.gmra.mxu0 %v1707
  %v1751 = vpop.f32.mrf.mxu0
  %v1752 = vadd.f32 0.0, %v1751
  %1753 = vmatmul.f32.gmra.mxu0 %v1708
  %v1754 = vpop.f32.mrf.mxu0
  %v1755 = vadd.f32 0.0, %v1754
  %1756 = vmatmul.f32.gmra.mxu0 %v1709
  %v1757 = vpop.f32.mrf.mxu0
  %v1758 = vadd.f32 0.0, %v1757
  %1759 = vmatmul.f32.gmra.mxu0 %v1710
  %v1760 = vpop.f32.mrf.mxu0
  %v1761 = vadd.f32 0.0, %v1760
  %1762 = vmatmul.f32.gmra.mxu0 %v1711
  %v1763 = vpop.f32.mrf.mxu0
  %v1764 = vadd.f32 0.0, %v1763
  %1765 = vmatmul.f32.gmra.mxu0 %v1712
  %v1766 = vpop.f32.mrf.mxu0
  %v1767 = vadd.f32 0.0, %v1766
  %1768 = vmatmul.f32.gmra.mxu0 %v1713
  %v1769 = vpop.f32.mrf.mxu0
  %v1770 = vadd.f32 0.0, %v1769
  %1771 = vdwg.mxu0
  %v1772 = vadd.f32 %v1698, %v1749
  %v1773 = vadd.f32 %v1699, %v1752
  %v1774 = vadd.f32 %v1700, %v1755
  %v1775 = vadd.f32 %v1701, %v1758
  %v1776 = vadd.f32 %v1702, %v1761
  %v1777 = vadd.f32 %v1703, %v1764
  %v1778 = vadd.f32 %v1704, %v1767
  %v1779 = vadd.f32 %v1705, %v1770
  %v1780 = vld [vmem:[#allocation3 + $0x14] sm:$0xff]
  %v1781 = vld [vmem:[#allocation3 + $0x1c] sm:$0xff]
  %v1782 = vld [vmem:[#allocation3 + $0x24] sm:$0xff]
  %v1783 = vld [vmem:[#allocation3 + $0x2c] sm:$0xff]
  %v1784 = vld [vmem:[#allocation3 + $0x34] sm:$0xff]
  %v1785 = vld [vmem:[#allocation3 + $0x3c] sm:$0xff]
  %v1786 = vld [vmem:[#allocation3 + $0x44] sm:$0xff]
  %v1787 = vld [vmem:[#allocation3 + $0x4c] sm:$0x1f]
  %s1788 = scalar_lea.vmem %s7, 1024
  %v1789 = vld [vmem:[%s1788] sm:$0xff]
  %v1790 = vld [vmem:[%s1788 + $0x8] sm:$0xff]
  %v1791 = vld [vmem:[%s1788 + $0x10] sm:$0xff]
  %v1792 = vld [vmem:[%s1788 + $0x18] sm:$0xff]
  %v1793 = vld [vmem:[%s1788 + $0x20] sm:$0xff]
  %v1794 = vld [vmem:[%s1788 + $0x28] sm:$0xff]
  %v1795 = vld [vmem:[%s1788 + $0x30] sm:$0xff]
  %v1796 = vld [vmem:[%s1788 + $0x38] sm:$0xff]
  %v1797 = vld [vmem:[%s1788 + $0x40] sm:$0xff]
  %v1798 = vld [vmem:[%s1788 + $0x48] sm:$0xff]
  %v1799 = vld [vmem:[%s1788 + $0x50] sm:$0xff]
  %v1800 = vld [vmem:[%s1788 + $0x58] sm:$0xff]
  %v1801 = vld [vmem:[%s1788 + $0x60] sm:$0xff]
  %v1802 = vld [vmem:[%s1788 + $0x68] sm:$0xff]
  %v1803 = vld [vmem:[%s1788 + $0x70] sm:$0xff]
  %v1804 = vld [vmem:[%s1788 + $0x78] sm:$0xff]
  %1805 = vmatpush.msra.mxu0 %v1804
  %1806 = vmatpush.msra.mxu0 %v1803
  %1807 = vmatpush.msra.mxu0 %v1802
  %1808 = vmatpush.msra.mxu0 %v1801
  %1809 = vmatpush.msra.mxu0 %v1800
  %1810 = vmatpush.msra.mxu0 %v1799
  %1811 = vmatpush.msra.mxu0 %v1798
  %1812 = vmatpush.msra.mxu0 %v1797
  %1813 = vmatpush.msra.mxu0 %v1796
  %1814 = vmatpush.msra.mxu0 %v1795
  %1815 = vmatpush.msra.mxu0 %v1794
  %1816 = vmatpush.msra.mxu0 %v1793
  %1817 = vmatpush.msra.mxu0 %v1792
  %1818 = vmatpush.msra.mxu0 %v1791
  %1819 = vmatpush.msra.mxu0 %v1790
  %1820 = vmatpush.msra.mxu0 %v1789
  %1821 = vmatmul.f32.gmra.mxu0 %v1780
  %v1822 = vpop.f32.mrf.mxu0
  %v1823 = vadd.f32 0.0, %v1822
  %1824 = vmatmul.f32.gmra.mxu0 %v1781
  %v1825 = vpop.f32.mrf.mxu0
  %v1826 = vadd.f32 0.0, %v1825
  %1827 = vmatmul.f32.gmra.mxu0 %v1782
  %v1828 = vpop.f32.mrf.mxu0
  %v1829 = vadd.f32 0.0, %v1828
  %1830 = vmatmul.f32.gmra.mxu0 %v1783
  %v1831 = vpop.f32.mrf.mxu0
  %v1832 = vadd.f32 0.0, %v1831
  %1833 = vmatmul.f32.gmra.mxu0 %v1784
  %v1834 = vpop.f32.mrf.mxu0
  %v1835 = vadd.f32 0.0, %v1834
  %1836 = vmatmul.f32.gmra.mxu0 %v1785
  %v1837 = vpop.f32.mrf.mxu0
  %v1838 = vadd.f32 0.0, %v1837
  %1839 = vmatmul.f32.gmra.mxu0 %v1786
  %v1840 = vpop.f32.mrf.mxu0
  %v1841 = vadd.f32 0.0, %v1840
  %1842 = vmatmul.f32.gmra.mxu0 %v1787
  %v1843 = vpop.f32.mrf.mxu0
  %v1844 = vadd.f32 0.0, %v1843
  %1845 = vdwg.mxu0
  %v1846 = vadd.f32 %v1772, %v1823
  %v1847 = vadd.f32 %v1773, %v1826
  %v1848 = vadd.f32 %v1774, %v1829
  %v1849 = vadd.f32 %v1775, %v1832
  %v1850 = vadd.f32 %v1776, %v1835
  %v1851 = vadd.f32 %v1777, %v1838
  %v1852 = vadd.f32 %v1778, %v1841
  %v1853 = vadd.f32 %v1779, %v1844
  %v1854 = vld [vmem:[%s2 + $0x4] ss:$0 sm:$0xff]
  %v1855 = vadd.f32 %v1846, %v1854
  %v1856 = vadd.f32 %v1847, %v1854
  %v1857 = vadd.f32 %v1848, %v1854
  %v1858 = vadd.f32 %v1849, %v1854
  %v1859 = vadd.f32 %v1850, %v1854
  %v1860 = vadd.f32 %v1851, %v1854
  %v1861 = vadd.f32 %v1852, %v1854
  %v1862 = vadd.f32 %v1853, %v1854
  %v1863 = vld [vmem:[%s10] sm:$0xf]
  %v1864 = vld [vmem:[%s10 + $0x4] sm:$0xf]
  %v1865 = vld [vmem:[%s10 + $0x8] sm:$0xf]
  %v1866 = vld [vmem:[%s10 + $0xc] sm:$0xf]
  %v1867 = vld [vmem:[%s10 + $0x10] sm:$0xf]
  %v1868 = vld [vmem:[%s10 + $0x14] sm:$0xf]
  %v1869 = vld [vmem:[%s10 + $0x18] sm:$0xf]
  %v1870 = vld [vmem:[%s10 + $0x1c] sm:$0xf]
  %v1871 = vld [vmem:[%s10 + $0x20] sm:$0xf]
  %v1872 = vld [vmem:[%s10 + $0x24] sm:$0xf]
  %v1873 = vld [vmem:[%s10 + $0x28] sm:$0xf]
  %v1874 = vld [vmem:[%s10 + $0x2c] sm:$0xf]
  %v1875 = vld [vmem:[%s10 + $0x30] sm:$0xf]
  %v1876 = vld [vmem:[%s10 + $0x34] sm:$0xf]
  %v1877 = vld [vmem:[%s10 + $0x38] sm:$0xf]
  %v1878 = vld [vmem:[%s10 + $0x3c] sm:$0xf]
  %v1879 = vld [vmem:[%s10 + $0x40] sm:$0xf]
  %v1880 = vld [vmem:[%s10 + $0x44] sm:$0xf]
  %v1881 = vld [vmem:[%s10 + $0x48] sm:$0xf]
  %v1882 = vld [vmem:[%s10 + $0x4c] sm:$0xf]
  %v1883 = vld [vmem:[%s10 + $0x50] sm:$0xf]
  %v1884 = vld [vmem:[%s10 + $0x54] sm:$0xf]
  %v1885 = vld [vmem:[%s10 + $0x58] sm:$0xf]
  %v1886 = vld [vmem:[%s10 + $0x5c] sm:$0xf]
  %v1887 = vld [vmem:[%s10 + $0x60] sm:$0xf]
  %v1888 = vld [vmem:[%s10 + $0x64] sm:$0xf]
  %v1889 = vld [vmem:[%s10 + $0x68] sm:$0xf]
  %v1890 = vld [vmem:[%s10 + $0x6c] sm:$0xf]
  %v1891 = vld [vmem:[%s10 + $0x70] sm:$0xf]
  %v1892 = vld [vmem:[%s10 + $0x74] sm:$0xf]
  %v1893 = vld [vmem:[%s10 + $0x78] sm:$0xf]
  %v1894 = vld [vmem:[%s10 + $0x7c] sm:$0xf]
  %v1895 = vld [vmem:[%s10 + $0x80] sm:$0xf]
  %v1896 = vld [vmem:[%s10 + $0x84] sm:$0xf]
  %v1897 = vld [vmem:[%s10 + $0x88] sm:$0xf]
  %v1898 = vld [vmem:[%s10 + $0x8c] sm:$0xf]
  %v1899 = vld [vmem:[%s10 + $0x90] sm:$0x1]
  %v1900 = vunpack.c.l.bf16 %v1863
  %v1901 = vunpack.c.l.bf16 %v1864
  %v1902 = vunpack.c.l.bf16 %v1865
  %v1903 = vunpack.c.l.bf16 %v1866
  %v1904 = vunpack.c.l.bf16 %v1867
  %v1905 = vunpack.c.l.bf16 %v1868
  %v1906 = vunpack.c.l.bf16 %v1869
  %v1907 = vunpack.c.l.bf16 %v1870
  %v1908 = vunpack.c.l.bf16 %v1871
  %v1909 = vunpack.c.l.bf16 %v1872
  %v1910 = vunpack.c.l.bf16 %v1873
  %v1911 = vunpack.c.l.bf16 %v1874
  %v1912 = vunpack.c.l.bf16 %v1875
  %v1913 = vunpack.c.l.bf16 %v1876
  %v1914 = vunpack.c.l.bf16 %v1877
  %v1915 = vunpack.c.l.bf16 %v1878
  %v1916 = vunpack.c.l.bf16 %v1879
  %v1917 = vunpack.c.l.bf16 %v1880
  %v1918 = vunpack.c.l.bf16 %v1881
  %v1919 = vunpack.c.l.bf16 %v1882
  %v1920 = vunpack.c.l.bf16 %v1883
  %v1921 = vunpack.c.l.bf16 %v1884
  %v1922 = vunpack.c.l.bf16 %v1885
  %v1923 = vunpack.c.l.bf16 %v1886
  %v1924 = vunpack.c.l.bf16 %v1887
  %v1925 = vunpack.c.l.bf16 %v1888
  %v1926 = vunpack.c.l.bf16 %v1889
  %v1927 = vunpack.c.l.bf16 %v1890
  %v1928 = vunpack.c.l.bf16 %v1891
  %v1929 = vunpack.c.l.bf16 %v1892
  %v1930 = vunpack.c.l.bf16 %v1893
  %v1931 = vunpack.c.l.bf16 %v1894
  %v1932 = vunpack.c.l.bf16 %v1895
  %v1933 = vunpack.c.l.bf16 %v1896
  %v1934 = vunpack.c.l.bf16 %v1897
  %v1935 = vunpack.c.l.bf16 %v1898
  %v1936 = vunpack.c.l.bf16 %v1899
  %vm1937 = vcmask 498688
  %v1939 = vsel %vm1937, %v1900, 0
  %v1942 = vsel %vm1937, %v1901, 0
  %v1945 = vsel %vm1937, %v1902, 0
  %v1948 = vsel %vm1937, %v1903, 0
  %v1951 = vsel %vm1937, %v1904, 0
  %v1954 = vsel %vm1937, %v1905, 0
  %v1957 = vsel %vm1937, %v1906, 0
  %v1960 = vsel %vm1937, %v1907, 0
  %v1963 = vsel %vm1937, %v1908, 0
  %v1966 = vsel %vm1937, %v1909, 0
  %v1969 = vsel %vm1937, %v1910, 0
  %v1972 = vsel %vm1937, %v1911, 0
  %v1975 = vsel %vm1937, %v1912, 0
  %v1978 = vsel %vm1937, %v1913, 0
  %v1981 = vsel %vm1937, %v1914, 0
  %v1984 = vsel %vm1937, %v1915, 0
  %v1987 = vsel %vm1937, %v1916, 0
  %v1990 = vsel %vm1937, %v1917, 0
  %v1993 = vsel %vm1937, %v1918, 0
  %v1996 = vsel %vm1937, %v1919, 0
  %v1999 = vsel %vm1937, %v1920, 0
  %v2002 = vsel %vm1937, %v1921, 0
  %v2005 = vsel %vm1937, %v1922, 0
  %v2008 = vsel %vm1937, %v1923, 0
  %v2011 = vsel %vm1937, %v1924, 0
  %v2014 = vsel %vm1937, %v1925, 0
  %v2017 = vsel %vm1937, %v1926, 0
  %v2020 = vsel %vm1937, %v1927, 0
  %v2023 = vsel %vm1937, %v1928, 0
  %v2026 = vsel %vm1937, %v1929, 0
  %v2029 = vsel %vm1937, %v1930, 0
  %v2032 = vsel %vm1937, %v1931, 0
  %v2035 = vsel %vm1937, %v1932, 0
  %v2038 = vsel %vm1937, %v1933, 0
  %v2041 = vsel %vm1937, %v1934, 0
  %v2044 = vsel %vm1937, %v1935, 0
  %v2047 = vsel %vm1937, %v1936, 0
  %vm2049 = vcmask 1044480
  %v2051 = vsel %vm2049, %v1862, 0
  %2053 = vmatpush.msra.mxu0 0.0
  %2054 = vmatpush.msra.mxu0 0.0
  %2055 = vmatpush.msra.mxu0 0.0
  %2056 = vmatpush.msra.mxu0 0.0
  %2057 = vmatpush.msra.mxu0 0.0
  %2058 = vmatpush.msra.mxu0 0.0
  %2059 = vmatpush.msra.mxu0 0.0
  %2060 = vmatpush.msra.mxu0 0.0
  %2061 = vmatpush.msra.mxu0 %v2051
  %2062 = vmatpush.msra.mxu0 %v1861
  %2063 = vmatpush.msra.mxu0 %v1860
  %2064 = vmatpush.msra.mxu0 %v1859
  %2065 = vmatpush.msra.mxu0 %v1858
  %2066 = vmatpush.msra.mxu0 %v1857
  %2067 = vmatpush.msra.mxu0 %v1856
  %2068 = vmatpush.msra.mxu0 %v1855
  %2069 = vmatmul.f32.gmra.mxu0 %v1939
  %v2070 = vpop.f32.mrf.mxu0
  %v2071 = vadd.f32 0.0, %v2070
  %2072 = vmatmul.f32.gmra.mxu0 %v1942
  %v2073 = vpop.f32.mrf.mxu0
  %v2074 = vadd.f32 0.0, %v2073
  %2075 = vmatmul.f32.gmra.mxu0 %v1945
  %v2076 = vpop.f32.mrf.mxu0
  %v2077 = vadd.f32 0.0, %v2076
  %2078 = vmatmul.f32.gmra.mxu0 %v1948
  %v2079 = vpop.f32.mrf.mxu0
  %v2080 = vadd.f32 0.0, %v2079
  %2081 = vmatmul.f32.gmra.mxu0 %v1951
  %v2082 = vpop.f32.mrf.mxu0
  %v2083 = vadd.f32 0.0, %v2082
  %2084 = vmatmul.f32.gmra.mxu0 %v1954
  %v2085 = vpop.f32.mrf.mxu0
  %v2086 = vadd.f32 0.0, %v2085
  %2087 = vmatmul.f32.gmra.mxu0 %v1957
  %v2088 = vpop.f32.mrf.mxu0
  %v2089 = vadd.f32 0.0, %v2088
  %2090 = vmatmul.f32.gmra.mxu0 %v1960
  %v2091 = vpop.f32.mrf.mxu0
  %v2092 = vadd.f32 0.0, %v2091
  %2093 = vmatmul.f32.gmra.mxu0 %v1963
  %v2094 = vpop.f32.mrf.mxu0
  %v2095 = vadd.f32 0.0, %v2094
  %2096 = vmatmul.f32.gmra.mxu0 %v1966
  %v2097 = vpop.f32.mrf.mxu0
  %v2098 = vadd.f32 0.0, %v2097
  %2099 = vmatmul.f32.gmra.mxu0 %v1969
  %v2100 = vpop.f32.mrf.mxu0
  %v2101 = vadd.f32 0.0, %v2100
  %2102 = vmatmul.f32.gmra.mxu0 %v1972
  %v2103 = vpop.f32.mrf.mxu0
  %v2104 = vadd.f32 0.0, %v2103
  %2105 = vmatmul.f32.gmra.mxu0 %v1975
  %v2106 = vpop.f32.mrf.mxu0
  %v2107 = vadd.f32 0.0, %v2106
  %2108 = vmatmul.f32.gmra.mxu0 %v1978
  %v2109 = vpop.f32.mrf.mxu0
  %v2110 = vadd.f32 0.0, %v2109
  %2111 = vmatmul.f32.gmra.mxu0 %v1981
  %v2112 = vpop.f32.mrf.mxu0
  %v2113 = vadd.f32 0.0, %v2112
  %2114 = vmatmul.f32.gmra.mxu0 %v1984
  %v2115 = vpop.f32.mrf.mxu0
  %v2116 = vadd.f32 0.0, %v2115
  %2117 = vmatmul.f32.gmra.mxu0 %v1987
  %v2118 = vpop.f32.mrf.mxu0
  %v2119 = vadd.f32 0.0, %v2118
  %2120 = vmatmul.f32.gmra.mxu0 %v1990
  %v2121 = vpop.f32.mrf.mxu0
  %v2122 = vadd.f32 0.0, %v2121
  %2123 = vmatmul.f32.gmra.mxu0 %v1993
  %v2124 = vpop.f32.mrf.mxu0
  %v2125 = vadd.f32 0.0, %v2124
  %2126 = vmatmul.f32.gmra.mxu0 %v1996
  %v2127 = vpop.f32.mrf.mxu0
  %v2128 = vadd.f32 0.0, %v2127
  %2129 = vmatmul.f32.gmra.mxu0 %v1999
  %v2130 = vpop.f32.mrf.mxu0
  %v2131 = vadd.f32 0.0, %v2130
  %2132 = vmatmul.f32.gmra.mxu0 %v2002
  %v2133 = vpop.f32.mrf.mxu0
  %v2134 = vadd.f32 0.0, %v2133
  %2135 = vmatmul.f32.gmra.mxu0 %v2005
  %v2136 = vpop.f32.mrf.mxu0
  %v2137 = vadd.f32 0.0, %v2136
  %2138 = vmatmul.f32.gmra.mxu0 %v2008
  %v2139 = vpop.f32.mrf.mxu0
  %v2140 = vadd.f32 0.0, %v2139
  %2141 = vmatmul.f32.gmra.mxu0 %v2011
  %v2142 = vpop.f32.mrf.mxu0
  %v2143 = vadd.f32 0.0, %v2142
  %2144 = vmatmul.f32.gmra.mxu0 %v2014
  %v2145 = vpop.f32.mrf.mxu0
  %v2146 = vadd.f32 0.0, %v2145
  %2147 = vmatmul.f32.gmra.mxu0 %v2017
  %v2148 = vpop.f32.mrf.mxu0
  %v2149 = vadd.f32 0.0, %v2148
  %2150 = vmatmul.f32.gmra.mxu0 %v2020
  %v2151 = vpop.f32.mrf.mxu0
  %v2152 = vadd.f32 0.0, %v2151
  %2153 = vmatmul.f32.gmra.mxu0 %v2023
  %v2154 = vpop.f32.mrf.mxu0
  %v2155 = vadd.f32 0.0, %v2154
  %2156 = vmatmul.f32.gmra.mxu0 %v2026
  %v2157 = vpop.f32.mrf.mxu0
  %v2158 = vadd.f32 0.0, %v2157
  %2159 = vmatmul.f32.gmra.mxu0 %v2029
  %v2160 = vpop.f32.mrf.mxu0
  %v2161 = vadd.f32 0.0, %v2160
  %2162 = vmatmul.f32.gmra.mxu0 %v2032
  %v2163 = vpop.f32.mrf.mxu0
  %v2164 = vadd.f32 0.0, %v2163
  %2165 = vmatmul.f32.gmra.mxu0 %v2035
  %v2166 = vpop.f32.mrf.mxu0
  %v2167 = vadd.f32 0.0, %v2166
  %2168 = vmatmul.f32.gmra.mxu0 %v2038
  %v2169 = vpop.f32.mrf.mxu0
  %v2170 = vadd.f32 0.0, %v2169
  %2171 = vmatmul.f32.gmra.mxu0 %v2041
  %v2172 = vpop.f32.mrf.mxu0
  %v2173 = vadd.f32 0.0, %v2172
  %2174 = vmatmul.f32.gmra.mxu0 %v2044
  %v2175 = vpop.f32.mrf.mxu0
  %v2176 = vadd.f32 0.0, %v2175
  %2177 = vmatmul.f32.gmra.mxu0 %v2047
  %v2178 = vpop.f32.mrf.mxu0
  %v2179 = vadd.f32 0.0, %v2178
  %2180 = vdwg.mxu0
  %vm2181 = vcmask 523264
  %2182 = vst.msk [vmem:[#allocation4] sm:$0xff] %vm2181, %v2071
  %2183 = vst.msk [vmem:[#allocation4 + $0x8] sm:$0xff] %vm2181, %v2074
  %2184 = vst.msk [vmem:[#allocation4 + $0x10] sm:$0xff] %vm2181, %v2077
  %2185 = vst.msk [vmem:[#allocation4 + $0x18] sm:$0xff] %vm2181, %v2080
  %2186 = vst.msk [vmem:[#allocation4 + $0x20] sm:$0xff] %vm2181, %v2083
  %2187 = vst.msk [vmem:[#allocation4 + $0x28] sm:$0xff] %vm2181, %v2086
  %2188 = vst.msk [vmem:[#allocation4 + $0x30] sm:$0xff] %vm2181, %v2089
  %2189 = vst.msk [vmem:[#allocation4 + $0x38] sm:$0xff] %vm2181, %v2092
  %2190 = vst.msk [vmem:[#allocation4 + $0x40] sm:$0xff] %vm2181, %v2095
  %2191 = vst.msk [vmem:[#allocation4 + $0x48] sm:$0xff] %vm2181, %v2098
  %2192 = vst.msk [vmem:[#allocation4 + $0x50] sm:$0xff] %vm2181, %v2101
  %2193 = vst.msk [vmem:[#allocation4 + $0x58] sm:$0xff] %vm2181, %v2104
  %2194 = vst.msk [vmem:[#allocation4 + $0x60] sm:$0xff] %vm2181, %v2107
  %2195 = vst.msk [vmem:[#allocation4 + $0x68] sm:$0xff] %vm2181, %v2110
  %2196 = vst.msk [vmem:[#allocation4 + $0x70] sm:$0xff] %vm2181, %v2113
  %2197 = vst.msk [vmem:[#allocation4 + $0x78] sm:$0xff] %vm2181, %v2116
  %2198 = vst.msk [vmem:[#allocation4 + $0x80] sm:$0xff] %vm2181, %v2119
  %2199 = vst.msk [vmem:[#allocation4 + $0x88] sm:$0xff] %vm2181, %v2122
  %2200 = vst.msk [vmem:[#allocation4 + $0x90] sm:$0xff] %vm2181, %v2125
  %2201 = vst.msk [vmem:[#allocation4 + $0x98] sm:$0xff] %vm2181, %v2128
  %2202 = vst.msk [vmem:[#allocation4 + $0xa0] sm:$0xff] %vm2181, %v2131
  %2203 = vst.msk [vmem:[#allocation4 + $0xa8] sm:$0xff] %vm2181, %v2134
  %2204 = vst.msk [vmem:[#allocation4 + $0xb0] sm:$0xff] %vm2181, %v2137
  %2205 = vst.msk [vmem:[#allocation4 + $0xb8] sm:$0xff] %vm2181, %v2140
  %2206 = vst.msk [vmem:[#allocation4 + $0xc0] sm:$0xff] %vm2181, %v2143
  %2207 = vst.msk [vmem:[#allocation4 + $0xc8] sm:$0xff] %vm2181, %v2146
  %2208 = vst.msk [vmem:[#allocation4 + $0xd0] sm:$0xff] %vm2181, %v2149
  %2209 = vst.msk [vmem:[#allocation4 + $0xd8] sm:$0xff] %vm2181, %v2152
  %2210 = vst.msk [vmem:[#allocation4 + $0xe0] sm:$0xff] %vm2181, %v2155
  %2211 = vst.msk [vmem:[#allocation4 + $0xe8] sm:$0xff] %vm2181, %v2158
  %2212 = vst.msk [vmem:[#allocation4 + $0xf0] sm:$0xff] %vm2181, %v2161
  %2213 = vst.msk [vmem:[#allocation4 + $0xf8] sm:$0xff] %vm2181, %v2164
  %2214 = vst.msk [vmem:[#allocation4 + $0x100] sm:$0xff] %vm2181, %v2167
  %2215 = vst.msk [vmem:[#allocation4 + $0x108] sm:$0xff] %vm2181, %v2170
  %2216 = vst.msk [vmem:[#allocation4 + $0x110] sm:$0xff] %vm2181, %v2173
  %2217 = vst.msk [vmem:[#allocation4 + $0x118] sm:$0xff] %vm2181, %v2176
  %vm2218 = vcmask 516096
  %2219 = vst.msk [vmem:[#allocation4 + $0x120] sm:$0x1] %vm2218, %v2179
  %v2220 = vld [vmem:[#allocation4] sm:$0xff]
  %v2221 = vld [vmem:[#allocation4 + $0x8] sm:$0xff]
  %v2222 = vld [vmem:[#allocation4 + $0x10] sm:$0xff]
  %v2223 = vld [vmem:[#allocation4 + $0x18] sm:$0xff]
  %v2224 = vld [vmem:[#allocation4 + $0x20] sm:$0xff]
  %v2225 = vld [vmem:[#allocation4 + $0x28] sm:$0xff]
  %v2226 = vld [vmem:[#allocation4 + $0x30] sm:$0xff]
  %v2227 = vld [vmem:[#allocation4 + $0x38] sm:$0xff]
  %v2228 = vld [vmem:[#allocation4 + $0x40] sm:$0xff]
  %v2229 = vld [vmem:[#allocation4 + $0x48] sm:$0xff]
  %v2230 = vld [vmem:[#allocation4 + $0x50] sm:$0xff]
  %v2231 = vld [vmem:[#allocation4 + $0x58] sm:$0xff]
  %v2232 = vld [vmem:[#allocation4 + $0x60] sm:$0xff]
  %v2233 = vld [vmem:[#allocation4 + $0x68] sm:$0xff]
  %v2234 = vld [vmem:[#allocation4 + $0x70] sm:$0xff]
  %v2235 = vld [vmem:[#allocation4 + $0x78] sm:$0xff]
  %v2236 = vld [vmem:[#allocation4 + $0x80] sm:$0xff]
  %v2237 = vld [vmem:[#allocation4 + $0x88] sm:$0xff]
  %v2238 = vld [vmem:[#allocation4 + $0x90] sm:$0xff]
  %v2239 = vld [vmem:[#allocation4 + $0x98] sm:$0xff]
  %v2240 = vld [vmem:[#allocation4 + $0xa0] sm:$0xff]
  %v2241 = vld [vmem:[#allocation4 + $0xa8] sm:$0xff]
  %v2242 = vld [vmem:[#allocation4 + $0xb0] sm:$0xff]
  %v2243 = vld [vmem:[#allocation4 + $0xb8] sm:$0xff]
  %v2244 = vld [vmem:[#allocation4 + $0xc0] sm:$0xff]
  %v2245 = vld [vmem:[#allocation4 + $0xc8] sm:$0xff]
  %v2246 = vld [vmem:[#allocation4 + $0xd0] sm:$0xff]
  %v2247 = vld [vmem:[#allocation4 + $0xd8] sm:$0xff]
  %v2248 = vld [vmem:[#allocation4 + $0xe0] sm:$0xff]
  %v2249 = vld [vmem:[#allocation4 + $0xe8] sm:$0xff]
  %v2250 = vld [vmem:[#allocation4 + $0xf0] sm:$0xff]
  %v2251 = vld [vmem:[#allocation4 + $0xf8] sm:$0x1f]
  %v2252 = vld [vmem:[%s8] sm:$0xff]
  %v2253 = vld [vmem:[%s8 + $0x8] sm:$0xff]
  %v2254 = vld [vmem:[%s8 + $0x10] sm:$0xff]
  %v2255 = vld [vmem:[%s8 + $0x18] sm:$0xff]
  %v2256 = vld [vmem:[%s8 + $0x20] sm:$0xff]
  %v2257 = vld [vmem:[%s8 + $0x28] sm:$0xff]
  %v2258 = vld [vmem:[%s8 + $0x30] sm:$0xff]
  %v2259 = vld [vmem:[%s8 + $0x38] sm:$0xff]
  %v2261 = vsel %vm2181, %v2220, 0
  %v2264 = vsel %vm2181, %v2221, 0
  %v2267 = vsel %vm2181, %v2222, 0
  %v2270 = vsel %vm2181, %v2223, 0
  %v2273 = vsel %vm2181, %v2224, 0
  %v2276 = vsel %vm2181, %v2225, 0
  %v2279 = vsel %vm2181, %v2226, 0
  %v2282 = vsel %vm2181, %v2227, 0
  %v2285 = vsel %vm2181, %v2228, 0
  %v2288 = vsel %vm2181, %v2229, 0
  %v2291 = vsel %vm2181, %v2230, 0
  %v2294 = vsel %vm2181, %v2231, 0
  %v2297 = vsel %vm2181, %v2232, 0
  %v2300 = vsel %vm2181, %v2233, 0
  %v2303 = vsel %vm2181, %v2234, 0
  %v2306 = vsel %vm2181, %v2235, 0
  %v2309 = vsel %vm2181, %v2236, 0
  %v2312 = vsel %vm2181, %v2237, 0
  %v2315 = vsel %vm2181, %v2238, 0
  %v2318 = vsel %vm2181, %v2239, 0
  %v2321 = vsel %vm2181, %v2240, 0
  %v2324 = vsel %vm2181, %v2241, 0
  %v2327 = vsel %vm2181, %v2242, 0
  %v2330 = vsel %vm2181, %v2243, 0
  %v2333 = vsel %vm2181, %v2244, 0
  %v2336 = vsel %vm2181, %v2245, 0
  %v2339 = vsel %vm2181, %v2246, 0
  %v2342 = vsel %vm2181, %v2247, 0
  %v2345 = vsel %vm2181, %v2248, 0
  %v2348 = vsel %vm2181, %v2249, 0
  %v2351 = vsel %vm2181, %v2250, 0
  %v2354 = vsel %vm2181, %v2251, 0
  %2356 = vmatpush.msra.mxu0 0.0
  %2357 = vmatpush.msra.mxu0 0.0
  %2358 = vmatpush.msra.mxu0 0.0
  %2359 = vmatpush.msra.mxu0 0.0
  %2360 = vmatpush.msra.mxu0 0.0
  %2361 = vmatpush.msra.mxu0 0.0
  %2362 = vmatpush.msra.mxu0 0.0
  %2363 = vmatpush.msra.mxu0 0.0
  %2364 = vmatpush.msra.mxu0 %v2259
  %2365 = vmatpush.msra.mxu0 %v2258
  %2366 = vmatpush.msra.mxu0 %v2257
  %2367 = vmatpush.msra.mxu0 %v2256
  %2368 = vmatpush.msra.mxu0 %v2255
  %2369 = vmatpush.msra.mxu0 %v2254
  %2370 = vmatpush.msra.mxu0 %v2253
  %2371 = vmatpush.msra.mxu0 %v2252
  %2372 = vmatmul.f32.gmra.mxu0 %v2261
  %v2373 = vpop.f32.mrf.mxu0
  %v2374 = vadd.f32 0.0, %v2373
  %2375 = vmatmul.f32.gmra.mxu0 %v2264
  %v2376 = vpop.f32.mrf.mxu0
  %v2377 = vadd.f32 0.0, %v2376
  %2378 = vmatmul.f32.gmra.mxu0 %v2267
  %v2379 = vpop.f32.mrf.mxu0
  %v2380 = vadd.f32 0.0, %v2379
  %2381 = vmatmul.f32.gmra.mxu0 %v2270
  %v2382 = vpop.f32.mrf.mxu0
  %v2383 = vadd.f32 0.0, %v2382
  %2384 = vmatmul.f32.gmra.mxu0 %v2273
  %v2385 = vpop.f32.mrf.mxu0
  %v2386 = vadd.f32 0.0, %v2385
  %2387 = vmatmul.f32.gmra.mxu0 %v2276
  %v2388 = vpop.f32.mrf.mxu0
  %v2389 = vadd.f32 0.0, %v2388
  %2390 = vmatmul.f32.gmra.mxu0 %v2279
  %v2391 = vpop.f32.mrf.mxu0
  %v2392 = vadd.f32 0.0, %v2391
  %2393 = vmatmul.f32.gmra.mxu0 %v2282
  %v2394 = vpop.f32.mrf.mxu0
  %v2395 = vadd.f32 0.0, %v2394
  %2396 = vmatmul.f32.gmra.mxu0 %v2285
  %v2397 = vpop.f32.mrf.mxu0
  %v2398 = vadd.f32 0.0, %v2397
  %2399 = vmatmul.f32.gmra.mxu0 %v2288
  %v2400 = vpop.f32.mrf.mxu0
  %v2401 = vadd.f32 0.0, %v2400
  %2402 = vmatmul.f32.gmra.mxu0 %v2291
  %v2403 = vpop.f32.mrf.mxu0
  %v2404 = vadd.f32 0.0, %v2403
  %2405 = vmatmul.f32.gmra.mxu0 %v2294
  %v2406 = vpop.f32.mrf.mxu0
  %v2407 = vadd.f32 0.0, %v2406
  %2408 = vmatmul.f32.gmra.mxu0 %v2297
  %v2409 = vpop.f32.mrf.mxu0
  %v2410 = vadd.f32 0.0, %v2409
  %2411 = vmatmul.f32.gmra.mxu0 %v2300
  %v2412 = vpop.f32.mrf.mxu0
  %v2413 = vadd.f32 0.0, %v2412
  %2414 = vmatmul.f32.gmra.mxu0 %v2303
  %v2415 = vpop.f32.mrf.mxu0
  %v2416 = vadd.f32 0.0, %v2415
  %2417 = vmatmul.f32.gmra.mxu0 %v2306
  %v2418 = vpop.f32.mrf.mxu0
  %v2419 = vadd.f32 0.0, %v2418
  %2420 = vmatmul.f32.gmra.mxu0 %v2309
  %v2421 = vpop.f32.mrf.mxu0
  %v2422 = vadd.f32 0.0, %v2421
  %2423 = vmatmul.f32.gmra.mxu0 %v2312
  %v2424 = vpop.f32.mrf.mxu0
  %v2425 = vadd.f32 0.0, %v2424
  %2426 = vmatmul.f32.gmra.mxu0 %v2315
  %v2427 = vpop.f32.mrf.mxu0
  %v2428 = vadd.f32 0.0, %v2427
  %2429 = vmatmul.f32.gmra.mxu0 %v2318
  %v2430 = vpop.f32.mrf.mxu0
  %v2431 = vadd.f32 0.0, %v2430
  %2432 = vmatmul.f32.gmra.mxu0 %v2321
  %v2433 = vpop.f32.mrf.mxu0
  %v2434 = vadd.f32 0.0, %v2433
  %2435 = vmatmul.f32.gmra.mxu0 %v2324
  %v2436 = vpop.f32.mrf.mxu0
  %v2437 = vadd.f32 0.0, %v2436
  %2438 = vmatmul.f32.gmra.mxu0 %v2327
  %v2439 = vpop.f32.mrf.mxu0
  %v2440 = vadd.f32 0.0, %v2439
  %2441 = vmatmul.f32.gmra.mxu0 %v2330
  %v2442 = vpop.f32.mrf.mxu0
  %v2443 = vadd.f32 0.0, %v2442
  %2444 = vmatmul.f32.gmra.mxu0 %v2333
  %v2445 = vpop.f32.mrf.mxu0
  %v2446 = vadd.f32 0.0, %v2445
  %2447 = vmatmul.f32.gmra.mxu0 %v2336
  %v2448 = vpop.f32.mrf.mxu0
  %v2449 = vadd.f32 0.0, %v2448
  %2450 = vmatmul.f32.gmra.mxu0 %v2339
  %v2451 = vpop.f32.mrf.mxu0
  %v2452 = vadd.f32 0.0, %v2451
  %2453 = vmatmul.f32.gmra.mxu0 %v2342
  %v2454 = vpop.f32.mrf.mxu0
  %v2455 = vadd.f32 0.0, %v2454
  %2456 = vmatmul.f32.gmra.mxu0 %v2345
  %v2457 = vpop.f32.mrf.mxu0
  %v2458 = vadd.f32 0.0, %v2457
  %2459 = vmatmul.f32.gmra.mxu0 %v2348
  %v2460 = vpop.f32.mrf.mxu0
  %v2461 = vadd.f32 0.0, %v2460
  %2462 = vmatmul.f32.gmra.mxu0 %v2351
  %v2463 = vpop.f32.mrf.mxu0
  %v2464 = vadd.f32 0.0, %v2463
  %2465 = vmatmul.f32.gmra.mxu0 %v2354
  %v2466 = vpop.f32.mrf.mxu0
  %v2467 = vadd.f32 0.0, %v2466
  %2468 = vdwg.mxu0
  %2469 = vst.msk [vmem:[#allocation6] sm:$0xff] %vm223, %v2374
  %2470 = vst.msk [vmem:[#allocation6 + $0x8] sm:$0xff] %vm223, %v2377
  %2471 = vst.msk [vmem:[#allocation6 + $0x10] sm:$0xff] %vm223, %v2380
  %2472 = vst.msk [vmem:[#allocation6 + $0x18] sm:$0xff] %vm223, %v2383
  %2473 = vst.msk [vmem:[#allocation6 + $0x20] sm:$0xff] %vm223, %v2386
  %2474 = vst.msk [vmem:[#allocation6 + $0x28] sm:$0xff] %vm223, %v2389
  %2475 = vst.msk [vmem:[#allocation6 + $0x30] sm:$0xff] %vm223, %v2392
  %2476 = vst.msk [vmem:[#allocation6 + $0x38] sm:$0xff] %vm223, %v2395
  %2477 = vst.msk [vmem:[#allocation6 + $0x40] sm:$0xff] %vm223, %v2398
  %2478 = vst.msk [vmem:[#allocation6 + $0x48] sm:$0xff] %vm223, %v2401
  %2479 = vst.msk [vmem:[#allocation6 + $0x50] sm:$0xff] %vm223, %v2404
  %2480 = vst.msk [vmem:[#allocation6 + $0x58] sm:$0xff] %vm223, %v2407
  %2481 = vst.msk [vmem:[#allocation6 + $0x60] sm:$0xff] %vm223, %v2410
  %2482 = vst.msk [vmem:[#allocation6 + $0x68] sm:$0xff] %vm223, %v2413
  %2483 = vst.msk [vmem:[#allocation6 + $0x70] sm:$0xff] %vm223, %v2416
  %2484 = vst.msk [vmem:[#allocation6 + $0x78] sm:$0xff] %vm223, %v2419
  %2485 = vst.msk [vmem:[#allocation6 + $0x80] sm:$0xff] %vm223, %v2422
  %2486 = vst.msk [vmem:[#allocation6 + $0x88] sm:$0xff] %vm223, %v2425
  %2487 = vst.msk [vmem:[#allocation6 + $0x90] sm:$0xff] %vm223, %v2428
  %2488 = vst.msk [vmem:[#allocation6 + $0x98] sm:$0xff] %vm223, %v2431
  %2489 = vst.msk [vmem:[#allocation6 + $0xa0] sm:$0xff] %vm223, %v2434
  %2490 = vst.msk [vmem:[#allocation6 + $0xa8] sm:$0xff] %vm223, %v2437
  %2491 = vst.msk [vmem:[#allocation6 + $0xb0] sm:$0xff] %vm223, %v2440
  %2492 = vst.msk [vmem:[#allocation6 + $0xb8] sm:$0xff] %vm223, %v2443
  %2493 = vst.msk [vmem:[#allocation6 + $0xc0] sm:$0xff] %vm223, %v2446
  %2494 = vst.msk [vmem:[#allocation6 + $0xc8] sm:$0xff] %vm223, %v2449
  %2495 = vst.msk [vmem:[#allocation6 + $0xd0] sm:$0xff] %vm223, %v2452
  %2496 = vst.msk [vmem:[#allocation6 + $0xd8] sm:$0xff] %vm223, %v2455
  %2497 = vst.msk [vmem:[#allocation6 + $0xe0] sm:$0xff] %vm223, %v2458
  %2498 = vst.msk [vmem:[#allocation6 + $0xe8] sm:$0xff] %vm223, %v2461
  %2499 = vst.msk [vmem:[#allocation6 + $0xf0] sm:$0xff] %vm223, %v2464
  %vm2500 = vcmask 258048
  %2501 = vst.msk [vmem:[#allocation6 + $0xf8] sm:$0x1f] %vm2500, %v2467
  %v2502 = vld [vmem:[#allocation4 + $0x1] sm:$0xff]
  %v2503 = vld [vmem:[#allocation4 + $0x9] sm:$0xff]
  %v2504 = vld [vmem:[#allocation4 + $0x11] sm:$0xff]
  %v2505 = vld [vmem:[#allocation4 + $0x19] sm:$0xff]
  %v2506 = vld [vmem:[#allocation4 + $0x21] sm:$0xff]
  %v2507 = vld [vmem:[#allocation4 + $0x29] sm:$0xff]
  %v2508 = vld [vmem:[#allocation4 + $0x31] sm:$0xff]
  %v2509 = vld [vmem:[#allocation4 + $0x39] sm:$0xff]
  %v2510 = vld [vmem:[#allocation4 + $0x41] sm:$0xff]
  %v2511 = vld [vmem:[#allocation4 + $0x49] sm:$0xff]
  %v2512 = vld [vmem:[#allocation4 + $0x51] sm:$0xff]
  %v2513 = vld [vmem:[#allocation4 + $0x59] sm:$0xff]
  %v2514 = vld [vmem:[#allocation4 + $0x61] sm:$0xff]
  %v2515 = vld [vmem:[#allocation4 + $0x69] sm:$0xff]
  %v2516 = vld [vmem:[#allocation4 + $0x71] sm:$0xff]
  %v2517 = vld [vmem:[#allocation4 + $0x79] sm:$0xff]
  %v2518 = vld [vmem:[#allocation4 + $0x81] sm:$0xff]
  %v2519 = vld [vmem:[#allocation4 + $0x89] sm:$0xff]
  %v2520 = vld [vmem:[#allocation4 + $0x91] sm:$0xff]
  %v2521 = vld [vmem:[#allocation4 + $0x99] sm:$0xff]
  %v2522 = vld [vmem:[#allocation4 + $0xa1] sm:$0xff]
  %v2523 = vld [vmem:[#allocation4 + $0xa9] sm:$0xff]
  %v2524 = vld [vmem:[#allocation4 + $0xb1] sm:$0xff]
  %v2525 = vld [vmem:[#allocation4 + $0xb9] sm:$0xff]
  %v2526 = vld [vmem:[#allocation4 + $0xc1] sm:$0xff]
  %v2527 = vld [vmem:[#allocation4 + $0xc9] sm:$0xff]
  %v2528 = vld [vmem:[#allocation4 + $0xd1] sm:$0xff]
  %v2529 = vld [vmem:[#allocation4 + $0xd9] sm:$0xff]
  %v2530 = vld [vmem:[#allocation4 + $0xe1] sm:$0xff]
  %v2531 = vld [vmem:[#allocation4 + $0xe9] sm:$0xff]
  %v2532 = vld [vmem:[#allocation4 + $0xf1] sm:$0xff]
  %v2533 = vld [vmem:[#allocation4 + $0xf9] sm:$0x1f]
  %s2534 = scalar_lea.vmem %s8, 64
  %v2535 = vld [vmem:[%s2534] sm:$0xff]
  %v2536 = vld [vmem:[%s2534 + $0x8] sm:$0xff]
  %v2537 = vld [vmem:[%s2534 + $0x10] sm:$0xff]
  %v2538 = vld [vmem:[%s2534 + $0x18] sm:$0xff]
  %v2539 = vld [vmem:[%s2534 + $0x20] sm:$0xff]
  %v2540 = vld [vmem:[%s2534 + $0x28] sm:$0xff]
  %v2541 = vld [vmem:[%s2534 + $0x30] sm:$0xff]
  %v2542 = vld [vmem:[%s2534 + $0x38] sm:$0xff]
  %v2544 = vsel %vm2181, %v2502, 0
  %v2547 = vsel %vm2181, %v2503, 0
  %v2550 = vsel %vm2181, %v2504, 0
  %v2553 = vsel %vm2181, %v2505, 0
  %v2556 = vsel %vm2181, %v2506, 0
  %v2559 = vsel %vm2181, %v2507, 0
  %v2562 = vsel %vm2181, %v2508, 0
  %v2565 = vsel %vm2181, %v2509, 0
  %v2568 = vsel %vm2181, %v2510, 0
  %v2571 = vsel %vm2181, %v2511, 0
  %v2574 = vsel %vm2181, %v2512, 0
  %v2577 = vsel %vm2181, %v2513, 0
  %v2580 = vsel %vm2181, %v2514, 0
  %v2583 = vsel %vm2181, %v2515, 0
  %v2586 = vsel %vm2181, %v2516, 0
  %v2589 = vsel %vm2181, %v2517, 0
  %v2592 = vsel %vm2181, %v2518, 0
  %v2595 = vsel %vm2181, %v2519, 0
  %v2598 = vsel %vm2181, %v2520, 0
  %v2601 = vsel %vm2181, %v2521, 0
  %v2604 = vsel %vm2181, %v2522, 0
  %v2607 = vsel %vm2181, %v2523, 0
  %v2610 = vsel %vm2181, %v2524, 0
  %v2613 = vsel %vm2181, %v2525, 0
  %v2616 = vsel %vm2181, %v2526, 0
  %v2619 = vsel %vm2181, %v2527, 0
  %v2622 = vsel %vm2181, %v2528, 0
  %v2625 = vsel %vm2181, %v2529, 0
  %v2628 = vsel %vm2181, %v2530, 0
  %v2631 = vsel %vm2181, %v2531, 0
  %v2634 = vsel %vm2181, %v2532, 0
  %v2637 = vsel %vm2181, %v2533, 0
  %2639 = vmatpush.msra.mxu0 0.0
  %2640 = vmatpush.msra.mxu0 0.0
  %2641 = vmatpush.msra.mxu0 0.0
  %2642 = vmatpush.msra.mxu0 0.0
  %2643 = vmatpush.msra.mxu0 0.0
  %2644 = vmatpush.msra.mxu0 0.0
  %2645 = vmatpush.msra.mxu0 0.0
  %2646 = vmatpush.msra.mxu0 0.0
  %2647 = vmatpush.msra.mxu0 %v2542
  %2648 = vmatpush.msra.mxu0 %v2541
  %2649 = vmatpush.msra.mxu0 %v2540
  %2650 = vmatpush.msra.mxu0 %v2539
  %2651 = vmatpush.msra.mxu0 %v2538
  %2652 = vmatpush.msra.mxu0 %v2537
  %2653 = vmatpush.msra.mxu0 %v2536
  %2654 = vmatpush.msra.mxu0 %v2535
  %2655 = vmatmul.f32.gmra.mxu0 %v2544
  %v2656 = vpop.f32.mrf.mxu0
  %v2657 = vadd.f32 0.0, %v2656
  %2658 = vmatmul.f32.gmra.mxu0 %v2547
  %v2659 = vpop.f32.mrf.mxu0
  %v2660 = vadd.f32 0.0, %v2659
  %2661 = vmatmul.f32.gmra.mxu0 %v2550
  %v2662 = vpop.f32.mrf.mxu0
  %v2663 = vadd.f32 0.0, %v2662
  %2664 = vmatmul.f32.gmra.mxu0 %v2553
  %v2665 = vpop.f32.mrf.mxu0
  %v2666 = vadd.f32 0.0, %v2665
  %2667 = vmatmul.f32.gmra.mxu0 %v2556
  %v2668 = vpop.f32.mrf.mxu0
  %v2669 = vadd.f32 0.0, %v2668
  %2670 = vmatmul.f32.gmra.mxu0 %v2559
  %v2671 = vpop.f32.mrf.mxu0
  %v2672 = vadd.f32 0.0, %v2671
  %2673 = vmatmul.f32.gmra.mxu0 %v2562
  %v2674 = vpop.f32.mrf.mxu0
  %v2675 = vadd.f32 0.0, %v2674
  %2676 = vmatmul.f32.gmra.mxu0 %v2565
  %v2677 = vpop.f32.mrf.mxu0
  %v2678 = vadd.f32 0.0, %v2677
  %2679 = vmatmul.f32.gmra.mxu0 %v2568
  %v2680 = vpop.f32.mrf.mxu0
  %v2681 = vadd.f32 0.0, %v2680
  %2682 = vmatmul.f32.gmra.mxu0 %v2571
  %v2683 = vpop.f32.mrf.mxu0
  %v2684 = vadd.f32 0.0, %v2683
  %2685 = vmatmul.f32.gmra.mxu0 %v2574
  %v2686 = vpop.f32.mrf.mxu0
  %v2687 = vadd.f32 0.0, %v2686
  %2688 = vmatmul.f32.gmra.mxu0 %v2577
  %v2689 = vpop.f32.mrf.mxu0
  %v2690 = vadd.f32 0.0, %v2689
  %2691 = vmatmul.f32.gmra.mxu0 %v2580
  %v2692 = vpop.f32.mrf.mxu0
  %v2693 = vadd.f32 0.0, %v2692
  %2694 = vmatmul.f32.gmra.mxu0 %v2583
  %v2695 = vpop.f32.mrf.mxu0
  %v2696 = vadd.f32 0.0, %v2695
  %2697 = vmatmul.f32.gmra.mxu0 %v2586
  %v2698 = vpop.f32.mrf.mxu0
  %v2699 = vadd.f32 0.0, %v2698
  %2700 = vmatmul.f32.gmra.mxu0 %v2589
  %v2701 = vpop.f32.mrf.mxu0
  %v2702 = vadd.f32 0.0, %v2701
  %2703 = vmatmul.f32.gmra.mxu0 %v2592
  %v2704 = vpop.f32.mrf.mxu0
  %v2705 = vadd.f32 0.0, %v2704
  %2706 = vmatmul.f32.gmra.mxu0 %v2595
  %v2707 = vpop.f32.mrf.mxu0
  %v2708 = vadd.f32 0.0, %v2707
  %2709 = vmatmul.f32.gmra.mxu0 %v2598
  %v2710 = vpop.f32.mrf.mxu0
  %v2711 = vadd.f32 0.0, %v2710
  %2712 = vmatmul.f32.gmra.mxu0 %v2601
  %v2713 = vpop.f32.mrf.mxu0
  %v2714 = vadd.f32 0.0, %v2713
  %2715 = vmatmul.f32.gmra.mxu0 %v2604
  %v2716 = vpop.f32.mrf.mxu0
  %v2717 = vadd.f32 0.0, %v2716
  %2718 = vmatmul.f32.gmra.mxu0 %v2607
  %v2719 = vpop.f32.mrf.mxu0
  %v2720 = vadd.f32 0.0, %v2719
  %2721 = vmatmul.f32.gmra.mxu0 %v2610
  %v2722 = vpop.f32.mrf.mxu0
  %v2723 = vadd.f32 0.0, %v2722
  %2724 = vmatmul.f32.gmra.mxu0 %v2613
  %v2725 = vpop.f32.mrf.mxu0
  %v2726 = vadd.f32 0.0, %v2725
  %2727 = vmatmul.f32.gmra.mxu0 %v2616
  %v2728 = vpop.f32.mrf.mxu0
  %v2729 = vadd.f32 0.0, %v2728
  %2730 = vmatmul.f32.gmra.mxu0 %v2619
  %v2731 = vpop.f32.mrf.mxu0
  %v2732 = vadd.f32 0.0, %v2731
  %2733 = vmatmul.f32.gmra.mxu0 %v2622
  %v2734 = vpop.f32.mrf.mxu0
  %v2735 = vadd.f32 0.0, %v2734
  %2736 = vmatmul.f32.gmra.mxu0 %v2625
  %v2737 = vpop.f32.mrf.mxu0
  %v2738 = vadd.f32 0.0, %v2737
  %2739 = vmatmul.f32.gmra.mxu0 %v2628
  %v2740 = vpop.f32.mrf.mxu0
  %v2741 = vadd.f32 0.0, %v2740
  %2742 = vmatmul.f32.gmra.mxu0 %v2631
  %v2743 = vpop.f32.mrf.mxu0
  %v2744 = vadd.f32 0.0, %v2743
  %2745 = vmatmul.f32.gmra.mxu0 %v2634
  %v2746 = vpop.f32.mrf.mxu0
  %v2747 = vadd.f32 0.0, %v2746
  %2748 = vmatmul.f32.gmra.mxu0 %v2637
  %v2749 = vpop.f32.mrf.mxu0
  %v2750 = vadd.f32 0.0, %v2749
  %2751 = vdwg.mxu0
  %v2752 = vld [vmem:[#allocation6] sm:$0xff]
  %v2753 = vld [vmem:[#allocation6 + $0x8] sm:$0xff]
  %v2754 = vld [vmem:[#allocation6 + $0x10] sm:$0xff]
  %v2755 = vld [vmem:[#allocation6 + $0x18] sm:$0xff]
  %v2756 = vld [vmem:[#allocation6 + $0x20] sm:$0xff]
  %v2757 = vld [vmem:[#allocation6 + $0x28] sm:$0xff]
  %v2758 = vld [vmem:[#allocation6 + $0x30] sm:$0xff]
  %v2759 = vld [vmem:[#allocation6 + $0x38] sm:$0xff]
  %v2760 = vld [vmem:[#allocation6 + $0x40] sm:$0xff]
  %v2761 = vld [vmem:[#allocation6 + $0x48] sm:$0xff]
  %v2762 = vld [vmem:[#allocation6 + $0x50] sm:$0xff]
  %v2763 = vld [vmem:[#allocation6 + $0x58] sm:$0xff]
  %v2764 = vld [vmem:[#allocation6 + $0x60] sm:$0xff]
  %v2765 = vld [vmem:[#allocation6 + $0x68] sm:$0xff]
  %v2766 = vld [vmem:[#allocation6 + $0x70] sm:$0xff]
  %v2767 = vld [vmem:[#allocation6 + $0x78] sm:$0xff]
  %v2768 = vld [vmem:[#allocation6 + $0x80] sm:$0xff]
  %v2769 = vld [vmem:[#allocation6 + $0x88] sm:$0xff]
  %v2770 = vld [vmem:[#allocation6 + $0x90] sm:$0xff]
  %v2771 = vld [vmem:[#allocation6 + $0x98] sm:$0xff]
  %v2772 = vld [vmem:[#allocation6 + $0xa0] sm:$0xff]
  %v2773 = vld [vmem:[#allocation6 + $0xa8] sm:$0xff]
  %v2774 = vld [vmem:[#allocation6 + $0xb0] sm:$0xff]
  %v2775 = vld [vmem:[#allocation6 + $0xb8] sm:$0xff]
  %v2776 = vld [vmem:[#allocation6 + $0xc0] sm:$0xff]
  %v2777 = vld [vmem:[#allocation6 + $0xc8] sm:$0xff]
  %v2778 = vld [vmem:[#allocation6 + $0xd0] sm:$0xff]
  %v2779 = vld [vmem:[#allocation6 + $0xd8] sm:$0xff]
  %v2780 = vld [vmem:[#allocation6 + $0xe0] sm:$0xff]
  %v2781 = vld [vmem:[#allocation6 + $0xe8] sm:$0xff]
  %v2782 = vld [vmem:[#allocation6 + $0xf0] sm:$0xff]
  %v2783 = vld [vmem:[#allocation6 + $0xf8] sm:$0x1f]
  %v2784 = vadd.f32 %v2752, %v2657
  %v2785 = vadd.f32 %v2753, %v2660
  %v2786 = vadd.f32 %v2754, %v2663
  %v2787 = vadd.f32 %v2755, %v2666
  %v2788 = vadd.f32 %v2756, %v2669
  %v2789 = vadd.f32 %v2757, %v2672
  %v2790 = vadd.f32 %v2758, %v2675
  %v2791 = vadd.f32 %v2759, %v2678
  %v2792 = vadd.f32 %v2760, %v2681
  %v2793 = vadd.f32 %v2761, %v2684
  %v2794 = vadd.f32 %v2762, %v2687
  %v2795 = vadd.f32 %v2763, %v2690
  %v2796 = vadd.f32 %v2764, %v2693
  %v2797 = vadd.f32 %v2765, %v2696
  %v2798 = vadd.f32 %v2766, %v2699
  %v2799 = vadd.f32 %v2767, %v2702
  %v2800 = vadd.f32 %v2768, %v2705
  %v2801 = vadd.f32 %v2769, %v2708
  %v2802 = vadd.f32 %v2770, %v2711
  %v2803 = vadd.f32 %v2771, %v2714
  %v2804 = vadd.f32 %v2772, %v2717
  %v2805 = vadd.f32 %v2773, %v2720
  %v2806 = vadd.f32 %v2774, %v2723
  %v2807 = vadd.f32 %v2775, %v2726
  %v2808 = vadd.f32 %v2776, %v2729
  %v2809 = vadd.f32 %v2777, %v2732
  %v2810 = vadd.f32 %v2778, %v2735
  %v2811 = vadd.f32 %v2779, %v2738
  %v2812 = vadd.f32 %v2780, %v2741
  %v2813 = vadd.f32 %v2781, %v2744
  %v2814 = vadd.f32 %v2782, %v2747
  %v2815 = vadd.f32 %v2783, %v2750
  %2816 = vst.msk [vmem:[#allocation6] sm:$0xff] %vm223, %v2784
  %2817 = vst.msk [vmem:[#allocation6 + $0x8] sm:$0xff] %vm223, %v2785
  %2818 = vst.msk [vmem:[#allocation6 + $0x10] sm:$0xff] %vm223, %v2786
  %2819 = vst.msk [vmem:[#allocation6 + $0x18] sm:$0xff] %vm223, %v2787
  %2820 = vst.msk [vmem:[#allocation6 + $0x20] sm:$0xff] %vm223, %v2788
  %2821 = vst.msk [vmem:[#allocation6 + $0x28] sm:$0xff] %vm223, %v2789
  %2822 = vst.msk [vmem:[#allocation6 + $0x30] sm:$0xff] %vm223, %v2790
  %2823 = vst.msk [vmem:[#allocation6 + $0x38] sm:$0xff] %vm223, %v2791
  %2824 = vst.msk [vmem:[#allocation6 + $0x40] sm:$0xff] %vm223, %v2792
  %2825 = vst.msk [vmem:[#allocation6 + $0x48] sm:$0xff] %vm223, %v2793
  %2826 = vst.msk [vmem:[#allocation6 + $0x50] sm:$0xff] %vm223, %v2794
  %2827 = vst.msk [vmem:[#allocation6 + $0x58] sm:$0xff] %vm223, %v2795
  %2828 = vst.msk [vmem:[#allocation6 + $0x60] sm:$0xff] %vm223, %v2796
  %2829 = vst.msk [vmem:[#allocation6 + $0x68] sm:$0xff] %vm223, %v2797
  %2830 = vst.msk [vmem:[#allocation6 + $0x70] sm:$0xff] %vm223, %v2798
  %2831 = vst.msk [vmem:[#allocation6 + $0x78] sm:$0xff] %vm223, %v2799
  %2832 = vst.msk [vmem:[#allocation6 + $0x80] sm:$0xff] %vm223, %v2800
  %2833 = vst.msk [vmem:[#allocation6 + $0x88] sm:$0xff] %vm223, %v2801
  %2834 = vst.msk [vmem:[#allocation6 + $0x90] sm:$0xff] %vm223, %v2802
  %2835 = vst.msk [vmem:[#allocation6 + $0x98] sm:$0xff] %vm223, %v2803
  %2836 = vst.msk [vmem:[#allocation6 + $0xa0] sm:$0xff] %vm223, %v2804
  %2837 = vst.msk [vmem:[#allocation6 + $0xa8] sm:$0xff] %vm223, %v2805
  %2838 = vst.msk [vmem:[#allocation6 + $0xb0] sm:$0xff] %vm223, %v2806
  %2839 = vst.msk [vmem:[#allocation6 + $0xb8] sm:$0xff] %vm223, %v2807
  %2840 = vst.msk [vmem:[#allocation6 + $0xc0] sm:$0xff] %vm223, %v2808
  %2841 = vst.msk [vmem:[#allocation6 + $0xc8] sm:$0xff] %vm223, %v2809
  %2842 = vst.msk [vmem:[#allocation6 + $0xd0] sm:$0xff] %vm223, %v2810
  %2843 = vst.msk [vmem:[#allocation6 + $0xd8] sm:$0xff] %vm223, %v2811
  %2844 = vst.msk [vmem:[#allocation6 + $0xe0] sm:$0xff] %vm223, %v2812
  %2845 = vst.msk [vmem:[#allocation6 + $0xe8] sm:$0xff] %vm223, %v2813
  %2846 = vst.msk [vmem:[#allocation6 + $0xf0] sm:$0xff] %vm223, %v2814
  %2847 = vst.msk [vmem:[#allocation6 + $0xf8] sm:$0x1f] %vm2500, %v2815
  %v2848 = vld [vmem:[#allocation4 + $0x2] sm:$0xff]
  %v2849 = vld [vmem:[#allocation4 + $0xa] sm:$0xff]
  %v2850 = vld [vmem:[#allocation4 + $0x12] sm:$0xff]
  %v2851 = vld [vmem:[#allocation4 + $0x1a] sm:$0xff]
  %v2852 = vld [vmem:[#allocation4 + $0x22] sm:$0xff]
  %v2853 = vld [vmem:[#allocation4 + $0x2a] sm:$0xff]
  %v2854 = vld [vmem:[#allocation4 + $0x32] sm:$0xff]
  %v2855 = vld [vmem:[#allocation4 + $0x3a] sm:$0xff]
  %v2856 = vld [vmem:[#allocation4 + $0x42] sm:$0xff]
  %v2857 = vld [vmem:[#allocation4 + $0x4a] sm:$0xff]
  %v2858 = vld [vmem:[#allocation4 + $0x52] sm:$0xff]
  %v2859 = vld [vmem:[#allocation4 + $0x5a] sm:$0xff]
  %v2860 = vld [vmem:[#allocation4 + $0x62] sm:$0xff]
  %v2861 = vld [vmem:[#allocation4 + $0x6a] sm:$0xff]
  %v2862 = vld [vmem:[#allocation4 + $0x72] sm:$0xff]
  %v2863 = vld [vmem:[#allocation4 + $0x7a] sm:$0xff]
  %v2864 = vld [vmem:[#allocation4 + $0x82] sm:$0xff]
  %v2865 = vld [vmem:[#allocation4 + $0x8a] sm:$0xff]
  %v2866 = vld [vmem:[#allocation4 + $0x92] sm:$0xff]
  %v2867 = vld [vmem:[#allocation4 + $0x9a] sm:$0xff]
  %v2868 = vld [vmem:[#allocation4 + $0xa2] sm:$0xff]
  %v2869 = vld [vmem:[#allocation4 + $0xaa] sm:$0xff]
  %v2870 = vld [vmem:[#allocation4 + $0xb2] sm:$0xff]
  %v2871 = vld [vmem:[#allocation4 + $0xba] sm:$0xff]
  %v2872 = vld [vmem:[#allocation4 + $0xc2] sm:$0xff]
  %v2873 = vld [vmem:[#allocation4 + $0xca] sm:$0xff]
  %v2874 = vld [vmem:[#allocation4 + $0xd2] sm:$0xff]
  %v2875 = vld [vmem:[#allocation4 + $0xda] sm:$0xff]
  %v2876 = vld [vmem:[#allocation4 + $0xe2] sm:$0xff]
  %v2877 = vld [vmem:[#allocation4 + $0xea] sm:$0xff]
  %v2878 = vld [vmem:[#allocation4 + $0xf2] sm:$0xff]
  %v2879 = vld [vmem:[#allocation4 + $0xfa] sm:$0x1f]
  %s2880 = scalar_lea.vmem %s8, 128
  %v2881 = vld [vmem:[%s2880] sm:$0xff]
  %v2882 = vld [vmem:[%s2880 + $0x8] sm:$0xff]
  %v2883 = vld [vmem:[%s2880 + $0x10] sm:$0xff]
  %v2884 = vld [vmem:[%s2880 + $0x18] sm:$0xff]
  %v2885 = vld [vmem:[%s2880 + $0x20] sm:$0xff]
  %v2886 = vld [vmem:[%s2880 + $0x28] sm:$0xff]
  %v2887 = vld [vmem:[%s2880 + $0x30] sm:$0xff]
  %v2888 = vld [vmem:[%s2880 + $0x38] sm:$0xff]
  %v2890 = vsel %vm2181, %v2848, 0
  %v2893 = vsel %vm2181, %v2849, 0
  %v2896 = vsel %vm2181, %v2850, 0
  %v2899 = vsel %vm2181, %v2851, 0
  %v2902 = vsel %vm2181, %v2852, 0
  %v2905 = vsel %vm2181, %v2853, 0
  %v2908 = vsel %vm2181, %v2854, 0
  %v2911 = vsel %vm2181, %v2855, 0
  %v2914 = vsel %vm2181, %v2856, 0
  %v2917 = vsel %vm2181, %v2857, 0
  %v2920 = vsel %vm2181, %v2858, 0
  %v2923 = vsel %vm2181, %v2859, 0
  %v2926 = vsel %vm2181, %v2860, 0
  %v2929 = vsel %vm2181, %v2861, 0
  %v2932 = vsel %vm2181, %v2862, 0
  %v2935 = vsel %vm2181, %v2863, 0
  %v2938 = vsel %vm2181, %v2864, 0
  %v2941 = vsel %vm2181, %v2865, 0
  %v2944 = vsel %vm2181, %v2866, 0
  %v2947 = vsel %vm2181, %v2867, 0
  %v2950 = vsel %vm2181, %v2868, 0
  %v2953 = vsel %vm2181, %v2869, 0
  %v2956 = vsel %vm2181, %v2870, 0
  %v2959 = vsel %vm2181, %v2871, 0
  %v2962 = vsel %vm2181, %v2872, 0
  %v2965 = vsel %vm2181, %v2873, 0
  %v2968 = vsel %vm2181, %v2874, 0
  %v2971 = vsel %vm2181, %v2875, 0
  %v2974 = vsel %vm2181, %v2876, 0
  %v2977 = vsel %vm2181, %v2877, 0
  %v2980 = vsel %vm2181, %v2878, 0
  %v2983 = vsel %vm2181, %v2879, 0
  %2985 = vmatpush.msra.mxu0 0.0
  %2986 = vmatpush.msra.mxu0 0.0
  %2987 = vmatpush.msra.mxu0 0.0
  %2988 = vmatpush.msra.mxu0 0.0
  %2989 = vmatpush.msra.mxu0 0.0
  %2990 = vmatpush.msra.mxu0 0.0
  %2991 = vmatpush.msra.mxu0 0.0
  %2992 = vmatpush.msra.mxu0 0.0
  %2993 = vmatpush.msra.mxu0 %v2888
  %2994 = vmatpush.msra.mxu0 %v2887
  %2995 = vmatpush.msra.mxu0 %v2886
  %2996 = vmatpush.msra.mxu0 %v2885
  %2997 = vmatpush.msra.mxu0 %v2884
  %2998 = vmatpush.msra.mxu0 %v2883
  %2999 = vmatpush.msra.mxu0 %v2882
  %3000 = vmatpush.msra.mxu0 %v2881
  %3001 = vmatmul.f32.gmra.mxu0 %v2890
  %v3002 = vpop.f32.mrf.mxu0
  %v3003 = vadd.f32 0.0, %v3002
  %3004 = vmatmul.f32.gmra.mxu0 %v2893
  %v3005 = vpop.f32.mrf.mxu0
  %v3006 = vadd.f32 0.0, %v3005
  %3007 = vmatmul.f32.gmra.mxu0 %v2896
  %v3008 = vpop.f32.mrf.mxu0
  %v3009 = vadd.f32 0.0, %v3008
  %3010 = vmatmul.f32.gmra.mxu0 %v2899
  %v3011 = vpop.f32.mrf.mxu0
  %v3012 = vadd.f32 0.0, %v3011
  %3013 = vmatmul.f32.gmra.mxu0 %v2902
  %v3014 = vpop.f32.mrf.mxu0
  %v3015 = vadd.f32 0.0, %v3014
  %3016 = vmatmul.f32.gmra.mxu0 %v2905
  %v3017 = vpop.f32.mrf.mxu0
  %v3018 = vadd.f32 0.0, %v3017
  %3019 = vmatmul.f32.gmra.mxu0 %v2908
  %v3020 = vpop.f32.mrf.mxu0
  %v3021 = vadd.f32 0.0, %v3020
  %3022 = vmatmul.f32.gmra.mxu0 %v2911
  %v3023 = vpop.f32.mrf.mxu0
  %v3024 = vadd.f32 0.0, %v3023
  %3025 = vmatmul.f32.gmra.mxu0 %v2914
  %v3026 = vpop.f32.mrf.mxu0
  %v3027 = vadd.f32 0.0, %v3026
  %3028 = vmatmul.f32.gmra.mxu0 %v2917
  %v3029 = vpop.f32.mrf.mxu0
  %v3030 = vadd.f32 0.0, %v3029
  %3031 = vmatmul.f32.gmra.mxu0 %v2920
  %v3032 = vpop.f32.mrf.mxu0
  %v3033 = vadd.f32 0.0, %v3032
  %3034 = vmatmul.f32.gmra.mxu0 %v2923
  %v3035 = vpop.f32.mrf.mxu0
  %v3036 = vadd.f32 0.0, %v3035
  %3037 = vmatmul.f32.gmra.mxu0 %v2926
  %v3038 = vpop.f32.mrf.mxu0
  %v3039 = vadd.f32 0.0, %v3038
  %3040 = vmatmul.f32.gmra.mxu0 %v2929
  %v3041 = vpop.f32.mrf.mxu0
  %v3042 = vadd.f32 0.0, %v3041
  %3043 = vmatmul.f32.gmra.mxu0 %v2932
  %v3044 = vpop.f32.mrf.mxu0
  %v3045 = vadd.f32 0.0, %v3044
  %3046 = vmatmul.f32.gmra.mxu0 %v2935
  %v3047 = vpop.f32.mrf.mxu0
  %v3048 = vadd.f32 0.0, %v3047
  %3049 = vmatmul.f32.gmra.mxu0 %v2938
  %v3050 = vpop.f32.mrf.mxu0
  %v3051 = vadd.f32 0.0, %v3050
  %3052 = vmatmul.f32.gmra.mxu0 %v2941
  %v3053 = vpop.f32.mrf.mxu0
  %v3054 = vadd.f32 0.0, %v3053
  %3055 = vmatmul.f32.gmra.mxu0 %v2944
  %v3056 = vpop.f32.mrf.mxu0
  %v3057 = vadd.f32 0.0, %v3056
  %3058 = vmatmul.f32.gmra.mxu0 %v2947
  %v3059 = vpop.f32.mrf.mxu0
  %v3060 = vadd.f32 0.0, %v3059
  %3061 = vmatmul.f32.gmra.mxu0 %v2950
  %v3062 = vpop.f32.mrf.mxu0
  %v3063 = vadd.f32 0.0, %v3062
  %3064 = vmatmul.f32.gmra.mxu0 %v2953
  %v3065 = vpop.f32.mrf.mxu0
  %v3066 = vadd.f32 0.0, %v3065
  %3067 = vmatmul.f32.gmra.mxu0 %v2956
  %v3068 = vpop.f32.mrf.mxu0
  %v3069 = vadd.f32 0.0, %v3068
  %3070 = vmatmul.f32.gmra.mxu0 %v2959
  %v3071 = vpop.f32.mrf.mxu0
  %v3072 = vadd.f32 0.0, %v3071
  %3073 = vmatmul.f32.gmra.mxu0 %v2962
  %v3074 = vpop.f32.mrf.mxu0
  %v3075 = vadd.f32 0.0, %v3074
  %3076 = vmatmul.f32.gmra.mxu0 %v2965
  %v3077 = vpop.f32.mrf.mxu0
  %v3078 = vadd.f32 0.0, %v3077
  %3079 = vmatmul.f32.gmra.mxu0 %v2968
  %v3080 = vpop.f32.mrf.mxu0
  %v3081 = vadd.f32 0.0, %v3080
  %3082 = vmatmul.f32.gmra.mxu0 %v2971
  %v3083 = vpop.f32.mrf.mxu0
  %v3084 = vadd.f32 0.0, %v3083
  %3085 = vmatmul.f32.gmra.mxu0 %v2974
  %v3086 = vpop.f32.mrf.mxu0
  %v3087 = vadd.f32 0.0, %v3086
  %3088 = vmatmul.f32.gmra.mxu0 %v2977
  %v3089 = vpop.f32.mrf.mxu0
  %v3090 = vadd.f32 0.0, %v3089
  %3091 = vmatmul.f32.gmra.mxu0 %v2980
  %v3092 = vpop.f32.mrf.mxu0
  %v3093 = vadd.f32 0.0, %v3092
  %3094 = vmatmul.f32.gmra.mxu0 %v2983
  %v3095 = vpop.f32.mrf.mxu0
  %v3096 = vadd.f32 0.0, %v3095
  %3097 = vdwg.mxu0
  %v3098 = vld [vmem:[#allocation6] sm:$0xff]
  %v3099 = vld [vmem:[#allocation6 + $0x8] sm:$0xff]
  %v3100 = vld [vmem:[#allocation6 + $0x10] sm:$0xff]
  %v3101 = vld [vmem:[#allocation6 + $0x18] sm:$0xff]
  %v3102 = vld [vmem:[#allocation6 + $0x20] sm:$0xff]
  %v3103 = vld [vmem:[#allocation6 + $0x28] sm:$0xff]
  %v3104 = vld [vmem:[#allocation6 + $0x30] sm:$0xff]
  %v3105 = vld [vmem:[#allocation6 + $0x38] sm:$0xff]
  %v3106 = vld [vmem:[#allocation6 + $0x40] sm:$0xff]
  %v3107 = vld [vmem:[#allocation6 + $0x48] sm:$0xff]
  %v3108 = vld [vmem:[#allocation6 + $0x50] sm:$0xff]
  %v3109 = vld [vmem:[#allocation6 + $0x58] sm:$0xff]
  %v3110 = vld [vmem:[#allocation6 + $0x60] sm:$0xff]
  %v3111 = vld [vmem:[#allocation6 + $0x68] sm:$0xff]
  %v3112 = vld [vmem:[#allocation6 + $0x70] sm:$0xff]
  %v3113 = vld [vmem:[#allocation6 + $0x78] sm:$0xff]
  %v3114 = vld [vmem:[#allocation6 + $0x80] sm:$0xff]
  %v3115 = vld [vmem:[#allocation6 + $0x88] sm:$0xff]
  %v3116 = vld [vmem:[#allocation6 + $0x90] sm:$0xff]
  %v3117 = vld [vmem:[#allocation6 + $0x98] sm:$0xff]
  %v3118 = vld [vmem:[#allocation6 + $0xa0] sm:$0xff]
  %v3119 = vld [vmem:[#allocation6 + $0xa8] sm:$0xff]
  %v3120 = vld [vmem:[#allocation6 + $0xb0] sm:$0xff]
  %v3121 = vld [vmem:[#allocation6 + $0xb8] sm:$0xff]
  %v3122 = vld [vmem:[#allocation6 + $0xc0] sm:$0xff]
  %v3123 = vld [vmem:[#allocation6 + $0xc8] sm:$0xff]
  %v3124 = vld [vmem:[#allocation6 + $0xd0] sm:$0xff]
  %v3125 = vld [vmem:[#allocation6 + $0xd8] sm:$0xff]
  %v3126 = vld [vmem:[#allocation6 + $0xe0] sm:$0xff]
  %v3127 = vld [vmem:[#allocation6 + $0xe8] sm:$0xff]
  %v3128 = vld [vmem:[#allocation6 + $0xf0] sm:$0xff]
  %v3129 = vld [vmem:[#allocation6 + $0xf8] sm:$0x1f]
  %v3130 = vadd.f32 %v3098, %v3003
  %v3131 = vadd.f32 %v3099, %v3006
  %v3132 = vadd.f32 %v3100, %v3009
  %v3133 = vadd.f32 %v3101, %v3012
  %v3134 = vadd.f32 %v3102, %v3015
  %v3135 = vadd.f32 %v3103, %v3018
  %v3136 = vadd.f32 %v3104, %v3021
  %v3137 = vadd.f32 %v3105, %v3024
  %v3138 = vadd.f32 %v3106, %v3027
  %v3139 = vadd.f32 %v3107, %v3030
  %v3140 = vadd.f32 %v3108, %v3033
  %v3141 = vadd.f32 %v3109, %v3036
  %v3142 = vadd.f32 %v3110, %v3039
  %v3143 = vadd.f32 %v3111, %v3042
  %v3144 = vadd.f32 %v3112, %v3045
  %v3145 = vadd.f32 %v3113, %v3048
  %v3146 = vadd.f32 %v3114, %v3051
  %v3147 = vadd.f32 %v3115, %v3054
  %v3148 = vadd.f32 %v3116, %v3057
  %v3149 = vadd.f32 %v3117, %v3060
  %v3150 = vadd.f32 %v3118, %v3063
  %v3151 = vadd.f32 %v3119, %v3066
  %v3152 = vadd.f32 %v3120, %v3069
  %v3153 = vadd.f32 %v3121, %v3072
  %v3154 = vadd.f32 %v3122, %v3075
  %v3155 = vadd.f32 %v3123, %v3078
  %v3156 = vadd.f32 %v3124, %v3081
  %v3157 = vadd.f32 %v3125, %v3084
  %v3158 = vadd.f32 %v3126, %v3087
  %v3159 = vadd.f32 %v3127, %v3090
  %v3160 = vadd.f32 %v3128, %v3093
  %v3161 = vadd.f32 %v3129, %v3096
  %3162 = vst.msk [vmem:[#allocation6] sm:$0xff] %vm223, %v3130
  %3163 = vst.msk [vmem:[#allocation6 + $0x8] sm:$0xff] %vm223, %v3131
  %3164 = vst.msk [vmem:[#allocation6 + $0x10] sm:$0xff] %vm223, %v3132
  %3165 = vst.msk [vmem:[#allocation6 + $0x18] sm:$0xff] %vm223, %v3133
  %3166 = vst.msk [vmem:[#allocation6 + $0x20] sm:$0xff] %vm223, %v3134
  %3167 = vst.msk [vmem:[#allocation6 + $0x28] sm:$0xff] %vm223, %v3135
  %3168 = vst.msk [vmem:[#allocation6 + $0x30] sm:$0xff] %vm223, %v3136
  %3169 = vst.msk [vmem:[#allocation6 + $0x38] sm:$0xff] %vm223, %v3137
  %3170 = vst.msk [vmem:[#allocation6 + $0x40] sm:$0xff] %vm223, %v3138
  %3171 = vst.msk [vmem:[#allocation6 + $0x48] sm:$0xff] %vm223, %v3139
  %3172 = vst.msk [vmem:[#allocation6 + $0x50] sm:$0xff] %vm223, %v3140
  %3173 = vst.msk [vmem:[#allocation6 + $0x58] sm:$0xff] %vm223, %v3141
  %3174 = vst.msk [vmem:[#allocation6 + $0x60] sm:$0xff] %vm223, %v3142
  %3175 = vst.msk [vmem:[#allocation6 + $0x68] sm:$0xff] %vm223, %v3143
  %3176 = vst.msk [vmem:[#allocation6 + $0x70] sm:$0xff] %vm223, %v3144
  %3177 = vst.msk [vmem:[#allocation6 + $0x78] sm:$0xff] %vm223, %v3145
  %3178 = vst.msk [vmem:[#allocation6 + $0x80] sm:$0xff] %vm223, %v3146
  %3179 = vst.msk [vmem:[#allocation6 + $0x88] sm:$0xff] %vm223, %v3147
  %3180 = vst.msk [vmem:[#allocation6 + $0x90] sm:$0xff] %vm223, %v3148
  %3181 = vst.msk [vmem:[#allocation6 + $0x98] sm:$0xff] %vm223, %v3149
  %3182 = vst.msk [vmem:[#allocation6 + $0xa0] sm:$0xff] %vm223, %v3150
  %3183 = vst.msk [vmem:[#allocation6 + $0xa8] sm:$0xff] %vm223, %v3151
  %3184 = vst.msk [vmem:[#allocation6 + $0xb0] sm:$0xff] %vm223, %v3152
  %3185 = vst.msk [vmem:[#allocation6 + $0xb8] sm:$0xff] %vm223, %v3153
  %3186 = vst.msk [vmem:[#allocation6 + $0xc0] sm:$0xff] %vm223, %v3154
  %3187 = vst.msk [vmem:[#allocation6 + $0xc8] sm:$0xff] %vm223, %v3155
  %3188 = vst.msk [vmem:[#allocation6 + $0xd0] sm:$0xff] %vm223, %v3156
  %3189 = vst.msk [vmem:[#allocation6 + $0xd8] sm:$0xff] %vm223, %v3157
  %3190 = vst.msk [vmem:[#allocation6 + $0xe0] sm:$0xff] %vm223, %v3158
  %3191 = vst.msk [vmem:[#allocation6 + $0xe8] sm:$0xff] %vm223, %v3159
  %3192 = vst.msk [vmem:[#allocation6 + $0xf0] sm:$0xff] %vm223, %v3160
  %3193 = vst.msk [vmem:[#allocation6 + $0xf8] sm:$0x1f] %vm2500, %v3161
  %v3194 = vld [vmem:[#allocation4 + $0x11] sm:$0xff]
  %v3195 = vld [vmem:[#allocation4 + $0x19] sm:$0xff]
  %v3196 = vld [vmem:[#allocation4 + $0x21] sm:$0xff]
  %v3197 = vld [vmem:[#allocation4 + $0x29] sm:$0xff]
  %v3198 = vld [vmem:[#allocation4 + $0x31] sm:$0xff]
  %v3199 = vld [vmem:[#allocation4 + $0x39] sm:$0xff]
  %v3200 = vld [vmem:[#allocation4 + $0x41] sm:$0xff]
  %v3201 = vld [vmem:[#allocation4 + $0x49] sm:$0xff]
  %v3202 = vld [vmem:[#allocation4 + $0x51] sm:$0xff]
  %v3203 = vld [vmem:[#allocation4 + $0x59] sm:$0xff]
  %v3204 = vld [vmem:[#allocation4 + $0x61] sm:$0xff]
  %v3205 = vld [vmem:[#allocation4 + $0x69] sm:$0xff]
  %v3206 = vld [vmem:[#allocation4 + $0x71] sm:$0xff]
  %v3207 = vld [vmem:[#allocation4 + $0x79] sm:$0xff]
  %v3208 = vld [vmem:[#allocation4 + $0x81] sm:$0xff]
  %v3209 = vld [vmem:[#allocation4 + $0x89] sm:$0xff]
  %v3210 = vld [vmem:[#allocation4 + $0x91] sm:$0xff]
  %v3211 = vld [vmem:[#allocation4 + $0x99] sm:$0xff]
  %v3212 = vld [vmem:[#allocation4 + $0xa1] sm:$0xff]
  %v3213 = vld [vmem:[#allocation4 + $0xa9] sm:$0xff]
  %v3214 = vld [vmem:[#allocation4 + $0xb1] sm:$0xff]
  %v3215 = vld [vmem:[#allocation4 + $0xb9] sm:$0xff]
  %v3216 = vld [vmem:[#allocation4 + $0xc1] sm:$0xff]
  %v3217 = vld [vmem:[#allocation4 + $0xc9] sm:$0xff]
  %v3218 = vld [vmem:[#allocation4 + $0xd1] sm:$0xff]
  %v3219 = vld [vmem:[#allocation4 + $0xd9] sm:$0xff]
  %v3220 = vld [vmem:[#allocation4 + $0xe1] sm:$0xff]
  %v3221 = vld [vmem:[#allocation4 + $0xe9] sm:$0xff]
  %v3222 = vld [vmem:[#allocation4 + $0xf1] sm:$0xff]
  %v3223 = vld [vmem:[#allocation4 + $0xf9] sm:$0xff]
  %v3224 = vld [vmem:[#allocation4 + $0x101] sm:$0xff]
  %v3225 = vld [vmem:[#allocation4 + $0x109] sm:$0x1f]
  %s3226 = scalar_lea.vmem %s8, 192
  %v3227 = vld [vmem:[%s3226] sm:$0xff]
  %v3228 = vld [vmem:[%s3226 + $0x8] sm:$0xff]
  %v3229 = vld [vmem:[%s3226 + $0x10] sm:$0xff]
  %v3230 = vld [vmem:[%s3226 + $0x18] sm:$0xff]
  %v3231 = vld [vmem:[%s3226 + $0x20] sm:$0xff]
  %v3232 = vld [vmem:[%s3226 + $0x28] sm:$0xff]
  %v3233 = vld [vmem:[%s3226 + $0x30] sm:$0xff]
  %v3234 = vld [vmem:[%s3226 + $0x38] sm:$0xff]
  %v3236 = vsel %vm2181, %v3194, 0
  %v3239 = vsel %vm2181, %v3195, 0
  %v3242 = vsel %vm2181, %v3196, 0
  %v3245 = vsel %vm2181, %v3197, 0
  %v3248 = vsel %vm2181, %v3198, 0
  %v3251 = vsel %vm2181, %v3199, 0
  %v3254 = vsel %vm2181, %v3200, 0
  %v3257 = vsel %vm2181, %v3201, 0
  %v3260 = vsel %vm2181, %v3202, 0
  %v3263 = vsel %vm2181, %v3203, 0
  %v3266 = vsel %vm2181, %v3204, 0
  %v3269 = vsel %vm2181, %v3205, 0
  %v3272 = vsel %vm2181, %v3206, 0
  %v3275 = vsel %vm2181, %v3207, 0
  %v3278 = vsel %vm2181, %v3208, 0
  %v3281 = vsel %vm2181, %v3209, 0
  %v3284 = vsel %vm2181, %v3210, 0
  %v3287 = vsel %vm2181, %v3211, 0
  %v3290 = vsel %vm2181, %v3212, 0
  %v3293 = vsel %vm2181, %v3213, 0
  %v3296 = vsel %vm2181, %v3214, 0
  %v3299 = vsel %vm2181, %v3215, 0
  %v3302 = vsel %vm2181, %v3216, 0
  %v3305 = vsel %vm2181, %v3217, 0
  %v3308 = vsel %vm2181, %v3218, 0
  %v3311 = vsel %vm2181, %v3219, 0
  %v3314 = vsel %vm2181, %v3220, 0
  %v3317 = vsel %vm2181, %v3221, 0
  %v3320 = vsel %vm2181, %v3222, 0
  %v3323 = vsel %vm2181, %v3223, 0
  %v3326 = vsel %vm2181, %v3224, 0
  %v3329 = vsel %vm2181, %v3225, 0
  %3331 = vmatpush.msra.mxu0 0.0
  %3332 = vmatpush.msra.mxu0 0.0
  %3333 = vmatpush.msra.mxu0 0.0
  %3334 = vmatpush.msra.mxu0 0.0
  %3335 = vmatpush.msra.mxu0 0.0
  %3336 = vmatpush.msra.mxu0 0.0
  %3337 = vmatpush.msra.mxu0 0.0
  %3338 = vmatpush.msra.mxu0 0.0
  %3339 = vmatpush.msra.mxu0 %v3234
  %3340 = vmatpush.msra.mxu0 %v3233
  %3341 = vmatpush.msra.mxu0 %v3232
  %3342 = vmatpush.msra.mxu0 %v3231
  %3343 = vmatpush.msra.mxu0 %v3230
  %3344 = vmatpush.msra.mxu0 %v3229
  %3345 = vmatpush.msra.mxu0 %v3228
  %3346 = vmatpush.msra.mxu0 %v3227
  %3347 = vmatmul.f32.gmra.mxu0 %v3236
  %v3348 = vpop.f32.mrf.mxu0
  %v3349 = vadd.f32 0.0, %v3348
  %3350 = vmatmul.f32.gmra.mxu0 %v3239
  %v3351 = vpop.f32.mrf.mxu0
  %v3352 = vadd.f32 0.0, %v3351
  %3353 = vmatmul.f32.gmra.mxu0 %v3242
  %v3354 = vpop.f32.mrf.mxu0
  %v3355 = vadd.f32 0.0, %v3354
  %3356 = vmatmul.f32.gmra.mxu0 %v3245
  %v3357 = vpop.f32.mrf.mxu0
  %v3358 = vadd.f32 0.0, %v3357
  %3359 = vmatmul.f32.gmra.mxu0 %v3248
  %v3360 = vpop.f32.mrf.mxu0
  %v3361 = vadd.f32 0.0, %v3360
  %3362 = vmatmul.f32.gmra.mxu0 %v3251
  %v3363 = vpop.f32.mrf.mxu0
  %v3364 = vadd.f32 0.0, %v3363
  %3365 = vmatmul.f32.gmra.mxu0 %v3254
  %v3366 = vpop.f32.mrf.mxu0
  %v3367 = vadd.f32 0.0, %v3366
  %3368 = vmatmul.f32.gmra.mxu0 %v3257
  %v3369 = vpop.f32.mrf.mxu0
  %v3370 = vadd.f32 0.0, %v3369
  %3371 = vmatmul.f32.gmra.mxu0 %v3260
  %v3372 = vpop.f32.mrf.mxu0
  %v3373 = vadd.f32 0.0, %v3372
  %3374 = vmatmul.f32.gmra.mxu0 %v3263
  %v3375 = vpop.f32.mrf.mxu0
  %v3376 = vadd.f32 0.0, %v3375
  %3377 = vmatmul.f32.gmra.mxu0 %v3266
  %v3378 = vpop.f32.mrf.mxu0
  %v3379 = vadd.f32 0.0, %v3378
  %3380 = vmatmul.f32.gmra.mxu0 %v3269
  %v3381 = vpop.f32.mrf.mxu0
  %v3382 = vadd.f32 0.0, %v3381
  %3383 = vmatmul.f32.gmra.mxu0 %v3272
  %v3384 = vpop.f32.mrf.mxu0
  %v3385 = vadd.f32 0.0, %v3384
  %3386 = vmatmul.f32.gmra.mxu0 %v3275
  %v3387 = vpop.f32.mrf.mxu0
  %v3388 = vadd.f32 0.0, %v3387
  %3389 = vmatmul.f32.gmra.mxu0 %v3278
  %v3390 = vpop.f32.mrf.mxu0
  %v3391 = vadd.f32 0.0, %v3390
  %3392 = vmatmul.f32.gmra.mxu0 %v3281
  %v3393 = vpop.f32.mrf.mxu0
  %v3394 = vadd.f32 0.0, %v3393
  %3395 = vmatmul.f32.gmra.mxu0 %v3284
  %v3396 = vpop.f32.mrf.mxu0
  %v3397 = vadd.f32 0.0, %v3396
  %3398 = vmatmul.f32.gmra.mxu0 %v3287
  %v3399 = vpop.f32.mrf.mxu0
  %v3400 = vadd.f32 0.0, %v3399
  %3401 = vmatmul.f32.gmra.mxu0 %v3290
  %v3402 = vpop.f32.mrf.mxu0
  %v3403 = vadd.f32 0.0, %v3402
  %3404 = vmatmul.f32.gmra.mxu0 %v3293
  %v3405 = vpop.f32.mrf.mxu0
  %v3406 = vadd.f32 0.0, %v3405
  %3407 = vmatmul.f32.gmra.mxu0 %v3296
  %v3408 = vpop.f32.mrf.mxu0
  %v3409 = vadd.f32 0.0, %v3408
  %3410 = vmatmul.f32.gmra.mxu0 %v3299
  %v3411 = vpop.f32.mrf.mxu0
  %v3412 = vadd.f32 0.0, %v3411
  %3413 = vmatmul.f32.gmra.mxu0 %v3302
  %v3414 = vpop.f32.mrf.mxu0
  %v3415 = vadd.f32 0.0, %v3414
  %3416 = vmatmul.f32.gmra.mxu0 %v3305
  %v3417 = vpop.f32.mrf.mxu0
  %v3418 = vadd.f32 0.0, %v3417
  %3419 = vmatmul.f32.gmra.mxu0 %v3308
  %v3420 = vpop.f32.mrf.mxu0
  %v3421 = vadd.f32 0.0, %v3420
  %3422 = vmatmul.f32.gmra.mxu0 %v3311
  %v3423 = vpop.f32.mrf.mxu0
  %v3424 = vadd.f32 0.0, %v3423
  %3425 = vmatmul.f32.gmra.mxu0 %v3314
  %v3426 = vpop.f32.mrf.mxu0
  %v3427 = vadd.f32 0.0, %v3426
  %3428 = vmatmul.f32.gmra.mxu0 %v3317
  %v3429 = vpop.f32.mrf.mxu0
  %v3430 = vadd.f32 0.0, %v3429
  %3431 = vmatmul.f32.gmra.mxu0 %v3320
  %v3432 = vpop.f32.mrf.mxu0
  %v3433 = vadd.f32 0.0, %v3432
  %3434 = vmatmul.f32.gmra.mxu0 %v3323
  %v3435 = vpop.f32.mrf.mxu0
  %v3436 = vadd.f32 0.0, %v3435
  %3437 = vmatmul.f32.gmra.mxu0 %v3326
  %v3438 = vpop.f32.mrf.mxu0
  %v3439 = vadd.f32 0.0, %v3438
  %3440 = vmatmul.f32.gmra.mxu0 %v3329
  %v3441 = vpop.f32.mrf.mxu0
  %v3442 = vadd.f32 0.0, %v3441
  %3443 = vdwg.mxu0
  %v3444 = vld [vmem:[#allocation6] sm:$0xff]
  %v3445 = vld [vmem:[#allocation6 + $0x8] sm:$0xff]
  %v3446 = vld [vmem:[#allocation6 + $0x10] sm:$0xff]
  %v3447 = vld [vmem:[#allocation6 + $0x18] sm:$0xff]
  %v3448 = vld [vmem:[#allocation6 + $0x20] sm:$0xff]
  %v3449 = vld [vmem:[#allocation6 + $0x28] sm:$0xff]
  %v3450 = vld [vmem:[#allocation6 + $0x30] sm:$0xff]
  %v3451 = vld [vmem:[#allocation6 + $0x38] sm:$0xff]
  %v3452 = vld [vmem:[#allocation6 + $0x40] sm:$0xff]
  %v3453 = vld [vmem:[#allocation6 + $0x48] sm:$0xff]
  %v3454 = vld [vmem:[#allocation6 + $0x50] sm:$0xff]
  %v3455 = vld [vmem:[#allocation6 + $0x58] sm:$0xff]
  %v3456 = vld [vmem:[#allocation6 + $0x60] sm:$0xff]
  %v3457 = vld [vmem:[#allocation6 + $0x68] sm:$0xff]
  %v3458 = vld [vmem:[#allocation6 + $0x70] sm:$0xff]
  %v3459 = vld [vmem:[#allocation6 + $0x78] sm:$0xff]
  %v3460 = vld [vmem:[#allocation6 + $0x80] sm:$0xff]
  %v3461 = vld [vmem:[#allocation6 + $0x88] sm:$0xff]
  %v3462 = vld [vmem:[#allocation6 + $0x90] sm:$0xff]
  %v3463 = vld [vmem:[#allocation6 + $0x98] sm:$0xff]
  %v3464 = vld [vmem:[#allocation6 + $0xa0] sm:$0xff]
  %v3465 = vld [vmem:[#allocation6 + $0xa8] sm:$0xff]
  %v3466 = vld [vmem:[#allocation6 + $0xb0] sm:$0xff]
  %v3467 = vld [vmem:[#allocation6 + $0xb8] sm:$0xff]
  %v3468 = vld [vmem:[#allocation6 + $0xc0] sm:$0xff]
  %v3469 = vld [vmem:[#allocation6 + $0xc8] sm:$0xff]
  %v3470 = vld [vmem:[#allocation6 + $0xd0] sm:$0xff]
  %v3471 = vld [vmem:[#allocation6 + $0xd8] sm:$0xff]
  %v3472 = vld [vmem:[#allocation6 + $0xe0] sm:$0xff]
  %v3473 = vld [vmem:[#allocation6 + $0xe8] sm:$0xff]
  %v3474 = vld [vmem:[#allocation6 + $0xf0] sm:$0xff]
  %v3475 = vld [vmem:[#allocation6 + $0xf8] sm:$0x1f]
  %v3476 = vadd.f32 %v3444, %v3349
  %v3477 = vadd.f32 %v3445, %v3352
  %v3478 = vadd.f32 %v3446, %v3355
  %v3479 = vadd.f32 %v3447, %v3358
  %v3480 = vadd.f32 %v3448, %v3361
  %v3481 = vadd.f32 %v3449, %v3364
  %v3482 = vadd.f32 %v3450, %v3367
  %v3483 = vadd.f32 %v3451, %v3370
  %v3484 = vadd.f32 %v3452, %v3373
  %v3485 = vadd.f32 %v3453, %v3376
  %v3486 = vadd.f32 %v3454, %v3379
  %v3487 = vadd.f32 %v3455, %v3382
  %v3488 = vadd.f32 %v3456, %v3385
  %v3489 = vadd.f32 %v3457, %v3388
  %v3490 = vadd.f32 %v3458, %v3391
  %v3491 = vadd.f32 %v3459, %v3394
  %v3492 = vadd.f32 %v3460, %v3397
  %v3493 = vadd.f32 %v3461, %v3400
  %v3494 = vadd.f32 %v3462, %v3403
  %v3495 = vadd.f32 %v3463, %v3406
  %v3496 = vadd.f32 %v3464, %v3409
  %v3497 = vadd.f32 %v3465, %v3412
  %v3498 = vadd.f32 %v3466, %v3415
  %v3499 = vadd.f32 %v3467, %v3418
  %v3500 = vadd.f32 %v3468, %v3421
  %v3501 = vadd.f32 %v3469, %v3424
  %v3502 = vadd.f32 %v3470, %v3427
  %v3503 = vadd.f32 %v3471, %v3430
  %v3504 = vadd.f32 %v3472, %v3433
  %v3505 = vadd.f32 %v3473, %v3436
  %v3506 = vadd.f32 %v3474, %v3439
  %v3507 = vadd.f32 %v3475, %v3442
  %3508 = vst.msk [vmem:[#allocation6] sm:$0xff] %vm223, %v3476
  %3509 = vst.msk [vmem:[#allocation6 + $0x8] sm:$0xff] %vm223, %v3477
  %3510 = vst.msk [vmem:[#allocation6 + $0x10] sm:$0xff] %vm223, %v3478
  %3511 = vst.msk [vmem:[#allocation6 + $0x18] sm:$0xff] %vm223, %v3479
  %3512 = vst.msk [vmem:[#allocation6 + $0x20] sm:$0xff] %vm223, %v3480
  %3513 = vst.msk [vmem:[#allocation6 + $0x28] sm:$0xff] %vm223, %v3481
  %3514 = vst.msk [vmem:[#allocation6 + $0x30] sm:$0xff] %vm223, %v3482
  %3515 = vst.msk [vmem:[#allocation6 + $0x38] sm:$0xff] %vm223, %v3483
  %3516 = vst.msk [vmem:[#allocation6 + $0x40] sm:$0xff] %vm223, %v3484
  %3517 = vst.msk [vmem:[#allocation6 + $0x48] sm:$0xff] %vm223, %v3485
  %3518 = vst.msk [vmem:[#allocation6 + $0x50] sm:$0xff] %vm223, %v3486
  %3519 = vst.msk [vmem:[#allocation6 + $0x58] sm:$0xff] %vm223, %v3487
  %3520 = vst.msk [vmem:[#allocation6 + $0x60] sm:$0xff] %vm223, %v3488
  %3521 = vst.msk [vmem:[#allocation6 + $0x68] sm:$0xff] %vm223, %v3489
  %3522 = vst.msk [vmem:[#allocation6 + $0x70] sm:$0xff] %vm223, %v3490
  %3523 = vst.msk [vmem:[#allocation6 + $0x78] sm:$0xff] %vm223, %v3491
  %3524 = vst.msk [vmem:[#allocation6 + $0x80] sm:$0xff] %vm223, %v3492
  %3525 = vst.msk [vmem:[#allocation6 + $0x88] sm:$0xff] %vm223, %v3493
  %3526 = vst.msk [vmem:[#allocation6 + $0x90] sm:$0xff] %vm223, %v3494
  %3527 = vst.msk [vmem:[#allocation6 + $0x98] sm:$0xff] %vm223, %v3495
  %3528 = vst.msk [vmem:[#allocation6 + $0xa0] sm:$0xff] %vm223, %v3496
  %3529 = vst.msk [vmem:[#allocation6 + $0xa8] sm:$0xff] %vm223, %v3497
  %3530 = vst.msk [vmem:[#allocation6 + $0xb0] sm:$0xff] %vm223, %v3498
  %3531 = vst.msk [vmem:[#allocation6 + $0xb8] sm:$0xff] %vm223, %v3499
  %3532 = vst.msk [vmem:[#allocation6 + $0xc0] sm:$0xff] %vm223, %v3500
  %3533 = vst.msk [vmem:[#allocation6 + $0xc8] sm:$0xff] %vm223, %v3501
  %3534 = vst.msk [vmem:[#allocation6 + $0xd0] sm:$0xff] %vm223, %v3502
  %3535 = vst.msk [vmem:[#allocation6 + $0xd8] sm:$0xff] %vm223, %v3503
  %3536 = vst.msk [vmem:[#allocation6 + $0xe0] sm:$0xff] %vm223, %v3504
  %3537 = vst.msk [vmem:[#allocation6 + $0xe8] sm:$0xff] %vm223, %v3505
  %3538 = vst.msk [vmem:[#allocation6 + $0xf0] sm:$0xff] %vm223, %v3506
  %3539 = vst.msk [vmem:[#allocation6 + $0xf8] sm:$0x1f] %vm2500, %v3507
  %v3540 = vld [vmem:[#allocation4 + $0x12] sm:$0xff]
  %v3541 = vld [vmem:[#allocation4 + $0x1a] sm:$0xff]
  %v3542 = vld [vmem:[#allocation4 + $0x22] sm:$0xff]
  %v3543 = vld [vmem:[#allocation4 + $0x2a] sm:$0xff]
  %v3544 = vld [vmem:[#allocation4 + $0x32] sm:$0xff]
  %v3545 = vld [vmem:[#allocation4 + $0x3a] sm:$0xff]
  %v3546 = vld [vmem:[#allocation4 + $0x42] sm:$0xff]
  %v3547 = vld [vmem:[#allocation4 + $0x4a] sm:$0xff]
  %v3548 = vld [vmem:[#allocation4 + $0x52] sm:$0xff]
  %v3549 = vld [vmem:[#allocation4 + $0x5a] sm:$0xff]
  %v3550 = vld [vmem:[#allocation4 + $0x62] sm:$0xff]
  %v3551 = vld [vmem:[#allocation4 + $0x6a] sm:$0xff]
  %v3552 = vld [vmem:[#allocation4 + $0x72] sm:$0xff]
  %v3553 = vld [vmem:[#allocation4 + $0x7a] sm:$0xff]
  %v3554 = vld [vmem:[#allocation4 + $0x82] sm:$0xff]
  %v3555 = vld [vmem:[#allocation4 + $0x8a] sm:$0xff]
  %v3556 = vld [vmem:[#allocation4 + $0x92] sm:$0xff]
  %v3557 = vld [vmem:[#allocation4 + $0x9a] sm:$0xff]
  %v3558 = vld [vmem:[#allocation4 + $0xa2] sm:$0xff]
  %v3559 = vld [vmem:[#allocation4 + $0xaa] sm:$0xff]
  %v3560 = vld [vmem:[#allocation4 + $0xb2] sm:$0xff]
  %v3561 = vld [vmem:[#allocation4 + $0xba] sm:$0xff]
  %v3562 = vld [vmem:[#allocation4 + $0xc2] sm:$0xff]
  %v3563 = vld [vmem:[#allocation4 + $0xca] sm:$0xff]
  %v3564 = vld [vmem:[#allocation4 + $0xd2] sm:$0xff]
  %v3565 = vld [vmem:[#allocation4 + $0xda] sm:$0xff]
  %v3566 = vld [vmem:[#allocation4 + $0xe2] sm:$0xff]
  %v3567 = vld [vmem:[#allocation4 + $0xea] sm:$0xff]
  %v3568 = vld [vmem:[#allocation4 + $0xf2] sm:$0xff]
  %v3569 = vld [vmem:[#allocation4 + $0xfa] sm:$0xff]
  %v3570 = vld [vmem:[#allocation4 + $0x102] sm:$0xff]
  %v3571 = vld [vmem:[#allocation4 + $0x10a] sm:$0x1f]
  %s3572 = scalar_lea.vmem %s8, 256
  %v3573 = vld [vmem:[%s3572] sm:$0xff]
  %v3574 = vld [vmem:[%s3572 + $0x8] sm:$0xff]
  %v3575 = vld [vmem:[%s3572 + $0x10] sm:$0xff]
  %v3576 = vld [vmem:[%s3572 + $0x18] sm:$0xff]
  %v3577 = vld [vmem:[%s3572 + $0x20] sm:$0xff]
  %v3578 = vld [vmem:[%s3572 + $0x28] sm:$0xff]
  %v3579 = vld [vmem:[%s3572 + $0x30] sm:$0xff]
  %v3580 = vld [vmem:[%s3572 + $0x38] sm:$0xff]
  %v3582 = vsel %vm2181, %v3540, 0
  %v3585 = vsel %vm2181, %v3541, 0
  %v3588 = vsel %vm2181, %v3542, 0
  %v3591 = vsel %vm2181, %v3543, 0
  %v3594 = vsel %vm2181, %v3544, 0
  %v3597 = vsel %vm2181, %v3545, 0
  %v3600 = vsel %vm2181, %v3546, 0
  %v3603 = vsel %vm2181, %v3547, 0
  %v3606 = vsel %vm2181, %v3548, 0
  %v3609 = vsel %vm2181, %v3549, 0
  %v3612 = vsel %vm2181, %v3550, 0
  %v3615 = vsel %vm2181, %v3551, 0
  %v3618 = vsel %vm2181, %v3552, 0
  %v3621 = vsel %vm2181, %v3553, 0
  %v3624 = vsel %vm2181, %v3554, 0
  %v3627 = vsel %vm2181, %v3555, 0
  %v3630 = vsel %vm2181, %v3556, 0
  %v3633 = vsel %vm2181, %v3557, 0
  %v3636 = vsel %vm2181, %v3558, 0
  %v3639 = vsel %vm2181, %v3559, 0
  %v3642 = vsel %vm2181, %v3560, 0
  %v3645 = vsel %vm2181, %v3561, 0
  %v3648 = vsel %vm2181, %v3562, 0
  %v3651 = vsel %vm2181, %v3563, 0
  %v3654 = vsel %vm2181, %v3564, 0
  %v3657 = vsel %vm2181, %v3565, 0
  %v3660 = vsel %vm2181, %v3566, 0
  %v3663 = vsel %vm2181, %v3567, 0
  %v3666 = vsel %vm2181, %v3568, 0
  %v3669 = vsel %vm2181, %v3569, 0
  %v3672 = vsel %vm2181, %v3570, 0
  %v3675 = vsel %vm2181, %v3571, 0
  %3677 = vmatpush.msra.mxu0 0.0
  %3678 = vmatpush.msra.mxu0 0.0
  %3679 = vmatpush.msra.mxu0 0.0
  %3680 = vmatpush.msra.mxu0 0.0
  %3681 = vmatpush.msra.mxu0 0.0
  %3682 = vmatpush.msra.mxu0 0.0
  %3683 = vmatpush.msra.mxu0 0.0
  %3684 = vmatpush.msra.mxu0 0.0
  %3685 = vmatpush.msra.mxu0 %v3580
  %3686 = vmatpush.msra.mxu0 %v3579
  %3687 = vmatpush.msra.mxu0 %v3578
  %3688 = vmatpush.msra.mxu0 %v3577
  %3689 = vmatpush.msra.mxu0 %v3576
  %3690 = vmatpush.msra.mxu0 %v3575
  %3691 = vmatpush.msra.mxu0 %v3574
  %3692 = vmatpush.msra.mxu0 %v3573
  %3693 = vmatmul.f32.gmra.mxu0 %v3582
  %v3694 = vpop.f32.mrf.mxu0
  %v3695 = vadd.f32 0.0, %v3694
  %3696 = vmatmul.f32.gmra.mxu0 %v3585
  %v3697 = vpop.f32.mrf.mxu0
  %v3698 = vadd.f32 0.0, %v3697
  %3699 = vmatmul.f32.gmra.mxu0 %v3588
  %v3700 = vpop.f32.mrf.mxu0
  %v3701 = vadd.f32 0.0, %v3700
  %3702 = vmatmul.f32.gmra.mxu0 %v3591
  %v3703 = vpop.f32.mrf.mxu0
  %v3704 = vadd.f32 0.0, %v3703
  %3705 = vmatmul.f32.gmra.mxu0 %v3594
  %v3706 = vpop.f32.mrf.mxu0
  %v3707 = vadd.f32 0.0, %v3706
  %3708 = vmatmul.f32.gmra.mxu0 %v3597
  %v3709 = vpop.f32.mrf.mxu0
  %v3710 = vadd.f32 0.0, %v3709
  %3711 = vmatmul.f32.gmra.mxu0 %v3600
  %v3712 = vpop.f32.mrf.mxu0
  %v3713 = vadd.f32 0.0, %v3712
  %3714 = vmatmul.f32.gmra.mxu0 %v3603
  %v3715 = vpop.f32.mrf.mxu0
  %v3716 = vadd.f32 0.0, %v3715
  %3717 = vmatmul.f32.gmra.mxu0 %v3606
  %v3718 = vpop.f32.mrf.mxu0
  %v3719 = vadd.f32 0.0, %v3718
  %3720 = vmatmul.f32.gmra.mxu0 %v3609
  %v3721 = vpop.f32.mrf.mxu0
  %v3722 = vadd.f32 0.0, %v3721
  %3723 = vmatmul.f32.gmra.mxu0 %v3612
  %v3724 = vpop.f32.mrf.mxu0
  %v3725 = vadd.f32 0.0, %v3724
  %3726 = vmatmul.f32.gmra.mxu0 %v3615
  %v3727 = vpop.f32.mrf.mxu0
  %v3728 = vadd.f32 0.0, %v3727
  %3729 = vmatmul.f32.gmra.mxu0 %v3618
  %v3730 = vpop.f32.mrf.mxu0
  %v3731 = vadd.f32 0.0, %v3730
  %3732 = vmatmul.f32.gmra.mxu0 %v3621
  %v3733 = vpop.f32.mrf.mxu0
  %v3734 = vadd.f32 0.0, %v3733
  %3735 = vmatmul.f32.gmra.mxu0 %v3624
  %v3736 = vpop.f32.mrf.mxu0
  %v3737 = vadd.f32 0.0, %v3736
  %3738 = vmatmul.f32.gmra.mxu0 %v3627
  %v3739 = vpop.f32.mrf.mxu0
  %v3740 = vadd.f32 0.0, %v3739
  %3741 = vmatmul.f32.gmra.mxu0 %v3630
  %v3742 = vpop.f32.mrf.mxu0
  %v3743 = vadd.f32 0.0, %v3742
  %3744 = vmatmul.f32.gmra.mxu0 %v3633
  %v3745 = vpop.f32.mrf.mxu0
  %v3746 = vadd.f32 0.0, %v3745
  %3747 = vmatmul.f32.gmra.mxu0 %v3636
  %v3748 = vpop.f32.mrf.mxu0
  %v3749 = vadd.f32 0.0, %v3748
  %3750 = vmatmul.f32.gmra.mxu0 %v3639
  %v3751 = vpop.f32.mrf.mxu0
  %v3752 = vadd.f32 0.0, %v3751
  %3753 = vmatmul.f32.gmra.mxu0 %v3642
  %v3754 = vpop.f32.mrf.mxu0
  %v3755 = vadd.f32 0.0, %v3754
  %3756 = vmatmul.f32.gmra.mxu0 %v3645
  %v3757 = vpop.f32.mrf.mxu0
  %v3758 = vadd.f32 0.0, %v3757
  %3759 = vmatmul.f32.gmra.mxu0 %v3648
  %v3760 = vpop.f32.mrf.mxu0
  %v3761 = vadd.f32 0.0, %v3760
  %3762 = vmatmul.f32.gmra.mxu0 %v3651
  %v3763 = vpop.f32.mrf.mxu0
  %v3764 = vadd.f32 0.0, %v3763
  %3765 = vmatmul.f32.gmra.mxu0 %v3654
  %v3766 = vpop.f32.mrf.mxu0
  %v3767 = vadd.f32 0.0, %v3766
  %3768 = vmatmul.f32.gmra.mxu0 %v3657
  %v3769 = vpop.f32.mrf.mxu0
  %v3770 = vadd.f32 0.0, %v3769
  %3771 = vmatmul.f32.gmra.mxu0 %v3660
  %v3772 = vpop.f32.mrf.mxu0
  %v3773 = vadd.f32 0.0, %v3772
  %3774 = vmatmul.f32.gmra.mxu0 %v3663
  %v3775 = vpop.f32.mrf.mxu0
  %v3776 = vadd.f32 0.0, %v3775
  %3777 = vmatmul.f32.gmra.mxu0 %v3666
  %v3778 = vpop.f32.mrf.mxu0
  %v3779 = vadd.f32 0.0, %v3778
  %3780 = vmatmul.f32.gmra.mxu0 %v3669
  %v3781 = vpop.f32.mrf.mxu0
  %v3782 = vadd.f32 0.0, %v3781
  %3783 = vmatmul.f32.gmra.mxu0 %v3672
  %v3784 = vpop.f32.mrf.mxu0
  %v3785 = vadd.f32 0.0, %v3784
  %3786 = vmatmul.f32.gmra.mxu0 %v3675
  %v3787 = vpop.f32.mrf.mxu0
  %v3788 = vadd.f32 0.0, %v3787
  %3789 = vdwg.mxu0
  %v3790 = vld [vmem:[#allocation6] sm:$0xff]
  %v3791 = vld [vmem:[#allocation6 + $0x8] sm:$0xff]
  %v3792 = vld [vmem:[#allocation6 + $0x10] sm:$0xff]
  %v3793 = vld [vmem:[#allocation6 + $0x18] sm:$0xff]
  %v3794 = vld [vmem:[#allocation6 + $0x20] sm:$0xff]
  %v3795 = vld [vmem:[#allocation6 + $0x28] sm:$0xff]
  %v3796 = vld [vmem:[#allocation6 + $0x30] sm:$0xff]
  %v3797 = vld [vmem:[#allocation6 + $0x38] sm:$0xff]
  %v3798 = vld [vmem:[#allocation6 + $0x40] sm:$0xff]
  %v3799 = vld [vmem:[#allocation6 + $0x48] sm:$0xff]
  %v3800 = vld [vmem:[#allocation6 + $0x50] sm:$0xff]
  %v3801 = vld [vmem:[#allocation6 + $0x58] sm:$0xff]
  %v3802 = vld [vmem:[#allocation6 + $0x60] sm:$0xff]
  %v3803 = vld [vmem:[#allocation6 + $0x68] sm:$0xff]
  %v3804 = vld [vmem:[#allocation6 + $0x70] sm:$0xff]
  %v3805 = vld [vmem:[#allocation6 + $0x78] sm:$0xff]
  %v3806 = vld [vmem:[#allocation6 + $0x80] sm:$0xff]
  %v3807 = vld [vmem:[#allocation6 + $0x88] sm:$0xff]
  %v3808 = vld [vmem:[#allocation6 + $0x90] sm:$0xff]
  %v3809 = vld [vmem:[#allocation6 + $0x98] sm:$0xff]
  %v3810 = vld [vmem:[#allocation6 + $0xa0] sm:$0xff]
  %v3811 = vld [vmem:[#allocation6 + $0xa8] sm:$0xff]
  %v3812 = vld [vmem:[#allocation6 + $0xb0] sm:$0xff]
  %v3813 = vld [vmem:[#allocation6 + $0xb8] sm:$0xff]
  %v3814 = vld [vmem:[#allocation6 + $0xc0] sm:$0xff]
  %v3815 = vld [vmem:[#allocation6 + $0xc8] sm:$0xff]
  %v3816 = vld [vmem:[#allocation6 + $0xd0] sm:$0xff]
  %v3817 = vld [vmem:[#allocation6 + $0xd8] sm:$0xff]
  %v3818 = vld [vmem:[#allocation6 + $0xe0] sm:$0xff]
  %v3819 = vld [vmem:[#allocation6 + $0xe8] sm:$0xff]
  %v3820 = vld [vmem:[#allocation6 + $0xf0] sm:$0xff]
  %v3821 = vld [vmem:[#allocation6 + $0xf8] sm:$0x1f]
  %v3822 = vadd.f32 %v3790, %v3695
  %v3823 = vadd.f32 %v3791, %v3698
  %v3824 = vadd.f32 %v3792, %v3701
  %v3825 = vadd.f32 %v3793, %v3704
  %v3826 = vadd.f32 %v3794, %v3707
  %v3827 = vadd.f32 %v3795, %v3710
  %v3828 = vadd.f32 %v3796, %v3713
  %v3829 = vadd.f32 %v3797, %v3716
  %v3830 = vadd.f32 %v3798, %v3719
  %v3831 = vadd.f32 %v3799, %v3722
  %v3832 = vadd.f32 %v3800, %v3725
  %v3833 = vadd.f32 %v3801, %v3728
  %v3834 = vadd.f32 %v3802, %v3731
  %v3835 = vadd.f32 %v3803, %v3734
  %v3836 = vadd.f32 %v3804, %v3737
  %v3837 = vadd.f32 %v3805, %v3740
  %v3838 = vadd.f32 %v3806, %v3743
  %v3839 = vadd.f32 %v3807, %v3746
  %v3840 = vadd.f32 %v3808, %v3749
  %v3841 = vadd.f32 %v3809, %v3752
  %v3842 = vadd.f32 %v3810, %v3755
  %v3843 = vadd.f32 %v3811, %v3758
  %v3844 = vadd.f32 %v3812, %v3761
  %v3845 = vadd.f32 %v3813, %v3764
  %v3846 = vadd.f32 %v3814, %v3767
  %v3847 = vadd.f32 %v3815, %v3770
  %v3848 = vadd.f32 %v3816, %v3773
  %v3849 = vadd.f32 %v3817, %v3776
  %v3850 = vadd.f32 %v3818, %v3779
  %v3851 = vadd.f32 %v3819, %v3782
  %v3852 = vadd.f32 %v3820, %v3785
  %v3853 = vadd.f32 %v3821, %v3788
  %3854 = vst.msk [vmem:[#allocation6] sm:$0xff] %vm223, %v3822
  %3855 = vst.msk [vmem:[#allocation6 + $0x8] sm:$0xff] %vm223, %v3823
  %3856 = vst.msk [vmem:[#allocation6 + $0x10] sm:$0xff] %vm223, %v3824
  %3857 = vst.msk [vmem:[#allocation6 + $0x18] sm:$0xff] %vm223, %v3825
  %3858 = vst.msk [vmem:[#allocation6 + $0x20] sm:$0xff] %vm223, %v3826
  %3859 = vst.msk [vmem:[#allocation6 + $0x28] sm:$0xff] %vm223, %v3827
  %3860 = vst.msk [vmem:[#allocation6 + $0x30] sm:$0xff] %vm223, %v3828
  %3861 = vst.msk [vmem:[#allocation6 + $0x38] sm:$0xff] %vm223, %v3829
  %3862 = vst.msk [vmem:[#allocation6 + $0x40] sm:$0xff] %vm223, %v3830
  %3863 = vst.msk [vmem:[#allocation6 + $0x48] sm:$0xff] %vm223, %v3831
  %3864 = vst.msk [vmem:[#allocation6 + $0x50] sm:$0xff] %vm223, %v3832
  %3865 = vst.msk [vmem:[#allocation6 + $0x58] sm:$0xff] %vm223, %v3833
  %3866 = vst.msk [vmem:[#allocation6 + $0x60] sm:$0xff] %vm223, %v3834
  %3867 = vst.msk [vmem:[#allocation6 + $0x68] sm:$0xff] %vm223, %v3835
  %3868 = vst.msk [vmem:[#allocation6 + $0x70] sm:$0xff] %vm223, %v3836
  %3869 = vst.msk [vmem:[#allocation6 + $0x78] sm:$0xff] %vm223, %v3837
  %3870 = vst.msk [vmem:[#allocation6 + $0x80] sm:$0xff] %vm223, %v3838
  %3871 = vst.msk [vmem:[#allocation6 + $0x88] sm:$0xff] %vm223, %v3839
  %3872 = vst.msk [vmem:[#allocation6 + $0x90] sm:$0xff] %vm223, %v3840
  %3873 = vst.msk [vmem:[#allocation6 + $0x98] sm:$0xff] %vm223, %v3841
  %3874 = vst.msk [vmem:[#allocation6 + $0xa0] sm:$0xff] %vm223, %v3842
  %3875 = vst.msk [vmem:[#allocation6 + $0xa8] sm:$0xff] %vm223, %v3843
  %3876 = vst.msk [vmem:[#allocation6 + $0xb0] sm:$0xff] %vm223, %v3844
  %3877 = vst.msk [vmem:[#allocation6 + $0xb8] sm:$0xff] %vm223, %v3845
  %3878 = vst.msk [vmem:[#allocation6 + $0xc0] sm:$0xff] %vm223, %v3846
  %3879 = vst.msk [vmem:[#allocation6 + $0xc8] sm:$0xff] %vm223, %v3847
  %3880 = vst.msk [vmem:[#allocation6 + $0xd0] sm:$0xff] %vm223, %v3848
  %3881 = vst.msk [vmem:[#allocation6 + $0xd8] sm:$0xff] %vm223, %v3849
  %3882 = vst.msk [vmem:[#allocation6 + $0xe0] sm:$0xff] %vm223, %v3850
  %3883 = vst.msk [vmem:[#allocation6 + $0xe8] sm:$0xff] %vm223, %v3851
  %3884 = vst.msk [vmem:[#allocation6 + $0xf0] sm:$0xff] %vm223, %v3852
  %3885 = vst.msk [vmem:[#allocation6 + $0xf8] sm:$0x1f] %vm2500, %v3853
  %v3886 = vld [vmem:[#allocation4 + $0x13] sm:$0xff]
  %v3887 = vld [vmem:[#allocation4 + $0x1b] sm:$0xff]
  %v3888 = vld [vmem:[#allocation4 + $0x23] sm:$0xff]
  %v3889 = vld [vmem:[#allocation4 + $0x2b] sm:$0xff]
  %v3890 = vld [vmem:[#allocation4 + $0x33] sm:$0xff]
  %v3891 = vld [vmem:[#allocation4 + $0x3b] sm:$0xff]
  %v3892 = vld [vmem:[#allocation4 + $0x43] sm:$0xff]
  %v3893 = vld [vmem:[#allocation4 + $0x4b] sm:$0xff]
  %v3894 = vld [vmem:[#allocation4 + $0x53] sm:$0xff]
  %v3895 = vld [vmem:[#allocation4 + $0x5b] sm:$0xff]
  %v3896 = vld [vmem:[#allocation4 + $0x63] sm:$0xff]
  %v3897 = vld [vmem:[#allocation4 + $0x6b] sm:$0xff]
  %v3898 = vld [vmem:[#allocation4 + $0x73] sm:$0xff]
  %v3899 = vld [vmem:[#allocation4 + $0x7b] sm:$0xff]
  %v3900 = vld [vmem:[#allocation4 + $0x83] sm:$0xff]
  %v3901 = vld [vmem:[#allocation4 + $0x8b] sm:$0xff]
  %v3902 = vld [vmem:[#allocation4 + $0x93] sm:$0xff]
  %v3903 = vld [vmem:[#allocation4 + $0x9b] sm:$0xff]
  %v3904 = vld [vmem:[#allocation4 + $0xa3] sm:$0xff]
  %v3905 = vld [vmem:[#allocation4 + $0xab] sm:$0xff]
  %v3906 = vld [vmem:[#allocation4 + $0xb3] sm:$0xff]
  %v3907 = vld [vmem:[#allocation4 + $0xbb] sm:$0xff]
  %v3908 = vld [vmem:[#allocation4 + $0xc3] sm:$0xff]
  %v3909 = vld [vmem:[#allocation4 + $0xcb] sm:$0xff]
  %v3910 = vld [vmem:[#allocation4 + $0xd3] sm:$0xff]
  %v3911 = vld [vmem:[#allocation4 + $0xdb] sm:$0xff]
  %v3912 = vld [vmem:[#allocation4 + $0xe3] sm:$0xff]
  %v3913 = vld [vmem:[#allocation4 + $0xeb] sm:$0xff]
  %v3914 = vld [vmem:[#allocation4 + $0xf3] sm:$0xff]
  %v3915 = vld [vmem:[#allocation4 + $0xfb] sm:$0xff]
  %v3916 = vld [vmem:[#allocation4 + $0x103] sm:$0xff]
  %v3917 = vld [vmem:[#allocation4 + $0x10b] sm:$0x1f]
  %s3918 = scalar_lea.vmem %s8, 320
  %v3919 = vld [vmem:[%s3918] sm:$0xff]
  %v3920 = vld [vmem:[%s3918 + $0x8] sm:$0xff]
  %v3921 = vld [vmem:[%s3918 + $0x10] sm:$0xff]
  %v3922 = vld [vmem:[%s3918 + $0x18] sm:$0xff]
  %v3923 = vld [vmem:[%s3918 + $0x20] sm:$0xff]
  %v3924 = vld [vmem:[%s3918 + $0x28] sm:$0xff]
  %v3925 = vld [vmem:[%s3918 + $0x30] sm:$0xff]
  %v3926 = vld [vmem:[%s3918 + $0x38] sm:$0xff]
  %v3928 = vsel %vm2181, %v3886, 0
  %v3931 = vsel %vm2181, %v3887, 0
  %v3934 = vsel %vm2181, %v3888, 0
  %v3937 = vsel %vm2181, %v3889, 0
  %v3940 = vsel %vm2181, %v3890, 0
  %v3943 = vsel %vm2181, %v3891, 0
  %v3946 = vsel %vm2181, %v3892, 0
  %v3949 = vsel %vm2181, %v3893, 0
  %v3952 = vsel %vm2181, %v3894, 0
  %v3955 = vsel %vm2181, %v3895, 0
  %v3958 = vsel %vm2181, %v3896, 0
  %v3961 = vsel %vm2181, %v3897, 0
  %v3964 = vsel %vm2181, %v3898, 0
  %v3967 = vsel %vm2181, %v3899, 0
  %v3970 = vsel %vm2181, %v3900, 0
  %v3973 = vsel %vm2181, %v3901, 0
  %v3976 = vsel %vm2181, %v3902, 0
  %v3979 = vsel %vm2181, %v3903, 0
  %v3982 = vsel %vm2181, %v3904, 0
  %v3985 = vsel %vm2181, %v3905, 0
  %v3988 = vsel %vm2181, %v3906, 0
  %v3991 = vsel %vm2181, %v3907, 0
  %v3994 = vsel %vm2181, %v3908, 0
  %v3997 = vsel %vm2181, %v3909, 0
  %v4000 = vsel %vm2181, %v3910, 0
  %v4003 = vsel %vm2181, %v3911, 0
  %v4006 = vsel %vm2181, %v3912, 0
  %v4009 = vsel %vm2181, %v3913, 0
  %v4012 = vsel %vm2181, %v3914, 0
  %v4015 = vsel %vm2181, %v3915, 0
  %v4018 = vsel %vm2181, %v3916, 0
  %v4021 = vsel %vm2181, %v3917, 0
  %4023 = vmatpush.msra.mxu0 0.0
  %4024 = vmatpush.msra.mxu0 0.0
  %4025 = vmatpush.msra.mxu0 0.0
  %4026 = vmatpush.msra.mxu0 0.0
  %4027 = vmatpush.msra.mxu0 0.0
  %4028 = vmatpush.msra.mxu0 0.0
  %4029 = vmatpush.msra.mxu0 0.0
  %4030 = vmatpush.msra.mxu0 0.0
  %4031 = vmatpush.msra.mxu0 %v3926
  %4032 = vmatpush.msra.mxu0 %v3925
  %4033 = vmatpush.msra.mxu0 %v3924
  %4034 = vmatpush.msra.mxu0 %v3923
  %4035 = vmatpush.msra.mxu0 %v3922
  %4036 = vmatpush.msra.mxu0 %v3921
  %4037 = vmatpush.msra.mxu0 %v3920
  %4038 = vmatpush.msra.mxu0 %v3919
  %4039 = vmatmul.f32.gmra.mxu0 %v3928
  %v4040 = vpop.f32.mrf.mxu0
  %v4041 = vadd.f32 0.0, %v4040
  %4042 = vmatmul.f32.gmra.mxu0 %v3931
  %v4043 = vpop.f32.mrf.mxu0
  %v4044 = vadd.f32 0.0, %v4043
  %4045 = vmatmul.f32.gmra.mxu0 %v3934
  %v4046 = vpop.f32.mrf.mxu0
  %v4047 = vadd.f32 0.0, %v4046
  %4048 = vmatmul.f32.gmra.mxu0 %v3937
  %v4049 = vpop.f32.mrf.mxu0
  %v4050 = vadd.f32 0.0, %v4049
  %4051 = vmatmul.f32.gmra.mxu0 %v3940
  %v4052 = vpop.f32.mrf.mxu0
  %v4053 = vadd.f32 0.0, %v4052
  %4054 = vmatmul.f32.gmra.mxu0 %v3943
  %v4055 = vpop.f32.mrf.mxu0
  %v4056 = vadd.f32 0.0, %v4055
  %4057 = vmatmul.f32.gmra.mxu0 %v3946
  %v4058 = vpop.f32.mrf.mxu0
  %v4059 = vadd.f32 0.0, %v4058
  %4060 = vmatmul.f32.gmra.mxu0 %v3949
  %v4061 = vpop.f32.mrf.mxu0
  %v4062 = vadd.f32 0.0, %v4061
  %4063 = vmatmul.f32.gmra.mxu0 %v3952
  %v4064 = vpop.f32.mrf.mxu0
  %v4065 = vadd.f32 0.0, %v4064
  %4066 = vmatmul.f32.gmra.mxu0 %v3955
  %v4067 = vpop.f32.mrf.mxu0
  %v4068 = vadd.f32 0.0, %v4067
  %4069 = vmatmul.f32.gmra.mxu0 %v3958
  %v4070 = vpop.f32.mrf.mxu0
  %v4071 = vadd.f32 0.0, %v4070
  %4072 = vmatmul.f32.gmra.mxu0 %v3961
  %v4073 = vpop.f32.mrf.mxu0
  %v4074 = vadd.f32 0.0, %v4073
  %4075 = vmatmul.f32.gmra.mxu0 %v3964
  %v4076 = vpop.f32.mrf.mxu0
  %v4077 = vadd.f32 0.0, %v4076
  %4078 = vmatmul.f32.gmra.mxu0 %v3967
  %v4079 = vpop.f32.mrf.mxu0
  %v4080 = vadd.f32 0.0, %v4079
  %4081 = vmatmul.f32.gmra.mxu0 %v3970
  %v4082 = vpop.f32.mrf.mxu0
  %v4083 = vadd.f32 0.0, %v4082
  %4084 = vmatmul.f32.gmra.mxu0 %v3973
  %v4085 = vpop.f32.mrf.mxu0
  %v4086 = vadd.f32 0.0, %v4085
  %4087 = vmatmul.f32.gmra.mxu0 %v3976
  %v4088 = vpop.f32.mrf.mxu0
  %v4089 = vadd.f32 0.0, %v4088
  %4090 = vmatmul.f32.gmra.mxu0 %v3979
  %v4091 = vpop.f32.mrf.mxu0
  %v4092 = vadd.f32 0.0, %v4091
  %4093 = vmatmul.f32.gmra.mxu0 %v3982
  %v4094 = vpop.f32.mrf.mxu0
  %v4095 = vadd.f32 0.0, %v4094
  %4096 = vmatmul.f32.gmra.mxu0 %v3985
  %v4097 = vpop.f32.mrf.mxu0
  %v4098 = vadd.f32 0.0, %v4097
  %4099 = vmatmul.f32.gmra.mxu0 %v3988
  %v4100 = vpop.f32.mrf.mxu0
  %v4101 = vadd.f32 0.0, %v4100
  %4102 = vmatmul.f32.gmra.mxu0 %v3991
  %v4103 = vpop.f32.mrf.mxu0
  %v4104 = vadd.f32 0.0, %v4103
  %4105 = vmatmul.f32.gmra.mxu0 %v3994
  %v4106 = vpop.f32.mrf.mxu0
  %v4107 = vadd.f32 0.0, %v4106
  %4108 = vmatmul.f32.gmra.mxu0 %v3997
  %v4109 = vpop.f32.mrf.mxu0
  %v4110 = vadd.f32 0.0, %v4109
  %4111 = vmatmul.f32.gmra.mxu0 %v4000
  %v4112 = vpop.f32.mrf.mxu0
  %v4113 = vadd.f32 0.0, %v4112
  %4114 = vmatmul.f32.gmra.mxu0 %v4003
  %v4115 = vpop.f32.mrf.mxu0
  %v4116 = vadd.f32 0.0, %v4115
  %4117 = vmatmul.f32.gmra.mxu0 %v4006
  %v4118 = vpop.f32.mrf.mxu0
  %v4119 = vadd.f32 0.0, %v4118
  %4120 = vmatmul.f32.gmra.mxu0 %v4009
  %v4121 = vpop.f32.mrf.mxu0
  %v4122 = vadd.f32 0.0, %v4121
  %4123 = vmatmul.f32.gmra.mxu0 %v4012
  %v4124 = vpop.f32.mrf.mxu0
  %v4125 = vadd.f32 0.0, %v4124
  %4126 = vmatmul.f32.gmra.mxu0 %v4015
  %v4127 = vpop.f32.mrf.mxu0
  %v4128 = vadd.f32 0.0, %v4127
  %4129 = vmatmul.f32.gmra.mxu0 %v4018
  %v4130 = vpop.f32.mrf.mxu0
  %v4131 = vadd.f32 0.0, %v4130
  %4132 = vmatmul.f32.gmra.mxu0 %v4021
  %v4133 = vpop.f32.mrf.mxu0
  %v4134 = vadd.f32 0.0, %v4133
  %4135 = vdwg.mxu0
  %v4136 = vld [vmem:[#allocation6] sm:$0xff]
  %v4137 = vld [vmem:[#allocation6 + $0x8] sm:$0xff]
  %v4138 = vld [vmem:[#allocation6 + $0x10] sm:$0xff]
  %v4139 = vld [vmem:[#allocation6 + $0x18] sm:$0xff]
  %v4140 = vld [vmem:[#allocation6 + $0x20] sm:$0xff]
  %v4141 = vld [vmem:[#allocation6 + $0x28] sm:$0xff]
  %v4142 = vld [vmem:[#allocation6 + $0x30] sm:$0xff]
  %v4143 = vld [vmem:[#allocation6 + $0x38] sm:$0xff]
  %v4144 = vld [vmem:[#allocation6 + $0x40] sm:$0xff]
  %v4145 = vld [vmem:[#allocation6 + $0x48] sm:$0xff]
  %v4146 = vld [vmem:[#allocation6 + $0x50] sm:$0xff]
  %v4147 = vld [vmem:[#allocation6 + $0x58] sm:$0xff]
  %v4148 = vld [vmem:[#allocation6 + $0x60] sm:$0xff]
  %v4149 = vld [vmem:[#allocation6 + $0x68] sm:$0xff]
  %v4150 = vld [vmem:[#allocation6 + $0x70] sm:$0xff]
  %v4151 = vld [vmem:[#allocation6 + $0x78] sm:$0xff]
  %v4152 = vld [vmem:[#allocation6 + $0x80] sm:$0xff]
  %v4153 = vld [vmem:[#allocation6 + $0x88] sm:$0xff]
  %v4154 = vld [vmem:[#allocation6 + $0x90] sm:$0xff]
  %v4155 = vld [vmem:[#allocation6 + $0x98] sm:$0xff]
  %v4156 = vld [vmem:[#allocation6 + $0xa0] sm:$0xff]
  %v4157 = vld [vmem:[#allocation6 + $0xa8] sm:$0xff]
  %v4158 = vld [vmem:[#allocation6 + $0xb0] sm:$0xff]
  %v4159 = vld [vmem:[#allocation6 + $0xb8] sm:$0xff]
  %v4160 = vld [vmem:[#allocation6 + $0xc0] sm:$0xff]
  %v4161 = vld [vmem:[#allocation6 + $0xc8] sm:$0xff]
  %v4162 = vld [vmem:[#allocation6 + $0xd0] sm:$0xff]
  %v4163 = vld [vmem:[#allocation6 + $0xd8] sm:$0xff]
  %v4164 = vld [vmem:[#allocation6 + $0xe0] sm:$0xff]
  %v4165 = vld [vmem:[#allocation6 + $0xe8] sm:$0xff]
  %v4166 = vld [vmem:[#allocation6 + $0xf0] sm:$0xff]
  %v4167 = vld [vmem:[#allocation6 + $0xf8] sm:$0x1f]
  %v4168 = vadd.f32 %v4136, %v4041
  %v4169 = vadd.f32 %v4137, %v4044
  %v4170 = vadd.f32 %v4138, %v4047
  %v4171 = vadd.f32 %v4139, %v4050
  %v4172 = vadd.f32 %v4140, %v4053
  %v4173 = vadd.f32 %v4141, %v4056
  %v4174 = vadd.f32 %v4142, %v4059
  %v4175 = vadd.f32 %v4143, %v4062
  %v4176 = vadd.f32 %v4144, %v4065
  %v4177 = vadd.f32 %v4145, %v4068
  %v4178 = vadd.f32 %v4146, %v4071
  %v4179 = vadd.f32 %v4147, %v4074
  %v4180 = vadd.f32 %v4148, %v4077
  %v4181 = vadd.f32 %v4149, %v4080
  %v4182 = vadd.f32 %v4150, %v4083
  %v4183 = vadd.f32 %v4151, %v4086
  %v4184 = vadd.f32 %v4152, %v4089
  %v4185 = vadd.f32 %v4153, %v4092
  %v4186 = vadd.f32 %v4154, %v4095
  %v4187 = vadd.f32 %v4155, %v4098
  %v4188 = vadd.f32 %v4156, %v4101
  %v4189 = vadd.f32 %v4157, %v4104
  %v4190 = vadd.f32 %v4158, %v4107
  %v4191 = vadd.f32 %v4159, %v4110
  %v4192 = vadd.f32 %v4160, %v4113
  %v4193 = vadd.f32 %v4161, %v4116
  %v4194 = vadd.f32 %v4162, %v4119
  %v4195 = vadd.f32 %v4163, %v4122
  %v4196 = vadd.f32 %v4164, %v4125
  %v4197 = vadd.f32 %v4165, %v4128
  %v4198 = vadd.f32 %v4166, %v4131
  %v4199 = vadd.f32 %v4167, %v4134
  %4200 = vst.msk [vmem:[#allocation6] sm:$0xff] %vm223, %v4168
  %4201 = vst.msk [vmem:[#allocation6 + $0x8] sm:$0xff] %vm223, %v4169
  %4202 = vst.msk [vmem:[#allocation6 + $0x10] sm:$0xff] %vm223, %v4170
  %4203 = vst.msk [vmem:[#allocation6 + $0x18] sm:$0xff] %vm223, %v4171
  %4204 = vst.msk [vmem:[#allocation6 + $0x20] sm:$0xff] %vm223, %v4172
  %4205 = vst.msk [vmem:[#allocation6 + $0x28] sm:$0xff] %vm223, %v4173
  %4206 = vst.msk [vmem:[#allocation6 + $0x30] sm:$0xff] %vm223, %v4174
  %4207 = vst.msk [vmem:[#allocation6 + $0x38] sm:$0xff] %vm223, %v4175
  %4208 = vst.msk [vmem:[#allocation6 + $0x40] sm:$0xff] %vm223, %v4176
  %4209 = vst.msk [vmem:[#allocation6 + $0x48] sm:$0xff] %vm223, %v4177
  %4210 = vst.msk [vmem:[#allocation6 + $0x50] sm:$0xff] %vm223, %v4178
  %4211 = vst.msk [vmem:[#allocation6 + $0x58] sm:$0xff] %vm223, %v4179
  %4212 = vst.msk [vmem:[#allocation6 + $0x60] sm:$0xff] %vm223, %v4180
  %4213 = vst.msk [vmem:[#allocation6 + $0x68] sm:$0xff] %vm223, %v4181
  %4214 = vst.msk [vmem:[#allocation6 + $0x70] sm:$0xff] %vm223, %v4182
  %4215 = vst.msk [vmem:[#allocation6 + $0x78] sm:$0xff] %vm223, %v4183
  %4216 = vst.msk [vmem:[#allocation6 + $0x80] sm:$0xff] %vm223, %v4184
  %4217 = vst.msk [vmem:[#allocation6 + $0x88] sm:$0xff] %vm223, %v4185
  %4218 = vst.msk [vmem:[#allocation6 + $0x90] sm:$0xff] %vm223, %v4186
  %4219 = vst.msk [vmem:[#allocation6 + $0x98] sm:$0xff] %vm223, %v4187
  %4220 = vst.msk [vmem:[#allocation6 + $0xa0] sm:$0xff] %vm223, %v4188
  %4221 = vst.msk [vmem:[#allocation6 + $0xa8] sm:$0xff] %vm223, %v4189
  %4222 = vst.msk [vmem:[#allocation6 + $0xb0] sm:$0xff] %vm223, %v4190
  %4223 = vst.msk [vmem:[#allocation6 + $0xb8] sm:$0xff] %vm223, %v4191
  %4224 = vst.msk [vmem:[#allocation6 + $0xc0] sm:$0xff] %vm223, %v4192
  %4225 = vst.msk [vmem:[#allocation6 + $0xc8] sm:$0xff] %vm223, %v4193
  %4226 = vst.msk [vmem:[#allocation6 + $0xd0] sm:$0xff] %vm223, %v4194
  %4227 = vst.msk [vmem:[#allocation6 + $0xd8] sm:$0xff] %vm223, %v4195
  %4228 = vst.msk [vmem:[#allocation6 + $0xe0] sm:$0xff] %vm223, %v4196
  %4229 = vst.msk [vmem:[#allocation6 + $0xe8] sm:$0xff] %vm223, %v4197
  %4230 = vst.msk [vmem:[#allocation6 + $0xf0] sm:$0xff] %vm223, %v4198
  %4231 = vst.msk [vmem:[#allocation6 + $0xf8] sm:$0x1f] %vm2500, %v4199
  %v4232 = vld [vmem:[#allocation4 + $0x22] sm:$0xff]
  %v4233 = vld [vmem:[#allocation4 + $0x2a] sm:$0xff]
  %v4234 = vld [vmem:[#allocation4 + $0x32] sm:$0xff]
  %v4235 = vld [vmem:[#allocation4 + $0x3a] sm:$0xff]
  %v4236 = vld [vmem:[#allocation4 + $0x42] sm:$0xff]
  %v4237 = vld [vmem:[#allocation4 + $0x4a] sm:$0xff]
  %v4238 = vld [vmem:[#allocation4 + $0x52] sm:$0xff]
  %v4239 = vld [vmem:[#allocation4 + $0x5a] sm:$0xff]
  %v4240 = vld [vmem:[#allocation4 + $0x62] sm:$0xff]
  %v4241 = vld [vmem:[#allocation4 + $0x6a] sm:$0xff]
  %v4242 = vld [vmem:[#allocation4 + $0x72] sm:$0xff]
  %v4243 = vld [vmem:[#allocation4 + $0x7a] sm:$0xff]
  %v4244 = vld [vmem:[#allocation4 + $0x82] sm:$0xff]
  %v4245 = vld [vmem:[#allocation4 + $0x8a] sm:$0xff]
  %v4246 = vld [vmem:[#allocation4 + $0x92] sm:$0xff]
  %v4247 = vld [vmem:[#allocation4 + $0x9a] sm:$0xff]
  %v4248 = vld [vmem:[#allocation4 + $0xa2] sm:$0xff]
  %v4249 = vld [vmem:[#allocation4 + $0xaa] sm:$0xff]
  %v4250 = vld [vmem:[#allocation4 + $0xb2] sm:$0xff]
  %v4251 = vld [vmem:[#allocation4 + $0xba] sm:$0xff]
  %v4252 = vld [vmem:[#allocation4 + $0xc2] sm:$0xff]
  %v4253 = vld [vmem:[#allocation4 + $0xca] sm:$0xff]
  %v4254 = vld [vmem:[#allocation4 + $0xd2] sm:$0xff]
  %v4255 = vld [vmem:[#allocation4 + $0xda] sm:$0xff]
  %v4256 = vld [vmem:[#allocation4 + $0xe2] sm:$0xff]
  %v4257 = vld [vmem:[#allocation4 + $0xea] sm:$0xff]
  %v4258 = vld [vmem:[#allocation4 + $0xf2] sm:$0xff]
  %v4259 = vld [vmem:[#allocation4 + $0xfa] sm:$0xff]
  %v4260 = vld [vmem:[#allocation4 + $0x102] sm:$0xff]
  %v4261 = vld [vmem:[#allocation4 + $0x10a] sm:$0xff]
  %v4262 = vld [vmem:[#allocation4 + $0x112] sm:$0xff]
  %v4263 = vld [vmem:[#allocation4 + $0x11a] sm:$0x1f]
  %s4264 = scalar_lea.vmem %s8, 384
  %v4265 = vld [vmem:[%s4264] sm:$0xff]
  %v4266 = vld [vmem:[%s4264 + $0x8] sm:$0xff]
  %v4267 = vld [vmem:[%s4264 + $0x10] sm:$0xff]
  %v4268 = vld [vmem:[%s4264 + $0x18] sm:$0xff]
  %v4269 = vld [vmem:[%s4264 + $0x20] sm:$0xff]
  %v4270 = vld [vmem:[%s4264 + $0x28] sm:$0xff]
  %v4271 = vld [vmem:[%s4264 + $0x30] sm:$0xff]
  %v4272 = vld [vmem:[%s4264 + $0x38] sm:$0xff]
  %v4274 = vsel %vm2181, %v4232, 0
  %v4277 = vsel %vm2181, %v4233, 0
  %v4280 = vsel %vm2181, %v4234, 0
  %v4283 = vsel %vm2181, %v4235, 0
  %v4286 = vsel %vm2181, %v4236, 0
  %v4289 = vsel %vm2181, %v4237, 0
  %v4292 = vsel %vm2181, %v4238, 0
  %v4295 = vsel %vm2181, %v4239, 0
  %v4298 = vsel %vm2181, %v4240, 0
  %v4301 = vsel %vm2181, %v4241, 0
  %v4304 = vsel %vm2181, %v4242, 0
  %v4307 = vsel %vm2181, %v4243, 0
  %v4310 = vsel %vm2181, %v4244, 0
  %v4313 = vsel %vm2181, %v4245, 0
  %v4316 = vsel %vm2181, %v4246, 0
  %v4319 = vsel %vm2181, %v4247, 0
  %v4322 = vsel %vm2181, %v4248, 0
  %v4325 = vsel %vm2181, %v4249, 0
  %v4328 = vsel %vm2181, %v4250, 0
  %v4331 = vsel %vm2181, %v4251, 0
  %v4334 = vsel %vm2181, %v4252, 0
  %v4337 = vsel %vm2181, %v4253, 0
  %v4340 = vsel %vm2181, %v4254, 0
  %v4343 = vsel %vm2181, %v4255, 0
  %v4346 = vsel %vm2181, %v4256, 0
  %v4349 = vsel %vm2181, %v4257, 0
  %v4352 = vsel %vm2181, %v4258, 0
  %v4355 = vsel %vm2181, %v4259, 0
  %v4358 = vsel %vm2181, %v4260, 0
  %v4361 = vsel %vm2181, %v4261, 0
  %v4364 = vsel %vm2181, %v4262, 0
  %v4367 = vsel %vm2181, %v4263, 0
  %4369 = vmatpush.msra.mxu0 0.0
  %4370 = vmatpush.msra.mxu0 0.0
  %4371 = vmatpush.msra.mxu0 0.0
  %4372 = vmatpush.msra.mxu0 0.0
  %4373 = vmatpush.msra.mxu0 0.0
  %4374 = vmatpush.msra.mxu0 0.0
  %4375 = vmatpush.msra.mxu0 0.0
  %4376 = vmatpush.msra.mxu0 0.0
  %4377 = vmatpush.msra.mxu0 %v4272
  %4378 = vmatpush.msra.mxu0 %v4271
  %4379 = vmatpush.msra.mxu0 %v4270
  %4380 = vmatpush.msra.mxu0 %v4269
  %4381 = vmatpush.msra.mxu0 %v4268
  %4382 = vmatpush.msra.mxu0 %v4267
  %4383 = vmatpush.msra.mxu0 %v4266
  %4384 = vmatpush.msra.mxu0 %v4265
  %4385 = vmatmul.f32.gmra.mxu0 %v4274
  %v4386 = vpop.f32.mrf.mxu0
  %v4387 = vadd.f32 0.0, %v4386
  %4388 = vmatmul.f32.gmra.mxu0 %v4277
  %v4389 = vpop.f32.mrf.mxu0
  %v4390 = vadd.f32 0.0, %v4389
  %4391 = vmatmul.f32.gmra.mxu0 %v4280
  %v4392 = vpop.f32.mrf.mxu0
  %v4393 = vadd.f32 0.0, %v4392
  %4394 = vmatmul.f32.gmra.mxu0 %v4283
  %v4395 = vpop.f32.mrf.mxu0
  %v4396 = vadd.f32 0.0, %v4395
  %4397 = vmatmul.f32.gmra.mxu0 %v4286
  %v4398 = vpop.f32.mrf.mxu0
  %v4399 = vadd.f32 0.0, %v4398
  %4400 = vmatmul.f32.gmra.mxu0 %v4289
  %v4401 = vpop.f32.mrf.mxu0
  %v4402 = vadd.f32 0.0, %v4401
  %4403 = vmatmul.f32.gmra.mxu0 %v4292
  %v4404 = vpop.f32.mrf.mxu0
  %v4405 = vadd.f32 0.0, %v4404
  %4406 = vmatmul.f32.gmra.mxu0 %v4295
  %v4407 = vpop.f32.mrf.mxu0
  %v4408 = vadd.f32 0.0, %v4407
  %4409 = vmatmul.f32.gmra.mxu0 %v4298
  %v4410 = vpop.f32.mrf.mxu0
  %v4411 = vadd.f32 0.0, %v4410
  %4412 = vmatmul.f32.gmra.mxu0 %v4301
  %v4413 = vpop.f32.mrf.mxu0
  %v4414 = vadd.f32 0.0, %v4413
  %4415 = vmatmul.f32.gmra.mxu0 %v4304
  %v4416 = vpop.f32.mrf.mxu0
  %v4417 = vadd.f32 0.0, %v4416
  %4418 = vmatmul.f32.gmra.mxu0 %v4307
  %v4419 = vpop.f32.mrf.mxu0
  %v4420 = vadd.f32 0.0, %v4419
  %4421 = vmatmul.f32.gmra.mxu0 %v4310
  %v4422 = vpop.f32.mrf.mxu0
  %v4423 = vadd.f32 0.0, %v4422
  %4424 = vmatmul.f32.gmra.mxu0 %v4313
  %v4425 = vpop.f32.mrf.mxu0
  %v4426 = vadd.f32 0.0, %v4425
  %4427 = vmatmul.f32.gmra.mxu0 %v4316
  %v4428 = vpop.f32.mrf.mxu0
  %v4429 = vadd.f32 0.0, %v4428
  %4430 = vmatmul.f32.gmra.mxu0 %v4319
  %v4431 = vpop.f32.mrf.mxu0
  %v4432 = vadd.f32 0.0, %v4431
  %4433 = vmatmul.f32.gmra.mxu0 %v4322
  %v4434 = vpop.f32.mrf.mxu0
  %v4435 = vadd.f32 0.0, %v4434
  %4436 = vmatmul.f32.gmra.mxu0 %v4325
  %v4437 = vpop.f32.mrf.mxu0
  %v4438 = vadd.f32 0.0, %v4437
  %4439 = vmatmul.f32.gmra.mxu0 %v4328
  %v4440 = vpop.f32.mrf.mxu0
  %v4441 = vadd.f32 0.0, %v4440
  %4442 = vmatmul.f32.gmra.mxu0 %v4331
  %v4443 = vpop.f32.mrf.mxu0
  %v4444 = vadd.f32 0.0, %v4443
  %4445 = vmatmul.f32.gmra.mxu0 %v4334
  %v4446 = vpop.f32.mrf.mxu0
  %v4447 = vadd.f32 0.0, %v4446
  %4448 = vmatmul.f32.gmra.mxu0 %v4337
  %v4449 = vpop.f32.mrf.mxu0
  %v4450 = vadd.f32 0.0, %v4449
  %4451 = vmatmul.f32.gmra.mxu0 %v4340
  %v4452 = vpop.f32.mrf.mxu0
  %v4453 = vadd.f32 0.0, %v4452
  %4454 = vmatmul.f32.gmra.mxu0 %v4343
  %v4455 = vpop.f32.mrf.mxu0
  %v4456 = vadd.f32 0.0, %v4455
  %4457 = vmatmul.f32.gmra.mxu0 %v4346
  %v4458 = vpop.f32.mrf.mxu0
  %v4459 = vadd.f32 0.0, %v4458
  %4460 = vmatmul.f32.gmra.mxu0 %v4349
  %v4461 = vpop.f32.mrf.mxu0
  %v4462 = vadd.f32 0.0, %v4461
  %4463 = vmatmul.f32.gmra.mxu0 %v4352
  %v4464 = vpop.f32.mrf.mxu0
  %v4465 = vadd.f32 0.0, %v4464
  %4466 = vmatmul.f32.gmra.mxu0 %v4355
  %v4467 = vpop.f32.mrf.mxu0
  %v4468 = vadd.f32 0.0, %v4467
  %4469 = vmatmul.f32.gmra.mxu0 %v4358
  %v4470 = vpop.f32.mrf.mxu0
  %v4471 = vadd.f32 0.0, %v4470
  %4472 = vmatmul.f32.gmra.mxu0 %v4361
  %v4473 = vpop.f32.mrf.mxu0
  %v4474 = vadd.f32 0.0, %v4473
  %4475 = vmatmul.f32.gmra.mxu0 %v4364
  %v4476 = vpop.f32.mrf.mxu0
  %v4477 = vadd.f32 0.0, %v4476
  %4478 = vmatmul.f32.gmra.mxu0 %v4367
  %v4479 = vpop.f32.mrf.mxu0
  %v4480 = vadd.f32 0.0, %v4479
  %4481 = vdwg.mxu0
  %v4482 = vld [vmem:[#allocation6] sm:$0xff]
  %v4483 = vld [vmem:[#allocation6 + $0x8] sm:$0xff]
  %v4484 = vld [vmem:[#allocation6 + $0x10] sm:$0xff]
  %v4485 = vld [vmem:[#allocation6 + $0x18] sm:$0xff]
  %v4486 = vld [vmem:[#allocation6 + $0x20] sm:$0xff]
  %v4487 = vld [vmem:[#allocation6 + $0x28] sm:$0xff]
  %v4488 = vld [vmem:[#allocation6 + $0x30] sm:$0xff]
  %v4489 = vld [vmem:[#allocation6 + $0x38] sm:$0xff]
  %v4490 = vld [vmem:[#allocation6 + $0x40] sm:$0xff]
  %v4491 = vld [vmem:[#allocation6 + $0x48] sm:$0xff]
  %v4492 = vld [vmem:[#allocation6 + $0x50] sm:$0xff]
  %v4493 = vld [vmem:[#allocation6 + $0x58] sm:$0xff]
  %v4494 = vld [vmem:[#allocation6 + $0x60] sm:$0xff]
  %v4495 = vld [vmem:[#allocation6 + $0x68] sm:$0xff]
  %v4496 = vld [vmem:[#allocation6 + $0x70] sm:$0xff]
  %v4497 = vld [vmem:[#allocation6 + $0x78] sm:$0xff]
  %v4498 = vld [vmem:[#allocation6 + $0x80] sm:$0xff]
  %v4499 = vld [vmem:[#allocation6 + $0x88] sm:$0xff]
  %v4500 = vld [vmem:[#allocation6 + $0x90] sm:$0xff]
  %v4501 = vld [vmem:[#allocation6 + $0x98] sm:$0xff]
  %v4502 = vld [vmem:[#allocation6 + $0xa0] sm:$0xff]
  %v4503 = vld [vmem:[#allocation6 + $0xa8] sm:$0xff]
  %v4504 = vld [vmem:[#allocation6 + $0xb0] sm:$0xff]
  %v4505 = vld [vmem:[#allocation6 + $0xb8] sm:$0xff]
  %v4506 = vld [vmem:[#allocation6 + $0xc0] sm:$0xff]
  %v4507 = vld [vmem:[#allocation6 + $0xc8] sm:$0xff]
  %v4508 = vld [vmem:[#allocation6 + $0xd0] sm:$0xff]
  %v4509 = vld [vmem:[#allocation6 + $0xd8] sm:$0xff]
  %v4510 = vld [vmem:[#allocation6 + $0xe0] sm:$0xff]
  %v4511 = vld [vmem:[#allocation6 + $0xe8] sm:$0xff]
  %v4512 = vld [vmem:[#allocation6 + $0xf0] sm:$0xff]
  %v4513 = vld [vmem:[#allocation6 + $0xf8] sm:$0x1f]
  %v4514 = vadd.f32 %v4482, %v4387
  %v4515 = vadd.f32 %v4483, %v4390
  %v4516 = vadd.f32 %v4484, %v4393
  %v4517 = vadd.f32 %v4485, %v4396
  %v4518 = vadd.f32 %v4486, %v4399
  %v4519 = vadd.f32 %v4487, %v4402
  %v4520 = vadd.f32 %v4488, %v4405
  %v4521 = vadd.f32 %v4489, %v4408
  %v4522 = vadd.f32 %v4490, %v4411
  %v4523 = vadd.f32 %v4491, %v4414
  %v4524 = vadd.f32 %v4492, %v4417
  %v4525 = vadd.f32 %v4493, %v4420
  %v4526 = vadd.f32 %v4494, %v4423
  %v4527 = vadd.f32 %v4495, %v4426
  %v4528 = vadd.f32 %v4496, %v4429
  %v4529 = vadd.f32 %v4497, %v4432
  %v4530 = vadd.f32 %v4498, %v4435
  %v4531 = vadd.f32 %v4499, %v4438
  %v4532 = vadd.f32 %v4500, %v4441
  %v4533 = vadd.f32 %v4501, %v4444
  %v4534 = vadd.f32 %v4502, %v4447
  %v4535 = vadd.f32 %v4503, %v4450
  %v4536 = vadd.f32 %v4504, %v4453
  %v4537 = vadd.f32 %v4505, %v4456
  %v4538 = vadd.f32 %v4506, %v4459
  %v4539 = vadd.f32 %v4507, %v4462
  %v4540 = vadd.f32 %v4508, %v4465
  %v4541 = vadd.f32 %v4509, %v4468
  %v4542 = vadd.f32 %v4510, %v4471
  %v4543 = vadd.f32 %v4511, %v4474
  %v4544 = vadd.f32 %v4512, %v4477
  %v4545 = vadd.f32 %v4513, %v4480
  %4546 = vst.msk [vmem:[#allocation6] sm:$0xff] %vm223, %v4514
  %4547 = vst.msk [vmem:[#allocation6 + $0x8] sm:$0xff] %vm223, %v4515
  %4548 = vst.msk [vmem:[#allocation6 + $0x10] sm:$0xff] %vm223, %v4516
  %4549 = vst.msk [vmem:[#allocation6 + $0x18] sm:$0xff] %vm223, %v4517
  %4550 = vst.msk [vmem:[#allocation6 + $0x20] sm:$0xff] %vm223, %v4518
  %4551 = vst.msk [vmem:[#allocation6 + $0x28] sm:$0xff] %vm223, %v4519
  %4552 = vst.msk [vmem:[#allocation6 + $0x30] sm:$0xff] %vm223, %v4520
  %4553 = vst.msk [vmem:[#allocation6 + $0x38] sm:$0xff] %vm223, %v4521
  %4554 = vst.msk [vmem:[#allocation6 + $0x40] sm:$0xff] %vm223, %v4522
  %4555 = vst.msk [vmem:[#allocation6 + $0x48] sm:$0xff] %vm223, %v4523
  %4556 = vst.msk [vmem:[#allocation6 + $0x50] sm:$0xff] %vm223, %v4524
  %4557 = vst.msk [vmem:[#allocation6 + $0x58] sm:$0xff] %vm223, %v4525
  %4558 = vst.msk [vmem:[#allocation6 + $0x60] sm:$0xff] %vm223, %v4526
  %4559 = vst.msk [vmem:[#allocation6 + $0x68] sm:$0xff] %vm223, %v4527
  %4560 = vst.msk [vmem:[#allocation6 + $0x70] sm:$0xff] %vm223, %v4528
  %4561 = vst.msk [vmem:[#allocation6 + $0x78] sm:$0xff] %vm223, %v4529
  %4562 = vst.msk [vmem:[#allocation6 + $0x80] sm:$0xff] %vm223, %v4530
  %4563 = vst.msk [vmem:[#allocation6 + $0x88] sm:$0xff] %vm223, %v4531
  %4564 = vst.msk [vmem:[#allocation6 + $0x90] sm:$0xff] %vm223, %v4532
  %4565 = vst.msk [vmem:[#allocation6 + $0x98] sm:$0xff] %vm223, %v4533
  %4566 = vst.msk [vmem:[#allocation6 + $0xa0] sm:$0xff] %vm223, %v4534
  %4567 = vst.msk [vmem:[#allocation6 + $0xa8] sm:$0xff] %vm223, %v4535
  %4568 = vst.msk [vmem:[#allocation6 + $0xb0] sm:$0xff] %vm223, %v4536
  %4569 = vst.msk [vmem:[#allocation6 + $0xb8] sm:$0xff] %vm223, %v4537
  %4570 = vst.msk [vmem:[#allocation6 + $0xc0] sm:$0xff] %vm223, %v4538
  %4571 = vst.msk [vmem:[#allocation6 + $0xc8] sm:$0xff] %vm223, %v4539
  %4572 = vst.msk [vmem:[#allocation6 + $0xd0] sm:$0xff] %vm223, %v4540
  %4573 = vst.msk [vmem:[#allocation6 + $0xd8] sm:$0xff] %vm223, %v4541
  %4574 = vst.msk [vmem:[#allocation6 + $0xe0] sm:$0xff] %vm223, %v4542
  %4575 = vst.msk [vmem:[#allocation6 + $0xe8] sm:$0xff] %vm223, %v4543
  %4576 = vst.msk [vmem:[#allocation6 + $0xf0] sm:$0xff] %vm223, %v4544
  %4577 = vst.msk [vmem:[#allocation6 + $0xf8] sm:$0x1f] %vm2500, %v4545
  %v4578 = vld [vmem:[#allocation4 + $0x23] sm:$0xff]
  %v4579 = vld [vmem:[#allocation4 + $0x2b] sm:$0xff]
  %v4580 = vld [vmem:[#allocation4 + $0x33] sm:$0xff]
  %v4581 = vld [vmem:[#allocation4 + $0x3b] sm:$0xff]
  %v4582 = vld [vmem:[#allocation4 + $0x43] sm:$0xff]
  %v4583 = vld [vmem:[#allocation4 + $0x4b] sm:$0xff]
  %v4584 = vld [vmem:[#allocation4 + $0x53] sm:$0xff]
  %v4585 = vld [vmem:[#allocation4 + $0x5b] sm:$0xff]
  %v4586 = vld [vmem:[#allocation4 + $0x63] sm:$0xff]
  %v4587 = vld [vmem:[#allocation4 + $0x6b] sm:$0xff]
  %v4588 = vld [vmem:[#allocation4 + $0x73] sm:$0xff]
  %v4589 = vld [vmem:[#allocation4 + $0x7b] sm:$0xff]
  %v4590 = vld [vmem:[#allocation4 + $0x83] sm:$0xff]
  %v4591 = vld [vmem:[#allocation4 + $0x8b] sm:$0xff]
  %v4592 = vld [vmem:[#allocation4 + $0x93] sm:$0xff]
  %v4593 = vld [vmem:[#allocation4 + $0x9b] sm:$0xff]
  %v4594 = vld [vmem:[#allocation4 + $0xa3] sm:$0xff]
  %v4595 = vld [vmem:[#allocation4 + $0xab] sm:$0xff]
  %v4596 = vld [vmem:[#allocation4 + $0xb3] sm:$0xff]
  %v4597 = vld [vmem:[#allocation4 + $0xbb] sm:$0xff]
  %v4598 = vld [vmem:[#allocation4 + $0xc3] sm:$0xff]
  %v4599 = vld [vmem:[#allocation4 + $0xcb] sm:$0xff]
  %v4600 = vld [vmem:[#allocation4 + $0xd3] sm:$0xff]
  %v4601 = vld [vmem:[#allocation4 + $0xdb] sm:$0xff]
  %v4602 = vld [vmem:[#allocation4 + $0xe3] sm:$0xff]
  %v4603 = vld [vmem:[#allocation4 + $0xeb] sm:$0xff]
  %v4604 = vld [vmem:[#allocation4 + $0xf3] sm:$0xff]
  %v4605 = vld [vmem:[#allocation4 + $0xfb] sm:$0xff]
  %v4606 = vld [vmem:[#allocation4 + $0x103] sm:$0xff]
  %v4607 = vld [vmem:[#allocation4 + $0x10b] sm:$0xff]
  %v4608 = vld [vmem:[#allocation4 + $0x113] sm:$0xff]
  %v4609 = vld [vmem:[#allocation4 + $0x11b] sm:$0x1f]
  %s4610 = scalar_lea.vmem %s8, 448
  %v4611 = vld [vmem:[%s4610] sm:$0xff]
  %v4612 = vld [vmem:[%s4610 + $0x8] sm:$0xff]
  %v4613 = vld [vmem:[%s4610 + $0x10] sm:$0xff]
  %v4614 = vld [vmem:[%s4610 + $0x18] sm:$0xff]
  %v4615 = vld [vmem:[%s4610 + $0x20] sm:$0xff]
  %v4616 = vld [vmem:[%s4610 + $0x28] sm:$0xff]
  %v4617 = vld [vmem:[%s4610 + $0x30] sm:$0xff]
  %v4618 = vld [vmem:[%s4610 + $0x38] sm:$0xff]
  %v4620 = vsel %vm2181, %v4578, 0
  %v4623 = vsel %vm2181, %v4579, 0
  %v4626 = vsel %vm2181, %v4580, 0
  %v4629 = vsel %vm2181, %v4581, 0
  %v4632 = vsel %vm2181, %v4582, 0
  %v4635 = vsel %vm2181, %v4583, 0
  %v4638 = vsel %vm2181, %v4584, 0
  %v4641 = vsel %vm2181, %v4585, 0
  %v4644 = vsel %vm2181, %v4586, 0
  %v4647 = vsel %vm2181, %v4587, 0
  %v4650 = vsel %vm2181, %v4588, 0
  %v4653 = vsel %vm2181, %v4589, 0
  %v4656 = vsel %vm2181, %v4590, 0
  %v4659 = vsel %vm2181, %v4591, 0
  %v4662 = vsel %vm2181, %v4592, 0
  %v4665 = vsel %vm2181, %v4593, 0
  %v4668 = vsel %vm2181, %v4594, 0
  %v4671 = vsel %vm2181, %v4595, 0
  %v4674 = vsel %vm2181, %v4596, 0
  %v4677 = vsel %vm2181, %v4597, 0
  %v4680 = vsel %vm2181, %v4598, 0
  %v4683 = vsel %vm2181, %v4599, 0
  %v4686 = vsel %vm2181, %v4600, 0
  %v4689 = vsel %vm2181, %v4601, 0
  %v4692 = vsel %vm2181, %v4602, 0
  %v4695 = vsel %vm2181, %v4603, 0
  %v4698 = vsel %vm2181, %v4604, 0
  %v4701 = vsel %vm2181, %v4605, 0
  %v4704 = vsel %vm2181, %v4606, 0
  %v4707 = vsel %vm2181, %v4607, 0
  %v4710 = vsel %vm2181, %v4608, 0
  %v4713 = vsel %vm2181, %v4609, 0
  %4715 = vmatpush.msra.mxu0 0.0
  %4716 = vmatpush.msra.mxu0 0.0
  %4717 = vmatpush.msra.mxu0 0.0
  %4718 = vmatpush.msra.mxu0 0.0
  %4719 = vmatpush.msra.mxu0 0.0
  %4720 = vmatpush.msra.mxu0 0.0
  %4721 = vmatpush.msra.mxu0 0.0
  %4722 = vmatpush.msra.mxu0 0.0
  %4723 = vmatpush.msra.mxu0 %v4618
  %4724 = vmatpush.msra.mxu0 %v4617
  %4725 = vmatpush.msra.mxu0 %v4616
  %4726 = vmatpush.msra.mxu0 %v4615
  %4727 = vmatpush.msra.mxu0 %v4614
  %4728 = vmatpush.msra.mxu0 %v4613
  %4729 = vmatpush.msra.mxu0 %v4612
  %4730 = vmatpush.msra.mxu0 %v4611
  %4731 = vmatmul.f32.gmra.mxu0 %v4620
  %v4732 = vpop.f32.mrf.mxu0
  %v4733 = vadd.f32 0.0, %v4732
  %4734 = vmatmul.f32.gmra.mxu0 %v4623
  %v4735 = vpop.f32.mrf.mxu0
  %v4736 = vadd.f32 0.0, %v4735
  %4737 = vmatmul.f32.gmra.mxu0 %v4626
  %v4738 = vpop.f32.mrf.mxu0
  %v4739 = vadd.f32 0.0, %v4738
  %4740 = vmatmul.f32.gmra.mxu0 %v4629
  %v4741 = vpop.f32.mrf.mxu0
  %v4742 = vadd.f32 0.0, %v4741
  %4743 = vmatmul.f32.gmra.mxu0 %v4632
  %v4744 = vpop.f32.mrf.mxu0
  %v4745 = vadd.f32 0.0, %v4744
  %4746 = vmatmul.f32.gmra.mxu0 %v4635
  %v4747 = vpop.f32.mrf.mxu0
  %v4748 = vadd.f32 0.0, %v4747
  %4749 = vmatmul.f32.gmra.mxu0 %v4638
  %v4750 = vpop.f32.mrf.mxu0
  %v4751 = vadd.f32 0.0, %v4750
  %4752 = vmatmul.f32.gmra.mxu0 %v4641
  %v4753 = vpop.f32.mrf.mxu0
  %v4754 = vadd.f32 0.0, %v4753
  %4755 = vmatmul.f32.gmra.mxu0 %v4644
  %v4756 = vpop.f32.mrf.mxu0
  %v4757 = vadd.f32 0.0, %v4756
  %4758 = vmatmul.f32.gmra.mxu0 %v4647
  %v4759 = vpop.f32.mrf.mxu0
  %v4760 = vadd.f32 0.0, %v4759
  %4761 = vmatmul.f32.gmra.mxu0 %v4650
  %v4762 = vpop.f32.mrf.mxu0
  %v4763 = vadd.f32 0.0, %v4762
  %4764 = vmatmul.f32.gmra.mxu0 %v4653
  %v4765 = vpop.f32.mrf.mxu0
  %v4766 = vadd.f32 0.0, %v4765
  %4767 = vmatmul.f32.gmra.mxu0 %v4656
  %v4768 = vpop.f32.mrf.mxu0
  %v4769 = vadd.f32 0.0, %v4768
  %4770 = vmatmul.f32.gmra.mxu0 %v4659
  %v4771 = vpop.f32.mrf.mxu0
  %v4772 = vadd.f32 0.0, %v4771
  %4773 = vmatmul.f32.gmra.mxu0 %v4662
  %v4774 = vpop.f32.mrf.mxu0
  %v4775 = vadd.f32 0.0, %v4774
  %4776 = vmatmul.f32.gmra.mxu0 %v4665
  %v4777 = vpop.f32.mrf.mxu0
  %v4778 = vadd.f32 0.0, %v4777
  %4779 = vmatmul.f32.gmra.mxu0 %v4668
  %v4780 = vpop.f32.mrf.mxu0
  %v4781 = vadd.f32 0.0, %v4780
  %4782 = vmatmul.f32.gmra.mxu0 %v4671
  %v4783 = vpop.f32.mrf.mxu0
  %v4784 = vadd.f32 0.0, %v4783
  %4785 = vmatmul.f32.gmra.mxu0 %v4674
  %v4786 = vpop.f32.mrf.mxu0
  %v4787 = vadd.f32 0.0, %v4786
  %4788 = vmatmul.f32.gmra.mxu0 %v4677
  %v4789 = vpop.f32.mrf.mxu0
  %v4790 = vadd.f32 0.0, %v4789
  %4791 = vmatmul.f32.gmra.mxu0 %v4680
  %v4792 = vpop.f32.mrf.mxu0
  %v4793 = vadd.f32 0.0, %v4792
  %4794 = vmatmul.f32.gmra.mxu0 %v4683
  %v4795 = vpop.f32.mrf.mxu0
  %v4796 = vadd.f32 0.0, %v4795
  %4797 = vmatmul.f32.gmra.mxu0 %v4686
  %v4798 = vpop.f32.mrf.mxu0
  %v4799 = vadd.f32 0.0, %v4798
  %4800 = vmatmul.f32.gmra.mxu0 %v4689
  %v4801 = vpop.f32.mrf.mxu0
  %v4802 = vadd.f32 0.0, %v4801
  %4803 = vmatmul.f32.gmra.mxu0 %v4692
  %v4804 = vpop.f32.mrf.mxu0
  %v4805 = vadd.f32 0.0, %v4804
  %4806 = vmatmul.f32.gmra.mxu0 %v4695
  %v4807 = vpop.f32.mrf.mxu0
  %v4808 = vadd.f32 0.0, %v4807
  %4809 = vmatmul.f32.gmra.mxu0 %v4698
  %v4810 = vpop.f32.mrf.mxu0
  %v4811 = vadd.f32 0.0, %v4810
  %4812 = vmatmul.f32.gmra.mxu0 %v4701
  %v4813 = vpop.f32.mrf.mxu0
  %v4814 = vadd.f32 0.0, %v4813
  %4815 = vmatmul.f32.gmra.mxu0 %v4704
  %v4816 = vpop.f32.mrf.mxu0
  %v4817 = vadd.f32 0.0, %v4816
  %4818 = vmatmul.f32.gmra.mxu0 %v4707
  %v4819 = vpop.f32.mrf.mxu0
  %v4820 = vadd.f32 0.0, %v4819
  %4821 = vmatmul.f32.gmra.mxu0 %v4710
  %v4822 = vpop.f32.mrf.mxu0
  %v4823 = vadd.f32 0.0, %v4822
  %4824 = vmatmul.f32.gmra.mxu0 %v4713
  %v4825 = vpop.f32.mrf.mxu0
  %v4826 = vadd.f32 0.0, %v4825
  %4827 = vdwg.mxu0
  %v4828 = vld [vmem:[#allocation6] sm:$0xff]
  %v4829 = vld [vmem:[#allocation6 + $0x8] sm:$0xff]
  %v4830 = vld [vmem:[#allocation6 + $0x10] sm:$0xff]
  %v4831 = vld [vmem:[#allocation6 + $0x18] sm:$0xff]
  %v4832 = vld [vmem:[#allocation6 + $0x20] sm:$0xff]
  %v4833 = vld [vmem:[#allocation6 + $0x28] sm:$0xff]
  %v4834 = vld [vmem:[#allocation6 + $0x30] sm:$0xff]
  %v4835 = vld [vmem:[#allocation6 + $0x38] sm:$0xff]
  %v4836 = vld [vmem:[#allocation6 + $0x40] sm:$0xff]
  %v4837 = vld [vmem:[#allocation6 + $0x48] sm:$0xff]
  %v4838 = vld [vmem:[#allocation6 + $0x50] sm:$0xff]
  %v4839 = vld [vmem:[#allocation6 + $0x58] sm:$0xff]
  %v4840 = vld [vmem:[#allocation6 + $0x60] sm:$0xff]
  %v4841 = vld [vmem:[#allocation6 + $0x68] sm:$0xff]
  %v4842 = vld [vmem:[#allocation6 + $0x70] sm:$0xff]
  %v4843 = vld [vmem:[#allocation6 + $0x78] sm:$0xff]
  %v4844 = vld [vmem:[#allocation6 + $0x80] sm:$0xff]
  %v4845 = vld [vmem:[#allocation6 + $0x88] sm:$0xff]
  %v4846 = vld [vmem:[#allocation6 + $0x90] sm:$0xff]
  %v4847 = vld [vmem:[#allocation6 + $0x98] sm:$0xff]
  %v4848 = vld [vmem:[#allocation6 + $0xa0] sm:$0xff]
  %v4849 = vld [vmem:[#allocation6 + $0xa8] sm:$0xff]
  %v4850 = vld [vmem:[#allocation6 + $0xb0] sm:$0xff]
  %v4851 = vld [vmem:[#allocation6 + $0xb8] sm:$0xff]
  %v4852 = vld [vmem:[#allocation6 + $0xc0] sm:$0xff]
  %v4853 = vld [vmem:[#allocation6 + $0xc8] sm:$0xff]
  %v4854 = vld [vmem:[#allocation6 + $0xd0] sm:$0xff]
  %v4855 = vld [vmem:[#allocation6 + $0xd8] sm:$0xff]
  %v4856 = vld [vmem:[#allocation6 + $0xe0] sm:$0xff]
  %v4857 = vld [vmem:[#allocation6 + $0xe8] sm:$0xff]
  %v4858 = vld [vmem:[#allocation6 + $0xf0] sm:$0xff]
  %v4859 = vld [vmem:[#allocation6 + $0xf8] sm:$0x1f]
  %v4860 = vadd.f32 %v4828, %v4733
  %v4861 = vadd.f32 %v4829, %v4736
  %v4862 = vadd.f32 %v4830, %v4739
  %v4863 = vadd.f32 %v4831, %v4742
  %v4864 = vadd.f32 %v4832, %v4745
  %v4865 = vadd.f32 %v4833, %v4748
  %v4866 = vadd.f32 %v4834, %v4751
  %v4867 = vadd.f32 %v4835, %v4754
  %v4868 = vadd.f32 %v4836, %v4757
  %v4869 = vadd.f32 %v4837, %v4760
  %v4870 = vadd.f32 %v4838, %v4763
  %v4871 = vadd.f32 %v4839, %v4766
  %v4872 = vadd.f32 %v4840, %v4769
  %v4873 = vadd.f32 %v4841, %v4772
  %v4874 = vadd.f32 %v4842, %v4775
  %v4875 = vadd.f32 %v4843, %v4778
  %v4876 = vadd.f32 %v4844, %v4781
  %v4877 = vadd.f32 %v4845, %v4784
  %v4878 = vadd.f32 %v4846, %v4787
  %v4879 = vadd.f32 %v4847, %v4790
  %v4880 = vadd.f32 %v4848, %v4793
  %v4881 = vadd.f32 %v4849, %v4796
  %v4882 = vadd.f32 %v4850, %v4799
  %v4883 = vadd.f32 %v4851, %v4802
  %v4884 = vadd.f32 %v4852, %v4805
  %v4885 = vadd.f32 %v4853, %v4808
  %v4886 = vadd.f32 %v4854, %v4811
  %v4887 = vadd.f32 %v4855, %v4814
  %v4888 = vadd.f32 %v4856, %v4817
  %v4889 = vadd.f32 %v4857, %v4820
  %v4890 = vadd.f32 %v4858, %v4823
  %v4891 = vadd.f32 %v4859, %v4826
  %4892 = vst.msk [vmem:[#allocation6] sm:$0xff] %vm223, %v4860
  %4893 = vst.msk [vmem:[#allocation6 + $0x8] sm:$0xff] %vm223, %v4861
  %4894 = vst.msk [vmem:[#allocation6 + $0x10] sm:$0xff] %vm223, %v4862
  %4895 = vst.msk [vmem:[#allocation6 + $0x18] sm:$0xff] %vm223, %v4863
  %4896 = vst.msk [vmem:[#allocation6 + $0x20] sm:$0xff] %vm223, %v4864
  %4897 = vst.msk [vmem:[#allocation6 + $0x28] sm:$0xff] %vm223, %v4865
  %4898 = vst.msk [vmem:[#allocation6 + $0x30] sm:$0xff] %vm223, %v4866
  %4899 = vst.msk [vmem:[#allocation6 + $0x38] sm:$0xff] %vm223, %v4867
  %4900 = vst.msk [vmem:[#allocation6 + $0x40] sm:$0xff] %vm223, %v4868
  %4901 = vst.msk [vmem:[#allocation6 + $0x48] sm:$0xff] %vm223, %v4869
  %4902 = vst.msk [vmem:[#allocation6 + $0x50] sm:$0xff] %vm223, %v4870
  %4903 = vst.msk [vmem:[#allocation6 + $0x58] sm:$0xff] %vm223, %v4871
  %4904 = vst.msk [vmem:[#allocation6 + $0x60] sm:$0xff] %vm223, %v4872
  %4905 = vst.msk [vmem:[#allocation6 + $0x68] sm:$0xff] %vm223, %v4873
  %4906 = vst.msk [vmem:[#allocation6 + $0x70] sm:$0xff] %vm223, %v4874
  %4907 = vst.msk [vmem:[#allocation6 + $0x78] sm:$0xff] %vm223, %v4875
  %4908 = vst.msk [vmem:[#allocation6 + $0x80] sm:$0xff] %vm223, %v4876
  %4909 = vst.msk [vmem:[#allocation6 + $0x88] sm:$0xff] %vm223, %v4877
  %4910 = vst.msk [vmem:[#allocation6 + $0x90] sm:$0xff] %vm223, %v4878
  %4911 = vst.msk [vmem:[#allocation6 + $0x98] sm:$0xff] %vm223, %v4879
  %4912 = vst.msk [vmem:[#allocation6 + $0xa0] sm:$0xff] %vm223, %v4880
  %4913 = vst.msk [vmem:[#allocation6 + $0xa8] sm:$0xff] %vm223, %v4881
  %4914 = vst.msk [vmem:[#allocation6 + $0xb0] sm:$0xff] %vm223, %v4882
  %4915 = vst.msk [vmem:[#allocation6 + $0xb8] sm:$0xff] %vm223, %v4883
  %4916 = vst.msk [vmem:[#allocation6 + $0xc0] sm:$0xff] %vm223, %v4884
  %4917 = vst.msk [vmem:[#allocation6 + $0xc8] sm:$0xff] %vm223, %v4885
  %4918 = vst.msk [vmem:[#allocation6 + $0xd0] sm:$0xff] %vm223, %v4886
  %4919 = vst.msk [vmem:[#allocation6 + $0xd8] sm:$0xff] %vm223, %v4887
  %4920 = vst.msk [vmem:[#allocation6 + $0xe0] sm:$0xff] %vm223, %v4888
  %4921 = vst.msk [vmem:[#allocation6 + $0xe8] sm:$0xff] %vm223, %v4889
  %4922 = vst.msk [vmem:[#allocation6 + $0xf0] sm:$0xff] %vm223, %v4890
  %4923 = vst.msk [vmem:[#allocation6 + $0xf8] sm:$0x1f] %vm2500, %v4891
  %v4924 = vld [vmem:[#allocation4 + $0x24] sm:$0xff]
  %v4925 = vld [vmem:[#allocation4 + $0x2c] sm:$0xff]
  %v4926 = vld [vmem:[#allocation4 + $0x34] sm:$0xff]
  %v4927 = vld [vmem:[#allocation4 + $0x3c] sm:$0xff]
  %v4928 = vld [vmem:[#allocation4 + $0x44] sm:$0xff]
  %v4929 = vld [vmem:[#allocation4 + $0x4c] sm:$0xff]
  %v4930 = vld [vmem:[#allocation4 + $0x54] sm:$0xff]
  %v4931 = vld [vmem:[#allocation4 + $0x5c] sm:$0xff]
  %v4932 = vld [vmem:[#allocation4 + $0x64] sm:$0xff]
  %v4933 = vld [vmem:[#allocation4 + $0x6c] sm:$0xff]
  %v4934 = vld [vmem:[#allocation4 + $0x74] sm:$0xff]
  %v4935 = vld [vmem:[#allocation4 + $0x7c] sm:$0xff]
  %v4936 = vld [vmem:[#allocation4 + $0x84] sm:$0xff]
  %v4937 = vld [vmem:[#allocation4 + $0x8c] sm:$0xff]
  %v4938 = vld [vmem:[#allocation4 + $0x94] sm:$0xff]
  %v4939 = vld [vmem:[#allocation4 + $0x9c] sm:$0xff]
  %v4940 = vld [vmem:[#allocation4 + $0xa4] sm:$0xff]
  %v4941 = vld [vmem:[#allocation4 + $0xac] sm:$0xff]
  %v4942 = vld [vmem:[#allocation4 + $0xb4] sm:$0xff]
  %v4943 = vld [vmem:[#allocation4 + $0xbc] sm:$0xff]
  %v4944 = vld [vmem:[#allocation4 + $0xc4] sm:$0xff]
  %v4945 = vld [vmem:[#allocation4 + $0xcc] sm:$0xff]
  %v4946 = vld [vmem:[#allocation4 + $0xd4] sm:$0xff]
  %v4947 = vld [vmem:[#allocation4 + $0xdc] sm:$0xff]
  %v4948 = vld [vmem:[#allocation4 + $0xe4] sm:$0xff]
  %v4949 = vld [vmem:[#allocation4 + $0xec] sm:$0xff]
  %v4950 = vld [vmem:[#allocation4 + $0xf4] sm:$0xff]
  %v4951 = vld [vmem:[#allocation4 + $0xfc] sm:$0xff]
  %v4952 = vld [vmem:[#allocation4 + $0x104] sm:$0xff]
  %v4953 = vld [vmem:[#allocation4 + $0x10c] sm:$0xff]
  %v4954 = vld [vmem:[#allocation4 + $0x114] sm:$0xff]
  %v4955 = vld [vmem:[#allocation4 + $0x11c] sm:$0x1f]
  %s4956 = scalar_lea.vmem %s8, 512
  %v4957 = vld [vmem:[%s4956] sm:$0xff]
  %v4958 = vld [vmem:[%s4956 + $0x8] sm:$0xff]
  %v4959 = vld [vmem:[%s4956 + $0x10] sm:$0xff]
  %v4960 = vld [vmem:[%s4956 + $0x18] sm:$0xff]
  %v4961 = vld [vmem:[%s4956 + $0x20] sm:$0xff]
  %v4962 = vld [vmem:[%s4956 + $0x28] sm:$0xff]
  %v4963 = vld [vmem:[%s4956 + $0x30] sm:$0xff]
  %v4964 = vld [vmem:[%s4956 + $0x38] sm:$0xff]
  %v4966 = vsel %vm2181, %v4924, 0
  %v4969 = vsel %vm2181, %v4925, 0
  %v4972 = vsel %vm2181, %v4926, 0
  %v4975 = vsel %vm2181, %v4927, 0
  %v4978 = vsel %vm2181, %v4928, 0
  %v4981 = vsel %vm2181, %v4929, 0
  %v4984 = vsel %vm2181, %v4930, 0
  %v4987 = vsel %vm2181, %v4931, 0
  %v4990 = vsel %vm2181, %v4932, 0
  %v4993 = vsel %vm2181, %v4933, 0
  %v4996 = vsel %vm2181, %v4934, 0
  %v4999 = vsel %vm2181, %v4935, 0
  %v5002 = vsel %vm2181, %v4936, 0
  %v5005 = vsel %vm2181, %v4937, 0
  %v5008 = vsel %vm2181, %v4938, 0
  %v5011 = vsel %vm2181, %v4939, 0
  %v5014 = vsel %vm2181, %v4940, 0
  %v5017 = vsel %vm2181, %v4941, 0
  %v5020 = vsel %vm2181, %v4942, 0
  %v5023 = vsel %vm2181, %v4943, 0
  %v5026 = vsel %vm2181, %v4944, 0
  %v5029 = vsel %vm2181, %v4945, 0
  %v5032 = vsel %vm2181, %v4946, 0
  %v5035 = vsel %vm2181, %v4947, 0
  %v5038 = vsel %vm2181, %v4948, 0
  %v5041 = vsel %vm2181, %v4949, 0
  %v5044 = vsel %vm2181, %v4950, 0
  %v5047 = vsel %vm2181, %v4951, 0
  %v5050 = vsel %vm2181, %v4952, 0
  %v5053 = vsel %vm2181, %v4953, 0
  %v5056 = vsel %vm2181, %v4954, 0
  %v5059 = vsel %vm2181, %v4955, 0
  %5061 = vmatpush.msra.mxu0 0.0
  %5062 = vmatpush.msra.mxu0 0.0
  %5063 = vmatpush.msra.mxu0 0.0
  %5064 = vmatpush.msra.mxu0 0.0
  %5065 = vmatpush.msra.mxu0 0.0
  %5066 = vmatpush.msra.mxu0 0.0
  %5067 = vmatpush.msra.mxu0 0.0
  %5068 = vmatpush.msra.mxu0 0.0
  %5069 = vmatpush.msra.mxu0 %v4964
  %5070 = vmatpush.msra.mxu0 %v4963
  %5071 = vmatpush.msra.mxu0 %v4962
  %5072 = vmatpush.msra.mxu0 %v4961
  %5073 = vmatpush.msra.mxu0 %v4960
  %5074 = vmatpush.msra.mxu0 %v4959
  %5075 = vmatpush.msra.mxu0 %v4958
  %5076 = vmatpush.msra.mxu0 %v4957
  %5077 = vmatmul.f32.gmra.mxu0 %v4966
  %v5078 = vpop.f32.mrf.mxu0
  %v5079 = vadd.f32 0.0, %v5078
  %5080 = vmatmul.f32.gmra.mxu0 %v4969
  %v5081 = vpop.f32.mrf.mxu0
  %v5082 = vadd.f32 0.0, %v5081
  %5083 = vmatmul.f32.gmra.mxu0 %v4972
  %v5084 = vpop.f32.mrf.mxu0
  %v5085 = vadd.f32 0.0, %v5084
  %5086 = vmatmul.f32.gmra.mxu0 %v4975
  %v5087 = vpop.f32.mrf.mxu0
  %v5088 = vadd.f32 0.0, %v5087
  %5089 = vmatmul.f32.gmra.mxu0 %v4978
  %v5090 = vpop.f32.mrf.mxu0
  %v5091 = vadd.f32 0.0, %v5090
  %5092 = vmatmul.f32.gmra.mxu0 %v4981
  %v5093 = vpop.f32.mrf.mxu0
  %v5094 = vadd.f32 0.0, %v5093
  %5095 = vmatmul.f32.gmra.mxu0 %v4984
  %v5096 = vpop.f32.mrf.mxu0
  %v5097 = vadd.f32 0.0, %v5096
  %5098 = vmatmul.f32.gmra.mxu0 %v4987
  %v5099 = vpop.f32.mrf.mxu0
  %v5100 = vadd.f32 0.0, %v5099
  %5101 = vmatmul.f32.gmra.mxu0 %v4990
  %v5102 = vpop.f32.mrf.mxu0
  %v5103 = vadd.f32 0.0, %v5102
  %5104 = vmatmul.f32.gmra.mxu0 %v4993
  %v5105 = vpop.f32.mrf.mxu0
  %v5106 = vadd.f32 0.0, %v5105
  %5107 = vmatmul.f32.gmra.mxu0 %v4996
  %v5108 = vpop.f32.mrf.mxu0
  %v5109 = vadd.f32 0.0, %v5108
  %5110 = vmatmul.f32.gmra.mxu0 %v4999
  %v5111 = vpop.f32.mrf.mxu0
  %v5112 = vadd.f32 0.0, %v5111
  %5113 = vmatmul.f32.gmra.mxu0 %v5002
  %v5114 = vpop.f32.mrf.mxu0
  %v5115 = vadd.f32 0.0, %v5114
  %5116 = vmatmul.f32.gmra.mxu0 %v5005
  %v5117 = vpop.f32.mrf.mxu0
  %v5118 = vadd.f32 0.0, %v5117
  %5119 = vmatmul.f32.gmra.mxu0 %v5008
  %v5120 = vpop.f32.mrf.mxu0
  %v5121 = vadd.f32 0.0, %v5120
  %5122 = vmatmul.f32.gmra.mxu0 %v5011
  %v5123 = vpop.f32.mrf.mxu0
  %v5124 = vadd.f32 0.0, %v5123
  %5125 = vmatmul.f32.gmra.mxu0 %v5014
  %v5126 = vpop.f32.mrf.mxu0
  %v5127 = vadd.f32 0.0, %v5126
  %5128 = vmatmul.f32.gmra.mxu0 %v5017
  %v5129 = vpop.f32.mrf.mxu0
  %v5130 = vadd.f32 0.0, %v5129
  %5131 = vmatmul.f32.gmra.mxu0 %v5020
  %v5132 = vpop.f32.mrf.mxu0
  %v5133 = vadd.f32 0.0, %v5132
  %5134 = vmatmul.f32.gmra.mxu0 %v5023
  %v5135 = vpop.f32.mrf.mxu0
  %v5136 = vadd.f32 0.0, %v5135
  %5137 = vmatmul.f32.gmra.mxu0 %v5026
  %v5138 = vpop.f32.mrf.mxu0
  %v5139 = vadd.f32 0.0, %v5138
  %5140 = vmatmul.f32.gmra.mxu0 %v5029
  %v5141 = vpop.f32.mrf.mxu0
  %v5142 = vadd.f32 0.0, %v5141
  %5143 = vmatmul.f32.gmra.mxu0 %v5032
  %v5144 = vpop.f32.mrf.mxu0
  %v5145 = vadd.f32 0.0, %v5144
  %5146 = vmatmul.f32.gmra.mxu0 %v5035
  %v5147 = vpop.f32.mrf.mxu0
  %v5148 = vadd.f32 0.0, %v5147
  %5149 = vmatmul.f32.gmra.mxu0 %v5038
  %v5150 = vpop.f32.mrf.mxu0
  %v5151 = vadd.f32 0.0, %v5150
  %5152 = vmatmul.f32.gmra.mxu0 %v5041
  %v5153 = vpop.f32.mrf.mxu0
  %v5154 = vadd.f32 0.0, %v5153
  %5155 = vmatmul.f32.gmra.mxu0 %v5044
  %v5156 = vpop.f32.mrf.mxu0
  %v5157 = vadd.f32 0.0, %v5156
  %5158 = vmatmul.f32.gmra.mxu0 %v5047
  %v5159 = vpop.f32.mrf.mxu0
  %v5160 = vadd.f32 0.0, %v5159
  %5161 = vmatmul.f32.gmra.mxu0 %v5050
  %v5162 = vpop.f32.mrf.mxu0
  %v5163 = vadd.f32 0.0, %v5162
  %5164 = vmatmul.f32.gmra.mxu0 %v5053
  %v5165 = vpop.f32.mrf.mxu0
  %v5166 = vadd.f32 0.0, %v5165
  %5167 = vmatmul.f32.gmra.mxu0 %v5056
  %v5168 = vpop.f32.mrf.mxu0
  %v5169 = vadd.f32 0.0, %v5168
  %5170 = vmatmul.f32.gmra.mxu0 %v5059
  %v5171 = vpop.f32.mrf.mxu0
  %v5172 = vadd.f32 0.0, %v5171
  %5173 = vdwg.mxu0
  %v5174 = vld [vmem:[#allocation6] sm:$0xff]
  %v5175 = vld [vmem:[#allocation6 + $0x8] sm:$0xff]
  %v5176 = vld [vmem:[#allocation6 + $0x10] sm:$0xff]
  %v5177 = vld [vmem:[#allocation6 + $0x18] sm:$0xff]
  %v5178 = vld [vmem:[#allocation6 + $0x20] sm:$0xff]
  %v5179 = vld [vmem:[#allocation6 + $0x28] sm:$0xff]
  %v5180 = vld [vmem:[#allocation6 + $0x30] sm:$0xff]
  %v5181 = vld [vmem:[#allocation6 + $0x38] sm:$0xff]
  %v5182 = vld [vmem:[#allocation6 + $0x40] sm:$0xff]
  %v5183 = vld [vmem:[#allocation6 + $0x48] sm:$0xff]
  %v5184 = vld [vmem:[#allocation6 + $0x50] sm:$0xff]
  %v5185 = vld [vmem:[#allocation6 + $0x58] sm:$0xff]
  %v5186 = vld [vmem:[#allocation6 + $0x60] sm:$0xff]
  %v5187 = vld [vmem:[#allocation6 + $0x68] sm:$0xff]
  %v5188 = vld [vmem:[#allocation6 + $0x70] sm:$0xff]
  %v5189 = vld [vmem:[#allocation6 + $0x78] sm:$0xff]
  %v5190 = vld [vmem:[#allocation6 + $0x80] sm:$0xff]
  %v5191 = vld [vmem:[#allocation6 + $0x88] sm:$0xff]
  %v5192 = vld [vmem:[#allocation6 + $0x90] sm:$0xff]
  %v5193 = vld [vmem:[#allocation6 + $0x98] sm:$0xff]
  %v5194 = vld [vmem:[#allocation6 + $0xa0] sm:$0xff]
  %v5195 = vld [vmem:[#allocation6 + $0xa8] sm:$0xff]
  %v5196 = vld [vmem:[#allocation6 + $0xb0] sm:$0xff]
  %v5197 = vld [vmem:[#allocation6 + $0xb8] sm:$0xff]
  %v5198 = vld [vmem:[#allocation6 + $0xc0] sm:$0xff]
  %v5199 = vld [vmem:[#allocation6 + $0xc8] sm:$0xff]
  %v5200 = vld [vmem:[#allocation6 + $0xd0] sm:$0xff]
  %v5201 = vld [vmem:[#allocation6 + $0xd8] sm:$0xff]
  %v5202 = vld [vmem:[#allocation6 + $0xe0] sm:$0xff]
  %v5203 = vld [vmem:[#allocation6 + $0xe8] sm:$0xff]
  %v5204 = vld [vmem:[#allocation6 + $0xf0] sm:$0xff]
  %v5205 = vld [vmem:[#allocation6 + $0xf8] sm:$0x1f]
  %v5206 = vadd.f32 %v5174, %v5079
  %v5207 = vadd.f32 %v5175, %v5082
  %v5208 = vadd.f32 %v5176, %v5085
  %v5209 = vadd.f32 %v5177, %v5088
  %v5210 = vadd.f32 %v5178, %v5091
  %v5211 = vadd.f32 %v5179, %v5094
  %v5212 = vadd.f32 %v5180, %v5097
  %v5213 = vadd.f32 %v5181, %v5100
  %v5214 = vadd.f32 %v5182, %v5103
  %v5215 = vadd.f32 %v5183, %v5106
  %v5216 = vadd.f32 %v5184, %v5109
  %v5217 = vadd.f32 %v5185, %v5112
  %v5218 = vadd.f32 %v5186, %v5115
  %v5219 = vadd.f32 %v5187, %v5118
  %v5220 = vadd.f32 %v5188, %v5121
  %v5221 = vadd.f32 %v5189, %v5124
  %v5222 = vadd.f32 %v5190, %v5127
  %v5223 = vadd.f32 %v5191, %v5130
  %v5224 = vadd.f32 %v5192, %v5133
  %v5225 = vadd.f32 %v5193, %v5136
  %v5226 = vadd.f32 %v5194, %v5139
  %v5227 = vadd.f32 %v5195, %v5142
  %v5228 = vadd.f32 %v5196, %v5145
  %v5229 = vadd.f32 %v5197, %v5148
  %v5230 = vadd.f32 %v5198, %v5151
  %v5231 = vadd.f32 %v5199, %v5154
  %v5232 = vadd.f32 %v5200, %v5157
  %v5233 = vadd.f32 %v5201, %v5160
  %v5234 = vadd.f32 %v5202, %v5163
  %v5235 = vadd.f32 %v5203, %v5166
  %v5236 = vadd.f32 %v5204, %v5169
  %v5237 = vadd.f32 %v5205, %v5172
  %5238 = vst.msk [vmem:[#allocation6] sm:$0xff] %vm223, %v5206
  %5239 = vst.msk [vmem:[#allocation6 + $0x8] sm:$0xff] %vm223, %v5207
  %5240 = vst.msk [vmem:[#allocation6 + $0x10] sm:$0xff] %vm223, %v5208
  %5241 = vst.msk [vmem:[#allocation6 + $0x18] sm:$0xff] %vm223, %v5209
  %5242 = vst.msk [vmem:[#allocation6 + $0x20] sm:$0xff] %vm223, %v5210
  %5243 = vst.msk [vmem:[#allocation6 + $0x28] sm:$0xff] %vm223, %v5211
  %5244 = vst.msk [vmem:[#allocation6 + $0x30] sm:$0xff] %vm223, %v5212
  %5245 = vst.msk [vmem:[#allocation6 + $0x38] sm:$0xff] %vm223, %v5213
  %5246 = vst.msk [vmem:[#allocation6 + $0x40] sm:$0xff] %vm223, %v5214
  %5247 = vst.msk [vmem:[#allocation6 + $0x48] sm:$0xff] %vm223, %v5215
  %5248 = vst.msk [vmem:[#allocation6 + $0x50] sm:$0xff] %vm223, %v5216
  %5249 = vst.msk [vmem:[#allocation6 + $0x58] sm:$0xff] %vm223, %v5217
  %5250 = vst.msk [vmem:[#allocation6 + $0x60] sm:$0xff] %vm223, %v5218
  %5251 = vst.msk [vmem:[#allocation6 + $0x68] sm:$0xff] %vm223, %v5219
  %5252 = vst.msk [vmem:[#allocation6 + $0x70] sm:$0xff] %vm223, %v5220
  %5253 = vst.msk [vmem:[#allocation6 + $0x78] sm:$0xff] %vm223, %v5221
  %5254 = vst.msk [vmem:[#allocation6 + $0x80] sm:$0xff] %vm223, %v5222
  %5255 = vst.msk [vmem:[#allocation6 + $0x88] sm:$0xff] %vm223, %v5223
  %5256 = vst.msk [vmem:[#allocation6 + $0x90] sm:$0xff] %vm223, %v5224
  %5257 = vst.msk [vmem:[#allocation6 + $0x98] sm:$0xff] %vm223, %v5225
  %5258 = vst.msk [vmem:[#allocation6 + $0xa0] sm:$0xff] %vm223, %v5226
  %5259 = vst.msk [vmem:[#allocation6 + $0xa8] sm:$0xff] %vm223, %v5227
  %5260 = vst.msk [vmem:[#allocation6 + $0xb0] sm:$0xff] %vm223, %v5228
  %5261 = vst.msk [vmem:[#allocation6 + $0xb8] sm:$0xff] %vm223, %v5229
  %5262 = vst.msk [vmem:[#allocation6 + $0xc0] sm:$0xff] %vm223, %v5230
  %5263 = vst.msk [vmem:[#allocation6 + $0xc8] sm:$0xff] %vm223, %v5231
  %5264 = vst.msk [vmem:[#allocation6 + $0xd0] sm:$0xff] %vm223, %v5232
  %5265 = vst.msk [vmem:[#allocation6 + $0xd8] sm:$0xff] %vm223, %v5233
  %5266 = vst.msk [vmem:[#allocation6 + $0xe0] sm:$0xff] %vm223, %v5234
  %5267 = vst.msk [vmem:[#allocation6 + $0xe8] sm:$0xff] %vm223, %v5235
  %5268 = vst.msk [vmem:[#allocation6 + $0xf0] sm:$0xff] %vm223, %v5236
  %5269 = vst.msk [vmem:[#allocation6 + $0xf8] sm:$0x1f] %vm2500, %v5237
  %v5270 = vld [vmem:[#allocation6] sm:$0xff]
  %v5271 = vld [vmem:[#allocation6 + $0x8] sm:$0xff]
  %v5272 = vld [vmem:[#allocation6 + $0x10] sm:$0xff]
  %v5273 = vld [vmem:[#allocation6 + $0x18] sm:$0xff]
  %v5274 = vld [vmem:[#allocation6 + $0x20] sm:$0xff]
  %v5275 = vld [vmem:[#allocation6 + $0x28] sm:$0xff]
  %v5276 = vld [vmem:[#allocation6 + $0x30] sm:$0xff]
  %v5277 = vld [vmem:[#allocation6 + $0x38] sm:$0xff]
  %v5278 = vld [vmem:[#allocation6 + $0x40] sm:$0xff]
  %v5279 = vld [vmem:[#allocation6 + $0x48] sm:$0xff]
  %v5280 = vld [vmem:[#allocation6 + $0x50] sm:$0xff]
  %v5281 = vld [vmem:[#allocation6 + $0x58] sm:$0xff]
  %v5282 = vld [vmem:[#allocation6 + $0x60] sm:$0xff]
  %v5283 = vld [vmem:[#allocation6 + $0x68] sm:$0xff]
  %v5284 = vld [vmem:[#allocation6 + $0x70] sm:$0xff]
  %v5285 = vld [vmem:[#allocation6 + $0x78] sm:$0xff]
  %v5286 = vld [vmem:[#allocation6 + $0x80] sm:$0xff]
  %v5287 = vld [vmem:[#allocation6 + $0x88] sm:$0xff]
  %v5288 = vld [vmem:[#allocation6 + $0x90] sm:$0xff]
  %v5289 = vld [vmem:[#allocation6 + $0x98] sm:$0xff]
  %v5290 = vld [vmem:[#allocation6 + $0xa0] sm:$0xff]
  %v5291 = vld [vmem:[#allocation6 + $0xa8] sm:$0xff]
  %v5292 = vld [vmem:[#allocation6 + $0xb0] sm:$0xff]
  %v5293 = vld [vmem:[#allocation6 + $0xb8] sm:$0xff]
  %v5294 = vld [vmem:[#allocation6 + $0xc0] sm:$0xff]
  %v5295 = vld [vmem:[#allocation6 + $0xc8] sm:$0xff]
  %v5296 = vld [vmem:[#allocation6 + $0xd0] sm:$0xff]
  %v5297 = vld [vmem:[#allocation6 + $0xd8] sm:$0xff]
  %v5298 = vld [vmem:[#allocation6 + $0xe0] sm:$0xff]
  %v5299 = vld [vmem:[#allocation6 + $0xe8] sm:$0xff]
  %v5300 = vld [vmem:[#allocation6 + $0xf0] sm:$0xff]
  %v5301 = vld [vmem:[#allocation6 + $0xf8] sm:$0x1f]
  %v5302 = vld [vmem:[%s2 + $0x5] ss:$0 sm:$0xff]
  %v5303 = vadd.f32 %v5270, %v5302
  %v5304 = vadd.f32 %v5271, %v5302
  %v5305 = vadd.f32 %v5272, %v5302
  %v5306 = vadd.f32 %v5273, %v5302
  %v5307 = vadd.f32 %v5274, %v5302
  %v5308 = vadd.f32 %v5275, %v5302
  %v5309 = vadd.f32 %v5276, %v5302
  %v5310 = vadd.f32 %v5277, %v5302
  %v5311 = vadd.f32 %v5278, %v5302
  %v5312 = vadd.f32 %v5279, %v5302
  %v5313 = vadd.f32 %v5280, %v5302
  %v5314 = vadd.f32 %v5281, %v5302
  %v5315 = vadd.f32 %v5282, %v5302
  %v5316 = vadd.f32 %v5283, %v5302
  %v5317 = vadd.f32 %v5284, %v5302
  %v5318 = vadd.f32 %v5285, %v5302
  %v5319 = vadd.f32 %v5286, %v5302
  %v5320 = vadd.f32 %v5287, %v5302
  %v5321 = vadd.f32 %v5288, %v5302
  %v5322 = vadd.f32 %v5289, %v5302
  %v5323 = vadd.f32 %v5290, %v5302
  %v5324 = vadd.f32 %v5291, %v5302
  %v5325 = vadd.f32 %v5292, %v5302
  %v5326 = vadd.f32 %v5293, %v5302
  %v5327 = vadd.f32 %v5294, %v5302
  %v5328 = vadd.f32 %v5295, %v5302
  %v5329 = vadd.f32 %v5296, %v5302
  %v5330 = vadd.f32 %v5297, %v5302
  %v5331 = vadd.f32 %v5298, %v5302
  %v5332 = vadd.f32 %v5299, %v5302
  %v5333 = vadd.f32 %v5300, %v5302
  %v5334 = vadd.f32 %v5301, %v5302
  %v5335 = vld [vmem:[%s11] sm:$0xff]
  %v5336 = vld [vmem:[%s11 + $0x8] sm:$0xff]
  %v5337 = vld [vmem:[%s11 + $0x10] sm:$0xff]
  %v5338 = vld [vmem:[%s11 + $0x18] sm:$0xff]
  %v5339 = vld [vmem:[%s11 + $0x20] sm:$0xff]
  %v5340 = vld [vmem:[%s11 + $0x28] sm:$0xff]
  %v5341 = vld [vmem:[%s11 + $0x30] sm:$0xff]
  %v5342 = vld [vmem:[%s11 + $0x38] sm:$0xff]
  %v5343 = vld [vmem:[%s11 + $0x40] sm:$0xff]
  %v5344 = vld [vmem:[%s11 + $0x48] sm:$0xff]
  %v5345 = vld [vmem:[%s11 + $0x50] sm:$0xff]
  %v5346 = vld [vmem:[%s11 + $0x58] sm:$0xff]
  %v5347 = vld [vmem:[%s11 + $0x60] sm:$0xff]
  %v5348 = vld [vmem:[%s11 + $0x68] sm:$0xff]
  %v5349 = vld [vmem:[%s11 + $0x70] sm:$0xff]
  %v5350 = vld [vmem:[%s11 + $0x78] sm:$0xff]
  %v5351 = vld [vmem:[%s11 + $0x80] sm:$0xff]
  %v5352 = vld [vmem:[%s11 + $0x88] sm:$0xff]
  %v5353 = vld [vmem:[%s11 + $0x90] sm:$0xff]
  %v5354 = vld [vmem:[%s11 + $0x98] sm:$0xff]
  %v5355 = vld [vmem:[%s11 + $0xa0] sm:$0xff]
  %v5356 = vld [vmem:[%s11 + $0xa8] sm:$0xff]
  %v5357 = vld [vmem:[%s11 + $0xb0] sm:$0xff]
  %v5358 = vld [vmem:[%s11 + $0xb8] sm:$0xff]
  %v5359 = vld [vmem:[%s11 + $0xc0] sm:$0xff]
  %v5360 = vld [vmem:[%s11 + $0xc8] sm:$0xff]
  %v5361 = vld [vmem:[%s11 + $0xd0] sm:$0xff]
  %v5362 = vld [vmem:[%s11 + $0xd8] sm:$0xff]
  %v5363 = vld [vmem:[%s11 + $0xe0] sm:$0xff]
  %v5364 = vld [vmem:[%s11 + $0xe8] sm:$0xff]
  %v5365 = vld [vmem:[%s11 + $0xf0] sm:$0xff]
  %v5366 = vld [vmem:[%s11 + $0xf8] sm:$0xff]
  %v5367 = vld [vmem:[%s11 + $0x100] sm:$0xff]
  %v5368 = vld [vmem:[%s11 + $0x108] sm:$0xff]
  %v5369 = vld [vmem:[%s11 + $0x110] sm:$0xff]
  %v5370 = vld [vmem:[%s11 + $0x118] sm:$0xff]
  %v5371 = vld [vmem:[%s11 + $0x120] sm:$0xff]
  %v5372 = vld [vmem:[%s11 + $0x128] sm:$0xff]
  %v5373 = vld [vmem:[%s11 + $0x130] sm:$0xff]
  %v5374 = vld [vmem:[%s11 + $0x138] sm:$0xff]
  %v5375 = vld [vmem:[%s11 + $0x140] sm:$0x33]
  %v5376 = vunpack.c.l.bf16 %v5335
  %v5377 = vunpack.c.h.bf16 %v5335
  %v5378 = vunpack.c.l.bf16 %v5336
  %v5379 = vunpack.c.h.bf16 %v5336
  %v5380 = vunpack.c.l.bf16 %v5337
  %v5381 = vunpack.c.h.bf16 %v5337
  %v5382 = vunpack.c.l.bf16 %v5338
  %v5383 = vunpack.c.h.bf16 %v5338
  %v5384 = vunpack.c.l.bf16 %v5339
  %v5385 = vunpack.c.h.bf16 %v5339
  %v5386 = vunpack.c.l.bf16 %v5340
  %v5387 = vunpack.c.h.bf16 %v5340
  %v5388 = vunpack.c.l.bf16 %v5341
  %v5389 = vunpack.c.h.bf16 %v5341
  %v5390 = vunpack.c.l.bf16 %v5342
  %v5391 = vunpack.c.h.bf16 %v5342
  %v5392 = vunpack.c.l.bf16 %v5343
  %v5393 = vunpack.c.h.bf16 %v5343
  %v5394 = vunpack.c.l.bf16 %v5344
  %v5395 = vunpack.c.h.bf16 %v5344
  %v5396 = vunpack.c.l.bf16 %v5345
  %v5397 = vunpack.c.h.bf16 %v5345
  %v5398 = vunpack.c.l.bf16 %v5346
  %v5399 = vunpack.c.h.bf16 %v5346
  %v5400 = vunpack.c.l.bf16 %v5347
  %v5401 = vunpack.c.h.bf16 %v5347
  %v5402 = vunpack.c.l.bf16 %v5348
  %v5403 = vunpack.c.h.bf16 %v5348
  %v5404 = vunpack.c.l.bf16 %v5349
  %v5405 = vunpack.c.h.bf16 %v5349
  %v5406 = vunpack.c.l.bf16 %v5350
  %v5407 = vunpack.c.h.bf16 %v5350
  %v5408 = vunpack.c.l.bf16 %v5351
  %v5409 = vunpack.c.h.bf16 %v5351
  %v5410 = vunpack.c.l.bf16 %v5352
  %v5411 = vunpack.c.h.bf16 %v5352
  %v5412 = vunpack.c.l.bf16 %v5353
  %v5413 = vunpack.c.h.bf16 %v5353
  %v5414 = vunpack.c.l.bf16 %v5354
  %v5415 = vunpack.c.h.bf16 %v5354
  %v5416 = vunpack.c.l.bf16 %v5355
  %v5417 = vunpack.c.h.bf16 %v5355
  %v5418 = vunpack.c.l.bf16 %v5356
  %v5419 = vunpack.c.h.bf16 %v5356
  %v5420 = vunpack.c.l.bf16 %v5357
  %v5421 = vunpack.c.h.bf16 %v5357
  %v5422 = vunpack.c.l.bf16 %v5358
  %v5423 = vunpack.c.h.bf16 %v5358
  %v5424 = vunpack.c.l.bf16 %v5359
  %v5425 = vunpack.c.h.bf16 %v5359
  %v5426 = vunpack.c.l.bf16 %v5360
  %v5427 = vunpack.c.h.bf16 %v5360
  %v5428 = vunpack.c.l.bf16 %v5361
  %v5429 = vunpack.c.h.bf16 %v5361
  %v5430 = vunpack.c.l.bf16 %v5362
  %v5431 = vunpack.c.h.bf16 %v5362
  %v5432 = vunpack.c.l.bf16 %v5363
  %v5433 = vunpack.c.h.bf16 %v5363
  %v5434 = vunpack.c.l.bf16 %v5364
  %v5435 = vunpack.c.h.bf16 %v5364
  %v5436 = vunpack.c.l.bf16 %v5365
  %v5437 = vunpack.c.h.bf16 %v5365
  %v5438 = vunpack.c.l.bf16 %v5366
  %v5439 = vunpack.c.h.bf16 %v5366
  %v5440 = vunpack.c.l.bf16 %v5367
  %v5441 = vunpack.c.h.bf16 %v5367
  %v5442 = vunpack.c.l.bf16 %v5368
  %v5443 = vunpack.c.h.bf16 %v5368
  %v5444 = vunpack.c.l.bf16 %v5369
  %v5445 = vunpack.c.h.bf16 %v5369
  %v5446 = vunpack.c.l.bf16 %v5370
  %v5447 = vunpack.c.h.bf16 %v5370
  %v5448 = vunpack.c.l.bf16 %v5371
  %v5449 = vunpack.c.h.bf16 %v5371
  %v5450 = vunpack.c.l.bf16 %v5372
  %v5451 = vunpack.c.h.bf16 %v5372
  %v5452 = vunpack.c.l.bf16 %v5373
  %v5453 = vunpack.c.h.bf16 %v5373
  %v5454 = vunpack.c.l.bf16 %v5374
  %v5455 = vunpack.c.h.bf16 %v5374
  %v5456 = vunpack.c.l.bf16 %v5375
  %v5457 = vunpack.c.h.bf16 %v5375
  %vm5458 = vcmask 1022976
  %v5460 = vsel %vm5458, %v5377, 0
  %v5463 = vsel %vm5458, %v5379, 0
  %v5466 = vsel %vm5458, %v5381, 0
  %v5469 = vsel %vm5458, %v5383, 0
  %v5472 = vsel %vm5458, %v5385, 0
  %v5475 = vsel %vm5458, %v5387, 0
  %v5478 = vsel %vm5458, %v5389, 0
  %v5481 = vsel %vm5458, %v5391, 0
  %v5484 = vsel %vm5458, %v5393, 0
  %v5487 = vsel %vm5458, %v5395, 0
  %v5490 = vsel %vm5458, %v5397, 0
  %v5493 = vsel %vm5458, %v5399, 0
  %v5496 = vsel %vm5458, %v5401, 0
  %v5499 = vsel %vm5458, %v5403, 0
  %v5502 = vsel %vm5458, %v5405, 0
  %v5505 = vsel %vm5458, %v5407, 0
  %v5508 = vsel %vm5458, %v5409, 0
  %v5511 = vsel %vm5458, %v5411, 0
  %v5514 = vsel %vm5458, %v5413, 0
  %v5517 = vsel %vm5458, %v5415, 0
  %v5520 = vsel %vm5458, %v5417, 0
  %v5523 = vsel %vm5458, %v5419, 0
  %v5526 = vsel %vm5458, %v5421, 0
  %v5529 = vsel %vm5458, %v5423, 0
  %v5532 = vsel %vm5458, %v5425, 0
  %v5535 = vsel %vm5458, %v5427, 0
  %v5538 = vsel %vm5458, %v5429, 0
  %v5541 = vsel %vm5458, %v5431, 0
  %v5544 = vsel %vm5458, %v5433, 0
  %v5547 = vsel %vm5458, %v5435, 0
  %v5550 = vsel %vm5458, %v5437, 0
  %v5553 = vsel %vm5458, %v5439, 0
  %v5556 = vsel %vm5458, %v5441, 0
  %v5559 = vsel %vm5458, %v5443, 0
  %v5562 = vsel %vm5458, %v5445, 0
  %v5565 = vsel %vm5458, %v5447, 0
  %v5568 = vsel %vm5458, %v5449, 0
  %v5571 = vsel %vm5458, %v5451, 0
  %v5574 = vsel %vm5458, %v5453, 0
  %v5577 = vsel %vm5458, %v5455, 0
  %v5580 = vsel %vm5458, %v5457, 0
  %v5583 = vsel %vm2049, %v5334, 0
  %5585 = vmatpush.msra.mxu0 %v5318
  %5586 = vmatpush.msra.mxu0 %v5317
  %5587 = vmatpush.msra.mxu0 %v5316
  %5588 = vmatpush.msra.mxu0 %v5315
  %5589 = vmatpush.msra.mxu0 %v5314
  %5590 = vmatpush.msra.mxu0 %v5313
  %5591 = vmatpush.msra.mxu0 %v5312
  %5592 = vmatpush.msra.mxu0 %v5311
  %5593 = vmatpush.msra.mxu0 %v5310
  %5594 = vmatpush.msra.mxu0 %v5309
  %5595 = vmatpush.msra.mxu0 %v5308
  %5596 = vmatpush.msra.mxu0 %v5307
  %5597 = vmatpush.msra.mxu0 %v5306
  %5598 = vmatpush.msra.mxu0 %v5305
  %5599 = vmatpush.msra.mxu0 %v5304
  %5600 = vmatpush.msra.mxu0 %v5303
  %5601 = vmatmul.f32.gmra.mxu0 %v5376
  %v5602 = vpop.f32.mrf.mxu0
  %v5603 = vadd.f32 0.0, %v5602
  %5604 = vmatmul.f32.gmra.mxu0 %v5378
  %v5605 = vpop.f32.mrf.mxu0
  %v5606 = vadd.f32 0.0, %v5605
  %5607 = vmatmul.f32.gmra.mxu0 %v5380
  %v5608 = vpop.f32.mrf.mxu0
  %v5609 = vadd.f32 0.0, %v5608
  %5610 = vmatmul.f32.gmra.mxu0 %v5382
  %v5611 = vpop.f32.mrf.mxu0
  %v5612 = vadd.f32 0.0, %v5611
  %5613 = vmatmul.f32.gmra.mxu0 %v5384
  %v5614 = vpop.f32.mrf.mxu0
  %v5615 = vadd.f32 0.0, %v5614
  %5616 = vmatmul.f32.gmra.mxu0 %v5386
  %v5617 = vpop.f32.mrf.mxu0
  %v5618 = vadd.f32 0.0, %v5617
  %5619 = vmatmul.f32.gmra.mxu0 %v5388
  %v5620 = vpop.f32.mrf.mxu0
  %v5621 = vadd.f32 0.0, %v5620
  %5622 = vmatmul.f32.gmra.mxu0 %v5390
  %v5623 = vpop.f32.mrf.mxu0
  %v5624 = vadd.f32 0.0, %v5623
  %5625 = vmatmul.f32.gmra.mxu0 %v5392
  %v5626 = vpop.f32.mrf.mxu0
  %v5627 = vadd.f32 0.0, %v5626
  %5628 = vmatmul.f32.gmra.mxu0 %v5394
  %v5629 = vpop.f32.mrf.mxu0
  %v5630 = vadd.f32 0.0, %v5629
  %5631 = vmatmul.f32.gmra.mxu0 %v5396
  %v5632 = vpop.f32.mrf.mxu0
  %v5633 = vadd.f32 0.0, %v5632
  %5634 = vmatmul.f32.gmra.mxu0 %v5398
  %v5635 = vpop.f32.mrf.mxu0
  %v5636 = vadd.f32 0.0, %v5635
  %5637 = vmatmul.f32.gmra.mxu0 %v5400
  %v5638 = vpop.f32.mrf.mxu0
  %v5639 = vadd.f32 0.0, %v5638
  %5640 = vmatmul.f32.gmra.mxu0 %v5402
  %v5641 = vpop.f32.mrf.mxu0
  %v5642 = vadd.f32 0.0, %v5641
  %5643 = vmatmul.f32.gmra.mxu0 %v5404
  %v5644 = vpop.f32.mrf.mxu0
  %v5645 = vadd.f32 0.0, %v5644
  %5646 = vmatmul.f32.gmra.mxu0 %v5406
  %v5647 = vpop.f32.mrf.mxu0
  %v5648 = vadd.f32 0.0, %v5647
  %5649 = vmatmul.f32.gmra.mxu0 %v5408
  %v5650 = vpop.f32.mrf.mxu0
  %v5651 = vadd.f32 0.0, %v5650
  %5652 = vmatmul.f32.gmra.mxu0 %v5410
  %v5653 = vpop.f32.mrf.mxu0
  %v5654 = vadd.f32 0.0, %v5653
  %5655 = vmatmul.f32.gmra.mxu0 %v5412
  %v5656 = vpop.f32.mrf.mxu0
  %v5657 = vadd.f32 0.0, %v5656
  %5658 = vmatmul.f32.gmra.mxu0 %v5414
  %v5659 = vpop.f32.mrf.mxu0
  %v5660 = vadd.f32 0.0, %v5659
  %5661 = vmatmul.f32.gmra.mxu0 %v5416
  %v5662 = vpop.f32.mrf.mxu0
  %v5663 = vadd.f32 0.0, %v5662
  %5664 = vmatmul.f32.gmra.mxu0 %v5418
  %v5665 = vpop.f32.mrf.mxu0
  %v5666 = vadd.f32 0.0, %v5665
  %5667 = vmatmul.f32.gmra.mxu0 %v5420
  %v5668 = vpop.f32.mrf.mxu0
  %v5669 = vadd.f32 0.0, %v5668
  %5670 = vmatmul.f32.gmra.mxu0 %v5422
  %v5671 = vpop.f32.mrf.mxu0
  %v5672 = vadd.f32 0.0, %v5671
  %5673 = vmatmul.f32.gmra.mxu0 %v5424
  %v5674 = vpop.f32.mrf.mxu0
  %v5675 = vadd.f32 0.0, %v5674
  %5676 = vmatmul.f32.gmra.mxu0 %v5426
  %v5677 = vpop.f32.mrf.mxu0
  %v5678 = vadd.f32 0.0, %v5677
  %5679 = vmatmul.f32.gmra.mxu0 %v5428
  %v5680 = vpop.f32.mrf.mxu0
  %v5681 = vadd.f32 0.0, %v5680
  %5682 = vmatmul.f32.gmra.mxu0 %v5430
  %v5683 = vpop.f32.mrf.mxu0
  %v5684 = vadd.f32 0.0, %v5683
  %5685 = vmatmul.f32.gmra.mxu0 %v5432
  %v5686 = vpop.f32.mrf.mxu0
  %v5687 = vadd.f32 0.0, %v5686
  %5688 = vmatmul.f32.gmra.mxu0 %v5434
  %v5689 = vpop.f32.mrf.mxu0
  %v5690 = vadd.f32 0.0, %v5689
  %5691 = vmatmul.f32.gmra.mxu0 %v5436
  %v5692 = vpop.f32.mrf.mxu0
  %v5693 = vadd.f32 0.0, %v5692
  %5694 = vmatmul.f32.gmra.mxu0 %v5438
  %v5695 = vpop.f32.mrf.mxu0
  %v5696 = vadd.f32 0.0, %v5695
  %5697 = vmatmul.f32.gmra.mxu0 %v5440
  %v5698 = vpop.f32.mrf.mxu0
  %v5699 = vadd.f32 0.0, %v5698
  %5700 = vmatmul.f32.gmra.mxu0 %v5442
  %v5701 = vpop.f32.mrf.mxu0
  %v5702 = vadd.f32 0.0, %v5701
  %5703 = vmatmul.f32.gmra.mxu0 %v5444
  %v5704 = vpop.f32.mrf.mxu0
  %v5705 = vadd.f32 0.0, %v5704
  %5706 = vmatmul.f32.gmra.mxu0 %v5446
  %v5707 = vpop.f32.mrf.mxu0
  %v5708 = vadd.f32 0.0, %v5707
  %5709 = vmatmul.f32.gmra.mxu0 %v5448
  %v5710 = vpop.f32.mrf.mxu0
  %v5711 = vadd.f32 0.0, %v5710
  %5712 = vmatmul.f32.gmra.mxu0 %v5450
  %v5713 = vpop.f32.mrf.mxu0
  %v5714 = vadd.f32 0.0, %v5713
  %5715 = vmatmul.f32.gmra.mxu0 %v5452
  %v5716 = vpop.f32.mrf.mxu0
  %v5717 = vadd.f32 0.0, %v5716
  %5718 = vmatmul.f32.gmra.mxu0 %v5454
  %v5719 = vpop.f32.mrf.mxu0
  %v5720 = vadd.f32 0.0, %v5719
  %5721 = vmatmul.f32.gmra.mxu0 %v5456
  %v5722 = vpop.f32.mrf.mxu0
  %v5723 = vadd.f32 0.0, %v5722
  %5724 = vdwg.mxu0
  %5725 = vmatpush.msra.mxu0 %v5583
  %5726 = vmatpush.msra.mxu0 %v5333
  %5727 = vmatpush.msra.mxu0 %v5332
  %5728 = vmatpush.msra.mxu0 %v5331
  %5729 = vmatpush.msra.mxu0 %v5330
  %5730 = vmatpush.msra.mxu0 %v5329
  %5731 = vmatpush.msra.mxu0 %v5328
  %5732 = vmatpush.msra.mxu0 %v5327
  %5733 = vmatpush.msra.mxu0 %v5326
  %5734 = vmatpush.msra.mxu0 %v5325
  %5735 = vmatpush.msra.mxu0 %v5324
  %5736 = vmatpush.msra.mxu0 %v5323
  %5737 = vmatpush.msra.mxu0 %v5322
  %5738 = vmatpush.msra.mxu0 %v5321
  %5739 = vmatpush.msra.mxu0 %v5320
  %5740 = vmatpush.msra.mxu0 %v5319
  %5741 = vmatmul.f32.gmra.mxu0 %v5460
  %v5742 = vpop.f32.mrf.mxu0
  %v5743 = vadd.f32 %v5603, %v5742
  %5744 = vmatmul.f32.gmra.mxu0 %v5463
  %v5745 = vpop.f32.mrf.mxu0
  %v5746 = vadd.f32 %v5606, %v5745
  %5747 = vmatmul.f32.gmra.mxu0 %v5466
  %v5748 = vpop.f32.mrf.mxu0
  %v5749 = vadd.f32 %v5609, %v5748
  %5750 = vmatmul.f32.gmra.mxu0 %v5469
  %v5751 = vpop.f32.mrf.mxu0
  %v5752 = vadd.f32 %v5612, %v5751
  %5753 = vmatmul.f32.gmra.mxu0 %v5472
  %v5754 = vpop.f32.mrf.mxu0
  %v5755 = vadd.f32 %v5615, %v5754
  %5756 = vmatmul.f32.gmra.mxu0 %v5475
  %v5757 = vpop.f32.mrf.mxu0
  %v5758 = vadd.f32 %v5618, %v5757
  %5759 = vmatmul.f32.gmra.mxu0 %v5478
  %v5760 = vpop.f32.mrf.mxu0
  %v5761 = vadd.f32 %v5621, %v5760
  %5762 = vmatmul.f32.gmra.mxu0 %v5481
  %v5763 = vpop.f32.mrf.mxu0
  %v5764 = vadd.f32 %v5624, %v5763
  %5765 = vmatmul.f32.gmra.mxu0 %v5484
  %v5766 = vpop.f32.mrf.mxu0
  %v5767 = vadd.f32 %v5627, %v5766
  %5768 = vmatmul.f32.gmra.mxu0 %v5487
  %v5769 = vpop.f32.mrf.mxu0
  %v5770 = vadd.f32 %v5630, %v5769
  %5771 = vmatmul.f32.gmra.mxu0 %v5490
  %v5772 = vpop.f32.mrf.mxu0
  %v5773 = vadd.f32 %v5633, %v5772
  %5774 = vmatmul.f32.gmra.mxu0 %v5493
  %v5775 = vpop.f32.mrf.mxu0
  %v5776 = vadd.f32 %v5636, %v5775
  %5777 = vmatmul.f32.gmra.mxu0 %v5496
  %v5778 = vpop.f32.mrf.mxu0
  %v5779 = vadd.f32 %v5639, %v5778
  %5780 = vmatmul.f32.gmra.mxu0 %v5499
  %v5781 = vpop.f32.mrf.mxu0
  %v5782 = vadd.f32 %v5642, %v5781
  %5783 = vmatmul.f32.gmra.mxu0 %v5502
  %v5784 = vpop.f32.mrf.mxu0
  %v5785 = vadd.f32 %v5645, %v5784
  %5786 = vmatmul.f32.gmra.mxu0 %v5505
  %v5787 = vpop.f32.mrf.mxu0
  %v5788 = vadd.f32 %v5648, %v5787
  %5789 = vmatmul.f32.gmra.mxu0 %v5508
  %v5790 = vpop.f32.mrf.mxu0
  %v5791 = vadd.f32 %v5651, %v5790
  %5792 = vmatmul.f32.gmra.mxu0 %v5511
  %v5793 = vpop.f32.mrf.mxu0
  %v5794 = vadd.f32 %v5654, %v5793
  %5795 = vmatmul.f32.gmra.mxu0 %v5514
  %v5796 = vpop.f32.mrf.mxu0
  %v5797 = vadd.f32 %v5657, %v5796
  %5798 = vmatmul.f32.gmra.mxu0 %v5517
  %v5799 = vpop.f32.mrf.mxu0
  %v5800 = vadd.f32 %v5660, %v5799
  %5801 = vmatmul.f32.gmra.mxu0 %v5520
  %v5802 = vpop.f32.mrf.mxu0
  %v5803 = vadd.f32 %v5663, %v5802
  %5804 = vmatmul.f32.gmra.mxu0 %v5523
  %v5805 = vpop.f32.mrf.mxu0
  %v5806 = vadd.f32 %v5666, %v5805
  %5807 = vmatmul.f32.gmra.mxu0 %v5526
  %v5808 = vpop.f32.mrf.mxu0
  %v5809 = vadd.f32 %v5669, %v5808
  %5810 = vmatmul.f32.gmra.mxu0 %v5529
  %v5811 = vpop.f32.mrf.mxu0
  %v5812 = vadd.f32 %v5672, %v5811
  %5813 = vmatmul.f32.gmra.mxu0 %v5532
  %v5814 = vpop.f32.mrf.mxu0
  %v5815 = vadd.f32 %v5675, %v5814
  %5816 = vmatmul.f32.gmra.mxu0 %v5535
  %v5817 = vpop.f32.mrf.mxu0
  %v5818 = vadd.f32 %v5678, %v5817
  %5819 = vmatmul.f32.gmra.mxu0 %v5538
  %v5820 = vpop.f32.mrf.mxu0
  %v5821 = vadd.f32 %v5681, %v5820
  %5822 = vmatmul.f32.gmra.mxu0 %v5541
  %v5823 = vpop.f32.mrf.mxu0
  %v5824 = vadd.f32 %v5684, %v5823
  %5825 = vmatmul.f32.gmra.mxu0 %v5544
  %v5826 = vpop.f32.mrf.mxu0
  %v5827 = vadd.f32 %v5687, %v5826
  %5828 = vmatmul.f32.gmra.mxu0 %v5547
  %v5829 = vpop.f32.mrf.mxu0
  %v5830 = vadd.f32 %v5690, %v5829
  %5831 = vmatmul.f32.gmra.mxu0 %v5550
  %v5832 = vpop.f32.mrf.mxu0
  %v5833 = vadd.f32 %v5693, %v5832
  %5834 = vmatmul.f32.gmra.mxu0 %v5553
  %v5835 = vpop.f32.mrf.mxu0
  %v5836 = vadd.f32 %v5696, %v5835
  %5837 = vmatmul.f32.gmra.mxu0 %v5556
  %v5838 = vpop.f32.mrf.mxu0
  %v5839 = vadd.f32 %v5699, %v5838
  %5840 = vmatmul.f32.gmra.mxu0 %v5559
  %v5841 = vpop.f32.mrf.mxu0
  %v5842 = vadd.f32 %v5702, %v5841
  %5843 = vmatmul.f32.gmra.mxu0 %v5562
  %v5844 = vpop.f32.mrf.mxu0
  %v5845 = vadd.f32 %v5705, %v5844
  %5846 = vmatmul.f32.gmra.mxu0 %v5565
  %v5847 = vpop.f32.mrf.mxu0
  %v5848 = vadd.f32 %v5708, %v5847
  %5849 = vmatmul.f32.gmra.mxu0 %v5568
  %v5850 = vpop.f32.mrf.mxu0
  %v5851 = vadd.f32 %v5711, %v5850
  %5852 = vmatmul.f32.gmra.mxu0 %v5571
  %v5853 = vpop.f32.mrf.mxu0
  %v5854 = vadd.f32 %v5714, %v5853
  %5855 = vmatmul.f32.gmra.mxu0 %v5574
  %v5856 = vpop.f32.mrf.mxu0
  %v5857 = vadd.f32 %v5717, %v5856
  %5858 = vmatmul.f32.gmra.mxu0 %v5577
  %v5859 = vpop.f32.mrf.mxu0
  %v5860 = vadd.f32 %v5720, %v5859
  %5861 = vmatmul.f32.gmra.mxu0 %v5580
  %v5862 = vpop.f32.mrf.mxu0
  %v5863 = vadd.f32 %v5723, %v5862
  %5864 = vdwg.mxu0
  %5865 = vst.msk [vmem:[#allocation5] sm:$0xff] %vm223, %v5743
  %5866 = vst.msk [vmem:[#allocation5 + $0x8] sm:$0xff] %vm223, %v5746
  %5867 = vst.msk [vmem:[#allocation5 + $0x10] sm:$0xff] %vm223, %v5749
  %5868 = vst.msk [vmem:[#allocation5 + $0x18] sm:$0xff] %vm223, %v5752
  %5869 = vst.msk [vmem:[#allocation5 + $0x20] sm:$0xff] %vm223, %v5755
  %5870 = vst.msk [vmem:[#allocation5 + $0x28] sm:$0xff] %vm223, %v5758
  %5871 = vst.msk [vmem:[#allocation5 + $0x30] sm:$0xff] %vm223, %v5761
  %5872 = vst.msk [vmem:[#allocation5 + $0x38] sm:$0xff] %vm223, %v5764
  %5873 = vst.msk [vmem:[#allocation5 + $0x40] sm:$0xff] %vm223, %v5767
  %5874 = vst.msk [vmem:[#allocation5 + $0x48] sm:$0xff] %vm223, %v5770
  %5875 = vst.msk [vmem:[#allocation5 + $0x50] sm:$0xff] %vm223, %v5773
  %5876 = vst.msk [vmem:[#allocation5 + $0x58] sm:$0xff] %vm223, %v5776
  %5877 = vst.msk [vmem:[#allocation5 + $0x60] sm:$0xff] %vm223, %v5779
  %5878 = vst.msk [vmem:[#allocation5 + $0x68] sm:$0xff] %vm223, %v5782
  %5879 = vst.msk [vmem:[#allocation5 + $0x70] sm:$0xff] %vm223, %v5785
  %5880 = vst.msk [vmem:[#allocation5 + $0x78] sm:$0xff] %vm223, %v5788
  %5881 = vst.msk [vmem:[#allocation5 + $0x80] sm:$0xff] %vm223, %v5791
  %5882 = vst.msk [vmem:[#allocation5 + $0x88] sm:$0xff] %vm223, %v5794
  %5883 = vst.msk [vmem:[#allocation5 + $0x90] sm:$0xff] %vm223, %v5797
  %5884 = vst.msk [vmem:[#allocation5 + $0x98] sm:$0xff] %vm223, %v5800
  %5885 = vst.msk [vmem:[#allocation5 + $0xa0] sm:$0xff] %vm223, %v5803
  %5886 = vst.msk [vmem:[#allocation5 + $0xa8] sm:$0xff] %vm223, %v5806
  %5887 = vst.msk [vmem:[#allocation5 + $0xb0] sm:$0xff] %vm223, %v5809
  %5888 = vst.msk [vmem:[#allocation5 + $0xb8] sm:$0xff] %vm223, %v5812
  %5889 = vst.msk [vmem:[#allocation5 + $0xc0] sm:$0xff] %vm223, %v5815
  %5890 = vst.msk [vmem:[#allocation5 + $0xc8] sm:$0xff] %vm223, %v5818
  %5891 = vst.msk [vmem:[#allocation5 + $0xd0] sm:$0xff] %vm223, %v5821
  %5892 = vst.msk [vmem:[#allocation5 + $0xd8] sm:$0xff] %vm223, %v5824
  %5893 = vst.msk [vmem:[#allocation5 + $0xe0] sm:$0xff] %vm223, %v5827
  %5894 = vst.msk [vmem:[#allocation5 + $0xe8] sm:$0xff] %vm223, %v5830
  %5895 = vst.msk [vmem:[#allocation5 + $0xf0] sm:$0xff] %vm223, %v5833
  %5896 = vst.msk [vmem:[#allocation5 + $0xf8] sm:$0xff] %vm223, %v5836
  %5897 = vst.msk [vmem:[#allocation5 + $0x100] sm:$0xff] %vm223, %v5839
  %5898 = vst.msk [vmem:[#allocation5 + $0x108] sm:$0xff] %vm223, %v5842
  %5899 = vst.msk [vmem:[#allocation5 + $0x110] sm:$0xff] %vm223, %v5845
  %5900 = vst.msk [vmem:[#allocation5 + $0x118] sm:$0xff] %vm223, %v5848
  %5901 = vst.msk [vmem:[#allocation5 + $0x120] sm:$0xff] %vm223, %v5851
  %5902 = vst.msk [vmem:[#allocation5 + $0x128] sm:$0xff] %vm223, %v5854
  %5903 = vst.msk [vmem:[#allocation5 + $0x130] sm:$0xff] %vm223, %v5857
  %5904 = vst.msk [vmem:[#allocation5 + $0x138] sm:$0xff] %vm223, %v5860
  %5905 = vst.msk [vmem:[#allocation5 + $0x140] sm:$0xf] %vm671, %v5863
  %v5906 = vld [vmem:[#allocation5] sm:$0xff]
  %v5907 = vld [vmem:[#allocation5 + $0x8] sm:$0xff]
  %v5908 = vld [vmem:[#allocation5 + $0x10] sm:$0xff]
  %v5909 = vld [vmem:[#allocation5 + $0x18] sm:$0xff]
  %v5910 = vld [vmem:[#allocation5 + $0x20] sm:$0xff]
  %v5911 = vld [vmem:[#allocation5 + $0x28] sm:$0xff]
  %v5912 = vld [vmem:[#allocation5 + $0x30] sm:$0xff]
  %v5913 = vld [vmem:[#allocation5 + $0x38] sm:$0xff]
  %v5914 = vld [vmem:[#allocation5 + $0x40] sm:$0xff]
  %v5915 = vld [vmem:[#allocation5 + $0x48] sm:$0xff]
  %v5916 = vld [vmem:[#allocation5 + $0x50] sm:$0xff]
  %v5917 = vld [vmem:[#allocation5 + $0x58] sm:$0xff]
  %v5918 = vld [vmem:[#allocation5 + $0x60] sm:$0xff]
  %v5919 = vld [vmem:[#allocation5 + $0x68] sm:$0xff]
  %v5920 = vld [vmem:[#allocation5 + $0x70] sm:$0xff]
  %v5921 = vld [vmem:[#allocation5 + $0x78] sm:$0xff]
  %v5922 = vld [vmem:[#allocation5 + $0x80] sm:$0xff]
  %v5923 = vld [vmem:[#allocation5 + $0x88] sm:$0xff]
  %v5924 = vld [vmem:[#allocation5 + $0x90] sm:$0xff]
  %v5925 = vld [vmem:[#allocation5 + $0x98] sm:$0xff]
  %v5926 = vld [vmem:[#allocation5 + $0xa0] sm:$0xff]
  %v5927 = vld [vmem:[#allocation5 + $0xa8] sm:$0xff]
  %v5928 = vld [vmem:[#allocation5 + $0xb0] sm:$0xff]
  %v5929 = vld [vmem:[#allocation5 + $0xb8] sm:$0xff]
  %v5930 = vld [vmem:[#allocation5 + $0xc0] sm:$0xff]
  %v5931 = vld [vmem:[#allocation5 + $0xc8] sm:$0xff]
  %v5932 = vld [vmem:[#allocation5 + $0xd0] sm:$0xff]
  %v5933 = vld [vmem:[#allocation5 + $0xd8] sm:$0xff]
  %v5934 = vld [vmem:[#allocation5 + $0xe0] sm:$0xff]
  %v5935 = vld [vmem:[#allocation5 + $0xe8] sm:$0xff]
  %v5936 = vld [vmem:[#allocation5 + $0xf0] sm:$0xff]
  %v5937 = vld [vmem:[#allocation5 + $0xf8] sm:$0xff]
  %v5938 = vld [vmem:[#allocation5 + $0x100] sm:$0xff]
  %v5939 = vld [vmem:[#allocation5 + $0x108] sm:$0xff]
  %v5940 = vld [vmem:[#allocation5 + $0x110] sm:$0xff]
  %v5941 = vld [vmem:[#allocation5 + $0x118] sm:$0x3f]
  %v5942 = vld [vmem:[%s2 + $0x7] ss:$0 sm:$0xff]
  %v5943 = vmul.f32 %v5906, %v5942
  %v5944 = vmul.f32 %v5907, %v5942
  %v5945 = vmul.f32 %v5908, %v5942
  %v5946 = vmul.f32 %v5909, %v5942
  %v5947 = vmul.f32 %v5910, %v5942
  %v5948 = vmul.f32 %v5911, %v5942
  %v5949 = vmul.f32 %v5912, %v5942
  %v5950 = vmul.f32 %v5913, %v5942
  %v5951 = vmul.f32 %v5914, %v5942
  %v5952 = vmul.f32 %v5915, %v5942
  %v5953 = vmul.f32 %v5916, %v5942
  %v5954 = vmul.f32 %v5917, %v5942
  %v5955 = vmul.f32 %v5918, %v5942
  %v5956 = vmul.f32 %v5919, %v5942
  %v5957 = vmul.f32 %v5920, %v5942
  %v5958 = vmul.f32 %v5921, %v5942
  %v5959 = vmul.f32 %v5922, %v5942
  %v5960 = vmul.f32 %v5923, %v5942
  %v5961 = vmul.f32 %v5924, %v5942
  %v5962 = vmul.f32 %v5925, %v5942
  %v5963 = vmul.f32 %v5926, %v5942
  %v5964 = vmul.f32 %v5927, %v5942
  %v5965 = vmul.f32 %v5928, %v5942
  %v5966 = vmul.f32 %v5929, %v5942
  %v5967 = vmul.f32 %v5930, %v5942
  %v5968 = vmul.f32 %v5931, %v5942
  %v5969 = vmul.f32 %v5932, %v5942
  %v5970 = vmul.f32 %v5933, %v5942
  %v5971 = vmul.f32 %v5934, %v5942
  %v5972 = vmul.f32 %v5935, %v5942
  %v5973 = vmul.f32 %v5936, %v5942
  %v5974 = vmul.f32 %v5937, %v5942
  %v5975 = vmul.f32 %v5938, %v5942
  %v5976 = vmul.f32 %v5939, %v5942
  %v5977 = vmul.f32 %v5940, %v5942
  %v5978 = vmul.f32 %v5941, %v5942
  %5979 = vst.msk [vmem:[#allocation7] sm:$0xff] %vm223, %v5943
  %5980 = vst.msk [vmem:[#allocation7 + $0x8] sm:$0xff] %vm223, %v5944
  %5981 = vst.msk [vmem:[#allocation7 + $0x10] sm:$0xff] %vm223, %v5945
  %5982 = vst.msk [vmem:[#allocation7 + $0x18] sm:$0xff] %vm223, %v5946
  %5983 = vst.msk [vmem:[#allocation7 + $0x20] sm:$0xff] %vm223, %v5947
  %5984 = vst.msk [vmem:[#allocation7 + $0x28] sm:$0xff] %vm223, %v5948
  %5985 = vst.msk [vmem:[#allocation7 + $0x30] sm:$0xff] %vm223, %v5949
  %5986 = vst.msk [vmem:[#allocation7 + $0x38] sm:$0xff] %vm223, %v5950
  %5987 = vst.msk [vmem:[#allocation7 + $0x40] sm:$0xff] %vm223, %v5951
  %5988 = vst.msk [vmem:[#allocation7 + $0x48] sm:$0xff] %vm223, %v5952
  %5989 = vst.msk [vmem:[#allocation7 + $0x50] sm:$0xff] %vm223, %v5953
  %5990 = vst.msk [vmem:[#allocation7 + $0x58] sm:$0xff] %vm223, %v5954
  %5991 = vst.msk [vmem:[#allocation7 + $0x60] sm:$0xff] %vm223, %v5955
  %5992 = vst.msk [vmem:[#allocation7 + $0x68] sm:$0xff] %vm223, %v5956
  %5993 = vst.msk [vmem:[#allocation7 + $0x70] sm:$0xff] %vm223, %v5957
  %5994 = vst.msk [vmem:[#allocation7 + $0x78] sm:$0xff] %vm223, %v5958
  %5995 = vst.msk [vmem:[#allocation7 + $0x80] sm:$0xff] %vm223, %v5959
  %5996 = vst.msk [vmem:[#allocation7 + $0x88] sm:$0xff] %vm223, %v5960
  %5997 = vst.msk [vmem:[#allocation7 + $0x90] sm:$0xff] %vm223, %v5961
  %5998 = vst.msk [vmem:[#allocation7 + $0x98] sm:$0xff] %vm223, %v5962
  %5999 = vst.msk [vmem:[#allocation7 + $0xa0] sm:$0xff] %vm223, %v5963
  %6000 = vst.msk [vmem:[#allocation7 + $0xa8] sm:$0xff] %vm223, %v5964
  %6001 = vst.msk [vmem:[#allocation7 + $0xb0] sm:$0xff] %vm223, %v5965
  %6002 = vst.msk [vmem:[#allocation7 + $0xb8] sm:$0xff] %vm223, %v5966
  %6003 = vst.msk [vmem:[#allocation7 + $0xc0] sm:$0xff] %vm223, %v5967
  %6004 = vst.msk [vmem:[#allocation7 + $0xc8] sm:$0xff] %vm223, %v5968
  %6005 = vst.msk [vmem:[#allocation7 + $0xd0] sm:$0xff] %vm223, %v5969
  %6006 = vst.msk [vmem:[#allocation7 + $0xd8] sm:$0xff] %vm223, %v5970
  %6007 = vst.msk [vmem:[#allocation7 + $0xe0] sm:$0xff] %vm223, %v5971
  %6008 = vst.msk [vmem:[#allocation7 + $0xe8] sm:$0xff] %vm223, %v5972
  %6009 = vst.msk [vmem:[#allocation7 + $0xf0] sm:$0xff] %vm223, %v5973
  %6010 = vst.msk [vmem:[#allocation7 + $0xf8] sm:$0xff] %vm223, %v5974
  %6011 = vst.msk [vmem:[#allocation7 + $0x100] sm:$0xff] %vm223, %v5975
  %6012 = vst.msk [vmem:[#allocation7 + $0x108] sm:$0xff] %vm223, %v5976
  %6013 = vst.msk [vmem:[#allocation7 + $0x110] sm:$0xff] %vm223, %v5977
  %vm6014 = vcmask 259072
  %6015 = vst.msk [vmem:[#allocation7 + $0x118] sm:$0x3f] %vm6014, %v5978
  %v6016 = vld [vmem:[#allocation5 + $0x1] sm:$0xff]
  %v6017 = vld [vmem:[#allocation5 + $0x9] sm:$0xff]
  %v6018 = vld [vmem:[#allocation5 + $0x11] sm:$0xff]
  %v6019 = vld [vmem:[#allocation5 + $0x19] sm:$0xff]
  %v6020 = vld [vmem:[#allocation5 + $0x21] sm:$0xff]
  %v6021 = vld [vmem:[#allocation5 + $0x29] sm:$0xff]
  %v6022 = vld [vmem:[#allocation5 + $0x31] sm:$0xff]
  %v6023 = vld [vmem:[#allocation5 + $0x39] sm:$0xff]
  %v6024 = vld [vmem:[#allocation5 + $0x41] sm:$0xff]
  %v6025 = vld [vmem:[#allocation5 + $0x49] sm:$0xff]
  %v6026 = vld [vmem:[#allocation5 + $0x51] sm:$0xff]
  %v6027 = vld [vmem:[#allocation5 + $0x59] sm:$0xff]
  %v6028 = vld [vmem:[#allocation5 + $0x61] sm:$0xff]
  %v6029 = vld [vmem:[#allocation5 + $0x69] sm:$0xff]
  %v6030 = vld [vmem:[#allocation5 + $0x71] sm:$0xff]
  %v6031 = vld [vmem:[#allocation5 + $0x79] sm:$0xff]
  %v6032 = vld [vmem:[#allocation5 + $0x81] sm:$0xff]
  %v6033 = vld [vmem:[#allocation5 + $0x89] sm:$0xff]
  %v6034 = vld [vmem:[#allocation5 + $0x91] sm:$0xff]
  %v6035 = vld [vmem:[#allocation5 + $0x99] sm:$0xff]
  %v6036 = vld [vmem:[#allocation5 + $0xa1] sm:$0xff]
  %v6037 = vld [vmem:[#allocation5 + $0xa9] sm:$0xff]
  %v6038 = vld [vmem:[#allocation5 + $0xb1] sm:$0xff]
  %v6039 = vld [vmem:[#allocation5 + $0xb9] sm:$0xff]
  %v6040 = vld [vmem:[#allocation5 + $0xc1] sm:$0xff]
  %v6041 = vld [vmem:[#allocation5 + $0xc9] sm:$0xff]
  %v6042 = vld [vmem:[#allocation5 + $0xd1] sm:$0xff]
  %v6043 = vld [vmem:[#allocation5 + $0xd9] sm:$0xff]
  %v6044 = vld [vmem:[#allocation5 + $0xe1] sm:$0xff]
  %v6045 = vld [vmem:[#allocation5 + $0xe9] sm:$0xff]
  %v6046 = vld [vmem:[#allocation5 + $0xf1] sm:$0xff]
  %v6047 = vld [vmem:[#allocation5 + $0xf9] sm:$0xff]
  %v6048 = vld [vmem:[#allocation5 + $0x101] sm:$0xff]
  %v6049 = vld [vmem:[#allocation5 + $0x109] sm:$0xff]
  %v6050 = vld [vmem:[#allocation5 + $0x111] sm:$0xff]
  %v6051 = vld [vmem:[#allocation5 + $0x119] sm:$0x3f]
  %v6052 = vld [vmem:[%s2 + $0x10] ss:$0 sm:$0xff]
  %v6053 = vmul.f32 %v6016, %v6052
  %v6054 = vmul.f32 %v6017, %v6052
  %v6055 = vmul.f32 %v6018, %v6052
  %v6056 = vmul.f32 %v6019, %v6052
  %v6057 = vmul.f32 %v6020, %v6052
  %v6058 = vmul.f32 %v6021, %v6052
  %v6059 = vmul.f32 %v6022, %v6052
  %v6060 = vmul.f32 %v6023, %v6052
  %v6061 = vmul.f32 %v6024, %v6052
  %v6062 = vmul.f32 %v6025, %v6052
  %v6063 = vmul.f32 %v6026, %v6052
  %v6064 = vmul.f32 %v6027, %v6052
  %v6065 = vmul.f32 %v6028, %v6052
  %v6066 = vmul.f32 %v6029, %v6052
  %v6067 = vmul.f32 %v6030, %v6052
  %v6068 = vmul.f32 %v6031, %v6052
  %v6069 = vmul.f32 %v6032, %v6052
  %v6070 = vmul.f32 %v6033, %v6052
  %v6071 = vmul.f32 %v6034, %v6052
  %v6072 = vmul.f32 %v6035, %v6052
  %v6073 = vmul.f32 %v6036, %v6052
  %v6074 = vmul.f32 %v6037, %v6052
  %v6075 = vmul.f32 %v6038, %v6052
  %v6076 = vmul.f32 %v6039, %v6052
  %v6077 = vmul.f32 %v6040, %v6052
  %v6078 = vmul.f32 %v6041, %v6052
  %v6079 = vmul.f32 %v6042, %v6052
  %v6080 = vmul.f32 %v6043, %v6052
  %v6081 = vmul.f32 %v6044, %v6052
  %v6082 = vmul.f32 %v6045, %v6052
  %v6083 = vmul.f32 %v6046, %v6052
  %v6084 = vmul.f32 %v6047, %v6052
  %v6085 = vmul.f32 %v6048, %v6052
  %v6086 = vmul.f32 %v6049, %v6052
  %v6087 = vmul.f32 %v6050, %v6052
  %v6088 = vmul.f32 %v6051, %v6052
  %v6089 = vld [vmem:[#allocation7] sm:$0xff]
  %v6090 = vld [vmem:[#allocation7 + $0x8] sm:$0xff]
  %v6091 = vld [vmem:[#allocation7 + $0x10] sm:$0xff]
  %v6092 = vld [vmem:[#allocation7 + $0x18] sm:$0xff]
  %v6093 = vld [vmem:[#allocation7 + $0x20] sm:$0xff]
  %v6094 = vld [vmem:[#allocation7 + $0x28] sm:$0xff]
  %v6095 = vld [vmem:[#allocation7 + $0x30] sm:$0xff]
  %v6096 = vld [vmem:[#allocation7 + $0x38] sm:$0xff]
  %v6097 = vld [vmem:[#allocation7 + $0x40] sm:$0xff]
  %v6098 = vld [vmem:[#allocation7 + $0x48] sm:$0xff]
  %v6099 = vld [vmem:[#allocation7 + $0x50] sm:$0xff]
  %v6100 = vld [vmem:[#allocation7 + $0x58] sm:$0xff]
  %v6101 = vld [vmem:[#allocation7 + $0x60] sm:$0xff]
  %v6102 = vld [vmem:[#allocation7 + $0x68] sm:$0xff]
  %v6103 = vld [vmem:[#allocation7 + $0x70] sm:$0xff]
  %v6104 = vld [vmem:[#allocation7 + $0x78] sm:$0xff]
  %v6105 = vld [vmem:[#allocation7 + $0x80] sm:$0xff]
  %v6106 = vld [vmem:[#allocation7 + $0x88] sm:$0xff]
  %v6107 = vld [vmem:[#allocation7 + $0x90] sm:$0xff]
  %v6108 = vld [vmem:[#allocation7 + $0x98] sm:$0xff]
  %v6109 = vld [vmem:[#allocation7 + $0xa0] sm:$0xff]
  %v6110 = vld [vmem:[#allocation7 + $0xa8] sm:$0xff]
  %v6111 = vld [vmem:[#allocation7 + $0xb0] sm:$0xff]
  %v6112 = vld [vmem:[#allocation7 + $0xb8] sm:$0xff]
  %v6113 = vld [vmem:[#allocation7 + $0xc0] sm:$0xff]
  %v6114 = vld [vmem:[#allocation7 + $0xc8] sm:$0xff]
  %v6115 = vld [vmem:[#allocation7 + $0xd0] sm:$0xff]
  %v6116 = vld [vmem:[#allocation7 + $0xd8] sm:$0xff]
  %v6117 = vld [vmem:[#allocation7 + $0xe0] sm:$0xff]
  %v6118 = vld [vmem:[#allocation7 + $0xe8] sm:$0xff]
  %v6119 = vld [vmem:[#allocation7 + $0xf0] sm:$0xff]
  %v6120 = vld [vmem:[#allocation7 + $0xf8] sm:$0xff]
  %v6121 = vld [vmem:[#allocation7 + $0x100] sm:$0xff]
  %v6122 = vld [vmem:[#allocation7 + $0x108] sm:$0xff]
  %v6123 = vld [vmem:[#allocation7 + $0x110] sm:$0xff]
  %v6124 = vld [vmem:[#allocation7 + $0x118] sm:$0x3f]
  %v6125 = vadd.f32 %v6089, %v6053
  %v6126 = vadd.f32 %v6090, %v6054
  %v6127 = vadd.f32 %v6091, %v6055
  %v6128 = vadd.f32 %v6092, %v6056
  %v6129 = vadd.f32 %v6093, %v6057
  %v6130 = vadd.f32 %v6094, %v6058
  %v6131 = vadd.f32 %v6095, %v6059
  %v6132 = vadd.f32 %v6096, %v6060
  %v6133 = vadd.f32 %v6097, %v6061
  %v6134 = vadd.f32 %v6098, %v6062
  %v6135 = vadd.f32 %v6099, %v6063
  %v6136 = vadd.f32 %v6100, %v6064
  %v6137 = vadd.f32 %v6101, %v6065
  %v6138 = vadd.f32 %v6102, %v6066
  %v6139 = vadd.f32 %v6103, %v6067
  %v6140 = vadd.f32 %v6104, %v6068
  %v6141 = vadd.f32 %v6105, %v6069
  %v6142 = vadd.f32 %v6106, %v6070
  %v6143 = vadd.f32 %v6107, %v6071
  %v6144 = vadd.f32 %v6108, %v6072
  %v6145 = vadd.f32 %v6109, %v6073
  %v6146 = vadd.f32 %v6110, %v6074
  %v6147 = vadd.f32 %v6111, %v6075
  %v6148 = vadd.f32 %v6112, %v6076
  %v6149 = vadd.f32 %v6113, %v6077
  %v6150 = vadd.f32 %v6114, %v6078
  %v6151 = vadd.f32 %v6115, %v6079
  %v6152 = vadd.f32 %v6116, %v6080
  %v6153 = vadd.f32 %v6117, %v6081
  %v6154 = vadd.f32 %v6118, %v6082
  %v6155 = vadd.f32 %v6119, %v6083
  %v6156 = vadd.f32 %v6120, %v6084
  %v6157 = vadd.f32 %v6121, %v6085
  %v6158 = vadd.f32 %v6122, %v6086
  %v6159 = vadd.f32 %v6123, %v6087
  %v6160 = vadd.f32 %v6124, %v6088
  %6161 = vst.msk [vmem:[#allocation7] sm:$0xff] %vm223, %v6125
  %6162 = vst.msk [vmem:[#allocation7 + $0x8] sm:$0xff] %vm223, %v6126
  %6163 = vst.msk [vmem:[#allocation7 + $0x10] sm:$0xff] %vm223, %v6127
  %6164 = vst.msk [vmem:[#allocation7 + $0x18] sm:$0xff] %vm223, %v6128
  %6165 = vst.msk [vmem:[#allocation7 + $0x20] sm:$0xff] %vm223, %v6129
  %6166 = vst.msk [vmem:[#allocation7 + $0x28] sm:$0xff] %vm223, %v6130
  %6167 = vst.msk [vmem:[#allocation7 + $0x30] sm:$0xff] %vm223, %v6131
  %6168 = vst.msk [vmem:[#allocation7 + $0x38] sm:$0xff] %vm223, %v6132
  %6169 = vst.msk [vmem:[#allocation7 + $0x40] sm:$0xff] %vm223, %v6133
  %6170 = vst.msk [vmem:[#allocation7 + $0x48] sm:$0xff] %vm223, %v6134
  %6171 = vst.msk [vmem:[#allocation7 + $0x50] sm:$0xff] %vm223, %v6135
  %6172 = vst.msk [vmem:[#allocation7 + $0x58] sm:$0xff] %vm223, %v6136
  %6173 = vst.msk [vmem:[#allocation7 + $0x60] sm:$0xff] %vm223, %v6137
  %6174 = vst.msk [vmem:[#allocation7 + $0x68] sm:$0xff] %vm223, %v6138
  %6175 = vst.msk [vmem:[#allocation7 + $0x70] sm:$0xff] %vm223, %v6139
  %6176 = vst.msk [vmem:[#allocation7 + $0x78] sm:$0xff] %vm223, %v6140
  %6177 = vst.msk [vmem:[#allocation7 + $0x80] sm:$0xff] %vm223, %v6141
  %6178 = vst.msk [vmem:[#allocation7 + $0x88] sm:$0xff] %vm223, %v6142
  %6179 = vst.msk [vmem:[#allocation7 + $0x90] sm:$0xff] %vm223, %v6143
  %6180 = vst.msk [vmem:[#allocation7 + $0x98] sm:$0xff] %vm223, %v6144
  %6181 = vst.msk [vmem:[#allocation7 + $0xa0] sm:$0xff] %vm223, %v6145
  %6182 = vst.msk [vmem:[#allocation7 + $0xa8] sm:$0xff] %vm223, %v6146
  %6183 = vst.msk [vmem:[#allocation7 + $0xb0] sm:$0xff] %vm223, %v6147
  %6184 = vst.msk [vmem:[#allocation7 + $0xb8] sm:$0xff] %vm223, %v6148
  %6185 = vst.msk [vmem:[#allocation7 + $0xc0] sm:$0xff] %vm223, %v6149
  %6186 = vst.msk [vmem:[#allocation7 + $0xc8] sm:$0xff] %vm223, %v6150
  %6187 = vst.msk [vmem:[#allocation7 + $0xd0] sm:$0xff] %vm223, %v6151
  %6188 = vst.msk [vmem:[#allocation7 + $0xd8] sm:$0xff] %vm223, %v6152
  %6189 = vst.msk [vmem:[#allocation7 + $0xe0] sm:$0xff] %vm223, %v6153
  %6190 = vst.msk [vmem:[#allocation7 + $0xe8] sm:$0xff] %vm223, %v6154
  %6191 = vst.msk [vmem:[#allocation7 + $0xf0] sm:$0xff] %vm223, %v6155
  %6192 = vst.msk [vmem:[#allocation7 + $0xf8] sm:$0xff] %vm223, %v6156
  %6193 = vst.msk [vmem:[#allocation7 + $0x100] sm:$0xff] %vm223, %v6157
  %6194 = vst.msk [vmem:[#allocation7 + $0x108] sm:$0xff] %vm223, %v6158
  %6195 = vst.msk [vmem:[#allocation7 + $0x110] sm:$0xff] %vm223, %v6159
  %6196 = vst.msk [vmem:[#allocation7 + $0x118] sm:$0x3f] %vm6014, %v6160
  %v6197 = vld [vmem:[#allocation5 + $0x2] sm:$0xff]
  %v6198 = vld [vmem:[#allocation5 + $0xa] sm:$0xff]
  %v6199 = vld [vmem:[#allocation5 + $0x12] sm:$0xff]
  %v6200 = vld [vmem:[#allocation5 + $0x1a] sm:$0xff]
  %v6201 = vld [vmem:[#allocation5 + $0x22] sm:$0xff]
  %v6202 = vld [vmem:[#allocation5 + $0x2a] sm:$0xff]
  %v6203 = vld [vmem:[#allocation5 + $0x32] sm:$0xff]
  %v6204 = vld [vmem:[#allocation5 + $0x3a] sm:$0xff]
  %v6205 = vld [vmem:[#allocation5 + $0x42] sm:$0xff]
  %v6206 = vld [vmem:[#allocation5 + $0x4a] sm:$0xff]
  %v6207 = vld [vmem:[#allocation5 + $0x52] sm:$0xff]
  %v6208 = vld [vmem:[#allocation5 + $0x5a] sm:$0xff]
  %v6209 = vld [vmem:[#allocation5 + $0x62] sm:$0xff]
  %v6210 = vld [vmem:[#allocation5 + $0x6a] sm:$0xff]
  %v6211 = vld [vmem:[#allocation5 + $0x72] sm:$0xff]
  %v6212 = vld [vmem:[#allocation5 + $0x7a] sm:$0xff]
  %v6213 = vld [vmem:[#allocation5 + $0x82] sm:$0xff]
  %v6214 = vld [vmem:[#allocation5 + $0x8a] sm:$0xff]
  %v6215 = vld [vmem:[#allocation5 + $0x92] sm:$0xff]
  %v6216 = vld [vmem:[#allocation5 + $0x9a] sm:$0xff]
  %v6217 = vld [vmem:[#allocation5 + $0xa2] sm:$0xff]
  %v6218 = vld [vmem:[#allocation5 + $0xaa] sm:$0xff]
  %v6219 = vld [vmem:[#allocation5 + $0xb2] sm:$0xff]
  %v6220 = vld [vmem:[#allocation5 + $0xba] sm:$0xff]
  %v6221 = vld [vmem:[#allocation5 + $0xc2] sm:$0xff]
  %v6222 = vld [vmem:[#allocation5 + $0xca] sm:$0xff]
  %v6223 = vld [vmem:[#allocation5 + $0xd2] sm:$0xff]
  %v6224 = vld [vmem:[#allocation5 + $0xda] sm:$0xff]
  %v6225 = vld [vmem:[#allocation5 + $0xe2] sm:$0xff]
  %v6226 = vld [vmem:[#allocation5 + $0xea] sm:$0xff]
  %v6227 = vld [vmem:[#allocation5 + $0xf2] sm:$0xff]
  %v6228 = vld [vmem:[#allocation5 + $0xfa] sm:$0xff]
  %v6229 = vld [vmem:[#allocation5 + $0x102] sm:$0xff]
  %v6230 = vld [vmem:[#allocation5 + $0x10a] sm:$0xff]
  %v6231 = vld [vmem:[#allocation5 + $0x112] sm:$0xff]
  %v6232 = vld [vmem:[#allocation5 + $0x11a] sm:$0x3f]
  %v6233 = vld [vmem:[%s2 + $0x11] ss:$0 sm:$0xff]
  %v6234 = vmul.f32 %v6197, %v6233
  %v6235 = vmul.f32 %v6198, %v6233
  %v6236 = vmul.f32 %v6199, %v6233
  %v6237 = vmul.f32 %v6200, %v6233
  %v6238 = vmul.f32 %v6201, %v6233
  %v6239 = vmul.f32 %v6202, %v6233
  %v6240 = vmul.f32 %v6203, %v6233
  %v6241 = vmul.f32 %v6204, %v6233
  %v6242 = vmul.f32 %v6205, %v6233
  %v6243 = vmul.f32 %v6206, %v6233
  %v6244 = vmul.f32 %v6207, %v6233
  %v6245 = vmul.f32 %v6208, %v6233
  %v6246 = vmul.f32 %v6209, %v6233
  %v6247 = vmul.f32 %v6210, %v6233
  %v6248 = vmul.f32 %v6211, %v6233
  %v6249 = vmul.f32 %v6212, %v6233
  %v6250 = vmul.f32 %v6213, %v6233
  %v6251 = vmul.f32 %v6214, %v6233
  %v6252 = vmul.f32 %v6215, %v6233
  %v6253 = vmul.f32 %v6216, %v6233
  %v6254 = vmul.f32 %v6217, %v6233
  %v6255 = vmul.f32 %v6218, %v6233
  %v6256 = vmul.f32 %v6219, %v6233
  %v6257 = vmul.f32 %v6220, %v6233
  %v6258 = vmul.f32 %v6221, %v6233
  %v6259 = vmul.f32 %v6222, %v6233
  %v6260 = vmul.f32 %v6223, %v6233
  %v6261 = vmul.f32 %v6224, %v6233
  %v6262 = vmul.f32 %v6225, %v6233
  %v6263 = vmul.f32 %v6226, %v6233
  %v6264 = vmul.f32 %v6227, %v6233
  %v6265 = vmul.f32 %v6228, %v6233
  %v6266 = vmul.f32 %v6229, %v6233
  %v6267 = vmul.f32 %v6230, %v6233
  %v6268 = vmul.f32 %v6231, %v6233
  %v6269 = vmul.f32 %v6232, %v6233
  %v6270 = vld [vmem:[#allocation7] sm:$0xff]
  %v6271 = vld [vmem:[#allocation7 + $0x8] sm:$0xff]
  %v6272 = vld [vmem:[#allocation7 + $0x10] sm:$0xff]
  %v6273 = vld [vmem:[#allocation7 + $0x18] sm:$0xff]
  %v6274 = vld [vmem:[#allocation7 + $0x20] sm:$0xff]
  %v6275 = vld [vmem:[#allocation7 + $0x28] sm:$0xff]
  %v6276 = vld [vmem:[#allocation7 + $0x30] sm:$0xff]
  %v6277 = vld [vmem:[#allocation7 + $0x38] sm:$0xff]
  %v6278 = vld [vmem:[#allocation7 + $0x40] sm:$0xff]
  %v6279 = vld [vmem:[#allocation7 + $0x48] sm:$0xff]
  %v6280 = vld [vmem:[#allocation7 + $0x50] sm:$0xff]
  %v6281 = vld [vmem:[#allocation7 + $0x58] sm:$0xff]
  %v6282 = vld [vmem:[#allocation7 + $0x60] sm:$0xff]
  %v6283 = vld [vmem:[#allocation7 + $0x68] sm:$0xff]
  %v6284 = vld [vmem:[#allocation7 + $0x70] sm:$0xff]
  %v6285 = vld [vmem:[#allocation7 + $0x78] sm:$0xff]
  %v6286 = vld [vmem:[#allocation7 + $0x80] sm:$0xff]
  %v6287 = vld [vmem:[#allocation7 + $0x88] sm:$0xff]
  %v6288 = vld [vmem:[#allocation7 + $0x90] sm:$0xff]
  %v6289 = vld [vmem:[#allocation7 + $0x98] sm:$0xff]
  %v6290 = vld [vmem:[#allocation7 + $0xa0] sm:$0xff]
  %v6291 = vld [vmem:[#allocation7 + $0xa8] sm:$0xff]
  %v6292 = vld [vmem:[#allocation7 + $0xb0] sm:$0xff]
  %v6293 = vld [vmem:[#allocation7 + $0xb8] sm:$0xff]
  %v6294 = vld [vmem:[#allocation7 + $0xc0] sm:$0xff]
  %v6295 = vld [vmem:[#allocation7 + $0xc8] sm:$0xff]
  %v6296 = vld [vmem:[#allocation7 + $0xd0] sm:$0xff]
  %v6297 = vld [vmem:[#allocation7 + $0xd8] sm:$0xff]
  %v6298 = vld [vmem:[#allocation7 + $0xe0] sm:$0xff]
  %v6299 = vld [vmem:[#allocation7 + $0xe8] sm:$0xff]
  %v6300 = vld [vmem:[#allocation7 + $0xf0] sm:$0xff]
  %v6301 = vld [vmem:[#allocation7 + $0xf8] sm:$0xff]
  %v6302 = vld [vmem:[#allocation7 + $0x100] sm:$0xff]
  %v6303 = vld [vmem:[#allocation7 + $0x108] sm:$0xff]
  %v6304 = vld [vmem:[#allocation7 + $0x110] sm:$0xff]
  %v6305 = vld [vmem:[#allocation7 + $0x118] sm:$0x3f]
  %v6306 = vadd.f32 %v6270, %v6234
  %v6307 = vadd.f32 %v6271, %v6235
  %v6308 = vadd.f32 %v6272, %v6236
  %v6309 = vadd.f32 %v6273, %v6237
  %v6310 = vadd.f32 %v6274, %v6238
  %v6311 = vadd.f32 %v6275, %v6239
  %v6312 = vadd.f32 %v6276, %v6240
  %v6313 = vadd.f32 %v6277, %v6241
  %v6314 = vadd.f32 %v6278, %v6242
  %v6315 = vadd.f32 %v6279, %v6243
  %v6316 = vadd.f32 %v6280, %v6244
  %v6317 = vadd.f32 %v6281, %v6245
  %v6318 = vadd.f32 %v6282, %v6246
  %v6319 = vadd.f32 %v6283, %v6247
  %v6320 = vadd.f32 %v6284, %v6248
  %v6321 = vadd.f32 %v6285, %v6249
  %v6322 = vadd.f32 %v6286, %v6250
  %v6323 = vadd.f32 %v6287, %v6251
  %v6324 = vadd.f32 %v6288, %v6252
  %v6325 = vadd.f32 %v6289, %v6253
  %v6326 = vadd.f32 %v6290, %v6254
  %v6327 = vadd.f32 %v6291, %v6255
  %v6328 = vadd.f32 %v6292, %v6256
  %v6329 = vadd.f32 %v6293, %v6257
  %v6330 = vadd.f32 %v6294, %v6258
  %v6331 = vadd.f32 %v6295, %v6259
  %v6332 = vadd.f32 %v6296, %v6260
  %v6333 = vadd.f32 %v6297, %v6261
  %v6334 = vadd.f32 %v6298, %v6262
  %v6335 = vadd.f32 %v6299, %v6263
  %v6336 = vadd.f32 %v6300, %v6264
  %v6337 = vadd.f32 %v6301, %v6265
  %v6338 = vadd.f32 %v6302, %v6266
  %v6339 = vadd.f32 %v6303, %v6267
  %v6340 = vadd.f32 %v6304, %v6268
  %v6341 = vadd.f32 %v6305, %v6269
  %6342 = vst.msk [vmem:[#allocation7] sm:$0xff] %vm223, %v6306
  %6343 = vst.msk [vmem:[#allocation7 + $0x8] sm:$0xff] %vm223, %v6307
  %6344 = vst.msk [vmem:[#allocation7 + $0x10] sm:$0xff] %vm223, %v6308
  %6345 = vst.msk [vmem:[#allocation7 + $0x18] sm:$0xff] %vm223, %v6309
  %6346 = vst.msk [vmem:[#allocation7 + $0x20] sm:$0xff] %vm223, %v6310
  %6347 = vst.msk [vmem:[#allocation7 + $0x28] sm:$0xff] %vm223, %v6311
  %6348 = vst.msk [vmem:[#allocation7 + $0x30] sm:$0xff] %vm223, %v6312
  %6349 = vst.msk [vmem:[#allocation7 + $0x38] sm:$0xff] %vm223, %v6313
  %6350 = vst.msk [vmem:[#allocation7 + $0x40] sm:$0xff] %vm223, %v6314
  %6351 = vst.msk [vmem:[#allocation7 + $0x48] sm:$0xff] %vm223, %v6315
  %6352 = vst.msk [vmem:[#allocation7 + $0x50] sm:$0xff] %vm223, %v6316
  %6353 = vst.msk [vmem:[#allocation7 + $0x58] sm:$0xff] %vm223, %v6317
  %6354 = vst.msk [vmem:[#allocation7 + $0x60] sm:$0xff] %vm223, %v6318
  %6355 = vst.msk [vmem:[#allocation7 + $0x68] sm:$0xff] %vm223, %v6319
  %6356 = vst.msk [vmem:[#allocation7 + $0x70] sm:$0xff] %vm223, %v6320
  %6357 = vst.msk [vmem:[#allocation7 + $0x78] sm:$0xff] %vm223, %v6321
  %6358 = vst.msk [vmem:[#allocation7 + $0x80] sm:$0xff] %vm223, %v6322
  %6359 = vst.msk [vmem:[#allocation7 + $0x88] sm:$0xff] %vm223, %v6323
  %6360 = vst.msk [vmem:[#allocation7 + $0x90] sm:$0xff] %vm223, %v6324
  %6361 = vst.msk [vmem:[#allocation7 + $0x98] sm:$0xff] %vm223, %v6325
  %6362 = vst.msk [vmem:[#allocation7 + $0xa0] sm:$0xff] %vm223, %v6326
  %6363 = vst.msk [vmem:[#allocation7 + $0xa8] sm:$0xff] %vm223, %v6327
  %6364 = vst.msk [vmem:[#allocation7 + $0xb0] sm:$0xff] %vm223, %v6328
  %6365 = vst.msk [vmem:[#allocation7 + $0xb8] sm:$0xff] %vm223, %v6329
  %6366 = vst.msk [vmem:[#allocation7 + $0xc0] sm:$0xff] %vm223, %v6330
  %6367 = vst.msk [vmem:[#allocation7 + $0xc8] sm:$0xff] %vm223, %v6331
  %6368 = vst.msk [vmem:[#allocation7 + $0xd0] sm:$0xff] %vm223, %v6332
  %6369 = vst.msk [vmem:[#allocation7 + $0xd8] sm:$0xff] %vm223, %v6333
  %6370 = vst.msk [vmem:[#allocation7 + $0xe0] sm:$0xff] %vm223, %v6334
  %6371 = vst.msk [vmem:[#allocation7 + $0xe8] sm:$0xff] %vm223, %v6335
  %6372 = vst.msk [vmem:[#allocation7 + $0xf0] sm:$0xff] %vm223, %v6336
  %6373 = vst.msk [vmem:[#allocation7 + $0xf8] sm:$0xff] %vm223, %v6337
  %6374 = vst.msk [vmem:[#allocation7 + $0x100] sm:$0xff] %vm223, %v6338
  %6375 = vst.msk [vmem:[#allocation7 + $0x108] sm:$0xff] %vm223, %v6339
  %6376 = vst.msk [vmem:[#allocation7 + $0x110] sm:$0xff] %vm223, %v6340
  %6377 = vst.msk [vmem:[#allocation7 + $0x118] sm:$0x3f] %vm6014, %v6341
  %v6378 = vld [vmem:[#allocation5 + $0x12] sm:$0xff]
  %v6379 = vld [vmem:[#allocation5 + $0x1a] sm:$0xff]
  %v6380 = vld [vmem:[#allocation5 + $0x22] sm:$0xff]
  %v6381 = vld [vmem:[#allocation5 + $0x2a] sm:$0xff]
  %v6382 = vld [vmem:[#allocation5 + $0x32] sm:$0xff]
  %v6383 = vld [vmem:[#allocation5 + $0x3a] sm:$0xff]
  %v6384 = vld [vmem:[#allocation5 + $0x42] sm:$0xff]
  %v6385 = vld [vmem:[#allocation5 + $0x4a] sm:$0xff]
  %v6386 = vld [vmem:[#allocation5 + $0x52] sm:$0xff]
  %v6387 = vld [vmem:[#allocation5 + $0x5a] sm:$0xff]
  %v6388 = vld [vmem:[#allocation5 + $0x62] sm:$0xff]
  %v6389 = vld [vmem:[#allocation5 + $0x6a] sm:$0xff]
  %v6390 = vld [vmem:[#allocation5 + $0x72] sm:$0xff]
  %v6391 = vld [vmem:[#allocation5 + $0x7a] sm:$0xff]
  %v6392 = vld [vmem:[#allocation5 + $0x82] sm:$0xff]
  %v6393 = vld [vmem:[#allocation5 + $0x8a] sm:$0xff]
  %v6394 = vld [vmem:[#allocation5 + $0x92] sm:$0xff]
  %v6395 = vld [vmem:[#allocation5 + $0x9a] sm:$0xff]
  %v6396 = vld [vmem:[#allocation5 + $0xa2] sm:$0xff]
  %v6397 = vld [vmem:[#allocation5 + $0xaa] sm:$0xff]
  %v6398 = vld [vmem:[#allocation5 + $0xb2] sm:$0xff]
  %v6399 = vld [vmem:[#allocation5 + $0xba] sm:$0xff]
  %v6400 = vld [vmem:[#allocation5 + $0xc2] sm:$0xff]
  %v6401 = vld [vmem:[#allocation5 + $0xca] sm:$0xff]
  %v6402 = vld [vmem:[#allocation5 + $0xd2] sm:$0xff]
  %v6403 = vld [vmem:[#allocation5 + $0xda] sm:$0xff]
  %v6404 = vld [vmem:[#allocation5 + $0xe2] sm:$0xff]
  %v6405 = vld [vmem:[#allocation5 + $0xea] sm:$0xff]
  %v6406 = vld [vmem:[#allocation5 + $0xf2] sm:$0xff]
  %v6407 = vld [vmem:[#allocation5 + $0xfa] sm:$0xff]
  %v6408 = vld [vmem:[#allocation5 + $0x102] sm:$0xff]
  %v6409 = vld [vmem:[#allocation5 + $0x10a] sm:$0xff]
  %v6410 = vld [vmem:[#allocation5 + $0x112] sm:$0xff]
  %v6411 = vld [vmem:[#allocation5 + $0x11a] sm:$0xff]
  %v6412 = vld [vmem:[#allocation5 + $0x122] sm:$0xff]
  %v6413 = vld [vmem:[#allocation5 + $0x12a] sm:$0x3f]
  %v6414 = vld [vmem:[%s2 + $0x12] ss:$0 sm:$0xff]
  %v6415 = vmul.f32 %v6378, %v6414
  %v6416 = vmul.f32 %v6379, %v6414
  %v6417 = vmul.f32 %v6380, %v6414
  %v6418 = vmul.f32 %v6381, %v6414
  %v6419 = vmul.f32 %v6382, %v6414
  %v6420 = vmul.f32 %v6383, %v6414
  %v6421 = vmul.f32 %v6384, %v6414
  %v6422 = vmul.f32 %v6385, %v6414
  %v6423 = vmul.f32 %v6386, %v6414
  %v6424 = vmul.f32 %v6387, %v6414
  %v6425 = vmul.f32 %v6388, %v6414
  %v6426 = vmul.f32 %v6389, %v6414
  %v6427 = vmul.f32 %v6390, %v6414
  %v6428 = vmul.f32 %v6391, %v6414
  %v6429 = vmul.f32 %v6392, %v6414
  %v6430 = vmul.f32 %v6393, %v6414
  %v6431 = vmul.f32 %v6394, %v6414
  %v6432 = vmul.f32 %v6395, %v6414
  %v6433 = vmul.f32 %v6396, %v6414
  %v6434 = vmul.f32 %v6397, %v6414
  %v6435 = vmul.f32 %v6398, %v6414
  %v6436 = vmul.f32 %v6399, %v6414
  %v6437 = vmul.f32 %v6400, %v6414
  %v6438 = vmul.f32 %v6401, %v6414
  %v6439 = vmul.f32 %v6402, %v6414
  %v6440 = vmul.f32 %v6403, %v6414
  %v6441 = vmul.f32 %v6404, %v6414
  %v6442 = vmul.f32 %v6405, %v6414
  %v6443 = vmul.f32 %v6406, %v6414
  %v6444 = vmul.f32 %v6407, %v6414
  %v6445 = vmul.f32 %v6408, %v6414
  %v6446 = vmul.f32 %v6409, %v6414
  %v6447 = vmul.f32 %v6410, %v6414
  %v6448 = vmul.f32 %v6411, %v6414
  %v6449 = vmul.f32 %v6412, %v6414
  %v6450 = vmul.f32 %v6413, %v6414
  %v6451 = vld [vmem:[#allocation7] sm:$0xff]
  %v6452 = vld [vmem:[#allocation7 + $0x8] sm:$0xff]
  %v6453 = vld [vmem:[#allocation7 + $0x10] sm:$0xff]
  %v6454 = vld [vmem:[#allocation7 + $0x18] sm:$0xff]
  %v6455 = vld [vmem:[#allocation7 + $0x20] sm:$0xff]
  %v6456 = vld [vmem:[#allocation7 + $0x28] sm:$0xff]
  %v6457 = vld [vmem:[#allocation7 + $0x30] sm:$0xff]
  %v6458 = vld [vmem:[#allocation7 + $0x38] sm:$0xff]
  %v6459 = vld [vmem:[#allocation7 + $0x40] sm:$0xff]
  %v6460 = vld [vmem:[#allocation7 + $0x48] sm:$0xff]
  %v6461 = vld [vmem:[#allocation7 + $0x50] sm:$0xff]
  %v6462 = vld [vmem:[#allocation7 + $0x58] sm:$0xff]
  %v6463 = vld [vmem:[#allocation7 + $0x60] sm:$0xff]
  %v6464 = vld [vmem:[#allocation7 + $0x68] sm:$0xff]
  %v6465 = vld [vmem:[#allocation7 + $0x70] sm:$0xff]
  %v6466 = vld [vmem:[#allocation7 + $0x78] sm:$0xff]
  %v6467 = vld [vmem:[#allocation7 + $0x80] sm:$0xff]
  %v6468 = vld [vmem:[#allocation7 + $0x88] sm:$0xff]
  %v6469 = vld [vmem:[#allocation7 + $0x90] sm:$0xff]
  %v6470 = vld [vmem:[#allocation7 + $0x98] sm:$0xff]
  %v6471 = vld [vmem:[#allocation7 + $0xa0] sm:$0xff]
  %v6472 = vld [vmem:[#allocation7 + $0xa8] sm:$0xff]
  %v6473 = vld [vmem:[#allocation7 + $0xb0] sm:$0xff]
  %v6474 = vld [vmem:[#allocation7 + $0xb8] sm:$0xff]
  %v6475 = vld [vmem:[#allocation7 + $0xc0] sm:$0xff]
  %v6476 = vld [vmem:[#allocation7 + $0xc8] sm:$0xff]
  %v6477 = vld [vmem:[#allocation7 + $0xd0] sm:$0xff]
  %v6478 = vld [vmem:[#allocation7 + $0xd8] sm:$0xff]
  %v6479 = vld [vmem:[#allocation7 + $0xe0] sm:$0xff]
  %v6480 = vld [vmem:[#allocation7 + $0xe8] sm:$0xff]
  %v6481 = vld [vmem:[#allocation7 + $0xf0] sm:$0xff]
  %v6482 = vld [vmem:[#allocation7 + $0xf8] sm:$0xff]
  %v6483 = vld [vmem:[#allocation7 + $0x100] sm:$0xff]
  %v6484 = vld [vmem:[#allocation7 + $0x108] sm:$0xff]
  %v6485 = vld [vmem:[#allocation7 + $0x110] sm:$0xff]
  %v6486 = vld [vmem:[#allocation7 + $0x118] sm:$0x3f]
  %v6487 = vadd.f32 %v6451, %v6415
  %v6488 = vadd.f32 %v6452, %v6416
  %v6489 = vadd.f32 %v6453, %v6417
  %v6490 = vadd.f32 %v6454, %v6418
  %v6491 = vadd.f32 %v6455, %v6419
  %v6492 = vadd.f32 %v6456, %v6420
  %v6493 = vadd.f32 %v6457, %v6421
  %v6494 = vadd.f32 %v6458, %v6422
  %v6495 = vadd.f32 %v6459, %v6423
  %v6496 = vadd.f32 %v6460, %v6424
  %v6497 = vadd.f32 %v6461, %v6425
  %v6498 = vadd.f32 %v6462, %v6426
  %v6499 = vadd.f32 %v6463, %v6427
  %v6500 = vadd.f32 %v6464, %v6428
  %v6501 = vadd.f32 %v6465, %v6429
  %v6502 = vadd.f32 %v6466, %v6430
  %v6503 = vadd.f32 %v6467, %v6431
  %v6504 = vadd.f32 %v6468, %v6432
  %v6505 = vadd.f32 %v6469, %v6433
  %v6506 = vadd.f32 %v6470, %v6434
  %v6507 = vadd.f32 %v6471, %v6435
  %v6508 = vadd.f32 %v6472, %v6436
  %v6509 = vadd.f32 %v6473, %v6437
  %v6510 = vadd.f32 %v6474, %v6438
  %v6511 = vadd.f32 %v6475, %v6439
  %v6512 = vadd.f32 %v6476, %v6440
  %v6513 = vadd.f32 %v6477, %v6441
  %v6514 = vadd.f32 %v6478, %v6442
  %v6515 = vadd.f32 %v6479, %v6443
  %v6516 = vadd.f32 %v6480, %v6444
  %v6517 = vadd.f32 %v6481, %v6445
  %v6518 = vadd.f32 %v6482, %v6446
  %v6519 = vadd.f32 %v6483, %v6447
  %v6520 = vadd.f32 %v6484, %v6448
  %v6521 = vadd.f32 %v6485, %v6449
  %v6522 = vadd.f32 %v6486, %v6450
  %6523 = vst.msk [vmem:[#allocation7] sm:$0xff] %vm223, %v6487
  %6524 = vst.msk [vmem:[#allocation7 + $0x8] sm:$0xff] %vm223, %v6488
  %6525 = vst.msk [vmem:[#allocation7 + $0x10] sm:$0xff] %vm223, %v6489
  %6526 = vst.msk [vmem:[#allocation7 + $0x18] sm:$0xff] %vm223, %v6490
  %6527 = vst.msk [vmem:[#allocation7 + $0x20] sm:$0xff] %vm223, %v6491
  %6528 = vst.msk [vmem:[#allocation7 + $0x28] sm:$0xff] %vm223, %v6492
  %6529 = vst.msk [vmem:[#allocation7 + $0x30] sm:$0xff] %vm223, %v6493
  %6530 = vst.msk [vmem:[#allocation7 + $0x38] sm:$0xff] %vm223, %v6494
  %6531 = vst.msk [vmem:[#allocation7 + $0x40] sm:$0xff] %vm223, %v6495
  %6532 = vst.msk [vmem:[#allocation7 + $0x48] sm:$0xff] %vm223, %v6496
  %6533 = vst.msk [vmem:[#allocation7 + $0x50] sm:$0xff] %vm223, %v6497
  %6534 = vst.msk [vmem:[#allocation7 + $0x58] sm:$0xff] %vm223, %v6498
  %6535 = vst.msk [vmem:[#allocation7 + $0x60] sm:$0xff] %vm223, %v6499
  %6536 = vst.msk [vmem:[#allocation7 + $0x68] sm:$0xff] %vm223, %v6500
  %6537 = vst.msk [vmem:[#allocation7 + $0x70] sm:$0xff] %vm223, %v6501
  %6538 = vst.msk [vmem:[#allocation7 + $0x78] sm:$0xff] %vm223, %v6502
  %6539 = vst.msk [vmem:[#allocation7 + $0x80] sm:$0xff] %vm223, %v6503
  %6540 = vst.msk [vmem:[#allocation7 + $0x88] sm:$0xff] %vm223, %v6504
  %6541 = vst.msk [vmem:[#allocation7 + $0x90] sm:$0xff] %vm223, %v6505
  %6542 = vst.msk [vmem:[#allocation7 + $0x98] sm:$0xff] %vm223, %v6506
  %6543 = vst.msk [vmem:[#allocation7 + $0xa0] sm:$0xff] %vm223, %v6507
  %6544 = vst.msk [vmem:[#allocation7 + $0xa8] sm:$0xff] %vm223, %v6508
  %6545 = vst.msk [vmem:[#allocation7 + $0xb0] sm:$0xff] %vm223, %v6509
  %6546 = vst.msk [vmem:[#allocation7 + $0xb8] sm:$0xff] %vm223, %v6510
  %6547 = vst.msk [vmem:[#allocation7 + $0xc0] sm:$0xff] %vm223, %v6511
  %6548 = vst.msk [vmem:[#allocation7 + $0xc8] sm:$0xff] %vm223, %v6512
  %6549 = vst.msk [vmem:[#allocation7 + $0xd0] sm:$0xff] %vm223, %v6513
  %6550 = vst.msk [vmem:[#allocation7 + $0xd8] sm:$0xff] %vm223, %v6514
  %6551 = vst.msk [vmem:[#allocation7 + $0xe0] sm:$0xff] %vm223, %v6515
  %6552 = vst.msk [vmem:[#allocation7 + $0xe8] sm:$0xff] %vm223, %v6516
  %6553 = vst.msk [vmem:[#allocation7 + $0xf0] sm:$0xff] %vm223, %v6517
  %6554 = vst.msk [vmem:[#allocation7 + $0xf8] sm:$0xff] %vm223, %v6518
  %6555 = vst.msk [vmem:[#allocation7 + $0x100] sm:$0xff] %vm223, %v6519
  %6556 = vst.msk [vmem:[#allocation7 + $0x108] sm:$0xff] %vm223, %v6520
  %6557 = vst.msk [vmem:[#allocation7 + $0x110] sm:$0xff] %vm223, %v6521
  %6558 = vst.msk [vmem:[#allocation7 + $0x118] sm:$0x3f] %vm6014, %v6522
  %v6559 = vld [vmem:[#allocation5 + $0x13] sm:$0xff]
  %v6560 = vld [vmem:[#allocation5 + $0x1b] sm:$0xff]
  %v6561 = vld [vmem:[#allocation5 + $0x23] sm:$0xff]
  %v6562 = vld [vmem:[#allocation5 + $0x2b] sm:$0xff]
  %v6563 = vld [vmem:[#allocation5 + $0x33] sm:$0xff]
  %v6564 = vld [vmem:[#allocation5 + $0x3b] sm:$0xff]
  %v6565 = vld [vmem:[#allocation5 + $0x43] sm:$0xff]
  %v6566 = vld [vmem:[#allocation5 + $0x4b] sm:$0xff]
  %v6567 = vld [vmem:[#allocation5 + $0x53] sm:$0xff]
  %v6568 = vld [vmem:[#allocation5 + $0x5b] sm:$0xff]
  %v6569 = vld [vmem:[#allocation5 + $0x63] sm:$0xff]
  %v6570 = vld [vmem:[#allocation5 + $0x6b] sm:$0xff]
  %v6571 = vld [vmem:[#allocation5 + $0x73] sm:$0xff]
  %v6572 = vld [vmem:[#allocation5 + $0x7b] sm:$0xff]
  %v6573 = vld [vmem:[#allocation5 + $0x83] sm:$0xff]
  %v6574 = vld [vmem:[#allocation5 + $0x8b] sm:$0xff]
  %v6575 = vld [vmem:[#allocation5 + $0x93] sm:$0xff]
  %v6576 = vld [vmem:[#allocation5 + $0x9b] sm:$0xff]
  %v6577 = vld [vmem:[#allocation5 + $0xa3] sm:$0xff]
  %v6578 = vld [vmem:[#allocation5 + $0xab] sm:$0xff]
  %v6579 = vld [vmem:[#allocation5 + $0xb3] sm:$0xff]
  %v6580 = vld [vmem:[#allocation5 + $0xbb] sm:$0xff]
  %v6581 = vld [vmem:[#allocation5 + $0xc3] sm:$0xff]
  %v6582 = vld [vmem:[#allocation5 + $0xcb] sm:$0xff]
  %v6583 = vld [vmem:[#allocation5 + $0xd3] sm:$0xff]
  %v6584 = vld [vmem:[#allocation5 + $0xdb] sm:$0xff]
  %v6585 = vld [vmem:[#allocation5 + $0xe3] sm:$0xff]
  %v6586 = vld [vmem:[#allocation5 + $0xeb] sm:$0xff]
  %v6587 = vld [vmem:[#allocation5 + $0xf3] sm:$0xff]
  %v6588 = vld [vmem:[#allocation5 + $0xfb] sm:$0xff]
  %v6589 = vld [vmem:[#allocation5 + $0x103] sm:$0xff]
  %v6590 = vld [vmem:[#allocation5 + $0x10b] sm:$0xff]
  %v6591 = vld [vmem:[#allocation5 + $0x113] sm:$0xff]
  %v6592 = vld [vmem:[#allocation5 + $0x11b] sm:$0xff]
  %v6593 = vld [vmem:[#allocation5 + $0x123] sm:$0xff]
  %v6594 = vld [vmem:[#allocation5 + $0x12b] sm:$0x3f]
  %v6595 = vld [vmem:[%s2 + $0x13] ss:$0 sm:$0xff]
  %v6596 = vmul.f32 %v6559, %v6595
  %v6597 = vmul.f32 %v6560, %v6595
  %v6598 = vmul.f32 %v6561, %v6595
  %v6599 = vmul.f32 %v6562, %v6595
  %v6600 = vmul.f32 %v6563, %v6595
  %v6601 = vmul.f32 %v6564, %v6595
  %v6602 = vmul.f32 %v6565, %v6595
  %v6603 = vmul.f32 %v6566, %v6595
  %v6604 = vmul.f32 %v6567, %v6595
  %v6605 = vmul.f32 %v6568, %v6595
  %v6606 = vmul.f32 %v6569, %v6595
  %v6607 = vmul.f32 %v6570, %v6595
  %v6608 = vmul.f32 %v6571, %v6595
  %v6609 = vmul.f32 %v6572, %v6595
  %v6610 = vmul.f32 %v6573, %v6595
  %v6611 = vmul.f32 %v6574, %v6595
  %v6612 = vmul.f32 %v6575, %v6595
  %v6613 = vmul.f32 %v6576, %v6595
  %v6614 = vmul.f32 %v6577, %v6595
  %v6615 = vmul.f32 %v6578, %v6595
  %v6616 = vmul.f32 %v6579, %v6595
  %v6617 = vmul.f32 %v6580, %v6595
  %v6618 = vmul.f32 %v6581, %v6595
  %v6619 = vmul.f32 %v6582, %v6595
  %v6620 = vmul.f32 %v6583, %v6595
  %v6621 = vmul.f32 %v6584, %v6595
  %v6622 = vmul.f32 %v6585, %v6595
  %v6623 = vmul.f32 %v6586, %v6595
  %v6624 = vmul.f32 %v6587, %v6595
  %v6625 = vmul.f32 %v6588, %v6595
  %v6626 = vmul.f32 %v6589, %v6595
  %v6627 = vmul.f32 %v6590, %v6595
  %v6628 = vmul.f32 %v6591, %v6595
  %v6629 = vmul.f32 %v6592, %v6595
  %v6630 = vmul.f32 %v6593, %v6595
  %v6631 = vmul.f32 %v6594, %v6595
  %v6632 = vld [vmem:[#allocation7] sm:$0xff]
  %v6633 = vld [vmem:[#allocation7 + $0x8] sm:$0xff]
  %v6634 = vld [vmem:[#allocation7 + $0x10] sm:$0xff]
  %v6635 = vld [vmem:[#allocation7 + $0x18] sm:$0xff]
  %v6636 = vld [vmem:[#allocation7 + $0x20] sm:$0xff]
  %v6637 = vld [vmem:[#allocation7 + $0x28] sm:$0xff]
  %v6638 = vld [vmem:[#allocation7 + $0x30] sm:$0xff]
  %v6639 = vld [vmem:[#allocation7 + $0x38] sm:$0xff]
  %v6640 = vld [vmem:[#allocation7 + $0x40] sm:$0xff]
  %v6641 = vld [vmem:[#allocation7 + $0x48] sm:$0xff]
  %v6642 = vld [vmem:[#allocation7 + $0x50] sm:$0xff]
  %v6643 = vld [vmem:[#allocation7 + $0x58] sm:$0xff]
  %v6644 = vld [vmem:[#allocation7 + $0x60] sm:$0xff]
  %v6645 = vld [vmem:[#allocation7 + $0x68] sm:$0xff]
  %v6646 = vld [vmem:[#allocation7 + $0x70] sm:$0xff]
  %v6647 = vld [vmem:[#allocation7 + $0x78] sm:$0xff]
  %v6648 = vld [vmem:[#allocation7 + $0x80] sm:$0xff]
  %v6649 = vld [vmem:[#allocation7 + $0x88] sm:$0xff]
  %v6650 = vld [vmem:[#allocation7 + $0x90] sm:$0xff]
  %v6651 = vld [vmem:[#allocation7 + $0x98] sm:$0xff]
  %v6652 = vld [vmem:[#allocation7 + $0xa0] sm:$0xff]
  %v6653 = vld [vmem:[#allocation7 + $0xa8] sm:$0xff]
  %v6654 = vld [vmem:[#allocation7 + $0xb0] sm:$0xff]
  %v6655 = vld [vmem:[#allocation7 + $0xb8] sm:$0xff]
  %v6656 = vld [vmem:[#allocation7 + $0xc0] sm:$0xff]
  %v6657 = vld [vmem:[#allocation7 + $0xc8] sm:$0xff]
  %v6658 = vld [vmem:[#allocation7 + $0xd0] sm:$0xff]
  %v6659 = vld [vmem:[#allocation7 + $0xd8] sm:$0xff]
  %v6660 = vld [vmem:[#allocation7 + $0xe0] sm:$0xff]
  %v6661 = vld [vmem:[#allocation7 + $0xe8] sm:$0xff]
  %v6662 = vld [vmem:[#allocation7 + $0xf0] sm:$0xff]
  %v6663 = vld [vmem:[#allocation7 + $0xf8] sm:$0xff]
  %v6664 = vld [vmem:[#allocation7 + $0x100] sm:$0xff]
  %v6665 = vld [vmem:[#allocation7 + $0x108] sm:$0xff]
  %v6666 = vld [vmem:[#allocation7 + $0x110] sm:$0xff]
  %v6667 = vld [vmem:[#allocation7 + $0x118] sm:$0x3f]
  %v6668 = vadd.f32 %v6632, %v6596
  %v6669 = vadd.f32 %v6633, %v6597
  %v6670 = vadd.f32 %v6634, %v6598
  %v6671 = vadd.f32 %v6635, %v6599
  %v6672 = vadd.f32 %v6636, %v6600
  %v6673 = vadd.f32 %v6637, %v6601
  %v6674 = vadd.f32 %v6638, %v6602
  %v6675 = vadd.f32 %v6639, %v6603
  %v6676 = vadd.f32 %v6640, %v6604
  %v6677 = vadd.f32 %v6641, %v6605
  %v6678 = vadd.f32 %v6642, %v6606
  %v6679 = vadd.f32 %v6643, %v6607
  %v6680 = vadd.f32 %v6644, %v6608
  %v6681 = vadd.f32 %v6645, %v6609
  %v6682 = vadd.f32 %v6646, %v6610
  %v6683 = vadd.f32 %v6647, %v6611
  %v6684 = vadd.f32 %v6648, %v6612
  %v6685 = vadd.f32 %v6649, %v6613
  %v6686 = vadd.f32 %v6650, %v6614
  %v6687 = vadd.f32 %v6651, %v6615
  %v6688 = vadd.f32 %v6652, %v6616
  %v6689 = vadd.f32 %v6653, %v6617
  %v6690 = vadd.f32 %v6654, %v6618
  %v6691 = vadd.f32 %v6655, %v6619
  %v6692 = vadd.f32 %v6656, %v6620
  %v6693 = vadd.f32 %v6657, %v6621
  %v6694 = vadd.f32 %v6658, %v6622
  %v6695 = vadd.f32 %v6659, %v6623
  %v6696 = vadd.f32 %v6660, %v6624
  %v6697 = vadd.f32 %v6661, %v6625
  %v6698 = vadd.f32 %v6662, %v6626
  %v6699 = vadd.f32 %v6663, %v6627
  %v6700 = vadd.f32 %v6664, %v6628
  %v6701 = vadd.f32 %v6665, %v6629
  %v6702 = vadd.f32 %v6666, %v6630
  %v6703 = vadd.f32 %v6667, %v6631
  %6704 = vst.msk [vmem:[#allocation7] sm:$0xff] %vm223, %v6668
  %6705 = vst.msk [vmem:[#allocation7 + $0x8] sm:$0xff] %vm223, %v6669
  %6706 = vst.msk [vmem:[#allocation7 + $0x10] sm:$0xff] %vm223, %v6670
  %6707 = vst.msk [vmem:[#allocation7 + $0x18] sm:$0xff] %vm223, %v6671
  %6708 = vst.msk [vmem:[#allocation7 + $0x20] sm:$0xff] %vm223, %v6672
  %6709 = vst.msk [vmem:[#allocation7 + $0x28] sm:$0xff] %vm223, %v6673
  %6710 = vst.msk [vmem:[#allocation7 + $0x30] sm:$0xff] %vm223, %v6674
  %6711 = vst.msk [vmem:[#allocation7 + $0x38] sm:$0xff] %vm223, %v6675
  %6712 = vst.msk [vmem:[#allocation7 + $0x40] sm:$0xff] %vm223, %v6676
  %6713 = vst.msk [vmem:[#allocation7 + $0x48] sm:$0xff] %vm223, %v6677
  %6714 = vst.msk [vmem:[#allocation7 + $0x50] sm:$0xff] %vm223, %v6678
  %6715 = vst.msk [vmem:[#allocation7 + $0x58] sm:$0xff] %vm223, %v6679
  %6716 = vst.msk [vmem:[#allocation7 + $0x60] sm:$0xff] %vm223, %v6680
  %6717 = vst.msk [vmem:[#allocation7 + $0x68] sm:$0xff] %vm223, %v6681
  %6718 = vst.msk [vmem:[#allocation7 + $0x70] sm:$0xff] %vm223, %v6682
  %6719 = vst.msk [vmem:[#allocation7 + $0x78] sm:$0xff] %vm223, %v6683
  %6720 = vst.msk [vmem:[#allocation7 + $0x80] sm:$0xff] %vm223, %v6684
  %6721 = vst.msk [vmem:[#allocation7 + $0x88] sm:$0xff] %vm223, %v6685
  %6722 = vst.msk [vmem:[#allocation7 + $0x90] sm:$0xff] %vm223, %v6686
  %6723 = vst.msk [vmem:[#allocation7 + $0x98] sm:$0xff] %vm223, %v6687
  %6724 = vst.msk [vmem:[#allocation7 + $0xa0] sm:$0xff] %vm223, %v6688
  %6725 = vst.msk [vmem:[#allocation7 + $0xa8] sm:$0xff] %vm223, %v6689
  %6726 = vst.msk [vmem:[#allocation7 + $0xb0] sm:$0xff] %vm223, %v6690
  %6727 = vst.msk [vmem:[#allocation7 + $0xb8] sm:$0xff] %vm223, %v6691
  %6728 = vst.msk [vmem:[#allocation7 + $0xc0] sm:$0xff] %vm223, %v6692
  %6729 = vst.msk [vmem:[#allocation7 + $0xc8] sm:$0xff] %vm223, %v6693
  %6730 = vst.msk [vmem:[#allocation7 + $0xd0] sm:$0xff] %vm223, %v6694
  %6731 = vst.msk [vmem:[#allocation7 + $0xd8] sm:$0xff] %vm223, %v6695
  %6732 = vst.msk [vmem:[#allocation7 + $0xe0] sm:$0xff] %vm223, %v6696
  %6733 = vst.msk [vmem:[#allocation7 + $0xe8] sm:$0xff] %vm223, %v6697
  %6734 = vst.msk [vmem:[#allocation7 + $0xf0] sm:$0xff] %vm223, %v6698
  %6735 = vst.msk [vmem:[#allocation7 + $0xf8] sm:$0xff] %vm223, %v6699
  %6736 = vst.msk [vmem:[#allocation7 + $0x100] sm:$0xff] %vm223, %v6700
  %6737 = vst.msk [vmem:[#allocation7 + $0x108] sm:$0xff] %vm223, %v6701
  %6738 = vst.msk [vmem:[#allocation7 + $0x110] sm:$0xff] %vm223, %v6702
  %6739 = vst.msk [vmem:[#allocation7 + $0x118] sm:$0x3f] %vm6014, %v6703
  %v6740 = vld [vmem:[#allocation5 + $0x14] sm:$0xff]
  %v6741 = vld [vmem:[#allocation5 + $0x1c] sm:$0xff]
  %v6742 = vld [vmem:[#allocation5 + $0x24] sm:$0xff]
  %v6743 = vld [vmem:[#allocation5 + $0x2c] sm:$0xff]
  %v6744 = vld [vmem:[#allocation5 + $0x34] sm:$0xff]
  %v6745 = vld [vmem:[#allocation5 + $0x3c] sm:$0xff]
  %v6746 = vld [vmem:[#allocation5 + $0x44] sm:$0xff]
  %v6747 = vld [vmem:[#allocation5 + $0x4c] sm:$0xff]
  %v6748 = vld [vmem:[#allocation5 + $0x54] sm:$0xff]
  %v6749 = vld [vmem:[#allocation5 + $0x5c] sm:$0xff]
  %v6750 = vld [vmem:[#allocation5 + $0x64] sm:$0xff]
  %v6751 = vld [vmem:[#allocation5 + $0x6c] sm:$0xff]
  %v6752 = vld [vmem:[#allocation5 + $0x74] sm:$0xff]
  %v6753 = vld [vmem:[#allocation5 + $0x7c] sm:$0xff]
  %v6754 = vld [vmem:[#allocation5 + $0x84] sm:$0xff]
  %v6755 = vld [vmem:[#allocation5 + $0x8c] sm:$0xff]
  %v6756 = vld [vmem:[#allocation5 + $0x94] sm:$0xff]
  %v6757 = vld [vmem:[#allocation5 + $0x9c] sm:$0xff]
  %v6758 = vld [vmem:[#allocation5 + $0xa4] sm:$0xff]
  %v6759 = vld [vmem:[#allocation5 + $0xac] sm:$0xff]
  %v6760 = vld [vmem:[#allocation5 + $0xb4] sm:$0xff]
  %v6761 = vld [vmem:[#allocation5 + $0xbc] sm:$0xff]
  %v6762 = vld [vmem:[#allocation5 + $0xc4] sm:$0xff]
  %v6763 = vld [vmem:[#allocation5 + $0xcc] sm:$0xff]
  %v6764 = vld [vmem:[#allocation5 + $0xd4] sm:$0xff]
  %v6765 = vld [vmem:[#allocation5 + $0xdc] sm:$0xff]
  %v6766 = vld [vmem:[#allocation5 + $0xe4] sm:$0xff]
  %v6767 = vld [vmem:[#allocation5 + $0xec] sm:$0xff]
  %v6768 = vld [vmem:[#allocation5 + $0xf4] sm:$0xff]
  %v6769 = vld [vmem:[#allocation5 + $0xfc] sm:$0xff]
  %v6770 = vld [vmem:[#allocation5 + $0x104] sm:$0xff]
  %v6771 = vld [vmem:[#allocation5 + $0x10c] sm:$0xff]
  %v6772 = vld [vmem:[#allocation5 + $0x114] sm:$0xff]
  %v6773 = vld [vmem:[#allocation5 + $0x11c] sm:$0xff]
  %v6774 = vld [vmem:[#allocation5 + $0x124] sm:$0xff]
  %v6775 = vld [vmem:[#allocation5 + $0x12c] sm:$0x3f]
  %v6776 = vld [vmem:[%s2 + $0x14] ss:$0 sm:$0xff]
  %v6777 = vmul.f32 %v6740, %v6776
  %v6778 = vmul.f32 %v6741, %v6776
  %v6779 = vmul.f32 %v6742, %v6776
  %v6780 = vmul.f32 %v6743, %v6776
  %v6781 = vmul.f32 %v6744, %v6776
  %v6782 = vmul.f32 %v6745, %v6776
  %v6783 = vmul.f32 %v6746, %v6776
  %v6784 = vmul.f32 %v6747, %v6776
  %v6785 = vmul.f32 %v6748, %v6776
  %v6786 = vmul.f32 %v6749, %v6776
  %v6787 = vmul.f32 %v6750, %v6776
  %v6788 = vmul.f32 %v6751, %v6776
  %v6789 = vmul.f32 %v6752, %v6776
  %v6790 = vmul.f32 %v6753, %v6776
  %v6791 = vmul.f32 %v6754, %v6776
  %v6792 = vmul.f32 %v6755, %v6776
  %v6793 = vmul.f32 %v6756, %v6776
  %v6794 = vmul.f32 %v6757, %v6776
  %v6795 = vmul.f32 %v6758, %v6776
  %v6796 = vmul.f32 %v6759, %v6776
  %v6797 = vmul.f32 %v6760, %v6776
  %v6798 = vmul.f32 %v6761, %v6776
  %v6799 = vmul.f32 %v6762, %v6776
  %v6800 = vmul.f32 %v6763, %v6776
  %v6801 = vmul.f32 %v6764, %v6776
  %v6802 = vmul.f32 %v6765, %v6776
  %v6803 = vmul.f32 %v6766, %v6776
  %v6804 = vmul.f32 %v6767, %v6776
  %v6805 = vmul.f32 %v6768, %v6776
  %v6806 = vmul.f32 %v6769, %v6776
  %v6807 = vmul.f32 %v6770, %v6776
  %v6808 = vmul.f32 %v6771, %v6776
  %v6809 = vmul.f32 %v6772, %v6776
  %v6810 = vmul.f32 %v6773, %v6776
  %v6811 = vmul.f32 %v6774, %v6776
  %v6812 = vmul.f32 %v6775, %v6776
  %v6813 = vld [vmem:[#allocation7] sm:$0xff]
  %v6814 = vld [vmem:[#allocation7 + $0x8] sm:$0xff]
  %v6815 = vld [vmem:[#allocation7 + $0x10] sm:$0xff]
  %v6816 = vld [vmem:[#allocation7 + $0x18] sm:$0xff]
  %v6817 = vld [vmem:[#allocation7 + $0x20] sm:$0xff]
  %v6818 = vld [vmem:[#allocation7 + $0x28] sm:$0xff]
  %v6819 = vld [vmem:[#allocation7 + $0x30] sm:$0xff]
  %v6820 = vld [vmem:[#allocation7 + $0x38] sm:$0xff]
  %v6821 = vld [vmem:[#allocation7 + $0x40] sm:$0xff]
  %v6822 = vld [vmem:[#allocation7 + $0x48] sm:$0xff]
  %v6823 = vld [vmem:[#allocation7 + $0x50] sm:$0xff]
  %v6824 = vld [vmem:[#allocation7 + $0x58] sm:$0xff]
  %v6825 = vld [vmem:[#allocation7 + $0x60] sm:$0xff]
  %v6826 = vld [vmem:[#allocation7 + $0x68] sm:$0xff]
  %v6827 = vld [vmem:[#allocation7 + $0x70] sm:$0xff]
  %v6828 = vld [vmem:[#allocation7 + $0x78] sm:$0xff]
  %v6829 = vld [vmem:[#allocation7 + $0x80] sm:$0xff]
  %v6830 = vld [vmem:[#allocation7 + $0x88] sm:$0xff]
  %v6831 = vld [vmem:[#allocation7 + $0x90] sm:$0xff]
  %v6832 = vld [vmem:[#allocation7 + $0x98] sm:$0xff]
  %v6833 = vld [vmem:[#allocation7 + $0xa0] sm:$0xff]
  %v6834 = vld [vmem:[#allocation7 + $0xa8] sm:$0xff]
  %v6835 = vld [vmem:[#allocation7 + $0xb0] sm:$0xff]
  %v6836 = vld [vmem:[#allocation7 + $0xb8] sm:$0xff]
  %v6837 = vld [vmem:[#allocation7 + $0xc0] sm:$0xff]
  %v6838 = vld [vmem:[#allocation7 + $0xc8] sm:$0xff]
  %v6839 = vld [vmem:[#allocation7 + $0xd0] sm:$0xff]
  %v6840 = vld [vmem:[#allocation7 + $0xd8] sm:$0xff]
  %v6841 = vld [vmem:[#allocation7 + $0xe0] sm:$0xff]
  %v6842 = vld [vmem:[#allocation7 + $0xe8] sm:$0xff]
  %v6843 = vld [vmem:[#allocation7 + $0xf0] sm:$0xff]
  %v6844 = vld [vmem:[#allocation7 + $0xf8] sm:$0xff]
  %v6845 = vld [vmem:[#allocation7 + $0x100] sm:$0xff]
  %v6846 = vld [vmem:[#allocation7 + $0x108] sm:$0xff]
  %v6847 = vld [vmem:[#allocation7 + $0x110] sm:$0xff]
  %v6848 = vld [vmem:[#allocation7 + $0x118] sm:$0x3f]
  %v6849 = vadd.f32 %v6813, %v6777
  %v6850 = vadd.f32 %v6814, %v6778
  %v6851 = vadd.f32 %v6815, %v6779
  %v6852 = vadd.f32 %v6816, %v6780
  %v6853 = vadd.f32 %v6817, %v6781
  %v6854 = vadd.f32 %v6818, %v6782
  %v6855 = vadd.f32 %v6819, %v6783
  %v6856 = vadd.f32 %v6820, %v6784
  %v6857 = vadd.f32 %v6821, %v6785
  %v6858 = vadd.f32 %v6822, %v6786
  %v6859 = vadd.f32 %v6823, %v6787
  %v6860 = vadd.f32 %v6824, %v6788
  %v6861 = vadd.f32 %v6825, %v6789
  %v6862 = vadd.f32 %v6826, %v6790
  %v6863 = vadd.f32 %v6827, %v6791
  %v6864 = vadd.f32 %v6828, %v6792
  %v6865 = vadd.f32 %v6829, %v6793
  %v6866 = vadd.f32 %v6830, %v6794
  %v6867 = vadd.f32 %v6831, %v6795
  %v6868 = vadd.f32 %v6832, %v6796
  %v6869 = vadd.f32 %v6833, %v6797
  %v6870 = vadd.f32 %v6834, %v6798
  %v6871 = vadd.f32 %v6835, %v6799
  %v6872 = vadd.f32 %v6836, %v6800
  %v6873 = vadd.f32 %v6837, %v6801
  %v6874 = vadd.f32 %v6838, %v6802
  %v6875 = vadd.f32 %v6839, %v6803
  %v6876 = vadd.f32 %v6840, %v6804
  %v6877 = vadd.f32 %v6841, %v6805
  %v6878 = vadd.f32 %v6842, %v6806
  %v6879 = vadd.f32 %v6843, %v6807
  %v6880 = vadd.f32 %v6844, %v6808
  %v6881 = vadd.f32 %v6845, %v6809
  %v6882 = vadd.f32 %v6846, %v6810
  %v6883 = vadd.f32 %v6847, %v6811
  %v6884 = vadd.f32 %v6848, %v6812
  %6885 = vst.msk [vmem:[#allocation7] sm:$0xff] %vm223, %v6849
  %6886 = vst.msk [vmem:[#allocation7 + $0x8] sm:$0xff] %vm223, %v6850
  %6887 = vst.msk [vmem:[#allocation7 + $0x10] sm:$0xff] %vm223, %v6851
  %6888 = vst.msk [vmem:[#allocation7 + $0x18] sm:$0xff] %vm223, %v6852
  %6889 = vst.msk [vmem:[#allocation7 + $0x20] sm:$0xff] %vm223, %v6853
  %6890 = vst.msk [vmem:[#allocation7 + $0x28] sm:$0xff] %vm223, %v6854
  %6891 = vst.msk [vmem:[#allocation7 + $0x30] sm:$0xff] %vm223, %v6855
  %6892 = vst.msk [vmem:[#allocation7 + $0x38] sm:$0xff] %vm223, %v6856
  %6893 = vst.msk [vmem:[#allocation7 + $0x40] sm:$0xff] %vm223, %v6857
  %6894 = vst.msk [vmem:[#allocation7 + $0x48] sm:$0xff] %vm223, %v6858
  %6895 = vst.msk [vmem:[#allocation7 + $0x50] sm:$0xff] %vm223, %v6859
  %6896 = vst.msk [vmem:[#allocation7 + $0x58] sm:$0xff] %vm223, %v6860
  %6897 = vst.msk [vmem:[#allocation7 + $0x60] sm:$0xff] %vm223, %v6861
  %6898 = vst.msk [vmem:[#allocation7 + $0x68] sm:$0xff] %vm223, %v6862
  %6899 = vst.msk [vmem:[#allocation7 + $0x70] sm:$0xff] %vm223, %v6863
  %6900 = vst.msk [vmem:[#allocation7 + $0x78] sm:$0xff] %vm223, %v6864
  %6901 = vst.msk [vmem:[#allocation7 + $0x80] sm:$0xff] %vm223, %v6865
  %6902 = vst.msk [vmem:[#allocation7 + $0x88] sm:$0xff] %vm223, %v6866
  %6903 = vst.msk [vmem:[#allocation7 + $0x90] sm:$0xff] %vm223, %v6867
  %6904 = vst.msk [vmem:[#allocation7 + $0x98] sm:$0xff] %vm223, %v6868
  %6905 = vst.msk [vmem:[#allocation7 + $0xa0] sm:$0xff] %vm223, %v6869
  %6906 = vst.msk [vmem:[#allocation7 + $0xa8] sm:$0xff] %vm223, %v6870
  %6907 = vst.msk [vmem:[#allocation7 + $0xb0] sm:$0xff] %vm223, %v6871
  %6908 = vst.msk [vmem:[#allocation7 + $0xb8] sm:$0xff] %vm223, %v6872
  %6909 = vst.msk [vmem:[#allocation7 + $0xc0] sm:$0xff] %vm223, %v6873
  %6910 = vst.msk [vmem:[#allocation7 + $0xc8] sm:$0xff] %vm223, %v6874
  %6911 = vst.msk [vmem:[#allocation7 + $0xd0] sm:$0xff] %vm223, %v6875
  %6912 = vst.msk [vmem:[#allocation7 + $0xd8] sm:$0xff] %vm223, %v6876
  %6913 = vst.msk [vmem:[#allocation7 + $0xe0] sm:$0xff] %vm223, %v6877
  %6914 = vst.msk [vmem:[#allocation7 + $0xe8] sm:$0xff] %vm223, %v6878
  %6915 = vst.msk [vmem:[#allocation7 + $0xf0] sm:$0xff] %vm223, %v6879
  %6916 = vst.msk [vmem:[#allocation7 + $0xf8] sm:$0xff] %vm223, %v6880
  %6917 = vst.msk [vmem:[#allocation7 + $0x100] sm:$0xff] %vm223, %v6881
  %6918 = vst.msk [vmem:[#allocation7 + $0x108] sm:$0xff] %vm223, %v6882
  %6919 = vst.msk [vmem:[#allocation7 + $0x110] sm:$0xff] %vm223, %v6883
  %6920 = vst.msk [vmem:[#allocation7 + $0x118] sm:$0x3f] %vm6014, %v6884
  %v6921 = vld [vmem:[#allocation5 + $0x24] sm:$0xff]
  %v6922 = vld [vmem:[#allocation5 + $0x2c] sm:$0xff]
  %v6923 = vld [vmem:[#allocation5 + $0x34] sm:$0xff]
  %v6924 = vld [vmem:[#allocation5 + $0x3c] sm:$0xff]
  %v6925 = vld [vmem:[#allocation5 + $0x44] sm:$0xff]
  %v6926 = vld [vmem:[#allocation5 + $0x4c] sm:$0xff]
  %v6927 = vld [vmem:[#allocation5 + $0x54] sm:$0xff]
  %v6928 = vld [vmem:[#allocation5 + $0x5c] sm:$0xff]
  %v6929 = vld [vmem:[#allocation5 + $0x64] sm:$0xff]
  %v6930 = vld [vmem:[#allocation5 + $0x6c] sm:$0xff]
  %v6931 = vld [vmem:[#allocation5 + $0x74] sm:$0xff]
  %v6932 = vld [vmem:[#allocation5 + $0x7c] sm:$0xff]
  %v6933 = vld [vmem:[#allocation5 + $0x84] sm:$0xff]
  %v6934 = vld [vmem:[#allocation5 + $0x8c] sm:$0xff]
  %v6935 = vld [vmem:[#allocation5 + $0x94] sm:$0xff]
  %v6936 = vld [vmem:[#allocation5 + $0x9c] sm:$0xff]
  %v6937 = vld [vmem:[#allocation5 + $0xa4] sm:$0xff]
  %v6938 = vld [vmem:[#allocation5 + $0xac] sm:$0xff]
  %v6939 = vld [vmem:[#allocation5 + $0xb4] sm:$0xff]
  %v6940 = vld [vmem:[#allocation5 + $0xbc] sm:$0xff]
  %v6941 = vld [vmem:[#allocation5 + $0xc4] sm:$0xff]
  %v6942 = vld [vmem:[#allocation5 + $0xcc] sm:$0xff]
  %v6943 = vld [vmem:[#allocation5 + $0xd4] sm:$0xff]
  %v6944 = vld [vmem:[#allocation5 + $0xdc] sm:$0xff]
  %v6945 = vld [vmem:[#allocation5 + $0xe4] sm:$0xff]
  %v6946 = vld [vmem:[#allocation5 + $0xec] sm:$0xff]
  %v6947 = vld [vmem:[#allocation5 + $0xf4] sm:$0xff]
  %v6948 = vld [vmem:[#allocation5 + $0xfc] sm:$0xff]
  %v6949 = vld [vmem:[#allocation5 + $0x104] sm:$0xff]
  %v6950 = vld [vmem:[#allocation5 + $0x10c] sm:$0xff]
  %v6951 = vld [vmem:[#allocation5 + $0x114] sm:$0xff]
  %v6952 = vld [vmem:[#allocation5 + $0x11c] sm:$0xff]
  %v6953 = vld [vmem:[#allocation5 + $0x124] sm:$0xff]
  %v6954 = vld [vmem:[#allocation5 + $0x12c] sm:$0xff]
  %v6955 = vld [vmem:[#allocation5 + $0x134] sm:$0xff]
  %v6956 = vld [vmem:[#allocation5 + $0x13c] sm:$0x3f]
  %v6957 = vld [vmem:[%s2 + $0x15] ss:$0 sm:$0xff]
  %v6958 = vmul.f32 %v6921, %v6957
  %v6959 = vmul.f32 %v6922, %v6957
  %v6960 = vmul.f32 %v6923, %v6957
  %v6961 = vmul.f32 %v6924, %v6957
  %v6962 = vmul.f32 %v6925, %v6957
  %v6963 = vmul.f32 %v6926, %v6957
  %v6964 = vmul.f32 %v6927, %v6957
  %v6965 = vmul.f32 %v6928, %v6957
  %v6966 = vmul.f32 %v6929, %v6957
  %v6967 = vmul.f32 %v6930, %v6957
  %v6968 = vmul.f32 %v6931, %v6957
  %v6969 = vmul.f32 %v6932, %v6957
  %v6970 = vmul.f32 %v6933, %v6957
  %v6971 = vmul.f32 %v6934, %v6957
  %v6972 = vmul.f32 %v6935, %v6957
  %v6973 = vmul.f32 %v6936, %v6957
  %v6974 = vmul.f32 %v6937, %v6957
  %v6975 = vmul.f32 %v6938, %v6957
  %v6976 = vmul.f32 %v6939, %v6957
  %v6977 = vmul.f32 %v6940, %v6957
  %v6978 = vmul.f32 %v6941, %v6957
  %v6979 = vmul.f32 %v6942, %v6957
  %v6980 = vmul.f32 %v6943, %v6957
  %v6981 = vmul.f32 %v6944, %v6957
  %v6982 = vmul.f32 %v6945, %v6957
  %v6983 = vmul.f32 %v6946, %v6957
  %v6984 = vmul.f32 %v6947, %v6957
  %v6985 = vmul.f32 %v6948, %v6957
  %v6986 = vmul.f32 %v6949, %v6957
  %v6987 = vmul.f32 %v6950, %v6957
  %v6988 = vmul.f32 %v6951, %v6957
  %v6989 = vmul.f32 %v6952, %v6957
  %v6990 = vmul.f32 %v6953, %v6957
  %v6991 = vmul.f32 %v6954, %v6957
  %v6992 = vmul.f32 %v6955, %v6957
  %v6993 = vmul.f32 %v6956, %v6957
  %v6994 = vld [vmem:[#allocation7] sm:$0xff]
  %v6995 = vld [vmem:[#allocation7 + $0x8] sm:$0xff]
  %v6996 = vld [vmem:[#allocation7 + $0x10] sm:$0xff]
  %v6997 = vld [vmem:[#allocation7 + $0x18] sm:$0xff]
  %v6998 = vld [vmem:[#allocation7 + $0x20] sm:$0xff]
  %v6999 = vld [vmem:[#allocation7 + $0x28] sm:$0xff]
  %v7000 = vld [vmem:[#allocation7 + $0x30] sm:$0xff]
  %v7001 = vld [vmem:[#allocation7 + $0x38] sm:$0xff]
  %v7002 = vld [vmem:[#allocation7 + $0x40] sm:$0xff]
  %v7003 = vld [vmem:[#allocation7 + $0x48] sm:$0xff]
  %v7004 = vld [vmem:[#allocation7 + $0x50] sm:$0xff]
  %v7005 = vld [vmem:[#allocation7 + $0x58] sm:$0xff]
  %v7006 = vld [vmem:[#allocation7 + $0x60] sm:$0xff]
  %v7007 = vld [vmem:[#allocation7 + $0x68] sm:$0xff]
  %v7008 = vld [vmem:[#allocation7 + $0x70] sm:$0xff]
  %v7009 = vld [vmem:[#allocation7 + $0x78] sm:$0xff]
  %v7010 = vld [vmem:[#allocation7 + $0x80] sm:$0xff]
  %v7011 = vld [vmem:[#allocation7 + $0x88] sm:$0xff]
  %v7012 = vld [vmem:[#allocation7 + $0x90] sm:$0xff]
  %v7013 = vld [vmem:[#allocation7 + $0x98] sm:$0xff]
  %v7014 = vld [vmem:[#allocation7 + $0xa0] sm:$0xff]
  %v7015 = vld [vmem:[#allocation7 + $0xa8] sm:$0xff]
  %v7016 = vld [vmem:[#allocation7 + $0xb0] sm:$0xff]
  %v7017 = vld [vmem:[#allocation7 + $0xb8] sm:$0xff]
  %v7018 = vld [vmem:[#allocation7 + $0xc0] sm:$0xff]
  %v7019 = vld [vmem:[#allocation7 + $0xc8] sm:$0xff]
  %v7020 = vld [vmem:[#allocation7 + $0xd0] sm:$0xff]
  %v7021 = vld [vmem:[#allocation7 + $0xd8] sm:$0xff]
  %v7022 = vld [vmem:[#allocation7 + $0xe0] sm:$0xff]
  %v7023 = vld [vmem:[#allocation7 + $0xe8] sm:$0xff]
  %v7024 = vld [vmem:[#allocation7 + $0xf0] sm:$0xff]
  %v7025 = vld [vmem:[#allocation7 + $0xf8] sm:$0xff]
  %v7026 = vld [vmem:[#allocation7 + $0x100] sm:$0xff]
  %v7027 = vld [vmem:[#allocation7 + $0x108] sm:$0xff]
  %v7028 = vld [vmem:[#allocation7 + $0x110] sm:$0xff]
  %v7029 = vld [vmem:[#allocation7 + $0x118] sm:$0x3f]
  %v7030 = vadd.f32 %v6994, %v6958
  %v7031 = vadd.f32 %v6995, %v6959
  %v7032 = vadd.f32 %v6996, %v6960
  %v7033 = vadd.f32 %v6997, %v6961
  %v7034 = vadd.f32 %v6998, %v6962
  %v7035 = vadd.f32 %v6999, %v6963
  %v7036 = vadd.f32 %v7000, %v6964
  %v7037 = vadd.f32 %v7001, %v6965
  %v7038 = vadd.f32 %v7002, %v6966
  %v7039 = vadd.f32 %v7003, %v6967
  %v7040 = vadd.f32 %v7004, %v6968
  %v7041 = vadd.f32 %v7005, %v6969
  %v7042 = vadd.f32 %v7006, %v6970
  %v7043 = vadd.f32 %v7007, %v6971
  %v7044 = vadd.f32 %v7008, %v6972
  %v7045 = vadd.f32 %v7009, %v6973
  %v7046 = vadd.f32 %v7010, %v6974
  %v7047 = vadd.f32 %v7011, %v6975
  %v7048 = vadd.f32 %v7012, %v6976
  %v7049 = vadd.f32 %v7013, %v6977
  %v7050 = vadd.f32 %v7014, %v6978
  %v7051 = vadd.f32 %v7015, %v6979
  %v7052 = vadd.f32 %v7016, %v6980
  %v7053 = vadd.f32 %v7017, %v6981
  %v7054 = vadd.f32 %v7018, %v6982
  %v7055 = vadd.f32 %v7019, %v6983
  %v7056 = vadd.f32 %v7020, %v6984
  %v7057 = vadd.f32 %v7021, %v6985
  %v7058 = vadd.f32 %v7022, %v6986
  %v7059 = vadd.f32 %v7023, %v6987
  %v7060 = vadd.f32 %v7024, %v6988
  %v7061 = vadd.f32 %v7025, %v6989
  %v7062 = vadd.f32 %v7026, %v6990
  %v7063 = vadd.f32 %v7027, %v6991
  %v7064 = vadd.f32 %v7028, %v6992
  %v7065 = vadd.f32 %v7029, %v6993
  %7066 = vst.msk [vmem:[#allocation7] sm:$0xff] %vm223, %v7030
  %7067 = vst.msk [vmem:[#allocation7 + $0x8] sm:$0xff] %vm223, %v7031
  %7068 = vst.msk [vmem:[#allocation7 + $0x10] sm:$0xff] %vm223, %v7032
  %7069 = vst.msk [vmem:[#allocation7 + $0x18] sm:$0xff] %vm223, %v7033
  %7070 = vst.msk [vmem:[#allocation7 + $0x20] sm:$0xff] %vm223, %v7034
  %7071 = vst.msk [vmem:[#allocation7 + $0x28] sm:$0xff] %vm223, %v7035
  %7072 = vst.msk [vmem:[#allocation7 + $0x30] sm:$0xff] %vm223, %v7036
  %7073 = vst.msk [vmem:[#allocation7 + $0x38] sm:$0xff] %vm223, %v7037
  %7074 = vst.msk [vmem:[#allocation7 + $0x40] sm:$0xff] %vm223, %v7038
  %7075 = vst.msk [vmem:[#allocation7 + $0x48] sm:$0xff] %vm223, %v7039
  %7076 = vst.msk [vmem:[#allocation7 + $0x50] sm:$0xff] %vm223, %v7040
  %7077 = vst.msk [vmem:[#allocation7 + $0x58] sm:$0xff] %vm223, %v7041
  %7078 = vst.msk [vmem:[#allocation7 + $0x60] sm:$0xff] %vm223, %v7042
  %7079 = vst.msk [vmem:[#allocation7 + $0x68] sm:$0xff] %vm223, %v7043
  %7080 = vst.msk [vmem:[#allocation7 + $0x70] sm:$0xff] %vm223, %v7044
  %7081 = vst.msk [vmem:[#allocation7 + $0x78] sm:$0xff] %vm223, %v7045
  %7082 = vst.msk [vmem:[#allocation7 + $0x80] sm:$0xff] %vm223, %v7046
  %7083 = vst.msk [vmem:[#allocation7 + $0x88] sm:$0xff] %vm223, %v7047
  %7084 = vst.msk [vmem:[#allocation7 + $0x90] sm:$0xff] %vm223, %v7048
  %7085 = vst.msk [vmem:[#allocation7 + $0x98] sm:$0xff] %vm223, %v7049
  %7086 = vst.msk [vmem:[#allocation7 + $0xa0] sm:$0xff] %vm223, %v7050
  %7087 = vst.msk [vmem:[#allocation7 + $0xa8] sm:$0xff] %vm223, %v7051
  %7088 = vst.msk [vmem:[#allocation7 + $0xb0] sm:$0xff] %vm223, %v7052
  %7089 = vst.msk [vmem:[#allocation7 + $0xb8] sm:$0xff] %vm223, %v7053
  %7090 = vst.msk [vmem:[#allocation7 + $0xc0] sm:$0xff] %vm223, %v7054
  %7091 = vst.msk [vmem:[#allocation7 + $0xc8] sm:$0xff] %vm223, %v7055
  %7092 = vst.msk [vmem:[#allocation7 + $0xd0] sm:$0xff] %vm223, %v7056
  %7093 = vst.msk [vmem:[#allocation7 + $0xd8] sm:$0xff] %vm223, %v7057
  %7094 = vst.msk [vmem:[#allocation7 + $0xe0] sm:$0xff] %vm223, %v7058
  %7095 = vst.msk [vmem:[#allocation7 + $0xe8] sm:$0xff] %vm223, %v7059
  %7096 = vst.msk [vmem:[#allocation7 + $0xf0] sm:$0xff] %vm223, %v7060
  %7097 = vst.msk [vmem:[#allocation7 + $0xf8] sm:$0xff] %vm223, %v7061
  %7098 = vst.msk [vmem:[#allocation7 + $0x100] sm:$0xff] %vm223, %v7062
  %7099 = vst.msk [vmem:[#allocation7 + $0x108] sm:$0xff] %vm223, %v7063
  %7100 = vst.msk [vmem:[#allocation7 + $0x110] sm:$0xff] %vm223, %v7064
  %7101 = vst.msk [vmem:[#allocation7 + $0x118] sm:$0x3f] %vm6014, %v7065
  %v7102 = vld [vmem:[#allocation5 + $0x25] sm:$0xff]
  %v7103 = vld [vmem:[#allocation5 + $0x2d] sm:$0xff]
  %v7104 = vld [vmem:[#allocation5 + $0x35] sm:$0xff]
  %v7105 = vld [vmem:[#allocation5 + $0x3d] sm:$0xff]
  %v7106 = vld [vmem:[#allocation5 + $0x45] sm:$0xff]
  %v7107 = vld [vmem:[#allocation5 + $0x4d] sm:$0xff]
  %v7108 = vld [vmem:[#allocation5 + $0x55] sm:$0xff]
  %v7109 = vld [vmem:[#allocation5 + $0x5d] sm:$0xff]
  %v7110 = vld [vmem:[#allocation5 + $0x65] sm:$0xff]
  %v7111 = vld [vmem:[#allocation5 + $0x6d] sm:$0xff]
  %v7112 = vld [vmem:[#allocation5 + $0x75] sm:$0xff]
  %v7113 = vld [vmem:[#allocation5 + $0x7d] sm:$0xff]
  %v7114 = vld [vmem:[#allocation5 + $0x85] sm:$0xff]
  %v7115 = vld [vmem:[#allocation5 + $0x8d] sm:$0xff]
  %v7116 = vld [vmem:[#allocation5 + $0x95] sm:$0xff]
  %v7117 = vld [vmem:[#allocation5 + $0x9d] sm:$0xff]
  %v7118 = vld [vmem:[#allocation5 + $0xa5] sm:$0xff]
  %v7119 = vld [vmem:[#allocation5 + $0xad] sm:$0xff]
  %v7120 = vld [vmem:[#allocation5 + $0xb5] sm:$0xff]
  %v7121 = vld [vmem:[#allocation5 + $0xbd] sm:$0xff]
  %v7122 = vld [vmem:[#allocation5 + $0xc5] sm:$0xff]
  %v7123 = vld [vmem:[#allocation5 + $0xcd] sm:$0xff]
  %v7124 = vld [vmem:[#allocation5 + $0xd5] sm:$0xff]
  %v7125 = vld [vmem:[#allocation5 + $0xdd] sm:$0xff]
  %v7126 = vld [vmem:[#allocation5 + $0xe5] sm:$0xff]
  %v7127 = vld [vmem:[#allocation5 + $0xed] sm:$0xff]
  %v7128 = vld [vmem:[#allocation5 + $0xf5] sm:$0xff]
  %v7129 = vld [vmem:[#allocation5 + $0xfd] sm:$0xff]
  %v7130 = vld [vmem:[#allocation5 + $0x105] sm:$0xff]
  %v7131 = vld [vmem:[#allocation5 + $0x10d] sm:$0xff]
  %v7132 = vld [vmem:[#allocation5 + $0x115] sm:$0xff]
  %v7133 = vld [vmem:[#allocation5 + $0x11d] sm:$0xff]
  %v7134 = vld [vmem:[#allocation5 + $0x125] sm:$0xff]
  %v7135 = vld [vmem:[#allocation5 + $0x12d] sm:$0xff]
  %v7136 = vld [vmem:[#allocation5 + $0x135] sm:$0xff]
  %v7137 = vld [vmem:[#allocation5 + $0x13d] sm:$0x3f]
  %v7138 = vld [vmem:[%s2 + $0x16] ss:$0 sm:$0xff]
  %v7139 = vmul.f32 %v7102, %v7138
  %v7140 = vmul.f32 %v7103, %v7138
  %v7141 = vmul.f32 %v7104, %v7138
  %v7142 = vmul.f32 %v7105, %v7138
  %v7143 = vmul.f32 %v7106, %v7138
  %v7144 = vmul.f32 %v7107, %v7138
  %v7145 = vmul.f32 %v7108, %v7138
  %v7146 = vmul.f32 %v7109, %v7138
  %v7147 = vmul.f32 %v7110, %v7138
  %v7148 = vmul.f32 %v7111, %v7138
  %v7149 = vmul.f32 %v7112, %v7138
  %v7150 = vmul.f32 %v7113, %v7138
  %v7151 = vmul.f32 %v7114, %v7138
  %v7152 = vmul.f32 %v7115, %v7138
  %v7153 = vmul.f32 %v7116, %v7138
  %v7154 = vmul.f32 %v7117, %v7138
  %v7155 = vmul.f32 %v7118, %v7138
  %v7156 = vmul.f32 %v7119, %v7138
  %v7157 = vmul.f32 %v7120, %v7138
  %v7158 = vmul.f32 %v7121, %v7138
  %v7159 = vmul.f32 %v7122, %v7138
  %v7160 = vmul.f32 %v7123, %v7138
  %v7161 = vmul.f32 %v7124, %v7138
  %v7162 = vmul.f32 %v7125, %v7138
  %v7163 = vmul.f32 %v7126, %v7138
  %v7164 = vmul.f32 %v7127, %v7138
  %v7165 = vmul.f32 %v7128, %v7138
  %v7166 = vmul.f32 %v7129, %v7138
  %v7167 = vmul.f32 %v7130, %v7138
  %v7168 = vmul.f32 %v7131, %v7138
  %v7169 = vmul.f32 %v7132, %v7138
  %v7170 = vmul.f32 %v7133, %v7138
  %v7171 = vmul.f32 %v7134, %v7138
  %v7172 = vmul.f32 %v7135, %v7138
  %v7173 = vmul.f32 %v7136, %v7138
  %v7174 = vmul.f32 %v7137, %v7138
  %v7175 = vld [vmem:[#allocation7] sm:$0xff]
  %v7176 = vld [vmem:[#allocation7 + $0x8] sm:$0xff]
  %v7177 = vld [vmem:[#allocation7 + $0x10] sm:$0xff]
  %v7178 = vld [vmem:[#allocation7 + $0x18] sm:$0xff]
  %v7179 = vld [vmem:[#allocation7 + $0x20] sm:$0xff]
  %v7180 = vld [vmem:[#allocation7 + $0x28] sm:$0xff]
  %v7181 = vld [vmem:[#allocation7 + $0x30] sm:$0xff]
  %v7182 = vld [vmem:[#allocation7 + $0x38] sm:$0xff]
  %v7183 = vld [vmem:[#allocation7 + $0x40] sm:$0xff]
  %v7184 = vld [vmem:[#allocation7 + $0x48] sm:$0xff]
  %v7185 = vld [vmem:[#allocation7 + $0x50] sm:$0xff]
  %v7186 = vld [vmem:[#allocation7 + $0x58] sm:$0xff]
  %v7187 = vld [vmem:[#allocation7 + $0x60] sm:$0xff]
  %v7188 = vld [vmem:[#allocation7 + $0x68] sm:$0xff]
  %v7189 = vld [vmem:[#allocation7 + $0x70] sm:$0xff]
  %v7190 = vld [vmem:[#allocation7 + $0x78] sm:$0xff]
  %v7191 = vld [vmem:[#allocation7 + $0x80] sm:$0xff]
  %v7192 = vld [vmem:[#allocation7 + $0x88] sm:$0xff]
  %v7193 = vld [vmem:[#allocation7 + $0x90] sm:$0xff]
  %v7194 = vld [vmem:[#allocation7 + $0x98] sm:$0xff]
  %v7195 = vld [vmem:[#allocation7 + $0xa0] sm:$0xff]
  %v7196 = vld [vmem:[#allocation7 + $0xa8] sm:$0xff]
  %v7197 = vld [vmem:[#allocation7 + $0xb0] sm:$0xff]
  %v7198 = vld [vmem:[#allocation7 + $0xb8] sm:$0xff]
  %v7199 = vld [vmem:[#allocation7 + $0xc0] sm:$0xff]
  %v7200 = vld [vmem:[#allocation7 + $0xc8] sm:$0xff]
  %v7201 = vld [vmem:[#allocation7 + $0xd0] sm:$0xff]
  %v7202 = vld [vmem:[#allocation7 + $0xd8] sm:$0xff]
  %v7203 = vld [vmem:[#allocation7 + $0xe0] sm:$0xff]
  %v7204 = vld [vmem:[#allocation7 + $0xe8] sm:$0xff]
  %v7205 = vld [vmem:[#allocation7 + $0xf0] sm:$0xff]
  %v7206 = vld [vmem:[#allocation7 + $0xf8] sm:$0xff]
  %v7207 = vld [vmem:[#allocation7 + $0x100] sm:$0xff]
  %v7208 = vld [vmem:[#allocation7 + $0x108] sm:$0xff]
  %v7209 = vld [vmem:[#allocation7 + $0x110] sm:$0xff]
  %v7210 = vld [vmem:[#allocation7 + $0x118] sm:$0x3f]
  %v7211 = vadd.f32 %v7175, %v7139
  %v7212 = vadd.f32 %v7176, %v7140
  %v7213 = vadd.f32 %v7177, %v7141
  %v7214 = vadd.f32 %v7178, %v7142
  %v7215 = vadd.f32 %v7179, %v7143
  %v7216 = vadd.f32 %v7180, %v7144
  %v7217 = vadd.f32 %v7181, %v7145
  %v7218 = vadd.f32 %v7182, %v7146
  %v7219 = vadd.f32 %v7183, %v7147
  %v7220 = vadd.f32 %v7184, %v7148
  %v7221 = vadd.f32 %v7185, %v7149
  %v7222 = vadd.f32 %v7186, %v7150
  %v7223 = vadd.f32 %v7187, %v7151
  %v7224 = vadd.f32 %v7188, %v7152
  %v7225 = vadd.f32 %v7189, %v7153
  %v7226 = vadd.f32 %v7190, %v7154
  %v7227 = vadd.f32 %v7191, %v7155
  %v7228 = vadd.f32 %v7192, %v7156
  %v7229 = vadd.f32 %v7193, %v7157
  %v7230 = vadd.f32 %v7194, %v7158
  %v7231 = vadd.f32 %v7195, %v7159
  %v7232 = vadd.f32 %v7196, %v7160
  %v7233 = vadd.f32 %v7197, %v7161
  %v7234 = vadd.f32 %v7198, %v7162
  %v7235 = vadd.f32 %v7199, %v7163
  %v7236 = vadd.f32 %v7200, %v7164
  %v7237 = vadd.f32 %v7201, %v7165
  %v7238 = vadd.f32 %v7202, %v7166
  %v7239 = vadd.f32 %v7203, %v7167
  %v7240 = vadd.f32 %v7204, %v7168
  %v7241 = vadd.f32 %v7205, %v7169
  %v7242 = vadd.f32 %v7206, %v7170
  %v7243 = vadd.f32 %v7207, %v7171
  %v7244 = vadd.f32 %v7208, %v7172
  %v7245 = vadd.f32 %v7209, %v7173
  %v7246 = vadd.f32 %v7210, %v7174
  %7247 = vst.msk [vmem:[#allocation7] sm:$0xff] %vm223, %v7211
  %7248 = vst.msk [vmem:[#allocation7 + $0x8] sm:$0xff] %vm223, %v7212
  %7249 = vst.msk [vmem:[#allocation7 + $0x10] sm:$0xff] %vm223, %v7213
  %7250 = vst.msk [vmem:[#allocation7 + $0x18] sm:$0xff] %vm223, %v7214
  %7251 = vst.msk [vmem:[#allocation7 + $0x20] sm:$0xff] %vm223, %v7215
  %7252 = vst.msk [vmem:[#allocation7 + $0x28] sm:$0xff] %vm223, %v7216
  %7253 = vst.msk [vmem:[#allocation7 + $0x30] sm:$0xff] %vm223, %v7217
  %7254 = vst.msk [vmem:[#allocation7 + $0x38] sm:$0xff] %vm223, %v7218
  %7255 = vst.msk [vmem:[#allocation7 + $0x40] sm:$0xff] %vm223, %v7219
  %7256 = vst.msk [vmem:[#allocation7 + $0x48] sm:$0xff] %vm223, %v7220
  %7257 = vst.msk [vmem:[#allocation7 + $0x50] sm:$0xff] %vm223, %v7221
  %7258 = vst.msk [vmem:[#allocation7 + $0x58] sm:$0xff] %vm223, %v7222
  %7259 = vst.msk [vmem:[#allocation7 + $0x60] sm:$0xff] %vm223, %v7223
  %7260 = vst.msk [vmem:[#allocation7 + $0x68] sm:$0xff] %vm223, %v7224
  %7261 = vst.msk [vmem:[#allocation7 + $0x70] sm:$0xff] %vm223, %v7225
  %7262 = vst.msk [vmem:[#allocation7 + $0x78] sm:$0xff] %vm223, %v7226
  %7263 = vst.msk [vmem:[#allocation7 + $0x80] sm:$0xff] %vm223, %v7227
  %7264 = vst.msk [vmem:[#allocation7 + $0x88] sm:$0xff] %vm223, %v7228
  %7265 = vst.msk [vmem:[#allocation7 + $0x90] sm:$0xff] %vm223, %v7229
  %7266 = vst.msk [vmem:[#allocation7 + $0x98] sm:$0xff] %vm223, %v7230
  %7267 = vst.msk [vmem:[#allocation7 + $0xa0] sm:$0xff] %vm223, %v7231
  %7268 = vst.msk [vmem:[#allocation7 + $0xa8] sm:$0xff] %vm223, %v7232
  %7269 = vst.msk [vmem:[#allocation7 + $0xb0] sm:$0xff] %vm223, %v7233
  %7270 = vst.msk [vmem:[#allocation7 + $0xb8] sm:$0xff] %vm223, %v7234
  %7271 = vst.msk [vmem:[#allocation7 + $0xc0] sm:$0xff] %vm223, %v7235
  %7272 = vst.msk [vmem:[#allocation7 + $0xc8] sm:$0xff] %vm223, %v7236
  %7273 = vst.msk [vmem:[#allocation7 + $0xd0] sm:$0xff] %vm223, %v7237
  %7274 = vst.msk [vmem:[#allocation7 + $0xd8] sm:$0xff] %vm223, %v7238
  %7275 = vst.msk [vmem:[#allocation7 + $0xe0] sm:$0xff] %vm223, %v7239
  %7276 = vst.msk [vmem:[#allocation7 + $0xe8] sm:$0xff] %vm223, %v7240
  %7277 = vst.msk [vmem:[#allocation7 + $0xf0] sm:$0xff] %vm223, %v7241
  %7278 = vst.msk [vmem:[#allocation7 + $0xf8] sm:$0xff] %vm223, %v7242
  %7279 = vst.msk [vmem:[#allocation7 + $0x100] sm:$0xff] %vm223, %v7243
  %7280 = vst.msk [vmem:[#allocation7 + $0x108] sm:$0xff] %vm223, %v7244
  %7281 = vst.msk [vmem:[#allocation7 + $0x110] sm:$0xff] %vm223, %v7245
  %7282 = vst.msk [vmem:[#allocation7 + $0x118] sm:$0x3f] %vm6014, %v7246
  %v7283 = vld [vmem:[#allocation5 + $0x26] sm:$0xff]
  %v7284 = vld [vmem:[#allocation5 + $0x2e] sm:$0xff]
  %v7285 = vld [vmem:[#allocation5 + $0x36] sm:$0xff]
  %v7286 = vld [vmem:[#allocation5 + $0x3e] sm:$0xff]
  %v7287 = vld [vmem:[#allocation5 + $0x46] sm:$0xff]
  %v7288 = vld [vmem:[#allocation5 + $0x4e] sm:$0xff]
  %v7289 = vld [vmem:[#allocation5 + $0x56] sm:$0xff]
  %v7290 = vld [vmem:[#allocation5 + $0x5e] sm:$0xff]
  %v7291 = vld [vmem:[#allocation5 + $0x66] sm:$0xff]
  %v7292 = vld [vmem:[#allocation5 + $0x6e] sm:$0xff]
  %v7293 = vld [vmem:[#allocation5 + $0x76] sm:$0xff]
  %v7294 = vld [vmem:[#allocation5 + $0x7e] sm:$0xff]
  %v7295 = vld [vmem:[#allocation5 + $0x86] sm:$0xff]
  %v7296 = vld [vmem:[#allocation5 + $0x8e] sm:$0xff]
  %v7297 = vld [vmem:[#allocation5 + $0x96] sm:$0xff]
  %v7298 = vld [vmem:[#allocation5 + $0x9e] sm:$0xff]
  %v7299 = vld [vmem:[#allocation5 + $0xa6] sm:$0xff]
  %v7300 = vld [vmem:[#allocation5 + $0xae] sm:$0xff]
  %v7301 = vld [vmem:[#allocation5 + $0xb6] sm:$0xff]
  %v7302 = vld [vmem:[#allocation5 + $0xbe] sm:$0xff]
  %v7303 = vld [vmem:[#allocation5 + $0xc6] sm:$0xff]
  %v7304 = vld [vmem:[#allocation5 + $0xce] sm:$0xff]
  %v7305 = vld [vmem:[#allocation5 + $0xd6] sm:$0xff]
  %v7306 = vld [vmem:[#allocation5 + $0xde] sm:$0xff]
  %v7307 = vld [vmem:[#allocation5 + $0xe6] sm:$0xff]
  %v7308 = vld [vmem:[#allocation5 + $0xee] sm:$0xff]
  %v7309 = vld [vmem:[#allocation5 + $0xf6] sm:$0xff]
  %v7310 = vld [vmem:[#allocation5 + $0xfe] sm:$0xff]
  %v7311 = vld [vmem:[#allocation5 + $0x106] sm:$0xff]
  %v7312 = vld [vmem:[#allocation5 + $0x10e] sm:$0xff]
  %v7313 = vld [vmem:[#allocation5 + $0x116] sm:$0xff]
  %v7314 = vld [vmem:[#allocation5 + $0x11e] sm:$0xff]
  %v7315 = vld [vmem:[#allocation5 + $0x126] sm:$0xff]
  %v7316 = vld [vmem:[#allocation5 + $0x12e] sm:$0xff]
  %v7317 = vld [vmem:[#allocation5 + $0x136] sm:$0xff]
  %v7318 = vld [vmem:[#allocation5 + $0x13e] sm:$0x3f]
  %v7319 = vld [vmem:[%s2 + $0x17] ss:$0 sm:$0xff]
  %v7320 = vmul.f32 %v7283, %v7319
  %v7321 = vmul.f32 %v7284, %v7319
  %v7322 = vmul.f32 %v7285, %v7319
  %v7323 = vmul.f32 %v7286, %v7319
  %v7324 = vmul.f32 %v7287, %v7319
  %v7325 = vmul.f32 %v7288, %v7319
  %v7326 = vmul.f32 %v7289, %v7319
  %v7327 = vmul.f32 %v7290, %v7319
  %v7328 = vmul.f32 %v7291, %v7319
  %v7329 = vmul.f32 %v7292, %v7319
  %v7330 = vmul.f32 %v7293, %v7319
  %v7331 = vmul.f32 %v7294, %v7319
  %v7332 = vmul.f32 %v7295, %v7319
  %v7333 = vmul.f32 %v7296, %v7319
  %v7334 = vmul.f32 %v7297, %v7319
  %v7335 = vmul.f32 %v7298, %v7319
  %v7336 = vmul.f32 %v7299, %v7319
  %v7337 = vmul.f32 %v7300, %v7319
  %v7338 = vmul.f32 %v7301, %v7319
  %v7339 = vmul.f32 %v7302, %v7319
  %v7340 = vmul.f32 %v7303, %v7319
  %v7341 = vmul.f32 %v7304, %v7319
  %v7342 = vmul.f32 %v7305, %v7319
  %v7343 = vmul.f32 %v7306, %v7319
  %v7344 = vmul.f32 %v7307, %v7319
  %v7345 = vmul.f32 %v7308, %v7319
  %v7346 = vmul.f32 %v7309, %v7319
  %v7347 = vmul.f32 %v7310, %v7319
  %v7348 = vmul.f32 %v7311, %v7319
  %v7349 = vmul.f32 %v7312, %v7319
  %v7350 = vmul.f32 %v7313, %v7319
  %v7351 = vmul.f32 %v7314, %v7319
  %v7352 = vmul.f32 %v7315, %v7319
  %v7353 = vmul.f32 %v7316, %v7319
  %v7354 = vmul.f32 %v7317, %v7319
  %v7355 = vmul.f32 %v7318, %v7319
  %v7356 = vld [vmem:[#allocation7] sm:$0xff]
  %v7357 = vld [vmem:[#allocation7 + $0x8] sm:$0xff]
  %v7358 = vld [vmem:[#allocation7 + $0x10] sm:$0xff]
  %v7359 = vld [vmem:[#allocation7 + $0x18] sm:$0xff]
  %v7360 = vld [vmem:[#allocation7 + $0x20] sm:$0xff]
  %v7361 = vld [vmem:[#allocation7 + $0x28] sm:$0xff]
  %v7362 = vld [vmem:[#allocation7 + $0x30] sm:$0xff]
  %v7363 = vld [vmem:[#allocation7 + $0x38] sm:$0xff]
  %v7364 = vld [vmem:[#allocation7 + $0x40] sm:$0xff]
  %v7365 = vld [vmem:[#allocation7 + $0x48] sm:$0xff]
  %v7366 = vld [vmem:[#allocation7 + $0x50] sm:$0xff]
  %v7367 = vld [vmem:[#allocation7 + $0x58] sm:$0xff]
  %v7368 = vld [vmem:[#allocation7 + $0x60] sm:$0xff]
  %v7369 = vld [vmem:[#allocation7 + $0x68] sm:$0xff]
  %v7370 = vld [vmem:[#allocation7 + $0x70] sm:$0xff]
  %v7371 = vld [vmem:[#allocation7 + $0x78] sm:$0xff]
  %v7372 = vld [vmem:[#allocation7 + $0x80] sm:$0xff]
  %v7373 = vld [vmem:[#allocation7 + $0x88] sm:$0xff]
  %v7374 = vld [vmem:[#allocation7 + $0x90] sm:$0xff]
  %v7375 = vld [vmem:[#allocation7 + $0x98] sm:$0xff]
  %v7376 = vld [vmem:[#allocation7 + $0xa0] sm:$0xff]
  %v7377 = vld [vmem:[#allocation7 + $0xa8] sm:$0xff]
  %v7378 = vld [vmem:[#allocation7 + $0xb0] sm:$0xff]
  %v7379 = vld [vmem:[#allocation7 + $0xb8] sm:$0xff]
  %v7380 = vld [vmem:[#allocation7 + $0xc0] sm:$0xff]
  %v7381 = vld [vmem:[#allocation7 + $0xc8] sm:$0xff]
  %v7382 = vld [vmem:[#allocation7 + $0xd0] sm:$0xff]
  %v7383 = vld [vmem:[#allocation7 + $0xd8] sm:$0xff]
  %v7384 = vld [vmem:[#allocation7 + $0xe0] sm:$0xff]
  %v7385 = vld [vmem:[#allocation7 + $0xe8] sm:$0xff]
  %v7386 = vld [vmem:[#allocation7 + $0xf0] sm:$0xff]
  %v7387 = vld [vmem:[#allocation7 + $0xf8] sm:$0xff]
  %v7388 = vld [vmem:[#allocation7 + $0x100] sm:$0xff]
  %v7389 = vld [vmem:[#allocation7 + $0x108] sm:$0xff]
  %v7390 = vld [vmem:[#allocation7 + $0x110] sm:$0xff]
  %v7391 = vld [vmem:[#allocation7 + $0x118] sm:$0x3f]
  %v7392 = vadd.f32 %v7356, %v7320
  %v7393 = vadd.f32 %v7357, %v7321
  %v7394 = vadd.f32 %v7358, %v7322
  %v7395 = vadd.f32 %v7359, %v7323
  %v7396 = vadd.f32 %v7360, %v7324
  %v7397 = vadd.f32 %v7361, %v7325
  %v7398 = vadd.f32 %v7362, %v7326
  %v7399 = vadd.f32 %v7363, %v7327
  %v7400 = vadd.f32 %v7364, %v7328
  %v7401 = vadd.f32 %v7365, %v7329
  %v7402 = vadd.f32 %v7366, %v7330
  %v7403 = vadd.f32 %v7367, %v7331
  %v7404 = vadd.f32 %v7368, %v7332
  %v7405 = vadd.f32 %v7369, %v7333
  %v7406 = vadd.f32 %v7370, %v7334
  %v7407 = vadd.f32 %v7371, %v7335
  %v7408 = vadd.f32 %v7372, %v7336
  %v7409 = vadd.f32 %v7373, %v7337
  %v7410 = vadd.f32 %v7374, %v7338
  %v7411 = vadd.f32 %v7375, %v7339
  %v7412 = vadd.f32 %v7376, %v7340
  %v7413 = vadd.f32 %v7377, %v7341
  %v7414 = vadd.f32 %v7378, %v7342
  %v7415 = vadd.f32 %v7379, %v7343
  %v7416 = vadd.f32 %v7380, %v7344
  %v7417 = vadd.f32 %v7381, %v7345
  %v7418 = vadd.f32 %v7382, %v7346
  %v7419 = vadd.f32 %v7383, %v7347
  %v7420 = vadd.f32 %v7384, %v7348
  %v7421 = vadd.f32 %v7385, %v7349
  %v7422 = vadd.f32 %v7386, %v7350
  %v7423 = vadd.f32 %v7387, %v7351
  %v7424 = vadd.f32 %v7388, %v7352
  %v7425 = vadd.f32 %v7389, %v7353
  %v7426 = vadd.f32 %v7390, %v7354
  %v7427 = vadd.f32 %v7391, %v7355
  %7428 = vst.msk [vmem:[#allocation7] sm:$0xff] %vm223, %v7392
  %7429 = vst.msk [vmem:[#allocation7 + $0x8] sm:$0xff] %vm223, %v7393
  %7430 = vst.msk [vmem:[#allocation7 + $0x10] sm:$0xff] %vm223, %v7394
  %7431 = vst.msk [vmem:[#allocation7 + $0x18] sm:$0xff] %vm223, %v7395
  %7432 = vst.msk [vmem:[#allocation7 + $0x20] sm:$0xff] %vm223, %v7396
  %7433 = vst.msk [vmem:[#allocation7 + $0x28] sm:$0xff] %vm223, %v7397
  %7434 = vst.msk [vmem:[#allocation7 + $0x30] sm:$0xff] %vm223, %v7398
  %7435 = vst.msk [vmem:[#allocation7 + $0x38] sm:$0xff] %vm223, %v7399
  %7436 = vst.msk [vmem:[#allocation7 + $0x40] sm:$0xff] %vm223, %v7400
  %7437 = vst.msk [vmem:[#allocation7 + $0x48] sm:$0xff] %vm223, %v7401
  %7438 = vst.msk [vmem:[#allocation7 + $0x50] sm:$0xff] %vm223, %v7402
  %7439 = vst.msk [vmem:[#allocation7 + $0x58] sm:$0xff] %vm223, %v7403
  %7440 = vst.msk [vmem:[#allocation7 + $0x60] sm:$0xff] %vm223, %v7404
  %7441 = vst.msk [vmem:[#allocation7 + $0x68] sm:$0xff] %vm223, %v7405
  %7442 = vst.msk [vmem:[#allocation7 + $0x70] sm:$0xff] %vm223, %v7406
  %7443 = vst.msk [vmem:[#allocation7 + $0x78] sm:$0xff] %vm223, %v7407
  %7444 = vst.msk [vmem:[#allocation7 + $0x80] sm:$0xff] %vm223, %v7408
  %7445 = vst.msk [vmem:[#allocation7 + $0x88] sm:$0xff] %vm223, %v7409
  %7446 = vst.msk [vmem:[#allocation7 + $0x90] sm:$0xff] %vm223, %v7410
  %7447 = vst.msk [vmem:[#allocation7 + $0x98] sm:$0xff] %vm223, %v7411
  %7448 = vst.msk [vmem:[#allocation7 + $0xa0] sm:$0xff] %vm223, %v7412
  %7449 = vst.msk [vmem:[#allocation7 + $0xa8] sm:$0xff] %vm223, %v7413
  %7450 = vst.msk [vmem:[#allocation7 + $0xb0] sm:$0xff] %vm223, %v7414
  %7451 = vst.msk [vmem:[#allocation7 + $0xb8] sm:$0xff] %vm223, %v7415
  %7452 = vst.msk [vmem:[#allocation7 + $0xc0] sm:$0xff] %vm223, %v7416
  %7453 = vst.msk [vmem:[#allocation7 + $0xc8] sm:$0xff] %vm223, %v7417
  %7454 = vst.msk [vmem:[#allocation7 + $0xd0] sm:$0xff] %vm223, %v7418
  %7455 = vst.msk [vmem:[#allocation7 + $0xd8] sm:$0xff] %vm223, %v7419
  %7456 = vst.msk [vmem:[#allocation7 + $0xe0] sm:$0xff] %vm223, %v7420
  %7457 = vst.msk [vmem:[#allocation7 + $0xe8] sm:$0xff] %vm223, %v7421
  %7458 = vst.msk [vmem:[#allocation7 + $0xf0] sm:$0xff] %vm223, %v7422
  %7459 = vst.msk [vmem:[#allocation7 + $0xf8] sm:$0xff] %vm223, %v7423
  %7460 = vst.msk [vmem:[#allocation7 + $0x100] sm:$0xff] %vm223, %v7424
  %7461 = vst.msk [vmem:[#allocation7 + $0x108] sm:$0xff] %vm223, %v7425
  %7462 = vst.msk [vmem:[#allocation7 + $0x110] sm:$0xff] %vm223, %v7426
  %7463 = vst.msk [vmem:[#allocation7 + $0x118] sm:$0x3f] %vm6014, %v7427
  %v7464 = vld [vmem:[#allocation7] sm:$0xff]
  %v7465 = vld [vmem:[#allocation7 + $0x8] sm:$0xff]
  %v7466 = vld [vmem:[#allocation7 + $0x10] sm:$0xff]
  %v7467 = vld [vmem:[#allocation7 + $0x18] sm:$0xff]
  %v7468 = vld [vmem:[#allocation7 + $0x20] sm:$0xff]
  %v7469 = vld [vmem:[#allocation7 + $0x28] sm:$0xff]
  %v7470 = vld [vmem:[#allocation7 + $0x30] sm:$0xff]
  %v7471 = vld [vmem:[#allocation7 + $0x38] sm:$0xff]
  %v7472 = vld [vmem:[#allocation7 + $0x40] sm:$0xff]
  %v7473 = vld [vmem:[#allocation7 + $0x48] sm:$0xff]
  %v7474 = vld [vmem:[#allocation7 + $0x50] sm:$0xff]
  %v7475 = vld [vmem:[#allocation7 + $0x58] sm:$0xff]
  %v7476 = vld [vmem:[#allocation7 + $0x60] sm:$0xff]
  %v7477 = vld [vmem:[#allocation7 + $0x68] sm:$0xff]
  %v7478 = vld [vmem:[#allocation7 + $0x70] sm:$0xff]
  %v7479 = vld [vmem:[#allocation7 + $0x78] sm:$0xff]
  %v7480 = vld [vmem:[#allocation7 + $0x80] sm:$0xff]
  %v7481 = vld [vmem:[#allocation7 + $0x88] sm:$0xff]
  %v7482 = vld [vmem:[#allocation7 + $0x90] sm:$0xff]
  %v7483 = vld [vmem:[#allocation7 + $0x98] sm:$0xff]
  %v7484 = vld [vmem:[#allocation7 + $0xa0] sm:$0xff]
  %v7485 = vld [vmem:[#allocation7 + $0xa8] sm:$0xff]
  %v7486 = vld [vmem:[#allocation7 + $0xb0] sm:$0xff]
  %v7487 = vld [vmem:[#allocation7 + $0xb8] sm:$0xff]
  %v7488 = vld [vmem:[#allocation7 + $0xc0] sm:$0xff]
  %v7489 = vld [vmem:[#allocation7 + $0xc8] sm:$0xff]
  %v7490 = vld [vmem:[#allocation7 + $0xd0] sm:$0xff]
  %v7491 = vld [vmem:[#allocation7 + $0xd8] sm:$0xff]
  %v7492 = vld [vmem:[#allocation7 + $0xe0] sm:$0xff]
  %v7493 = vld [vmem:[#allocation7 + $0xe8] sm:$0xff]
  %v7494 = vld [vmem:[#allocation7 + $0xf0] sm:$0xff]
  %v7495 = vld [vmem:[#allocation7 + $0xf8] sm:$0xff]
  %v7496 = vld [vmem:[#allocation7 + $0x100] sm:$0xff]
  %v7497 = vld [vmem:[#allocation7 + $0x108] sm:$0xff]
  %v7498 = vld [vmem:[#allocation7 + $0x110] sm:$0xff]
  %v7499 = vld [vmem:[#allocation7 + $0x118] sm:$0x3f]
  %v7500 = vld [vmem:[%s12] sm:$0xf]
  %v7501 = vld [vmem:[%s12 + $0x4] sm:$0xf]
  %v7502 = vld [vmem:[%s12 + $0x8] sm:$0xf]
  %v7503 = vld [vmem:[%s12 + $0xc] sm:$0xf]
  %v7504 = vunpack.c.l.bf16 %v7500
  %v7505 = vunpack.c.l.bf16 %v7501
  %v7506 = vunpack.c.l.bf16 %v7502
  %v7507 = vunpack.c.l.bf16 %v7503
  %v7509 = vsel %vm223, %v7464, 0
  %v7512 = vsel %vm223, %v7465, 0
  %v7515 = vsel %vm223, %v7466, 0
  %v7518 = vsel %vm223, %v7467, 0
  %v7521 = vsel %vm223, %v7468, 0
  %v7524 = vsel %vm223, %v7469, 0
  %v7527 = vsel %vm223, %v7470, 0
  %v7530 = vsel %vm223, %v7471, 0
  %v7533 = vsel %vm223, %v7472, 0
  %v7536 = vsel %vm223, %v7473, 0
  %v7539 = vsel %vm223, %v7474, 0
  %v7542 = vsel %vm223, %v7475, 0
  %v7545 = vsel %vm223, %v7476, 0
  %v7548 = vsel %vm223, %v7477, 0
  %v7551 = vsel %vm223, %v7478, 0
  %v7554 = vsel %vm223, %v7479, 0
  %v7557 = vsel %vm223, %v7480, 0
  %v7560 = vsel %vm223, %v7481, 0
  %v7563 = vsel %vm223, %v7482, 0
  %v7566 = vsel %vm223, %v7483, 0
  %v7569 = vsel %vm223, %v7484, 0
  %v7572 = vsel %vm223, %v7485, 0
  %v7575 = vsel %vm223, %v7486, 0
  %v7578 = vsel %vm223, %v7487, 0
  %v7581 = vsel %vm223, %v7488, 0
  %v7584 = vsel %vm223, %v7489, 0
  %v7587 = vsel %vm223, %v7490, 0
  %v7590 = vsel %vm223, %v7491, 0
  %v7593 = vsel %vm223, %v7492, 0
  %v7596 = vsel %vm223, %v7493, 0
  %v7599 = vsel %vm223, %v7494, 0
  %v7602 = vsel %vm223, %v7495, 0
  %v7605 = vsel %vm223, %v7496, 0
  %v7608 = vsel %vm223, %v7497, 0
  %v7611 = vsel %vm223, %v7498, 0
  %v7614 = vsel %vm223, %v7499, 0
  %7616 = vmatpush.msra.mxu0 0.0
  %7617 = vmatpush.msra.mxu0 0.0
  %7618 = vmatpush.msra.mxu0 0.0
  %7619 = vmatpush.msra.mxu0 0.0
  %7620 = vmatpush.msra.mxu0 0.0
  %7621 = vmatpush.msra.mxu0 0.0
  %7622 = vmatpush.msra.mxu0 0.0
  %7623 = vmatpush.msra.mxu0 0.0
  %7624 = vmatpush.msra.mxu0 0.0
  %7625 = vmatpush.msra.mxu0 0.0
  %7626 = vmatpush.msra.mxu0 0.0
  %7627 = vmatpush.msra.mxu0 0.0
  %7628 = vmatpush.msra.mxu0 %v7507
  %7629 = vmatpush.msra.mxu0 %v7506
  %7630 = vmatpush.msra.mxu0 %v7505
  %7631 = vmatpush.msra.mxu0 %v7504
  %7632 = vmatmul.f32.gmra.mxu0 %v7509
  %v7633 = vpop.f32.mrf.mxu0
  %v7634 = vadd.f32 0.0, %v7633
  %7635 = vmatmul.f32.gmra.mxu0 %v7512
  %v7636 = vpop.f32.mrf.mxu0
  %v7637 = vadd.f32 0.0, %v7636
  %7638 = vmatmul.f32.gmra.mxu0 %v7515
  %v7639 = vpop.f32.mrf.mxu0
  %v7640 = vadd.f32 0.0, %v7639
  %7641 = vmatmul.f32.gmra.mxu0 %v7518
  %v7642 = vpop.f32.mrf.mxu0
  %v7643 = vadd.f32 0.0, %v7642
  %7644 = vmatmul.f32.gmra.mxu0 %v7521
  %v7645 = vpop.f32.mrf.mxu0
  %v7646 = vadd.f32 0.0, %v7645
  %7647 = vmatmul.f32.gmra.mxu0 %v7524
  %v7648 = vpop.f32.mrf.mxu0
  %v7649 = vadd.f32 0.0, %v7648
  %7650 = vmatmul.f32.gmra.mxu0 %v7527
  %v7651 = vpop.f32.mrf.mxu0
  %v7652 = vadd.f32 0.0, %v7651
  %7653 = vmatmul.f32.gmra.mxu0 %v7530
  %v7654 = vpop.f32.mrf.mxu0
  %v7655 = vadd.f32 0.0, %v7654
  %7656 = vmatmul.f32.gmra.mxu0 %v7533
  %v7657 = vpop.f32.mrf.mxu0
  %v7658 = vadd.f32 0.0, %v7657
  %7659 = vmatmul.f32.gmra.mxu0 %v7536
  %v7660 = vpop.f32.mrf.mxu0
  %v7661 = vadd.f32 0.0, %v7660
  %7662 = vmatmul.f32.gmra.mxu0 %v7539
  %v7663 = vpop.f32.mrf.mxu0
  %v7664 = vadd.f32 0.0, %v7663
  %7665 = vmatmul.f32.gmra.mxu0 %v7542
  %v7666 = vpop.f32.mrf.mxu0
  %v7667 = vadd.f32 0.0, %v7666
  %7668 = vmatmul.f32.gmra.mxu0 %v7545
  %v7669 = vpop.f32.mrf.mxu0
  %v7670 = vadd.f32 0.0, %v7669
  %7671 = vmatmul.f32.gmra.mxu0 %v7548
  %v7672 = vpop.f32.mrf.mxu0
  %v7673 = vadd.f32 0.0, %v7672
  %7674 = vmatmul.f32.gmra.mxu0 %v7551
  %v7675 = vpop.f32.mrf.mxu0
  %v7676 = vadd.f32 0.0, %v7675
  %7677 = vmatmul.f32.gmra.mxu0 %v7554
  %v7678 = vpop.f32.mrf.mxu0
  %v7679 = vadd.f32 0.0, %v7678
  %7680 = vmatmul.f32.gmra.mxu0 %v7557
  %v7681 = vpop.f32.mrf.mxu0
  %v7682 = vadd.f32 0.0, %v7681
  %7683 = vmatmul.f32.gmra.mxu0 %v7560
  %v7684 = vpop.f32.mrf.mxu0
  %v7685 = vadd.f32 0.0, %v7684
  %7686 = vmatmul.f32.gmra.mxu0 %v7563
  %v7687 = vpop.f32.mrf.mxu0
  %v7688 = vadd.f32 0.0, %v7687
  %7689 = vmatmul.f32.gmra.mxu0 %v7566
  %v7690 = vpop.f32.mrf.mxu0
  %v7691 = vadd.f32 0.0, %v7690
  %7692 = vmatmul.f32.gmra.mxu0 %v7569
  %v7693 = vpop.f32.mrf.mxu0
  %v7694 = vadd.f32 0.0, %v7693
  %7695 = vmatmul.f32.gmra.mxu0 %v7572
  %v7696 = vpop.f32.mrf.mxu0
  %v7697 = vadd.f32 0.0, %v7696
  %7698 = vmatmul.f32.gmra.mxu0 %v7575
  %v7699 = vpop.f32.mrf.mxu0
  %v7700 = vadd.f32 0.0, %v7699
  %7701 = vmatmul.f32.gmra.mxu0 %v7578
  %v7702 = vpop.f32.mrf.mxu0
  %v7703 = vadd.f32 0.0, %v7702
  %7704 = vmatmul.f32.gmra.mxu0 %v7581
  %v7705 = vpop.f32.mrf.mxu0
  %v7706 = vadd.f32 0.0, %v7705
  %7707 = vmatmul.f32.gmra.mxu0 %v7584
  %v7708 = vpop.f32.mrf.mxu0
  %v7709 = vadd.f32 0.0, %v7708
  %7710 = vmatmul.f32.gmra.mxu0 %v7587
  %v7711 = vpop.f32.mrf.mxu0
  %v7712 = vadd.f32 0.0, %v7711
  %7713 = vmatmul.f32.gmra.mxu0 %v7590
  %v7714 = vpop.f32.mrf.mxu0
  %v7715 = vadd.f32 0.0, %v7714
  %7716 = vmatmul.f32.gmra.mxu0 %v7593
  %v7717 = vpop.f32.mrf.mxu0
  %v7718 = vadd.f32 0.0, %v7717
  %7719 = vmatmul.f32.gmra.mxu0 %v7596
  %v7720 = vpop.f32.mrf.mxu0
  %v7721 = vadd.f32 0.0, %v7720
  %7722 = vmatmul.f32.gmra.mxu0 %v7599
  %v7723 = vpop.f32.mrf.mxu0
  %v7724 = vadd.f32 0.0, %v7723
  %7725 = vmatmul.f32.gmra.mxu0 %v7602
  %v7726 = vpop.f32.mrf.mxu0
  %v7727 = vadd.f32 0.0, %v7726
  %7728 = vmatmul.f32.gmra.mxu0 %v7605
  %v7729 = vpop.f32.mrf.mxu0
  %v7730 = vadd.f32 0.0, %v7729
  %7731 = vmatmul.f32.gmra.mxu0 %v7608
  %v7732 = vpop.f32.mrf.mxu0
  %v7733 = vadd.f32 0.0, %v7732
  %7734 = vmatmul.f32.gmra.mxu0 %v7611
  %v7735 = vpop.f32.mrf.mxu0
  %v7736 = vadd.f32 0.0, %v7735
  %7737 = vmatmul.f32.gmra.mxu0 %v7614
  %v7738 = vpop.f32.mrf.mxu0
  %v7739 = vadd.f32 0.0, %v7738
  %7740 = vdwg.mxu0
  %7742 = vset.pattern.permute.xlu0 0
  %7743 = vperm.xlu0 %7742, %v7634
  %v7744 = vpop.permute.xlu0 %7743
  %7747 = vset.pattern.permute.xlu0 0
  %7748 = vperm.xlu0 %7747, %v7637
  %v7749 = vpop.permute.xlu0 %7748
  %7752 = vset.pattern.permute.xlu0 0
  %7753 = vperm.xlu0 %7752, %v7640
  %v7754 = vpop.permute.xlu0 %7753
  %7757 = vset.pattern.permute.xlu0 0
  %7758 = vperm.xlu0 %7757, %v7643
  %v7759 = vpop.permute.xlu0 %7758
  %7762 = vset.pattern.permute.xlu0 0
  %7763 = vperm.xlu0 %7762, %v7646
  %v7764 = vpop.permute.xlu0 %7763
  %7767 = vset.pattern.permute.xlu0 0
  %7768 = vperm.xlu0 %7767, %v7649
  %v7769 = vpop.permute.xlu0 %7768
  %7772 = vset.pattern.permute.xlu0 0
  %7773 = vperm.xlu0 %7772, %v7652
  %v7774 = vpop.permute.xlu0 %7773
  %7777 = vset.pattern.permute.xlu0 0
  %7778 = vperm.xlu0 %7777, %v7655
  %v7779 = vpop.permute.xlu0 %7778
  %7782 = vset.pattern.permute.xlu0 0
  %7783 = vperm.xlu0 %7782, %v7658
  %v7784 = vpop.permute.xlu0 %7783
  %7787 = vset.pattern.permute.xlu0 0
  %7788 = vperm.xlu0 %7787, %v7661
  %v7789 = vpop.permute.xlu0 %7788
  %7792 = vset.pattern.permute.xlu0 0
  %7793 = vperm.xlu0 %7792, %v7664
  %v7794 = vpop.permute.xlu0 %7793
  %7797 = vset.pattern.permute.xlu0 0
  %7798 = vperm.xlu0 %7797, %v7667
  %v7799 = vpop.permute.xlu0 %7798
  %7802 = vset.pattern.permute.xlu0 0
  %7803 = vperm.xlu0 %7802, %v7670
  %v7804 = vpop.permute.xlu0 %7803
  %7807 = vset.pattern.permute.xlu0 0
  %7808 = vperm.xlu0 %7807, %v7673
  %v7809 = vpop.permute.xlu0 %7808
  %7812 = vset.pattern.permute.xlu0 0
  %7813 = vperm.xlu0 %7812, %v7676
  %v7814 = vpop.permute.xlu0 %7813
  %7817 = vset.pattern.permute.xlu0 0
  %7818 = vperm.xlu0 %7817, %v7679
  %v7819 = vpop.permute.xlu0 %7818
  %7822 = vset.pattern.permute.xlu0 0
  %7823 = vperm.xlu0 %7822, %v7682
  %v7824 = vpop.permute.xlu0 %7823
  %7827 = vset.pattern.permute.xlu0 0
  %7828 = vperm.xlu0 %7827, %v7685
  %v7829 = vpop.permute.xlu0 %7828
  %7832 = vset.pattern.permute.xlu0 0
  %7833 = vperm.xlu0 %7832, %v7688
  %v7834 = vpop.permute.xlu0 %7833
  %7837 = vset.pattern.permute.xlu0 0
  %7838 = vperm.xlu0 %7837, %v7691
  %v7839 = vpop.permute.xlu0 %7838
  %7842 = vset.pattern.permute.xlu0 0
  %7843 = vperm.xlu0 %7842, %v7694
  %v7844 = vpop.permute.xlu0 %7843
  %7847 = vset.pattern.permute.xlu0 0
  %7848 = vperm.xlu0 %7847, %v7697
  %v7849 = vpop.permute.xlu0 %7848
  %7852 = vset.pattern.permute.xlu0 0
  %7853 = vperm.xlu0 %7852, %v7700
  %v7854 = vpop.permute.xlu0 %7853
  %7857 = vset.pattern.permute.xlu0 0
  %7858 = vperm.xlu0 %7857, %v7703
  %v7859 = vpop.permute.xlu0 %7858
  %7862 = vset.pattern.permute.xlu0 0
  %7863 = vperm.xlu0 %7862, %v7706
  %v7864 = vpop.permute.xlu0 %7863
  %7867 = vset.pattern.permute.xlu0 0
  %7868 = vperm.xlu0 %7867, %v7709
  %v7869 = vpop.permute.xlu0 %7868
  %7872 = vset.pattern.permute.xlu0 0
  %7873 = vperm.xlu0 %7872, %v7712
  %v7874 = vpop.permute.xlu0 %7873
  %7877 = vset.pattern.permute.xlu0 0
  %7878 = vperm.xlu0 %7877, %v7715
  %v7879 = vpop.permute.xlu0 %7878
  %7882 = vset.pattern.permute.xlu0 0
  %7883 = vperm.xlu0 %7882, %v7718
  %v7884 = vpop.permute.xlu0 %7883
  %7887 = vset.pattern.permute.xlu0 0
  %7888 = vperm.xlu0 %7887, %v7721
  %v7889 = vpop.permute.xlu0 %7888
  %7892 = vset.pattern.permute.xlu0 0
  %7893 = vperm.xlu0 %7892, %v7724
  %v7894 = vpop.permute.xlu0 %7893
  %7897 = vset.pattern.permute.xlu0 0
  %7898 = vperm.xlu0 %7897, %v7727
  %v7899 = vpop.permute.xlu0 %7898
  %7902 = vset.pattern.permute.xlu0 0
  %7903 = vperm.xlu0 %7902, %v7730
  %v7904 = vpop.permute.xlu0 %7903
  %7907 = vset.pattern.permute.xlu0 0
  %7908 = vperm.xlu0 %7907, %v7733
  %v7909 = vpop.permute.xlu0 %7908
  %7912 = vset.pattern.permute.xlu0 0
  %7913 = vperm.xlu0 %7912, %v7736
  %v7914 = vpop.permute.xlu0 %7913
  %7917 = vset.pattern.permute.xlu0 0
  %7918 = vperm.xlu0 %7917, %v7739
  %v7919 = vpop.permute.xlu0 %7918
  %v7921 = vmul.f32 %v7744, %v162
  %v7922 = vmul.f32 %v7749, %v163
  %v7923 = vmul.f32 %v7754, %v164
  %v7924 = vmul.f32 %v7759, %v165
  %v7925 = vmul.f32 %v7764, %v166
  %v7926 = vmul.f32 %v7769, %v167
  %v7927 = vmul.f32 %v7774, %v168
  %v7928 = vmul.f32 %v7779, %v169
  %v7929 = vmul.f32 %v7784, %v170
  %v7930 = vmul.f32 %v7789, %v171
  %v7931 = vmul.f32 %v7794, %v172
  %v7932 = vmul.f32 %v7799, %v173
  %v7933 = vmul.f32 %v7804, %v174
  %v7934 = vmul.f32 %v7809, %v175
  %v7935 = vmul.f32 %v7814, %v176
  %v7936 = vmul.f32 %v7819, %v177
  %v7937 = vmul.f32 %v7824, %v178
  %v7938 = vmul.f32 %v7829, %v179
  %v7939 = vmul.f32 %v7834, %v180
  %v7940 = vmul.f32 %v7839, %v181
  %v7941 = vmul.f32 %v7844, %v182
  %v7942 = vmul.f32 %v7849, %v183
  %v7943 = vmul.f32 %v7854, %v184
  %v7944 = vmul.f32 %v7859, %v185
  %v7945 = vmul.f32 %v7864, %v186
  %v7946 = vmul.f32 %v7869, %v187
  %v7947 = vmul.f32 %v7874, %v188
  %v7948 = vmul.f32 %v7879, %v189
  %v7949 = vmul.f32 %v7884, %v190
  %v7950 = vmul.f32 %v7889, %v191
  %v7951 = vmul.f32 %v7894, %v192
  %v7952 = vmul.f32 %v7899, %v193
  %v7953 = vmul.f32 %v7904, %v194
  %v7954 = vmul.f32 %v7909, %v195
  %v7955 = vmul.f32 %v7914, %v196
  %v7956 = vmul.f32 %v7919, %v197
  %vm7957 = vcmask 244736
  %v7959 = vsel %vm7957, %v204, 0
  %v7962 = vsel %vm7957, %v207, 0
  %v7965 = vsel %vm1140, %v7956, 0
  %7967 = vmatpush.msra.mxu0 %v7936
  %7968 = vmatpush.msra.mxu0 %v7935
  %7969 = vmatpush.msra.mxu0 %v7934
  %7970 = vmatpush.msra.mxu0 %v7933
  %7971 = vmatpush.msra.mxu0 %v7932
  %7972 = vmatpush.msra.mxu0 %v7931
  %7973 = vmatpush.msra.mxu0 %v7930
  %7974 = vmatpush.msra.mxu0 %v7929
  %7975 = vmatpush.msra.mxu0 %v7928
  %7976 = vmatpush.msra.mxu0 %v7927
  %7977 = vmatpush.msra.mxu0 %v7926
  %7978 = vmatpush.msra.mxu0 %v7925
  %7979 = vmatpush.msra.mxu0 %v7924
  %7980 = vmatpush.msra.mxu0 %v7923
  %7981 = vmatpush.msra.mxu0 %v7922
  %7982 = vmatpush.msra.mxu0 %v7921
  %7983 = vmatmul.f32.gmra.mxu0 %v202
  %v7984 = vpop.f32.mrf.mxu0
  %v7985 = vadd.f32 0.0, %v7984
  %7986 = vmatmul.f32.gmra.mxu0 %v205
  %v7987 = vpop.f32.mrf.mxu0
  %v7988 = vadd.f32 0.0, %v7987
  %7989 = vdwg.mxu0
  %7990 = vmatpush.msra.mxu0 %v7952
  %7991 = vmatpush.msra.mxu0 %v7951
  %7992 = vmatpush.msra.mxu0 %v7950
  %7993 = vmatpush.msra.mxu0 %v7949
  %7994 = vmatpush.msra.mxu0 %v7948
  %7995 = vmatpush.msra.mxu0 %v7947
  %7996 = vmatpush.msra.mxu0 %v7946
  %7997 = vmatpush.msra.mxu0 %v7945
  %7998 = vmatpush.msra.mxu0 %v7944
  %7999 = vmatpush.msra.mxu0 %v7943
  %8000 = vmatpush.msra.mxu0 %v7942
  %8001 = vmatpush.msra.mxu0 %v7941
  %8002 = vmatpush.msra.mxu0 %v7940
  %8003 = vmatpush.msra.mxu0 %v7939
  %8004 = vmatpush.msra.mxu0 %v7938
  %8005 = vmatpush.msra.mxu0 %v7937
  %8006 = vmatmul.f32.gmra.mxu0 %v203
  %v8007 = vpop.f32.mrf.mxu0
  %v8008 = vadd.f32 %v7985, %v8007
  %8009 = vmatmul.f32.gmra.mxu0 %v206
  %v8010 = vpop.f32.mrf.mxu0
  %v8011 = vadd.f32 %v7988, %v8010
  %8012 = vdwg.mxu0
  %8013 = vmatpush.msra.mxu0 0.0
  %8014 = vmatpush.msra.mxu0 0.0
  %8015 = vmatpush.msra.mxu0 0.0
  %8016 = vmatpush.msra.mxu0 0.0
  %8017 = vmatpush.msra.mxu0 0.0
  %8018 = vmatpush.msra.mxu0 0.0
  %8019 = vmatpush.msra.mxu0 0.0
  %8020 = vmatpush.msra.mxu0 0.0
  %8021 = vmatpush.msra.mxu0 0.0
  %8022 = vmatpush.msra.mxu0 0.0
  %8023 = vmatpush.msra.mxu0 0.0
  %8024 = vmatpush.msra.mxu0 0.0
  %8025 = vmatpush.msra.mxu0 %v7965
  %8026 = vmatpush.msra.mxu0 %v7955
  %8027 = vmatpush.msra.mxu0 %v7954
  %8028 = vmatpush.msra.mxu0 %v7953
  %8029 = vmatmul.f32.gmra.mxu0 %v7959
  %v8030 = vpop.f32.mrf.mxu0
  %v8031 = vadd.f32 %v8008, %v8030
  %8032 = vmatmul.f32.gmra.mxu0 %v7962
  %v8033 = vpop.f32.mrf.mxu0
  %v8034 = vadd.f32 %v8011, %v8033
  %8035 = vdwg.mxu0
  %8036 = vset.pattern.permute.xlu0 1
  %8037 = vperm.xlu0 %8036, %v7634
  %v8038 = vpop.permute.xlu0 %8037
  %8040 = vset.pattern.permute.xlu0 1
  %8041 = vperm.xlu0 %8040, %v7637
  %v8042 = vpop.permute.xlu0 %8041
  %8044 = vset.pattern.permute.xlu0 1
  %8045 = vperm.xlu0 %8044, %v7640
  %v8046 = vpop.permute.xlu0 %8045
  %8048 = vset.pattern.permute.xlu0 1
  %8049 = vperm.xlu0 %8048, %v7643
  %v8050 = vpop.permute.xlu0 %8049
  %8052 = vset.pattern.permute.xlu0 1
  %8053 = vperm.xlu0 %8052, %v7646
  %v8054 = vpop.permute.xlu0 %8053
  %8056 = vset.pattern.permute.xlu0 1
  %8057 = vperm.xlu0 %8056, %v7649
  %v8058 = vpop.permute.xlu0 %8057
  %8060 = vset.pattern.permute.xlu0 1
  %8061 = vperm.xlu0 %8060, %v7652
  %v8062 = vpop.permute.xlu0 %8061
  %8064 = vset.pattern.permute.xlu0 1
  %8065 = vperm.xlu0 %8064, %v7655
  %v8066 = vpop.permute.xlu0 %8065
  %8068 = vset.pattern.permute.xlu0 1
  %8069 = vperm.xlu0 %8068, %v7658
  %v8070 = vpop.permute.xlu0 %8069
  %8072 = vset.pattern.permute.xlu0 1
  %8073 = vperm.xlu0 %8072, %v7661
  %v8074 = vpop.permute.xlu0 %8073
  %8076 = vset.pattern.permute.xlu0 1
  %8077 = vperm.xlu0 %8076, %v7664
  %v8078 = vpop.permute.xlu0 %8077
  %8080 = vset.pattern.permute.xlu0 1
  %8081 = vperm.xlu0 %8080, %v7667
  %v8082 = vpop.permute.xlu0 %8081
  %8084 = vset.pattern.permute.xlu0 1
  %8085 = vperm.xlu0 %8084, %v7670
  %v8086 = vpop.permute.xlu0 %8085
  %8088 = vset.pattern.permute.xlu0 1
  %8089 = vperm.xlu0 %8088, %v7673
  %v8090 = vpop.permute.xlu0 %8089
  %8092 = vset.pattern.permute.xlu0 1
  %8093 = vperm.xlu0 %8092, %v7676
  %v8094 = vpop.permute.xlu0 %8093
  %8096 = vset.pattern.permute.xlu0 1
  %8097 = vperm.xlu0 %8096, %v7679
  %v8098 = vpop.permute.xlu0 %8097
  %8100 = vset.pattern.permute.xlu0 1
  %8101 = vperm.xlu0 %8100, %v7682
  %v8102 = vpop.permute.xlu0 %8101
  %8104 = vset.pattern.permute.xlu0 1
  %8105 = vperm.xlu0 %8104, %v7685
  %v8106 = vpop.permute.xlu0 %8105
  %8108 = vset.pattern.permute.xlu0 1
  %8109 = vperm.xlu0 %8108, %v7688
  %v8110 = vpop.permute.xlu0 %8109
  %8112 = vset.pattern.permute.xlu0 1
  %8113 = vperm.xlu0 %8112, %v7691
  %v8114 = vpop.permute.xlu0 %8113
  %8116 = vset.pattern.permute.xlu0 1
  %8117 = vperm.xlu0 %8116, %v7694
  %v8118 = vpop.permute.xlu0 %8117
  %8120 = vset.pattern.permute.xlu0 1
  %8121 = vperm.xlu0 %8120, %v7697
  %v8122 = vpop.permute.xlu0 %8121
  %8124 = vset.pattern.permute.xlu0 1
  %8125 = vperm.xlu0 %8124, %v7700
  %v8126 = vpop.permute.xlu0 %8125
  %8128 = vset.pattern.permute.xlu0 1
  %8129 = vperm.xlu0 %8128, %v7703
  %v8130 = vpop.permute.xlu0 %8129
  %8132 = vset.pattern.permute.xlu0 1
  %8133 = vperm.xlu0 %8132, %v7706
  %v8134 = vpop.permute.xlu0 %8133
  %8136 = vset.pattern.permute.xlu0 1
  %8137 = vperm.xlu0 %8136, %v7709
  %v8138 = vpop.permute.xlu0 %8137
  %8140 = vset.pattern.permute.xlu0 1
  %8141 = vperm.xlu0 %8140, %v7712
  %v8142 = vpop.permute.xlu0 %8141
  %8144 = vset.pattern.permute.xlu0 1
  %8145 = vperm.xlu0 %8144, %v7715
  %v8146 = vpop.permute.xlu0 %8145
  %8148 = vset.pattern.permute.xlu0 1
  %8149 = vperm.xlu0 %8148, %v7718
  %v8150 = vpop.permute.xlu0 %8149
  %8152 = vset.pattern.permute.xlu0 1
  %8153 = vperm.xlu0 %8152, %v7721
  %v8154 = vpop.permute.xlu0 %8153
  %8156 = vset.pattern.permute.xlu0 1
  %8157 = vperm.xlu0 %8156, %v7724
  %v8158 = vpop.permute.xlu0 %8157
  %8160 = vset.pattern.permute.xlu0 1
  %8161 = vperm.xlu0 %8160, %v7727
  %v8162 = vpop.permute.xlu0 %8161
  %8164 = vset.pattern.permute.xlu0 1
  %8165 = vperm.xlu0 %8164, %v7730
  %v8166 = vpop.permute.xlu0 %8165
  %8168 = vset.pattern.permute.xlu0 1
  %8169 = vperm.xlu0 %8168, %v7733
  %v8170 = vpop.permute.xlu0 %8169
  %8172 = vset.pattern.permute.xlu0 1
  %8173 = vperm.xlu0 %8172, %v7736
  %v8174 = vpop.permute.xlu0 %8173
  %8176 = vset.pattern.permute.xlu0 1
  %8177 = vperm.xlu0 %8176, %v7739
  %v8178 = vpop.permute.xlu0 %8177
  %v8180 = vmul.f32 %v8038, %v162
  %v8181 = vmul.f32 %v8042, %v163
  %v8182 = vmul.f32 %v8046, %v164
  %v8183 = vmul.f32 %v8050, %v165
  %v8184 = vmul.f32 %v8054, %v166
  %v8185 = vmul.f32 %v8058, %v167
  %v8186 = vmul.f32 %v8062, %v168
  %v8187 = vmul.f32 %v8066, %v169
  %v8188 = vmul.f32 %v8070, %v170
  %v8189 = vmul.f32 %v8074, %v171
  %v8190 = vmul.f32 %v8078, %v172
  %v8191 = vmul.f32 %v8082, %v173
  %v8192 = vmul.f32 %v8086, %v174
  %v8193 = vmul.f32 %v8090, %v175
  %v8194 = vmul.f32 %v8094, %v176
  %v8195 = vmul.f32 %v8098, %v177
  %v8196 = vmul.f32 %v8102, %v178
  %v8197 = vmul.f32 %v8106, %v179
  %v8198 = vmul.f32 %v8110, %v180
  %v8199 = vmul.f32 %v8114, %v181
  %v8200 = vmul.f32 %v8118, %v182
  %v8201 = vmul.f32 %v8122, %v183
  %v8202 = vmul.f32 %v8126, %v184
  %v8203 = vmul.f32 %v8130, %v185
  %v8204 = vmul.f32 %v8134, %v186
  %v8205 = vmul.f32 %v8138, %v187
  %v8206 = vmul.f32 %v8142, %v188
  %v8207 = vmul.f32 %v8146, %v189
  %v8208 = vmul.f32 %v8150, %v190
  %v8209 = vmul.f32 %v8154, %v191
  %v8210 = vmul.f32 %v8158, %v192
  %v8211 = vmul.f32 %v8162, %v193
  %v8212 = vmul.f32 %v8166, %v194
  %v8213 = vmul.f32 %v8170, %v195
  %v8214 = vmul.f32 %v8174, %v196
  %v8215 = vmul.f32 %v8178, %v197
  %v8217 = vsel %vm1140, %v8215, 0
  %8219 = vmatpush.msra.mxu0 %v8195
  %8220 = vmatpush.msra.mxu0 %v8194
  %8221 = vmatpush.msra.mxu0 %v8193
  %8222 = vmatpush.msra.mxu0 %v8192
  %8223 = vmatpush.msra.mxu0 %v8191
  %8224 = vmatpush.msra.mxu0 %v8190
  %8225 = vmatpush.msra.mxu0 %v8189
  %8226 = vmatpush.msra.mxu0 %v8188
  %8227 = vmatpush.msra.mxu0 %v8187
  %8228 = vmatpush.msra.mxu0 %v8186
  %8229 = vmatpush.msra.mxu0 %v8185
  %8230 = vmatpush.msra.mxu0 %v8184
  %8231 = vmatpush.msra.mxu0 %v8183
  %8232 = vmatpush.msra.mxu0 %v8182
  %8233 = vmatpush.msra.mxu0 %v8181
  %8234 = vmatpush.msra.mxu0 %v8180
  %8235 = vmatmul.f32.gmra.mxu0 %v202
  %v8236 = vpop.f32.mrf.mxu0
  %v8237 = vadd.f32 0.0, %v8236
  %8238 = vmatmul.f32.gmra.mxu0 %v205
  %v8239 = vpop.f32.mrf.mxu0
  %v8240 = vadd.f32 0.0, %v8239
  %8241 = vdwg.mxu0
  %8242 = vmatpush.msra.mxu0 %v8211
  %8243 = vmatpush.msra.mxu0 %v8210
  %8244 = vmatpush.msra.mxu0 %v8209
  %8245 = vmatpush.msra.mxu0 %v8208
  %8246 = vmatpush.msra.mxu0 %v8207
  %8247 = vmatpush.msra.mxu0 %v8206
  %8248 = vmatpush.msra.mxu0 %v8205
  %8249 = vmatpush.msra.mxu0 %v8204
  %8250 = vmatpush.msra.mxu0 %v8203
  %8251 = vmatpush.msra.mxu0 %v8202
  %8252 = vmatpush.msra.mxu0 %v8201
  %8253 = vmatpush.msra.mxu0 %v8200
  %8254 = vmatpush.msra.mxu0 %v8199
  %8255 = vmatpush.msra.mxu0 %v8198
  %8256 = vmatpush.msra.mxu0 %v8197
  %8257 = vmatpush.msra.mxu0 %v8196
  %8258 = vmatmul.f32.gmra.mxu0 %v203
  %v8259 = vpop.f32.mrf.mxu0
  %v8260 = vadd.f32 %v8237, %v8259
  %8261 = vmatmul.f32.gmra.mxu0 %v206
  %v8262 = vpop.f32.mrf.mxu0
  %v8263 = vadd.f32 %v8240, %v8262
  %8264 = vdwg.mxu0
  %8265 = vmatpush.msra.mxu0 0.0
  %8266 = vmatpush.msra.mxu0 0.0
  %8267 = vmatpush.msra.mxu0 0.0
  %8268 = vmatpush.msra.mxu0 0.0
  %8269 = vmatpush.msra.mxu0 0.0
  %8270 = vmatpush.msra.mxu0 0.0
  %8271 = vmatpush.msra.mxu0 0.0
  %8272 = vmatpush.msra.mxu0 0.0
  %8273 = vmatpush.msra.mxu0 0.0
  %8274 = vmatpush.msra.mxu0 0.0
  %8275 = vmatpush.msra.mxu0 0.0
  %8276 = vmatpush.msra.mxu0 0.0
  %8277 = vmatpush.msra.mxu0 %v8217
  %8278 = vmatpush.msra.mxu0 %v8214
  %8279 = vmatpush.msra.mxu0 %v8213
  %8280 = vmatpush.msra.mxu0 %v8212
  %8281 = vmatmul.f32.gmra.mxu0 %v7959
  %v8282 = vpop.f32.mrf.mxu0
  %v8283 = vadd.f32 %v8260, %v8282
  %8284 = vmatmul.f32.gmra.mxu0 %v7962
  %v8285 = vpop.f32.mrf.mxu0
  %v8286 = vadd.f32 %v8263, %v8285
  %8287 = vdwg.mxu0
  %8290 = vrot.lane.b32.xlu0 %v8283, 16
  %v8291 = vpop.permute.xlu0 %8290
  %8292 = vrot.lane.b32.xlu0 %v8286, 16
  %v8293 = vpop.permute.xlu0 %8292
  %v8296 = vsel %vm401, %v8031, %v8291
  %v8297 = vsel %vm401, %v8034, %v8293
  %v8298 = vld [vmem:[%s2 + $0x6] ss:$0 sm:$0xff]
  %8300 = vset.pattern.permute.xlu0 0
  %8301 = vperm.xlu0 %8300, %v8298
  %v8302 = vpop.permute.xlu0 %8301
  %v8304 = vadd.f32 %v8296, %v8302
  %v8305 = vadd.f32 %v8297, %v8302
  %v8306 = vmax.f32 %v8304, 0.0
  %v8307 = vmax.f32 %v8305, 0.0
  %8308 = vst.msk [vmem:[%s15] sm:$0xff] %vm223, %v8306
  %8309 = vst.msk [vmem:[%s15 + $0x8] sm:$0xff] %vm223, %v8307
  // Predicated region
  $region62: #{decoder_forward.1} parent=0 // pred_check
    _
  $region63: #{decoder_forward.1} parent=0 // pred_check_branch
    %8311 = sbr.rel (0) target = $region65
  $region64: #{decoder_forward.1} parent=0 // pred_region
    _
  $region65: #{decoder_forward.1} parent=0 // pred_fallthru
    _
  // Predicated region
  $region66: #{decoder_forward.1} parent=0 // pred_check
    _
  $region67: #{decoder_forward.1} parent=0 // pred_check_branch
    %8313 = sbr.rel (0) target = $region69
  $region68: #{decoder_forward.1} parent=0 // pred_region
    _
  $region69: #{decoder_forward.1} parent=0 // pred_fallthru
    _

</llo_original>
